<compile_context>
chip_gen: v7x
topology: tpu7x:2x2x1
jax: 0.10.0
libtpu: 0.0.40
codegen_flags: <defaults>
</compile_context>

<pallas_src>
import functools

import jax
import jax.numpy as jnp
import numpy as np
from jax import lax
from jax.experimental import pallas as pl
from jax.experimental.pallas import tpu as pltpu


_MODE_STACKS = {"SQT": (2, 3), "SQT_X": (1, 3), "SQT_RW": (3, 3), "R": (2, 1)}

# Fixed order of the (14, H, H) row-helper stack (see _row_helpers).
(_SD,                               # shift rows down by 1 (top row -> 0)
 _SU_H, _SU_H2, _SU_H4, _SU_H8,     # shift rows up by 1, masked to height h
 _RP_H, _RP_H2, _RP_H4,             # 2x row mean-pool (x0.5), from height h
 _E_H8, _E_H4, _E_H2,               # place row i at row 2i   (h real rows)
 _O_H8, _O_H4, _O_H2) = range(14)   # place row i at row 2i+1 (h real rows)


# ----------------------------------------------------------------------------
# Fused U-Net kernel: one batch element per grid step, everything in VMEM.
# ----------------------------------------------------------------------------
def _unet_kernel(x_ref, hm_ref,
                 w1_ref, b1_ref, w2_ref, w3_ref, w4_ref,
                 u4w_ref, u4b_ref,
                 u3wu_ref, u3ws_ref, u3b_ref,
                 u2wu_ref, u2ws_ref, u2b_ref,
                 u1wu_ref, u1ws_ref, u1b_ref,
                 o_ref, *, mode):
    f32 = jnp.float32
    cdt = w1_ref.dtype                       # MXU operand dtype (f32 or bf16)

    def band_mm(a, w):                       # conv/deconv matmul, f32 accum
        return jnp.dot(a.astype(cdt), w, preferred_element_type=f32)

    def row_mm(h, a):                        # exact {0,0.5,1} row mixing
        return jnp.dot(h, a, preferred_element_type=f32)

    relu = lambda v: jnp.maximum(v, 0.0)
    mid_act = relu if mode == "R" else jnp.tanh

    sd = hm_ref[_SD]
    su = [hm_ref[_SU_H], hm_ref[_SU_H2], hm_ref[_SU_H4], hm_ref[_SU_H8]]
    rp = [hm_ref[_RP_H], hm_ref[_RP_H2], hm_ref[_RP_H4]]
    ee = [hm_ref[_E_H8], hm_ref[_E_H4], hm_ref[_E_H2]]
    oo = [hm_ref[_O_H8], hm_ref[_O_H4], hm_ref[_O_H2]]

    def conv3x3(x, w_ref, su_h, b=None):
        # y[i] = shift_down(x)[i] @ M0 + x[i] @ M1 + shift_up(x)[i] @ M2 (+ b)
        acc = (band_mm(row_mm(sd, x), w_ref[0])
               + band_mm(x, w_ref[1])
               + band_mm(row_mm(su_h, x), w_ref[2]))
        return acc if b is None else acc + b

    def up2x(a, s, wu_ref, ws_ref, b_ref, su_h, e_h, o_h, act):
        # ConvTranspose2d(3, stride=2, pad=1, out_pad=1) as a sub-pixel conv:
        # even output rows read input row i only; odd rows read rows i, i+1.
        # Skip connection handled as a second weight group (no concat needed).
        b = b_ref[...]
        ye = band_mm(a, wu_ref[0]) + b
        yo = band_mm(a, wu_ref[1]) + band_mm(row_mm(su_h, a), wu_ref[2]) + b
        if s is not None:
            ye = ye + band_mm(s, ws_ref[0])
            yo = yo + band_mm(s, ws_ref[1]) + band_mm(row_mm(su_h, s), ws_ref[2])
        return row_mm(e_h, act(ye)) + row_mm(o_h, act(yo))   # row interleave

    x = x_ref[0].astype(f32)                                       # (H, W*Cin0)
    out1 = relu(conv3x3(x, w1_ref, su[0], b1_ref[...]))            # height H
    out2 = relu(conv3x3(row_mm(rp[0], out1), w2_ref, su[1]))       # H/2 (W-pool folded)
    out3 = relu(conv3x3(row_mm(rp[1], out2), w3_ref, su[2]))       # H/4
    out4 = relu(conv3x3(row_mm(rp[2], out3), w4_ref, su[3]))       # H/8

    up = up2x(out4, None, u4w_ref, None, u4b_ref, su[3], ee[0], oo[0], relu)     # H/4
    up = up2x(up, out3, u3wu_ref, u3ws_ref, u3b_ref, su[2], ee[1], oo[1], relu)  # H/2
    up = up2x(up, out2, u2wu_ref, u2ws_ref, u2b_ref, su[1], ee[2], oo[2], mid_act)  # H

    # ConvTranspose2d(3, s=1, p=1) == flipped 3x3 conv, no activation.
    yf = (conv3x3(up, u1wu_ref, su[0], u1b_ref[...])
          + conv3x3(out1, u1ws_ref, su[0]))
    o_ref[0] = yf.astype(o_ref.dtype)


# ----------------------------------------------------------------------------
# Wrapper-side construction of the banded dense weights / row helpers.
# Dense layout convention: D[i, j*C + c] == t[i, j, c] for an (H, W, C) tensor.
# ----------------------------------------------------------------------------
def _conv_band(w_oihw, width):
    """3x3 / stride-1 / pad-1 conv -> (3, width*Cin, width*Cout) band matrices.
    y[i] = shift_down(X)[i] @ M[0] + X[i] @ M[1] + shift_up(X)[i] @ M[2]."""
    cout, cin = w_oihw.shape[0], w_oihw.shape[1]
    wt = jnp.transpose(w_oihw, (2, 3, 1, 0)).astype(jnp.float32)   # (kh,kw,ci,co)
    mats = []
    for kh in range(3):
        m = jnp.zeros((width * cin, width * cout), jnp.float32)
        for kw in range(3):
            # input column j+kw-1 contributes to output column j
            sel = np.eye(width, k=1 - kw, dtype=np.float32)
            m = m + jnp.kron(jnp.asarray(sel), wt[kh, kw])
        mats.append(m)
    return jnp.stack(mats, axis=0)


def _up_band(w_iohw, width):
    """ConvTranspose2d(3, stride=2, pad=1, output_padding=1), one input-channel
    group -> (3, width*Cin, 2*width*Cout) = [Ne, No0, No1]:
        Y_even[i] = X[i] @ Ne
        Y_odd[i]  = X[i] @ No0 + X[i+1] @ No1     (rows beyond the input are 0)
    Output dense columns are (2j+s)*Cout + co."""
    cin, cout = w_iohw.shape[0], w_iohw.shape[1]
    w = w_iohw.astype(jnp.float32)

    def sel(dx, s):
        t = np.zeros((width, 2 * width), np.float32)
        for j in range(width):
            if 0 <= j + dx < width:
                t[j + dx, 2 * j + s] = 1.0
        return jnp.asarray(t)

    def band(taps):
        m = jnp.zeros((width * cin, 2 * width * cout), jnp.float32)
        for dx, s, kh, kw in taps:
            m = m + jnp.kron(sel(dx, s), w[:, :, kh, kw])
        return m

    ne = band([(0, 0, 1, 1), (0, 1, 1, 2), (1, 1, 1, 0)])
    no0 = band([(0, 0, 2, 1), (0, 1, 2, 2), (1, 1, 2, 0)])
    no1 = band([(0, 0, 0, 1), (0, 1, 0, 2), (1, 1, 0, 0)])
    return jnp.stack([ne, no0, no1], axis=0)


def _col_pool(width_in, chan):
    """(width_in*chan, (width_in//2)*chan): 2x mean-pool along W (incl. x0.5)."""
    t = np.kron(np.eye(width_in // 2, dtype=np.float32),
                np.ones((2, 1), np.float32))
    return jnp.asarray(0.5 * np.kron(t, np.eye(chan, dtype=np.float32)))


def _row_helpers(H):
    """(14, H, H) stack of exact row-mixing matrices (order: _SD .. _O_H2)."""
    def shift_down():
        m = np.zeros((H, H), np.float32)
        for i in range(1, H):
            m[i, i - 1] = 1.0
        return m

    def shift_up(h):
        m = np.zeros((H, H), np.float32)
        for i in range(h - 1):
            m[i, i + 1] = 1.0
        return m

    def row_pool(h):
        m = np.zeros((H, H), np.float32)
        for i in range(h // 2):
            m[i, 2 * i] = 0.5
            m[i, 2 * i + 1] = 0.5
        return m

    def even(h):
        m = np.zeros((H, H), np.float32)
        for i in range(h):
            m[2 * i, i] = 1.0
        return m

    def odd(h):
        m = np.zeros((H, H), np.float32)
        for i in range(h):
            m[2 * i + 1, i] = 1.0
        return m

    mats = [shift_down(),
            shift_up(H), shift_up(H // 2), shift_up(H // 4), shift_up(H // 8),
            row_pool(H), row_pool(H // 2), row_pool(H // 4),
            even(H // 8), even(H // 4), even(H // 2),
            odd(H // 8), odd(H // 4), odd(H // 2)]
    return jnp.asarray(np.stack(mats, axis=0))


# ----------------------------------------------------------------------------
# Conv_U_SQT parameters + forward
# ----------------------------------------------------------------------------
def init_conv_u_sqt_params(key, in_chan, dim, out_layers, in_layers, mode="SQT",
                           zero_init_out=True):
    in_stacks, out_stacks = _MODE_STACKS[mode]
    ks = jax.random.split(key, 13)

    def w(k, shape, scale=0.1):
        return scale * jax.random.normal(k, shape, jnp.float32)

    up1_shape = (out_layers, 2 * dim, out_stacks * in_chan, 3, 3)
    p = {
        "conv1_w": w(ks[0], (in_layers, dim, in_stacks * in_chan, 3, 3)),
        "conv1_b": w(ks[1], (in_layers, dim)),
        "conv2_w": w(ks[2], (2 * dim, dim, 3, 3)),
        "conv3_w": w(ks[3], (4 * dim, 2 * dim, 3, 3)),
        "conv4_w": w(ks[4], (8 * dim, 4 * dim, 3, 3)),
        "convup4_w": w(ks[5], (8 * dim, 4 * dim, 3, 3)),
        "convup4_b": w(ks[6], (4 * dim,)),
        "convup3_w": w(ks[7], (8 * dim, 2 * dim, 3, 3)),
        "convup3_b": w(ks[8], (2 * dim,)),
        "convup2_w": w(ks[9], (4 * dim, dim, 3, 3)),
        "convup2_b": w(ks[10], (dim,)),
        "convup1_w": (jnp.zeros(up1_shape, jnp.float32) if zero_init_out
                      else w(ks[11], up1_shape)),
        "convup1_b": w(ks[12], (out_layers, out_stacks * in_chan)),
    }
    return p, in_stacks, out_stacks


def conv_u_sqt_forward(params, in_list_nchw, o, i, mode="SQT",
                       compute_dtype=jnp.bfloat16):
    """Mirrors Conv_U_SQT.forward(in_list, o, i) with scalar (int) o and i.
    Returns a list of out_stacks NCHW chunks (single array for mode='R')."""
    _, out_stacks = _MODE_STACKS[mode]
    x = jnp.concatenate(in_list_nchw, axis=1)                  # (N, Cin0, H, W)
    N, cin0, H, W = x.shape
    assert H % 8 == 0 and W % 8 == 0, "needs 3 levels of 2x2 pooling"
    assert params["conv1_w"].shape[2] == cin0, "in_list does not match mode"

    dim = params["conv1_w"].shape[1]
    out_ch = params["convup1_b"].shape[-1]
    f32 = jnp.float32
    cdt = compute_dtype

    # ---- banded dense weights (tiny wrapper-side tensors) -------------------
    w1 = _conv_band(params["conv1_w"][i], W)
    b1 = jnp.tile(params["conv1_b"][i], W)[None, :].astype(f32)

    def pooled_band(w_oihw, w_half, chan_in):
        band = _conv_band(w_oihw, w_half)
        cp = _col_pool(2 * w_half, chan_in)                    # fold W-pool in
        return jnp.einsum("ij,kjl->kil", cp, band)

    w2 = pooled_band(params["conv2_w"], W // 2, dim)
    w3 = pooled_band(params["conv3_w"], W // 4, 2 * dim)
    w4 = pooled_band(params["conv4_w"], W // 8, 4 * dim)

    u4w = _up_band(params["convup4_w"], W // 8)
    u4b = jnp.tile(params["convup4_b"], W // 4)[None, :].astype(f32)
    u3wu = _up_band(params["convup3_w"][:4 * dim], W // 4)     # upsampled group
    u3ws = _up_band(params["convup3_w"][4 * dim:], W // 4)     # skip (out3)
    u3b = jnp.tile(params["convup3_b"], W // 2)[None, :].astype(f32)
    u2wu = _up_band(params["convup2_w"][:2 * dim], W // 2)
    u2ws = _up_band(params["convup2_w"][2 * dim:], W // 2)     # skip (out2)
    u2b = jnp.tile(params["convup2_b"], W)[None, :].astype(f32)
    # ConvTranspose2d(3, s=1, p=1) == Conv2d with flipped, channel-swapped w.
    w1eq = jnp.transpose(jnp.flip(params["convup1_w"][o], axis=(2, 3)),
                         (1, 0, 2, 3))                         # (out_ch, 2*dim, 3, 3)
    u1wu = _conv_band(w1eq[:, :dim], W)
    u1ws = _conv_band(w1eq[:, dim:], W)                        # skip (out1)
    u1b = jnp.tile(params["convup1_b"][o], W)[None, :].astype(f32)

    hm = _row_helpers(H)

    ops = [w1.astype(cdt), b1, w2.astype(cdt), w3.astype(cdt), w4.astype(cdt),
           u4w.astype(cdt), u4b,
           u3wu.astype(cdt), u3ws.astype(cdt), u3b,
           u2wu.astype(cdt), u2ws.astype(cdt), u2b,
           u1wu.astype(cdt), u1ws.astype(cdt), u1b]

    # ---- lane-dense activations: (N, H, W*C) in HBM, one fused pallas_call --
    x_dense = jnp.transpose(x, (0, 2, 3, 1)).reshape(N, H, W * cin0)

    def whole(a):
        shp = a.shape
        return pl.BlockSpec(shp, lambda n: (0,) * len(shp))

    y = pl.pallas_call(
        functools.partial(_unet_kernel, mode=mode),
        out_shape=jax.ShapeDtypeStruct((N, H, W * out_ch), f32),
        grid=(N,),
        in_specs=[pl.BlockSpec((1, H, W * cin0), lambda n: (n, 0, 0)),
                  whole(hm)] + [whole(a) for a in ops],
        out_specs=pl.BlockSpec((1, H, W * out_ch), lambda n: (n, 0, 0)),
        compiler_params=pltpu.CompilerParams(
            dimension_semantics=("parallel",)),
    )(x_dense, hm, *ops)

    out = jnp.transpose(y.reshape(N, H, W, out_ch), (0, 3, 1, 2))  # -> NCHW
    if out_stacks > 1:
        return list(jnp.split(out, out_stacks, axis=1))
    return out


# ----------------------------------------------------------------------------
# Pure-JAX (XLA) reference for the self-test
# ----------------------------------------------------------------------------
def _ref_conv(x, w, b, pad):
    y = lax.conv_general_dilated(x, w, (1, 1), ((pad, pad), (pad, pad)),
                                 dimension_numbers=("NCHW", "OIHW", "NCHW"),
                                 precision=lax.Precision.HIGHEST)
    return y if b is None else y + b[None, :, None, None]


def _ref_convT_s2(x, wt, b):
    w_eq = jnp.transpose(jnp.flip(wt, (2, 3)), (1, 0, 2, 3))
    y = lax.conv_general_dilated(x, w_eq, (1, 1), ((1, 2), (1, 2)),
                                 lhs_dilation=(2, 2),
                                 dimension_numbers=("NCHW", "OIHW", "NCHW"),
                                 precision=lax.Precision.HIGHEST)
    return y + b[None, :, None, None]


def _ref_convT_s1(x, wt, b):
    w_eq = jnp.transpose(jnp.flip(wt, (2, 3)), (1, 0, 2, 3))
    return _ref_conv(x, w_eq, b, 1)


def _ref_pool(x):
    N, C, H, W = x.shape
    return x.reshape(N, C, H // 2, 2, W // 2, 2).mean(axis=(3, 5))


def conv_u_sqt_reference(params, in_list_nchw, o, i, mode="SQT"):
    _, out_stacks = _MODE_STACKS[mode]
    relu = lambda v: jnp.maximum(v, 0.0)
    x = jnp.concatenate(in_list_nchw, axis=1)
    out1 = relu(_ref_conv(x, params["conv1_w"][i], params["conv1_b"][i], 1))
    out2 = relu(_ref_conv(_ref_pool(out1), params["conv2_w"], None, 1))
    out3 = relu(_ref_conv(_ref_pool(out2), params["conv3_w"], None, 1))
    out4 = relu(_ref_conv(_ref_pool(out3), params["conv4_w"], None, 1))
    out = relu(_ref_convT_s2(out4, params["convup4_w"], params["convup4_b"]))
    out = relu(_ref_convT_s2(jnp.concatenate([out, out3], axis=1),
                             params["convup3_w"], params["convup3_b"]))
    up = _ref_convT_s2(jnp.concatenate([out, out2], axis=1),
                       params["convup2_w"], params["convup2_b"])
    out = relu(up) if mode == "R" else jnp.tanh(up)
    out = _ref_convT_s1(jnp.concatenate([out, out1], axis=1),
                        params["convup1_w"][o], params["convup1_b"][o])
    if out_stacks > 1:
        return list(jnp.split(out, out_stacks, axis=1))
    return out


# ----------------------------------------------------------------------------
if __name__ == "__main__":
    # mode='SQT' -> in_stacks=2: in_list has 2 tensors of (N, in_chan, H, W).
    N, in_chan, dim, H, W = 2, 4, 8, 16, 16
    in_layers, out_layers = 2, 2

    key = jax.random.PRNGKey(0)
    kp, k1, k2 = jax.random.split(key, 3)
    # zero_init_out=False so the final layer is non-trivial for the numerical
    # check (the PyTorch module zero-inits convup1; pass True to match that).
    params, in_stacks, out_stacks = init_conv_u_sqt_params(
        kp, in_chan, dim, out_layers, in_layers, mode="SQT", zero_init_out=False)

    x1 = jax.random.normal(k1, (N, in_chan, H, W), jnp.float32)
    x2 = jax.random.normal(k2, (N, in_chan, H, W), jnp.float32)

    fwd_f32 = jax.jit(lambda p, a, b: conv_u_sqt_forward(
        p, [a, b], o=0, i=1, mode="SQT", compute_dtype=jnp.float32))
    fwd_bf16 = jax.jit(lambda p, a, b: conv_u_sqt_forward(
        p, [a, b], o=0, i=1, mode="SQT", compute_dtype=jnp.bfloat16))
    ref_fn = jax.jit(lambda p, a, b: conv_u_sqt_reference(
        p, [a, b], o=0, i=1, mode="SQT"))

    out_f32 = fwd_f32(params, x1, x2)
    out_bf16 = fwd_bf16(params, x1, x2)
    ref = ref_fn(params, x1, x2)
    for t in list(out_f32) + list(out_bf16) + list(ref):
        jax.block_until_ready(t)

    assert len(out_f32) == out_stacks
    for a, b, c in zip(out_f32, out_bf16, ref):
        assert a.shape == (N, in_chan, H, W)
        # f32 path: tolerance allows for MXU multi-pass f32 matmul behaviour
        # while still catching any structural (band-construction) bug.
        np.testing.assert_allclose(np.asarray(a), np.asarray(c),
                                   rtol=5e-2, atol=5e-2)
        # bf16 MXU-operand path: loose check + finiteness.
        assert np.all(np.isfinite(np.asarray(b)))
        np.testing.assert_allclose(np.asarray(b), np.asarray(c),
                                   rtol=0.0, atol=0.3)

    print("KERNEL_OK")
</pallas_src>

<mosaic_0001>
module attributes {stable_mosaic.version = 11 : i64} {
  func.func @_unet_kernel(%arg0: i32, %arg1: memref<1x16x128xf32, #tpu.memory_space<vmem>>, %arg2: memref<14x16x16xf32, #tpu.memory_space<vmem>>, %arg3: memref<3x128x128xf32, #tpu.memory_space<vmem>>, %arg4: memref<1x128xf32, #tpu.memory_space<vmem>>, %arg5: memref<3x128x128xf32, #tpu.memory_space<vmem>>, %arg6: memref<3x128x128xf32, #tpu.memory_space<vmem>>, %arg7: memref<3x128x128xf32, #tpu.memory_space<vmem>>, %arg8: memref<3x128x128xf32, #tpu.memory_space<vmem>>, %arg9: memref<1x128xf32, #tpu.memory_space<vmem>>, %arg10: memref<3x128x128xf32, #tpu.memory_space<vmem>>, %arg11: memref<3x128x128xf32, #tpu.memory_space<vmem>>, %arg12: memref<1x128xf32, #tpu.memory_space<vmem>>, %arg13: memref<3x128x128xf32, #tpu.memory_space<vmem>>, %arg14: memref<3x128x128xf32, #tpu.memory_space<vmem>>, %arg15: memref<1x128xf32, #tpu.memory_space<vmem>>, %arg16: memref<3x128x192xf32, #tpu.memory_space<vmem>>, %arg17: memref<3x128x192xf32, #tpu.memory_space<vmem>>, %arg18: memref<1x192xf32, #tpu.memory_space<vmem>>, %arg19: memref<1x16x192xf32, #tpu.memory_space<vmem>>) attributes {dimension_semantics = [#tpu.dimension_semantics<parallel>], iteration_bounds = array<i64: 2>, scalar_prefetch = 0 : i64, scratch_operands = 0 : i64, tpu.core_type = #tpu.core_type<tc>, window_params = [{transform_indices = @transform_0, window_bounds = array<i64: 1, 16, 128>}, {pipeline_mode = #tpu.pipeline_mode<synchronous>, transform_indices = @transform_1, window_bounds = array<i64: 14, 16, 16>}, {pipeline_mode = #tpu.pipeline_mode<synchronous>, transform_indices = @transform_2, window_bounds = array<i64: 3, 128, 128>}, {pipeline_mode = #tpu.pipeline_mode<synchronous>, transform_indices = @transform_3, window_bounds = array<i64: 1, 128>}, {pipeline_mode = #tpu.pipeline_mode<synchronous>, transform_indices = @transform_4, window_bounds = array<i64: 3, 128, 128>}, {pipeline_mode = #tpu.pipeline_mode<synchronous>, transform_indices = @transform_5, window_bounds = array<i64: 3, 128, 128>}, {pipeline_mode = #tpu.pipeline_mode<synchronous>, transform_indices = @transform_6, window_bounds = array<i64: 3, 128, 128>}, {pipeline_mode = #tpu.pipeline_mode<synchronous>, transform_indices = @transform_7, window_bounds = array<i64: 3, 128, 128>}, {pipeline_mode = #tpu.pipeline_mode<synchronous>, transform_indices = @transform_8, window_bounds = array<i64: 1, 128>}, {pipeline_mode = #tpu.pipeline_mode<synchronous>, transform_indices = @transform_9, window_bounds = array<i64: 3, 128, 128>}, {pipeline_mode = #tpu.pipeline_mode<synchronous>, transform_indices = @transform_10, window_bounds = array<i64: 3, 128, 128>}, {pipeline_mode = #tpu.pipeline_mode<synchronous>, transform_indices = @transform_11, window_bounds = array<i64: 1, 128>}, {pipeline_mode = #tpu.pipeline_mode<synchronous>, transform_indices = @transform_12, window_bounds = array<i64: 3, 128, 128>}, {pipeline_mode = #tpu.pipeline_mode<synchronous>, transform_indices = @transform_13, window_bounds = array<i64: 3, 128, 128>}, {pipeline_mode = #tpu.pipeline_mode<synchronous>, transform_indices = @transform_14, window_bounds = array<i64: 1, 128>}, {pipeline_mode = #tpu.pipeline_mode<synchronous>, transform_indices = @transform_15, window_bounds = array<i64: 3, 128, 192>}, {pipeline_mode = #tpu.pipeline_mode<synchronous>, transform_indices = @transform_16, window_bounds = array<i64: 3, 128, 192>}, {pipeline_mode = #tpu.pipeline_mode<synchronous>, transform_indices = @transform_17, window_bounds = array<i64: 1, 192>}, {transform_indices = @transform_18, window_bounds = array<i64: 1, 16, 192>}]} {
    %c0 = arith.constant 0 : index
    %c0_0 = arith.constant 0 : index
    %c0_1 = arith.constant 0 : index
    %0 = vector.load %arg2[%c0, %c0_0, %c0_1] : memref<14x16x16xf32, #tpu.memory_space<vmem>>, vector<1x16x16xf32>
    %1 = vector.shape_cast %0 : vector<1x16x16xf32> to vector<16x16xf32>
    %c1 = arith.constant 1 : index
    %c0_2 = arith.constant 0 : index
    %c0_3 = arith.constant 0 : index
    %2 = vector.load %arg2[%c1, %c0_2, %c0_3] : memref<14x16x16xf32, #tpu.memory_space<vmem>>, vector<1x16x16xf32>
    %3 = vector.shape_cast %2 : vector<1x16x16xf32> to vector<16x16xf32>
    %c2 = arith.constant 2 : index
    %c0_4 = arith.constant 0 : index
    %c0_5 = arith.constant 0 : index
    %4 = vector.load %arg2[%c2, %c0_4, %c0_5] : memref<14x16x16xf32, #tpu.memory_space<vmem>>, vector<1x16x16xf32>
    %5 = vector.shape_cast %4 : vector<1x16x16xf32> to vector<16x16xf32>
    %c3 = arith.constant 3 : index
    %c0_6 = arith.constant 0 : index
    %c0_7 = arith.constant 0 : index
    %6 = vector.load %arg2[%c3, %c0_6, %c0_7] : memref<14x16x16xf32, #tpu.memory_space<vmem>>, vector<1x16x16xf32>
    %7 = vector.shape_cast %6 : vector<1x16x16xf32> to vector<16x16xf32>
    %c4 = arith.constant 4 : index
    %c0_8 = arith.constant 0 : index
    %c0_9 = arith.constant 0 : index
    %8 = vector.load %arg2[%c4, %c0_8, %c0_9] : memref<14x16x16xf32, #tpu.memory_space<vmem>>, vector<1x16x16xf32>
    %9 = vector.shape_cast %8 : vector<1x16x16xf32> to vector<16x16xf32>
    %c5 = arith.constant 5 : index
    %c0_10 = arith.constant 0 : index
    %c0_11 = arith.constant 0 : index
    %10 = vector.load %arg2[%c5, %c0_10, %c0_11] : memref<14x16x16xf32, #tpu.memory_space<vmem>>, vector<1x16x16xf32>
    %11 = vector.shape_cast %10 : vector<1x16x16xf32> to vector<16x16xf32>
    %c6 = arith.constant 6 : index
    %c0_12 = arith.constant 0 : index
    %c0_13 = arith.constant 0 : index
    %12 = vector.load %arg2[%c6, %c0_12, %c0_13] : memref<14x16x16xf32, #tpu.memory_space<vmem>>, vector<1x16x16xf32>
    %13 = vector.shape_cast %12 : vector<1x16x16xf32> to vector<16x16xf32>
    %c7 = arith.constant 7 : index
    %c0_14 = arith.constant 0 : index
    %c0_15 = arith.constant 0 : index
    %14 = vector.load %arg2[%c7, %c0_14, %c0_15] : memref<14x16x16xf32, #tpu.memory_space<vmem>>, vector<1x16x16xf32>
    %15 = vector.shape_cast %14 : vector<1x16x16xf32> to vector<16x16xf32>
    %c8 = arith.constant 8 : index
    %c0_16 = arith.constant 0 : index
    %c0_17 = arith.constant 0 : index
    %16 = vector.load %arg2[%c8, %c0_16, %c0_17] : memref<14x16x16xf32, #tpu.memory_space<vmem>>, vector<1x16x16xf32>
    %17 = vector.shape_cast %16 : vector<1x16x16xf32> to vector<16x16xf32>
    %c9 = arith.constant 9 : index
    %c0_18 = arith.constant 0 : index
    %c0_19 = arith.constant 0 : index
    %18 = vector.load %arg2[%c9, %c0_18, %c0_19] : memref<14x16x16xf32, #tpu.memory_space<vmem>>, vector<1x16x16xf32>
    %19 = vector.shape_cast %18 : vector<1x16x16xf32> to vector<16x16xf32>
    %c10 = arith.constant 10 : index
    %c0_20 = arith.constant 0 : index
    %c0_21 = arith.constant 0 : index
    %20 = vector.load %arg2[%c10, %c0_20, %c0_21] : memref<14x16x16xf32, #tpu.memory_space<vmem>>, vector<1x16x16xf32>
    %21 = vector.shape_cast %20 : vector<1x16x16xf32> to vector<16x16xf32>
    %c11 = arith.constant 11 : index
    %c0_22 = arith.constant 0 : index
    %c0_23 = arith.constant 0 : index
    %22 = vector.load %arg2[%c11, %c0_22, %c0_23] : memref<14x16x16xf32, #tpu.memory_space<vmem>>, vector<1x16x16xf32>
    %23 = vector.shape_cast %22 : vector<1x16x16xf32> to vector<16x16xf32>
    %c12 = arith.constant 12 : index
    %c0_24 = arith.constant 0 : index
    %c0_25 = arith.constant 0 : index
    %24 = vector.load %arg2[%c12, %c0_24, %c0_25] : memref<14x16x16xf32, #tpu.memory_space<vmem>>, vector<1x16x16xf32>
    %25 = vector.shape_cast %24 : vector<1x16x16xf32> to vector<16x16xf32>
    %c13 = arith.constant 13 : index
    %c0_26 = arith.constant 0 : index
    %c0_27 = arith.constant 0 : index
    %26 = vector.load %arg2[%c13, %c0_26, %c0_27] : memref<14x16x16xf32, #tpu.memory_space<vmem>>, vector<1x16x16xf32>
    %27 = vector.shape_cast %26 : vector<1x16x16xf32> to vector<16x16xf32>
    %c0_28 = arith.constant 0 : index
    %c0_29 = arith.constant 0 : index
    %c0_30 = arith.constant 0 : index
    %28 = vector.load %arg1[%c0_28, %c0_29, %c0_30] : memref<1x16x128xf32, #tpu.memory_space<vmem>>, vector<1x16x128xf32>
    %29 = vector.shape_cast %28 : vector<1x16x128xf32> to vector<16x128xf32>
    %c0_31 = arith.constant 0 : index
    %c0_32 = arith.constant 0 : index
    %30 = vector.load %arg4[%c0_31, %c0_32] : memref<1x128xf32, #tpu.memory_space<vmem>>, vector<1x128xf32>
    %cst = arith.constant dense<0.000000e+00> : vector<16x128xf32>
    %31 = tpu.matmul %1, %29, %cst {dimension_numbers = #tpu.dot_dimension_numbers<[1], [0], [0], [1], [0, 0, 1, 1], [], []>} : vector<16x16xf32>, vector<16x128xf32>, vector<16x128xf32> -> vector<16x128xf32>
    %c0_33 = arith.constant 0 : index
    %c0_34 = arith.constant 0 : index
    %c0_35 = arith.constant 0 : index
    %32 = vector.load %arg3[%c0_33, %c0_34, %c0_35] : memref<3x128x128xf32, #tpu.memory_space<vmem>>, vector<1x128x128xf32>
    %33 = vector.shape_cast %32 : vector<1x128x128xf32> to vector<128x128xf32>
    %cst_36 = arith.constant dense<0.000000e+00> : vector<16x128xf32>
    %34 = tpu.matmul %31, %33, %cst_36 {dimension_numbers = #tpu.dot_dimension_numbers<[1], [0], [0], [1], [0, 0, 1, 1], [], []>} : vector<16x128xf32>, vector<128x128xf32>, vector<16x128xf32> -> vector<16x128xf32>
    %c1_37 = arith.constant 1 : index
    %c0_38 = arith.constant 0 : index
    %c0_39 = arith.constant 0 : index
    %35 = vector.load %arg3[%c1_37, %c0_38, %c0_39] : memref<3x128x128xf32, #tpu.memory_space<vmem>>, vector<1x128x128xf32>
    %36 = vector.shape_cast %35 : vector<1x128x128xf32> to vector<128x128xf32>
    %cst_40 = arith.constant dense<0.000000e+00> : vector<16x128xf32>
    %37 = tpu.matmul %29, %36, %cst_40 {dimension_numbers = #tpu.dot_dimension_numbers<[1], [0], [0], [1], [0, 0, 1, 1], [], []>} : vector<16x128xf32>, vector<128x128xf32>, vector<16x128xf32> -> vector<16x128xf32>
    %38 = arith.addf %34, %37 : vector<16x128xf32>
    %cst_41 = arith.constant dense<0.000000e+00> : vector<16x128xf32>
    %39 = tpu.matmul %3, %29, %cst_41 {dimension_numbers = #tpu.dot_dimension_numbers<[1], [0], [0], [1], [0, 0, 1, 1], [], []>} : vector<16x16xf32>, vector<16x128xf32>, vector<16x128xf32> -> vector<16x128xf32>
    %c2_42 = arith.constant 2 : index
    %c0_43 = arith.constant 0 : index
    %c0_44 = arith.constant 0 : index
    %40 = vector.load %arg3[%c2_42, %c0_43, %c0_44] : memref<3x128x128xf32, #tpu.memory_space<vmem>>, vector<1x128x128xf32>
    %41 = vector.shape_cast %40 : vector<1x128x128xf32> to vector<128x128xf32>
    %cst_45 = arith.constant dense<0.000000e+00> : vector<16x128xf32>
    %42 = tpu.matmul %39, %41, %cst_45 {dimension_numbers = #tpu.dot_dimension_numbers<[1], [0], [0], [1], [0, 0, 1, 1], [], []>} : vector<16x128xf32>, vector<128x128xf32>, vector<16x128xf32> -> vector<16x128xf32>
    %43 = arith.addf %38, %42 : vector<16x128xf32>
    %44 = vector.broadcast %30 : vector<1x128xf32> to vector<16x128xf32>
    %45 = arith.addf %43, %44 : vector<16x128xf32>
    %cst_46 = arith.constant 0.000000e+00 : f32
    %46 = vector.broadcast %cst_46 : f32 to vector<16x128xf32>
    %47 = arith.maximumf %45, %46 : vector<16x128xf32>
    %cst_47 = arith.constant dense<0.000000e+00> : vector<16x128xf32>
    %48 = tpu.matmul %11, %47, %cst_47 {dimension_numbers = #tpu.dot_dimension_numbers<[1], [0], [0], [1], [0, 0, 1, 1], [], []>} : vector<16x16xf32>, vector<16x128xf32>, vector<16x128xf32> -> vector<16x128xf32>
    %cst_48 = arith.constant dense<0.000000e+00> : vector<16x128xf32>
    %49 = tpu.matmul %1, %48, %cst_48 {dimension_numbers = #tpu.dot_dimension_numbers<[1], [0], [0], [1], [0, 0, 1, 1], [], []>} : vector<16x16xf32>, vector<16x128xf32>, vector<16x128xf32> -> vector<16x128xf32>
    %c0_49 = arith.constant 0 : index
    %c0_50 = arith.constant 0 : index
    %c0_51 = arith.constant 0 : index
    %50 = vector.load %arg5[%c0_49, %c0_50, %c0_51] : memref<3x128x128xf32, #tpu.memory_space<vmem>>, vector<1x128x128xf32>
    %51 = vector.shape_cast %50 : vector<1x128x128xf32> to vector<128x128xf32>
    %cst_52 = arith.constant dense<0.000000e+00> : vector<16x128xf32>
    %52 = tpu.matmul %49, %51, %cst_52 {dimension_numbers = #tpu.dot_dimension_numbers<[1], [0], [0], [1], [0, 0, 1, 1], [], []>} : vector<16x128xf32>, vector<128x128xf32>, vector<16x128xf32> -> vector<16x128xf32>
    %c1_53 = arith.constant 1 : index
    %c0_54 = arith.constant 0 : index
    %c0_55 = arith.constant 0 : index
    %53 = vector.load %arg5[%c1_53, %c0_54, %c0_55] : memref<3x128x128xf32, #tpu.memory_space<vmem>>, vector<1x128x128xf32>
    %54 = vector.shape_cast %53 : vector<1x128x128xf32> to vector<128x128xf32>
    %cst_56 = arith.constant dense<0.000000e+00> : vector<16x128xf32>
    %55 = tpu.matmul %48, %54, %cst_56 {dimension_numbers = #tpu.dot_dimension_numbers<[1], [0], [0], [1], [0, 0, 1, 1], [], []>} : vector<16x128xf32>, vector<128x128xf32>, vector<16x128xf32> -> vector<16x128xf32>
    %56 = arith.addf %52, %55 : vector<16x128xf32>
    %cst_57 = arith.constant dense<0.000000e+00> : vector<16x128xf32>
    %57 = tpu.matmul %5, %48, %cst_57 {dimension_numbers = #tpu.dot_dimension_numbers<[1], [0], [0], [1], [0, 0, 1, 1], [], []>} : vector<16x16xf32>, vector<16x128xf32>, vector<16x128xf32> -> vector<16x128xf32>
    %c2_58 = arith.constant 2 : index
    %c0_59 = arith.constant 0 : index
    %c0_60 = arith.constant 0 : index
    %58 = vector.load %arg5[%c2_58, %c0_59, %c0_60] : memref<3x128x128xf32, #tpu.memory_space<vmem>>, vector<1x128x128xf32>
    %59 = vector.shape_cast %58 : vector<1x128x128xf32> to vector<128x128xf32>
    %cst_61 = arith.constant dense<0.000000e+00> : vector<16x128xf32>
    %60 = tpu.matmul %57, %59, %cst_61 {dimension_numbers = #tpu.dot_dimension_numbers<[1], [0], [0], [1], [0, 0, 1, 1], [], []>} : vector<16x128xf32>, vector<128x128xf32>, vector<16x128xf32> -> vector<16x128xf32>
    %61 = arith.addf %56, %60 : vector<16x128xf32>
    %cst_62 = arith.constant 0.000000e+00 : f32
    %62 = vector.broadcast %cst_62 : f32 to vector<16x128xf32>
    %63 = arith.maximumf %61, %62 : vector<16x128xf32>
    %cst_63 = arith.constant dense<0.000000e+00> : vector<16x128xf32>
    %64 = tpu.matmul %13, %63, %cst_63 {dimension_numbers = #tpu.dot_dimension_numbers<[1], [0], [0], [1], [0, 0, 1, 1], [], []>} : vector<16x16xf32>, vector<16x128xf32>, vector<16x128xf32> -> vector<16x128xf32>
    %cst_64 = arith.constant dense<0.000000e+00> : vector<16x128xf32>
    %65 = tpu.matmul %1, %64, %cst_64 {dimension_numbers = #tpu.dot_dimension_numbers<[1], [0], [0], [1], [0, 0, 1, 1], [], []>} : vector<16x16xf32>, vector<16x128xf32>, vector<16x128xf32> -> vector<16x128xf32>
    %c0_65 = arith.constant 0 : index
    %c0_66 = arith.constant 0 : index
    %c0_67 = arith.constant 0 : index
    %66 = vector.load %arg6[%c0_65, %c0_66, %c0_67] : memref<3x128x128xf32, #tpu.memory_space<vmem>>, vector<1x128x128xf32>
    %67 = vector.shape_cast %66 : vector<1x128x128xf32> to vector<128x128xf32>
    %cst_68 = arith.constant dense<0.000000e+00> : vector<16x128xf32>
    %68 = tpu.matmul %65, %67, %cst_68 {dimension_numbers = #tpu.dot_dimension_numbers<[1], [0], [0], [1], [0, 0, 1, 1], [], []>} : vector<16x128xf32>, vector<128x128xf32>, vector<16x128xf32> -> vector<16x128xf32>
    %c1_69 = arith.constant 1 : index
    %c0_70 = arith.constant 0 : index
    %c0_71 = arith.constant 0 : index
    %69 = vector.load %arg6[%c1_69, %c0_70, %c0_71] : memref<3x128x128xf32, #tpu.memory_space<vmem>>, vector<1x128x128xf32>
    %70 = vector.shape_cast %69 : vector<1x128x128xf32> to vector<128x128xf32>
    %cst_72 = arith.constant dense<0.000000e+00> : vector<16x128xf32>
    %71 = tpu.matmul %64, %70, %cst_72 {dimension_numbers = #tpu.dot_dimension_numbers<[1], [0], [0], [1], [0, 0, 1, 1], [], []>} : vector<16x128xf32>, vector<128x128xf32>, vector<16x128xf32> -> vector<16x128xf32>
    %72 = arith.addf %68, %71 : vector<16x128xf32>
    %cst_73 = arith.constant dense<0.000000e+00> : vector<16x128xf32>
    %73 = tpu.matmul %7, %64, %cst_73 {dimension_numbers = #tpu.dot_dimension_numbers<[1], [0], [0], [1], [0, 0, 1, 1], [], []>} : vector<16x16xf32>, vector<16x128xf32>, vector<16x128xf32> -> vector<16x128xf32>
    %c2_74 = arith.constant 2 : index
    %c0_75 = arith.constant 0 : index
    %c0_76 = arith.constant 0 : index
    %74 = vector.load %arg6[%c2_74, %c0_75, %c0_76] : memref<3x128x128xf32, #tpu.memory_space<vmem>>, vector<1x128x128xf32>
    %75 = vector.shape_cast %74 : vector<1x128x128xf32> to vector<128x128xf32>
    %cst_77 = arith.constant dense<0.000000e+00> : vector<16x128xf32>
    %76 = tpu.matmul %73, %75, %cst_77 {dimension_numbers = #tpu.dot_dimension_numbers<[1], [0], [0], [1], [0, 0, 1, 1], [], []>} : vector<16x128xf32>, vector<128x128xf32>, vector<16x128xf32> -> vector<16x128xf32>
    %77 = arith.addf %72, %76 : vector<16x128xf32>
    %cst_78 = arith.constant 0.000000e+00 : f32
    %78 = vector.broadcast %cst_78 : f32 to vector<16x128xf32>
    %79 = arith.maximumf %77, %78 : vector<16x128xf32>
    %cst_79 = arith.constant dense<0.000000e+00> : vector<16x128xf32>
    %80 = tpu.matmul %15, %79, %cst_79 {dimension_numbers = #tpu.dot_dimension_numbers<[1], [0], [0], [1], [0, 0, 1, 1], [], []>} : vector<16x16xf32>, vector<16x128xf32>, vector<16x128xf32> -> vector<16x128xf32>
    %cst_80 = arith.constant dense<0.000000e+00> : vector<16x128xf32>
    %81 = tpu.matmul %1, %80, %cst_80 {dimension_numbers = #tpu.dot_dimension_numbers<[1], [0], [0], [1], [0, 0, 1, 1], [], []>} : vector<16x16xf32>, vector<16x128xf32>, vector<16x128xf32> -> vector<16x128xf32>
    %c0_81 = arith.constant 0 : index
    %c0_82 = arith.constant 0 : index
    %c0_83 = arith.constant 0 : index
    %82 = vector.load %arg7[%c0_81, %c0_82, %c0_83] : memref<3x128x128xf32, #tpu.memory_space<vmem>>, vector<1x128x128xf32>
    %83 = vector.shape_cast %82 : vector<1x128x128xf32> to vector<128x128xf32>
    %cst_84 = arith.constant dense<0.000000e+00> : vector<16x128xf32>
    %84 = tpu.matmul %81, %83, %cst_84 {dimension_numbers = #tpu.dot_dimension_numbers<[1], [0], [0], [1], [0, 0, 1, 1], [], []>} : vector<16x128xf32>, vector<128x128xf32>, vector<16x128xf32> -> vector<16x128xf32>
    %c1_85 = arith.constant 1 : index
    %c0_86 = arith.constant 0 : index
    %c0_87 = arith.constant 0 : index
    %85 = vector.load %arg7[%c1_85, %c0_86, %c0_87] : memref<3x128x128xf32, #tpu.memory_space<vmem>>, vector<1x128x128xf32>
    %86 = vector.shape_cast %85 : vector<1x128x128xf32> to vector<128x128xf32>
    %cst_88 = arith.constant dense<0.000000e+00> : vector<16x128xf32>
    %87 = tpu.matmul %80, %86, %cst_88 {dimension_numbers = #tpu.dot_dimension_numbers<[1], [0], [0], [1], [0, 0, 1, 1], [], []>} : vector<16x128xf32>, vector<128x128xf32>, vector<16x128xf32> -> vector<16x128xf32>
    %88 = arith.addf %84, %87 : vector<16x128xf32>
    %cst_89 = arith.constant dense<0.000000e+00> : vector<16x128xf32>
    %89 = tpu.matmul %9, %80, %cst_89 {dimension_numbers = #tpu.dot_dimension_numbers<[1], [0], [0], [1], [0, 0, 1, 1], [], []>} : vector<16x16xf32>, vector<16x128xf32>, vector<16x128xf32> -> vector<16x128xf32>
    %c2_90 = arith.constant 2 : index
    %c0_91 = arith.constant 0 : index
    %c0_92 = arith.constant 0 : index
    %90 = vector.load %arg7[%c2_90, %c0_91, %c0_92] : memref<3x128x128xf32, #tpu.memory_space<vmem>>, vector<1x128x128xf32>
    %91 = vector.shape_cast %90 : vector<1x128x128xf32> to vector<128x128xf32>
    %cst_93 = arith.constant dense<0.000000e+00> : vector<16x128xf32>
    %92 = tpu.matmul %89, %91, %cst_93 {dimension_numbers = #tpu.dot_dimension_numbers<[1], [0], [0], [1], [0, 0, 1, 1], [], []>} : vector<16x128xf32>, vector<128x128xf32>, vector<16x128xf32> -> vector<16x128xf32>
    %93 = arith.addf %88, %92 : vector<16x128xf32>
    %cst_94 = arith.constant 0.000000e+00 : f32
    %94 = vector.broadcast %cst_94 : f32 to vector<16x128xf32>
    %95 = arith.maximumf %93, %94 : vector<16x128xf32>
    %c0_95 = arith.constant 0 : index
    %c0_96 = arith.constant 0 : index
    %96 = vector.load %arg9[%c0_95, %c0_96] : memref<1x128xf32, #tpu.memory_space<vmem>>, vector<1x128xf32>
    %c0_97 = arith.constant 0 : index
    %c0_98 = arith.constant 0 : index
    %c0_99 = arith.constant 0 : index
    %97 = vector.load %arg8[%c0_97, %c0_98, %c0_99] : memref<3x128x128xf32, #tpu.memory_space<vmem>>, vector<1x128x128xf32>
    %98 = vector.shape_cast %97 : vector<1x128x128xf32> to vector<128x128xf32>
    %cst_100 = arith.constant dense<0.000000e+00> : vector<16x128xf32>
    %99 = tpu.matmul %95, %98, %cst_100 {dimension_numbers = #tpu.dot_dimension_numbers<[1], [0], [0], [1], [0, 0, 1, 1], [], []>} : vector<16x128xf32>, vector<128x128xf32>, vector<16x128xf32> -> vector<16x128xf32>
    %100 = vector.broadcast %96 : vector<1x128xf32> to vector<16x128xf32>
    %101 = arith.addf %99, %100 : vector<16x128xf32>
    %c1_101 = arith.constant 1 : index
    %c0_102 = arith.constant 0 : index
    %c0_103 = arith.constant 0 : index
    %102 = vector.load %arg8[%c1_101, %c0_102, %c0_103] : memref<3x128x128xf32, #tpu.memory_space<vmem>>, vector<1x128x128xf32>
    %103 = vector.shape_cast %102 : vector<1x128x128xf32> to vector<128x128xf32>
    %cst_104 = arith.constant dense<0.000000e+00> : vector<16x128xf32>
    %104 = tpu.matmul %95, %103, %cst_104 {dimension_numbers = #tpu.dot_dimension_numbers<[1], [0], [0], [1], [0, 0, 1, 1], [], []>} : vector<16x128xf32>, vector<128x128xf32>, vector<16x128xf32> -> vector<16x128xf32>
    %cst_105 = arith.constant dense<0.000000e+00> : vector<16x128xf32>
    %105 = tpu.matmul %9, %95, %cst_105 {dimension_numbers = #tpu.dot_dimension_numbers<[1], [0], [0], [1], [0, 0, 1, 1], [], []>} : vector<16x16xf32>, vector<16x128xf32>, vector<16x128xf32> -> vector<16x128xf32>
    %c2_106 = arith.constant 2 : index
    %c0_107 = arith.constant 0 : index
    %c0_108 = arith.constant 0 : index
    %106 = vector.load %arg8[%c2_106, %c0_107, %c0_108] : memref<3x128x128xf32, #tpu.memory_space<vmem>>, vector<1x128x128xf32>
    %107 = vector.shape_cast %106 : vector<1x128x128xf32> to vector<128x128xf32>
    %cst_109 = arith.constant dense<0.000000e+00> : vector<16x128xf32>
    %108 = tpu.matmul %105, %107, %cst_109 {dimension_numbers = #tpu.dot_dimension_numbers<[1], [0], [0], [1], [0, 0, 1, 1], [], []>} : vector<16x128xf32>, vector<128x128xf32>, vector<16x128xf32> -> vector<16x128xf32>
    %109 = arith.addf %104, %108 : vector<16x128xf32>
    %110 = vector.broadcast %96 : vector<1x128xf32> to vector<16x128xf32>
    %111 = arith.addf %109, %110 : vector<16x128xf32>
    %cst_110 = arith.constant 0.000000e+00 : f32
    %112 = vector.broadcast %cst_110 : f32 to vector<16x128xf32>
    %113 = arith.maximumf %101, %112 : vector<16x128xf32>
    %cst_111 = arith.constant dense<0.000000e+00> : vector<16x128xf32>
    %114 = tpu.matmul %17, %113, %cst_111 {dimension_numbers = #tpu.dot_dimension_numbers<[1], [0], [0], [1], [0, 0, 1, 1], [], []>} : vector<16x16xf32>, vector<16x128xf32>, vector<16x128xf32> -> vector<16x128xf32>
    %cst_112 = arith.constant 0.000000e+00 : f32
    %115 = vector.broadcast %cst_112 : f32 to vector<16x128xf32>
    %116 = arith.maximumf %111, %115 : vector<16x128xf32>
    %cst_113 = arith.constant dense<0.000000e+00> : vector<16x128xf32>
    %117 = tpu.matmul %23, %116, %cst_113 {dimension_numbers = #tpu.dot_dimension_numbers<[1], [0], [0], [1], [0, 0, 1, 1], [], []>} : vector<16x16xf32>, vector<16x128xf32>, vector<16x128xf32> -> vector<16x128xf32>
    %118 = arith.addf %114, %117 : vector<16x128xf32>
    %c0_114 = arith.constant 0 : index
    %c0_115 = arith.constant 0 : index
    %119 = vector.load %arg12[%c0_114, %c0_115] : memref<1x128xf32, #tpu.memory_space<vmem>>, vector<1x128xf32>
    %c0_116 = arith.constant 0 : index
    %c0_117 = arith.constant 0 : index
    %c0_118 = arith.constant 0 : index
    %120 = vector.load %arg10[%c0_116, %c0_117, %c0_118] : memref<3x128x128xf32, #tpu.memory_space<vmem>>, vector<1x128x128xf32>
    %121 = vector.shape_cast %120 : vector<1x128x128xf32> to vector<128x128xf32>
    %cst_119 = arith.constant dense<0.000000e+00> : vector<16x128xf32>
    %122 = tpu.matmul %118, %121, %cst_119 {dimension_numbers = #tpu.dot_dimension_numbers<[1], [0], [0], [1], [0, 0, 1, 1], [], []>} : vector<16x128xf32>, vector<128x128xf32>, vector<16x128xf32> -> vector<16x128xf32>
    %123 = vector.broadcast %119 : vector<1x128xf32> to vector<16x128xf32>
    %124 = arith.addf %122, %123 : vector<16x128xf32>
    %c1_120 = arith.constant 1 : index
    %c0_121 = arith.constant 0 : index
    %c0_122 = arith.constant 0 : index
    %125 = vector.load %arg10[%c1_120, %c0_121, %c0_122] : memref<3x128x128xf32, #tpu.memory_space<vmem>>, vector<1x128x128xf32>
    %126 = vector.shape_cast %125 : vector<1x128x128xf32> to vector<128x128xf32>
    %cst_123 = arith.constant dense<0.000000e+00> : vector<16x128xf32>
    %127 = tpu.matmul %118, %126, %cst_123 {dimension_numbers = #tpu.dot_dimension_numbers<[1], [0], [0], [1], [0, 0, 1, 1], [], []>} : vector<16x128xf32>, vector<128x128xf32>, vector<16x128xf32> -> vector<16x128xf32>
    %cst_124 = arith.constant dense<0.000000e+00> : vector<16x128xf32>
    %128 = tpu.matmul %7, %118, %cst_124 {dimension_numbers = #tpu.dot_dimension_numbers<[1], [0], [0], [1], [0, 0, 1, 1], [], []>} : vector<16x16xf32>, vector<16x128xf32>, vector<16x128xf32> -> vector<16x128xf32>
    %c2_125 = arith.constant 2 : index
    %c0_126 = arith.constant 0 : index
    %c0_127 = arith.constant 0 : index
    %129 = vector.load %arg10[%c2_125, %c0_126, %c0_127] : memref<3x128x128xf32, #tpu.memory_space<vmem>>, vector<1x128x128xf32>
    %130 = vector.shape_cast %129 : vector<1x128x128xf32> to vector<128x128xf32>
    %cst_128 = arith.constant dense<0.000000e+00> : vector<16x128xf32>
    %131 = tpu.matmul %128, %130, %cst_128 {dimension_numbers = #tpu.dot_dimension_numbers<[1], [0], [0], [1], [0, 0, 1, 1], [], []>} : vector<16x128xf32>, vector<128x128xf32>, vector<16x128xf32> -> vector<16x128xf32>
    %132 = arith.addf %127, %131 : vector<16x128xf32>
    %133 = vector.broadcast %119 : vector<1x128xf32> to vector<16x128xf32>
    %134 = arith.addf %132, %133 : vector<16x128xf32>
    %c0_129 = arith.constant 0 : index
    %c0_130 = arith.constant 0 : index
    %c0_131 = arith.constant 0 : index
    %135 = vector.load %arg11[%c0_129, %c0_130, %c0_131] : memref<3x128x128xf32, #tpu.memory_space<vmem>>, vector<1x128x128xf32>
    %136 = vector.shape_cast %135 : vector<1x128x128xf32> to vector<128x128xf32>
    %cst_132 = arith.constant dense<0.000000e+00> : vector<16x128xf32>
    %137 = tpu.matmul %79, %136, %cst_132 {dimension_numbers = #tpu.dot_dimension_numbers<[1], [0], [0], [1], [0, 0, 1, 1], [], []>} : vector<16x128xf32>, vector<128x128xf32>, vector<16x128xf32> -> vector<16x128xf32>
    %138 = arith.addf %124, %137 : vector<16x128xf32>
    %c1_133 = arith.constant 1 : index
    %c0_134 = arith.constant 0 : index
    %c0_135 = arith.constant 0 : index
    %139 = vector.load %arg11[%c1_133, %c0_134, %c0_135] : memref<3x128x128xf32, #tpu.memory_space<vmem>>, vector<1x128x128xf32>
    %140 = vector.shape_cast %139 : vector<1x128x128xf32> to vector<128x128xf32>
    %cst_136 = arith.constant dense<0.000000e+00> : vector<16x128xf32>
    %141 = tpu.matmul %79, %140, %cst_136 {dimension_numbers = #tpu.dot_dimension_numbers<[1], [0], [0], [1], [0, 0, 1, 1], [], []>} : vector<16x128xf32>, vector<128x128xf32>, vector<16x128xf32> -> vector<16x128xf32>
    %142 = arith.addf %134, %141 : vector<16x128xf32>
    %cst_137 = arith.constant dense<0.000000e+00> : vector<16x128xf32>
    %143 = tpu.matmul %7, %79, %cst_137 {dimension_numbers = #tpu.dot_dimension_numbers<[1], [0], [0], [1], [0, 0, 1, 1], [], []>} : vector<16x16xf32>, vector<16x128xf32>, vector<16x128xf32> -> vector<16x128xf32>
    %c2_138 = arith.constant 2 : index
    %c0_139 = arith.constant 0 : index
    %c0_140 = arith.constant 0 : index
    %144 = vector.load %arg11[%c2_138, %c0_139, %c0_140] : memref<3x128x128xf32, #tpu.memory_space<vmem>>, vector<1x128x128xf32>
    %145 = vector.shape_cast %144 : vector<1x128x128xf32> to vector<128x128xf32>
    %cst_141 = arith.constant dense<0.000000e+00> : vector<16x128xf32>
    %146 = tpu.matmul %143, %145, %cst_141 {dimension_numbers = #tpu.dot_dimension_numbers<[1], [0], [0], [1], [0, 0, 1, 1], [], []>} : vector<16x128xf32>, vector<128x128xf32>, vector<16x128xf32> -> vector<16x128xf32>
    %147 = arith.addf %142, %146 : vector<16x128xf32>
    %cst_142 = arith.constant 0.000000e+00 : f32
    %148 = vector.broadcast %cst_142 : f32 to vector<16x128xf32>
    %149 = arith.maximumf %138, %148 : vector<16x128xf32>
    %cst_143 = arith.constant dense<0.000000e+00> : vector<16x128xf32>
    %150 = tpu.matmul %19, %149, %cst_143 {dimension_numbers = #tpu.dot_dimension_numbers<[1], [0], [0], [1], [0, 0, 1, 1], [], []>} : vector<16x16xf32>, vector<16x128xf32>, vector<16x128xf32> -> vector<16x128xf32>
    %cst_144 = arith.constant 0.000000e+00 : f32
    %151 = vector.broadcast %cst_144 : f32 to vector<16x128xf32>
    %152 = arith.maximumf %147, %151 : vector<16x128xf32>
    %cst_145 = arith.constant dense<0.000000e+00> : vector<16x128xf32>
    %153 = tpu.matmul %25, %152, %cst_145 {dimension_numbers = #tpu.dot_dimension_numbers<[1], [0], [0], [1], [0, 0, 1, 1], [], []>} : vector<16x16xf32>, vector<16x128xf32>, vector<16x128xf32> -> vector<16x128xf32>
    %154 = arith.addf %150, %153 : vector<16x128xf32>
    %c0_146 = arith.constant 0 : index
    %c0_147 = arith.constant 0 : index
    %155 = vector.load %arg15[%c0_146, %c0_147] : memref<1x128xf32, #tpu.memory_space<vmem>>, vector<1x128xf32>
    %c0_148 = arith.constant 0 : index
    %c0_149 = arith.constant 0 : index
    %c0_150 = arith.constant 0 : index
    %156 = vector.load %arg13[%c0_148, %c0_149, %c0_150] : memref<3x128x128xf32, #tpu.memory_space<vmem>>, vector<1x128x128xf32>
    %157 = vector.shape_cast %156 : vector<1x128x128xf32> to vector<128x128xf32>
    %cst_151 = arith.constant dense<0.000000e+00> : vector<16x128xf32>
    %158 = tpu.matmul %154, %157, %cst_151 {dimension_numbers = #tpu.dot_dimension_numbers<[1], [0], [0], [1], [0, 0, 1, 1], [], []>} : vector<16x128xf32>, vector<128x128xf32>, vector<16x128xf32> -> vector<16x128xf32>
    %159 = vector.broadcast %155 : vector<1x128xf32> to vector<16x128xf32>
    %160 = arith.addf %158, %159 : vector<16x128xf32>
    %c1_152 = arith.constant 1 : index
    %c0_153 = arith.constant 0 : index
    %c0_154 = arith.constant 0 : index
    %161 = vector.load %arg13[%c1_152, %c0_153, %c0_154] : memref<3x128x128xf32, #tpu.memory_space<vmem>>, vector<1x128x128xf32>
    %162 = vector.shape_cast %161 : vector<1x128x128xf32> to vector<128x128xf32>
    %cst_155 = arith.constant dense<0.000000e+00> : vector<16x128xf32>
    %163 = tpu.matmul %154, %162, %cst_155 {dimension_numbers = #tpu.dot_dimension_numbers<[1], [0], [0], [1], [0, 0, 1, 1], [], []>} : vector<16x128xf32>, vector<128x128xf32>, vector<16x128xf32> -> vector<16x128xf32>
    %cst_156 = arith.constant dense<0.000000e+00> : vector<16x128xf32>
    %164 = tpu.matmul %5, %154, %cst_156 {dimension_numbers = #tpu.dot_dimension_numbers<[1], [0], [0], [1], [0, 0, 1, 1], [], []>} : vector<16x16xf32>, vector<16x128xf32>, vector<16x128xf32> -> vector<16x128xf32>
    %c2_157 = arith.constant 2 : index
    %c0_158 = arith.constant 0 : index
    %c0_159 = arith.constant 0 : index
    %165 = vector.load %arg13[%c2_157, %c0_158, %c0_159] : memref<3x128x128xf32, #tpu.memory_space<vmem>>, vector<1x128x128xf32>
    %166 = vector.shape_cast %165 : vector<1x128x128xf32> to vector<128x128xf32>
    %cst_160 = arith.constant dense<0.000000e+00> : vector<16x128xf32>
    %167 = tpu.matmul %164, %166, %cst_160 {dimension_numbers = #tpu.dot_dimension_numbers<[1], [0], [0], [1], [0, 0, 1, 1], [], []>} : vector<16x128xf32>, vector<128x128xf32>, vector<16x128xf32> -> vector<16x128xf32>
    %168 = arith.addf %163, %167 : vector<16x128xf32>
    %169 = vector.broadcast %155 : vector<1x128xf32> to vector<16x128xf32>
    %170 = arith.addf %168, %169 : vector<16x128xf32>
    %c0_161 = arith.constant 0 : index
    %c0_162 = arith.constant 0 : index
    %c0_163 = arith.constant 0 : index
    %171 = vector.load %arg14[%c0_161, %c0_162, %c0_163] : memref<3x128x128xf32, #tpu.memory_space<vmem>>, vector<1x128x128xf32>
    %172 = vector.shape_cast %171 : vector<1x128x128xf32> to vector<128x128xf32>
    %cst_164 = arith.constant dense<0.000000e+00> : vector<16x128xf32>
    %173 = tpu.matmul %63, %172, %cst_164 {dimension_numbers = #tpu.dot_dimension_numbers<[1], [0], [0], [1], [0, 0, 1, 1], [], []>} : vector<16x128xf32>, vector<128x128xf32>, vector<16x128xf32> -> vector<16x128xf32>
    %174 = arith.addf %160, %173 : vector<16x128xf32>
    %c1_165 = arith.constant 1 : index
    %c0_166 = arith.constant 0 : index
    %c0_167 = arith.constant 0 : index
    %175 = vector.load %arg14[%c1_165, %c0_166, %c0_167] : memref<3x128x128xf32, #tpu.memory_space<vmem>>, vector<1x128x128xf32>
    %176 = vector.shape_cast %175 : vector<1x128x128xf32> to vector<128x128xf32>
    %cst_168 = arith.constant dense<0.000000e+00> : vector<16x128xf32>
    %177 = tpu.matmul %63, %176, %cst_168 {dimension_numbers = #tpu.dot_dimension_numbers<[1], [0], [0], [1], [0, 0, 1, 1], [], []>} : vector<16x128xf32>, vector<128x128xf32>, vector<16x128xf32> -> vector<16x128xf32>
    %178 = arith.addf %170, %177 : vector<16x128xf32>
    %cst_169 = arith.constant dense<0.000000e+00> : vector<16x128xf32>
    %179 = tpu.matmul %5, %63, %cst_169 {dimension_numbers = #tpu.dot_dimension_numbers<[1], [0], [0], [1], [0, 0, 1, 1], [], []>} : vector<16x16xf32>, vector<16x128xf32>, vector<16x128xf32> -> vector<16x128xf32>
    %c2_170 = arith.constant 2 : index
    %c0_171 = arith.constant 0 : index
    %c0_172 = arith.constant 0 : index
    %180 = vector.load %arg14[%c2_170, %c0_171, %c0_172] : memref<3x128x128xf32, #tpu.memory_space<vmem>>, vector<1x128x128xf32>
    %181 = vector.shape_cast %180 : vector<1x128x128xf32> to vector<128x128xf32>
    %cst_173 = arith.constant dense<0.000000e+00> : vector<16x128xf32>
    %182 = tpu.matmul %179, %181, %cst_173 {dimension_numbers = #tpu.dot_dimension_numbers<[1], [0], [0], [1], [0, 0, 1, 1], [], []>} : vector<16x128xf32>, vector<128x128xf32>, vector<16x128xf32> -> vector<16x128xf32>
    %183 = arith.addf %178, %182 : vector<16x128xf32>
    %184 = math.tanh %174 : vector<16x128xf32>
    %cst_174 = arith.constant dense<0.000000e+00> : vector<16x128xf32>
    %185 = tpu.matmul %21, %184, %cst_174 {dimension_numbers = #tpu.dot_dimension_numbers<[1], [0], [0], [1], [0, 0, 1, 1], [], []>} : vector<16x16xf32>, vector<16x128xf32>, vector<16x128xf32> -> vector<16x128xf32>
    %186 = math.tanh %183 : vector<16x128xf32>
    %cst_175 = arith.constant dense<0.000000e+00> : vector<16x128xf32>
    %187 = tpu.matmul %27, %186, %cst_175 {dimension_numbers = #tpu.dot_dimension_numbers<[1], [0], [0], [1], [0, 0, 1, 1], [], []>} : vector<16x16xf32>, vector<16x128xf32>, vector<16x128xf32> -> vector<16x128xf32>
    %188 = arith.addf %185, %187 : vector<16x128xf32>
    %c0_176 = arith.constant 0 : index
    %c0_177 = arith.constant 0 : index
    %189 = vector.load %arg18[%c0_176, %c0_177] : memref<1x192xf32, #tpu.memory_space<vmem>>, vector<1x192xf32>
    %cst_178 = arith.constant dense<0.000000e+00> : vector<16x128xf32>
    %190 = tpu.matmul %1, %188, %cst_178 {dimension_numbers = #tpu.dot_dimension_numbers<[1], [0], [0], [1], [0, 0, 1, 1], [], []>} : vector<16x16xf32>, vector<16x128xf32>, vector<16x128xf32> -> vector<16x128xf32>
    %c0_179 = arith.constant 0 : index
    %c0_180 = arith.constant 0 : index
    %c0_181 = arith.constant 0 : index
    %191 = vector.load %arg16[%c0_179, %c0_180, %c0_181] : memref<3x128x192xf32, #tpu.memory_space<vmem>>, vector<1x128x192xf32>
    %192 = vector.shape_cast %191 : vector<1x128x192xf32> to vector<128x192xf32>
    %cst_182 = arith.constant dense<0.000000e+00> : vector<16x192xf32>
    %193 = tpu.matmul %190, %192, %cst_182 {dimension_numbers = #tpu.dot_dimension_numbers<[1], [0], [0], [1], [0, 0, 1, 1], [], []>} : vector<16x128xf32>, vector<128x192xf32>, vector<16x192xf32> -> vector<16x192xf32>
    %c1_183 = arith.constant 1 : index
    %c0_184 = arith.constant 0 : index
    %c0_185 = arith.constant 0 : index
    %194 = vector.load %arg16[%c1_183, %c0_184, %c0_185] : memref<3x128x192xf32, #tpu.memory_space<vmem>>, vector<1x128x192xf32>
    %195 = vector.shape_cast %194 : vector<1x128x192xf32> to vector<128x192xf32>
    %cst_186 = arith.constant dense<0.000000e+00> : vector<16x192xf32>
    %196 = tpu.matmul %188, %195, %cst_186 {dimension_numbers = #tpu.dot_dimension_numbers<[1], [0], [0], [1], [0, 0, 1, 1], [], []>} : vector<16x128xf32>, vector<128x192xf32>, vector<16x192xf32> -> vector<16x192xf32>
    %197 = arith.addf %193, %196 : vector<16x192xf32>
    %cst_187 = arith.constant dense<0.000000e+00> : vector<16x128xf32>
    %198 = tpu.matmul %3, %188, %cst_187 {dimension_numbers = #tpu.dot_dimension_numbers<[1], [0], [0], [1], [0, 0, 1, 1], [], []>} : vector<16x16xf32>, vector<16x128xf32>, vector<16x128xf32> -> vector<16x128xf32>
    %c2_188 = arith.constant 2 : index
    %c0_189 = arith.constant 0 : index
    %c0_190 = arith.constant 0 : index
    %199 = vector.load %arg16[%c2_188, %c0_189, %c0_190] : memref<3x128x192xf32, #tpu.memory_space<vmem>>, vector<1x128x192xf32>
    %200 = vector.shape_cast %199 : vector<1x128x192xf32> to vector<128x192xf32>
    %cst_191 = arith.constant dense<0.000000e+00> : vector<16x192xf32>
    %201 = tpu.matmul %198, %200, %cst_191 {dimension_numbers = #tpu.dot_dimension_numbers<[1], [0], [0], [1], [0, 0, 1, 1], [], []>} : vector<16x128xf32>, vector<128x192xf32>, vector<16x192xf32> -> vector<16x192xf32>
    %202 = arith.addf %197, %201 : vector<16x192xf32>
    %203 = vector.broadcast %189 : vector<1x192xf32> to vector<16x192xf32>
    %204 = arith.addf %202, %203 : vector<16x192xf32>
    %cst_192 = arith.constant dense<0.000000e+00> : vector<16x128xf32>
    %205 = tpu.matmul %1, %47, %cst_192 {dimension_numbers = #tpu.dot_dimension_numbers<[1], [0], [0], [1], [0, 0, 1, 1], [], []>} : vector<16x16xf32>, vector<16x128xf32>, vector<16x128xf32> -> vector<16x128xf32>
    %c0_193 = arith.constant 0 : index
    %c0_194 = arith.constant 0 : index
    %c0_195 = arith.constant 0 : index
    %206 = vector.load %arg17[%c0_193, %c0_194, %c0_195] : memref<3x128x192xf32, #tpu.memory_space<vmem>>, vector<1x128x192xf32>
    %207 = vector.shape_cast %206 : vector<1x128x192xf32> to vector<128x192xf32>
    %cst_196 = arith.constant dense<0.000000e+00> : vector<16x192xf32>
    %208 = tpu.matmul %205, %207, %cst_196 {dimension_numbers = #tpu.dot_dimension_numbers<[1], [0], [0], [1], [0, 0, 1, 1], [], []>} : vector<16x128xf32>, vector<128x192xf32>, vector<16x192xf32> -> vector<16x192xf32>
    %c1_197 = arith.constant 1 : index
    %c0_198 = arith.constant 0 : index
    %c0_199 = arith.constant 0 : index
    %209 = vector.load %arg17[%c1_197, %c0_198, %c0_199] : memref<3x128x192xf32, #tpu.memory_space<vmem>>, vector<1x128x192xf32>
    %210 = vector.shape_cast %209 : vector<1x128x192xf32> to vector<128x192xf32>
    %cst_200 = arith.constant dense<0.000000e+00> : vector<16x192xf32>
    %211 = tpu.matmul %47, %210, %cst_200 {dimension_numbers = #tpu.dot_dimension_numbers<[1], [0], [0], [1], [0, 0, 1, 1], [], []>} : vector<16x128xf32>, vector<128x192xf32>, vector<16x192xf32> -> vector<16x192xf32>
    %212 = arith.addf %208, %211 : vector<16x192xf32>
    %cst_201 = arith.constant dense<0.000000e+00> : vector<16x128xf32>
    %213 = tpu.matmul %3, %47, %cst_201 {dimension_numbers = #tpu.dot_dimension_numbers<[1], [0], [0], [1], [0, 0, 1, 1], [], []>} : vector<16x16xf32>, vector<16x128xf32>, vector<16x128xf32> -> vector<16x128xf32>
    %c2_202 = arith.constant 2 : index
    %c0_203 = arith.constant 0 : index
    %c0_204 = arith.constant 0 : index
    %214 = vector.load %arg17[%c2_202, %c0_203, %c0_204] : memref<3x128x192xf32, #tpu.memory_space<vmem>>, vector<1x128x192xf32>
    %215 = vector.shape_cast %214 : vector<1x128x192xf32> to vector<128x192xf32>
    %cst_205 = arith.constant dense<0.000000e+00> : vector<16x192xf32>
    %216 = tpu.matmul %213, %215, %cst_205 {dimension_numbers = #tpu.dot_dimension_numbers<[1], [0], [0], [1], [0, 0, 1, 1], [], []>} : vector<16x128xf32>, vector<128x192xf32>, vector<16x192xf32> -> vector<16x192xf32>
    %217 = arith.addf %212, %216 : vector<16x192xf32>
    %218 = arith.addf %204, %217 : vector<16x192xf32>
    %c0_206 = arith.constant 0 : index
    %c0_207 = arith.constant 0 : index
    %c0_208 = arith.constant 0 : index
    %219 = vector.load %arg19[%c0_206, %c0_207, %c0_208] : memref<1x16x192xf32, #tpu.memory_space<vmem>>, vector<1x16x192xf32>
    %220 = vector.shape_cast %219 : vector<1x16x192xf32> to vector<16x192xf32>
    %221 = vector.shape_cast %218 : vector<16x192xf32> to vector<1x16x192xf32>
    tpu.vector_store %arg19[%c0_206, %c0_207, %c0_208], %221 {strides = array<i32>} : memref<1x16x192xf32, #tpu.memory_space<vmem>>, vector<1x16x192xf32>,
    return
  }
  func.func @transform_0(%arg0: i32) -> (i32, i32, i32) {
    %c0_i32 = arith.constant 0 : i32
    %c0_i32_0 = arith.constant 0 : i32
    %c0_i32_1 = arith.constant 0 : i32
    return %arg0, %c0_i32, %c0_i32_0 : i32, i32, i32
  }
  func.func @transform_1(%arg0: i32) -> (i32, i32, i32) {
    %c0_i32 = arith.constant 0 : i32
    %c0_i32_0 = arith.constant 0 : i32
    %c0_i32_1 = arith.constant 0 : i32
    %c0_i32_2 = arith.constant 0 : i32
    return %c0_i32, %c0_i32_0, %c0_i32_1 : i32, i32, i32
  }
  func.func @transform_2(%arg0: i32) -> (i32, i32, i32) {
    %c0_i32 = arith.constant 0 : i32
    %c0_i32_0 = arith.constant 0 : i32
    %c0_i32_1 = arith.constant 0 : i32
    %c0_i32_2 = arith.constant 0 : i32
    return %c0_i32, %c0_i32_0, %c0_i32_1 : i32, i32, i32
  }
  func.func @transform_3(%arg0: i32) -> (i32, i32) {
    %c0_i32 = arith.constant 0 : i32
    %c0_i32_0 = arith.constant 0 : i32
    %c0_i32_1 = arith.constant 0 : i32
    return %c0_i32, %c0_i32_0 : i32, i32
  }
  func.func @transform_4(%arg0: i32) -> (i32, i32, i32) {
    %c0_i32 = arith.constant 0 : i32
    %c0_i32_0 = arith.constant 0 : i32
    %c0_i32_1 = arith.constant 0 : i32
    %c0_i32_2 = arith.constant 0 : i32
    return %c0_i32, %c0_i32_0, %c0_i32_1 : i32, i32, i32
  }
  func.func @transform_5(%arg0: i32) -> (i32, i32, i32) {
    %c0_i32 = arith.constant 0 : i32
    %c0_i32_0 = arith.constant 0 : i32
    %c0_i32_1 = arith.constant 0 : i32
    %c0_i32_2 = arith.constant 0 : i32
    return %c0_i32, %c0_i32_0, %c0_i32_1 : i32, i32, i32
  }
  func.func @transform_6(%arg0: i32) -> (i32, i32, i32) {
    %c0_i32 = arith.constant 0 : i32
    %c0_i32_0 = arith.constant 0 : i32
    %c0_i32_1 = arith.constant 0 : i32
    %c0_i32_2 = arith.constant 0 : i32
    return %c0_i32, %c0_i32_0, %c0_i32_1 : i32, i32, i32
  }
  func.func @transform_7(%arg0: i32) -> (i32, i32, i32) {
    %c0_i32 = arith.constant 0 : i32
    %c0_i32_0 = arith.constant 0 : i32
    %c0_i32_1 = arith.constant 0 : i32
    %c0_i32_2 = arith.constant 0 : i32
    return %c0_i32, %c0_i32_0, %c0_i32_1 : i32, i32, i32
  }
  func.func @transform_8(%arg0: i32) -> (i32, i32) {
    %c0_i32 = arith.constant 0 : i32
    %c0_i32_0 = arith.constant 0 : i32
    %c0_i32_1 = arith.constant 0 : i32
    return %c0_i32, %c0_i32_0 : i32, i32
  }
  func.func @transform_9(%arg0: i32) -> (i32, i32, i32) {
    %c0_i32 = arith.constant 0 : i32
    %c0_i32_0 = arith.constant 0 : i32
    %c0_i32_1 = arith.constant 0 : i32
    %c0_i32_2 = arith.constant 0 : i32
    return %c0_i32, %c0_i32_0, %c0_i32_1 : i32, i32, i32
  }
  func.func @transform_10(%arg0: i32) -> (i32, i32, i32) {
    %c0_i32 = arith.constant 0 : i32
    %c0_i32_0 = arith.constant 0 : i32
    %c0_i32_1 = arith.constant 0 : i32
    %c0_i32_2 = arith.constant 0 : i32
    return %c0_i32, %c0_i32_0, %c0_i32_1 : i32, i32, i32
  }
  func.func @transform_11(%arg0: i32) -> (i32, i32) {
    %c0_i32 = arith.constant 0 : i32
    %c0_i32_0 = arith.constant 0 : i32
    %c0_i32_1 = arith.constant 0 : i32
    return %c0_i32, %c0_i32_0 : i32, i32
  }
  func.func @transform_12(%arg0: i32) -> (i32, i32, i32) {
    %c0_i32 = arith.constant 0 : i32
    %c0_i32_0 = arith.constant 0 : i32
    %c0_i32_1 = arith.constant 0 : i32
    %c0_i32_2 = arith.constant 0 : i32
    return %c0_i32, %c0_i32_0, %c0_i32_1 : i32, i32, i32
  }
  func.func @transform_13(%arg0: i32) -> (i32, i32, i32) {
    %c0_i32 = arith.constant 0 : i32
    %c0_i32_0 = arith.constant 0 : i32
    %c0_i32_1 = arith.constant 0 : i32
    %c0_i32_2 = arith.constant 0 : i32
    return %c0_i32, %c0_i32_0, %c0_i32_1 : i32, i32, i32
  }
  func.func @transform_14(%arg0: i32) -> (i32, i32) {
    %c0_i32 = arith.constant 0 : i32
    %c0_i32_0 = arith.constant 0 : i32
    %c0_i32_1 = arith.constant 0 : i32
    return %c0_i32, %c0_i32_0 : i32, i32
  }
  func.func @transform_15(%arg0: i32) -> (i32, i32, i32) {
    %c0_i32 = arith.constant 0 : i32
    %c0_i32_0 = arith.constant 0 : i32
    %c0_i32_1 = arith.constant 0 : i32
    %c0_i32_2 = arith.constant 0 : i32
    return %c0_i32, %c0_i32_0, %c0_i32_1 : i32, i32, i32
  }
  func.func @transform_16(%arg0: i32) -> (i32, i32, i32) {
    %c0_i32 = arith.constant 0 : i32
    %c0_i32_0 = arith.constant 0 : i32
    %c0_i32_1 = arith.constant 0 : i32
    %c0_i32_2 = arith.constant 0 : i32
    return %c0_i32, %c0_i32_0, %c0_i32_1 : i32, i32, i32
  }
  func.func @transform_17(%arg0: i32) -> (i32, i32) {
    %c0_i32 = arith.constant 0 : i32
    %c0_i32_0 = arith.constant 0 : i32
    %c0_i32_1 = arith.constant 0 : i32
    return %c0_i32, %c0_i32_0 : i32, i32
  }
  func.func @transform_18(%arg0: i32) -> (i32, i32, i32) {
    %c0_i32 = arith.constant 0 : i32
    %c0_i32_0 = arith.constant 0 : i32
    %c0_i32_1 = arith.constant 0 : i32
    return %arg0, %c0_i32, %c0_i32_0 : i32, i32, i32
  }
}

</mosaic_0001>

<llo_original>
// kernel: tile.45
$region0: #{tile.45}
  %s0 = inlined_call_operand.vmem [shape: f32[16,12], index: 0, kind: input, shape index: {}]
  %s1 = inlined_call_operand.vmem [shape: f32[1,192], index: 1, kind: output, shape index: {}]
  $region1: #{tile.45} parent=0
    #allocation0 [shape = 'u8[8192]{0}', space=vmem, size = 0x2000, scoped, tag = 'scoped mem for output reshape']
    %v2 = vld [vmem:[%s0] sm:$0x1]
    %vm3 = vcmask 97280
    %4 = vst.msk [vmem:[#allocation0] sm:$0x1] %vm3, %v2
    %s5 = scalar_lea.vmem %s0, 10
    %v6 = vld [vmem:[%s5] sm:$0x1]
    %s7 = scalar_lea.vmem %s0, 10
    %v8 = vld [vmem:[%s7] sm:$0x1]
    %vm9 = vcmask 64512
    %v10 = vsel %vm9, %v8, %v6
    %11 = vrot.lane.b32.xlu0 %v10, 120
    %v12 = vpop.permute.xlu0 %11
    %vm13 = vcmask 31744
    %s14 = scalar_lea.vmem [#allocation0], 8
    %15 = vst.msk [vmem:[%s14] sm:$0x1] %vm13, %v12
    %vm16 = vcmask 1048512
    %17 = vst.msk [vmem:[#allocation0] sm:$0x1] %vm16, %v12
    %s18 = scalar_lea.vmem %s0, 9
    %v19 = vld [vmem:[%s18] sm:$0x1]
    %20 = vrot.lane.b32.xlu0 %v19, 108
    %v21 = vpop.permute.xlu0 %20
    %vm22 = vcmask 982880
    %23 = vst.msk [vmem:[#allocation0] sm:$0x1] %vm22, %v21
    %s24 = scalar_lea.vmem %s0, 8
    %v25 = vld [vmem:[%s24] sm:$0x1]
    %26 = vrot.lane.b32.xlu0 %v25, 96
    %v27 = vpop.permute.xlu0 %26
    %vm28 = vcmask 884480
    %29 = vst.msk [vmem:[#allocation0] sm:$0x1] %vm28, %v27
    %s30 = scalar_lea.vmem %s0, 7
    %v31 = vld [vmem:[%s30] sm:$0x1]
    %32 = vrot.lane.b32.xlu0 %v31, 84
    %v33 = vpop.permute.xlu0 %32
    %vm34 = vcmask 786080
    %35 = vst.msk [vmem:[#allocation0] sm:$0x1] %vm34, %v33
    %s36 = scalar_lea.vmem %s0, 6
    %v37 = vld [vmem:[%s36] sm:$0x1]
    %38 = vrot.lane.b32.xlu0 %v37, 72
    %v39 = vpop.permute.xlu0 %38
    %vm40 = vcmask 687680
    %41 = vst.msk [vmem:[#allocation0] sm:$0x1] %vm40, %v39
    %s42 = scalar_lea.vmem %s0, 5
    %v43 = vld [vmem:[%s42] sm:$0x1]
    %44 = vrot.lane.b32.xlu0 %v43, 60
    %v45 = vpop.permute.xlu0 %44
    %vm46 = vcmask 589280
    %47 = vst.msk [vmem:[#allocation0] sm:$0x1] %vm46, %v45
    %s48 = scalar_lea.vmem %s0, 15
    %v49 = vld [vmem:[%s48] sm:$0x1]
    %50 = vrot.lane.b32.xlu0 %v49, 52
    %v51 = vpop.permute.xlu0 %50
    %vm52 = vcmask 523680
    %s53 = scalar_lea.vmem [#allocation0], 8
    %54 = vst.msk [vmem:[%s53] sm:$0x1] %vm52, %v51
    %s55 = scalar_lea.vmem %s0, 4
    %v56 = vld [vmem:[%s55] sm:$0x1]
    %57 = vrot.lane.b32.xlu0 %v56, 48
    %v58 = vpop.permute.xlu0 %57
    %vm59 = vcmask 490880
    %60 = vst.msk [vmem:[#allocation0] sm:$0x1] %vm59, %v58
    %s61 = scalar_lea.vmem %s0, 14
    %v62 = vld [vmem:[%s61] sm:$0x1]
    %63 = vrot.lane.b32.xlu0 %v62, 40
    %v64 = vpop.permute.xlu0 %63
    %vm65 = vcmask 425280
    %s66 = scalar_lea.vmem [#allocation0], 8
    %67 = vst.msk [vmem:[%s66] sm:$0x1] %vm65, %v64
    %s68 = scalar_lea.vmem %s0, 3
    %v69 = vld [vmem:[%s68] sm:$0x1]
    %70 = vrot.lane.b32.xlu0 %v69, 36
    %v71 = vpop.permute.xlu0 %70
    %vm72 = vcmask 392480
    %73 = vst.msk [vmem:[#allocation0] sm:$0x1] %vm72, %v71
    %s74 = scalar_lea.vmem %s0, 13
    %v75 = vld [vmem:[%s74] sm:$0x1]
    %76 = vrot.lane.b32.xlu0 %v75, 28
    %v77 = vpop.permute.xlu0 %76
    %vm78 = vcmask 326880
    %s79 = scalar_lea.vmem [#allocation0], 8
    %80 = vst.msk [vmem:[%s79] sm:$0x1] %vm78, %v77
    %s81 = scalar_lea.vmem %s0, 2
    %v82 = vld [vmem:[%s81] sm:$0x1]
    %83 = vrot.lane.b32.xlu0 %v82, 24
    %v84 = vpop.permute.xlu0 %83
    %vm85 = vcmask 294080
    %86 = vst.msk [vmem:[#allocation0] sm:$0x1] %vm85, %v84
    %s87 = scalar_lea.vmem %s0, 12
    %v88 = vld [vmem:[%s87] sm:$0x1]
    %89 = vrot.lane.b32.xlu0 %v88, 16
    %v90 = vpop.permute.xlu0 %89
    %vm91 = vcmask 228480
    %s92 = scalar_lea.vmem [#allocation0], 8
    %93 = vst.msk [vmem:[%s92] sm:$0x1] %vm91, %v90
    %s94 = scalar_lea.vmem %s0, 1
    %v95 = vld [vmem:[%s94] sm:$0x1]
    %96 = vrot.lane.b32.xlu0 %v95, 12
    %v97 = vpop.permute.xlu0 %96
    %vm98 = vcmask 195680
    %99 = vst.msk [vmem:[#allocation0] sm:$0x1] %vm98, %v97
    %s100 = scalar_lea.vmem %s0, 11
    %v101 = vld [vmem:[%s100] sm:$0x1]
    %102 = vrot.lane.b32.xlu0 %v101, 4
    %v103 = vpop.permute.xlu0 %102
    %vm104 = vcmask 130080
    %s105 = scalar_lea.vmem [#allocation0], 8
    %106 = vst.msk [vmem:[%s105] sm:$0x1] %vm104, %v103
    %s108 = sshllo.u32 0, 1
    %v110 = vld [vmem:[#allocation0] sm:%s108]
    %s111 = sshllo.u32 0, 1
    %112 = vst [vmem:[%s1] sm:%s111] %v110
    %s113 = scalar_lea.vmem [#allocation0], 8
    %v114 = vld [vmem:[%s113] sm:%s108]
    %s115 = sshllo.u32 0, 1
    %s116 = scalar_lea.vmem %s1, 1
    %117 = vst [vmem:[%s116] sm:%s115] %v114

// kernel: tile.44
$region0: #{tile.44}
  #allocation0 [shape = 's32[1]{0}', space=sflag, size = 0x4, scoped, tag = 'scoped memory for tile.44']
  %s0 = inlined_call_operand.vmem [shape: f32[12], index: 0, kind: input, shape index: {}]
  %s1 = inlined_call_operand.vmem [shape: f32[16,12], index: 1, kind: output, shape index: {}]
  // Predicated region
  $region2: #{tile.44} parent=0 // pred_check
    _
  $region3: #{tile.44} parent=0 // pred_check_branch
    %3 = sbr.rel (0) target = $region5
  $region4: #{tile.44} parent=0 // pred_region
    _
  $region5: #{tile.44} parent=0 // pred_fallthru
    _
  %v4 = vld [vmem:[%s0] ss:$0 sm:$0xff]
  %5 = vst [vmem:[%s1] sm:$0xff] %v4
  %s6 = scalar_lea.vmem %s1, 8
  %7 = vst [vmem:[%s6] sm:$0xff] %v4

// kernel: tile.25
$region0: #{tile.25}
  #allocation0 [shape = 's32[1]{0}', space=sflag, size = 0x4, scoped, tag = 'scoped memory for tile.25']
  %s0 = inlined_call_operand.vmem [shape: f32[8], index: 0, kind: input, shape index: {}]
  %s1 = inlined_call_operand.vmem [shape: f32[16,8], index: 1, kind: output, shape index: {}]
  // Predicated region
  $region2: #{tile.25} parent=0 // pred_check
    _
  $region3: #{tile.25} parent=0 // pred_check_branch
    %3 = sbr.rel (0) target = $region5
  $region4: #{tile.25} parent=0 // pred_region
    _
  $region5: #{tile.25} parent=0 // pred_fallthru
    _
  %v4 = vld [vmem:[%s0] ss:$0 sm:$0xff]
  %5 = vst [vmem:[%s1] sm:$0xff] %v4
  %s6 = scalar_lea.vmem %s1, 8
  %7 = vst [vmem:[%s6] sm:$0xff] %v4

// kernel: tile.35
$region0: #{tile.35}
  #allocation0 [shape = 's32[1]{0}', space=sflag, size = 0x4, scoped, tag = 'scoped memory for tile.35']
  %s0 = inlined_call_operand.vmem [shape: f32[16], index: 0, kind: input, shape index: {}]
  %s1 = inlined_call_operand.vmem [shape: f32[8,16], index: 1, kind: output, shape index: {}]
  // Predicated region
  $region2: #{tile.35} parent=0 // pred_check
    _
  $region3: #{tile.35} parent=0 // pred_check_branch
    %3 = sbr.rel (0) target = $region5
  $region4: #{tile.35} parent=0 // pred_region
    _
  $region5: #{tile.35} parent=0 // pred_fallthru
    _
  %v4 = vld [vmem:[%s0] ss:$0 sm:$0xff]
  %5 = vst [vmem:[%s1] sm:$0xff] %v4

// kernel: tile.36
$region0: #{tile.36}
  %s0 = inlined_call_operand.vmem [shape: f32[8,16], index: 0, kind: input, shape index: {}]
  %s1 = inlined_call_operand.vmem [shape: f32[1,128], index: 1, kind: output, shape index: {}]
  $region1: #{tile.36} parent=0
    #allocation0 [shape = 'u8[4096]{0}', space=vmem, size = 0x1000, scoped, tag = 'scoped mem for output reshape']
    %v2 = vld [vmem:[%s0] sm:$0x1]
    %vm3 = vcmask 130048
    %4 = vst.msk [vmem:[#allocation0] sm:$0x1] %vm3, %v2
    %s5 = scalar_lea.vmem %s0, 7
    %v6 = vld [vmem:[%s5] sm:$0x1]
    %7 = vrot.lane.b32.xlu0 %v6, 112
    %v8 = vpop.permute.xlu0 %7
    %vm9 = vcmask 1048448
    %10 = vst.msk [vmem:[#allocation0] sm:$0x1] %vm9, %v8
    %s11 = scalar_lea.vmem %s0, 6
    %v12 = vld [vmem:[%s11] sm:$0x1]
    %13 = vrot.lane.b32.xlu0 %v12, 96
    %v14 = vpop.permute.xlu0 %13
    %vm15 = vcmask 917248
    %16 = vst.msk [vmem:[#allocation0] sm:$0x1] %vm15, %v14
    %s17 = scalar_lea.vmem %s0, 5
    %v18 = vld [vmem:[%s17] sm:$0x1]
    %19 = vrot.lane.b32.xlu0 %v18, 80
    %v20 = vpop.permute.xlu0 %19
    %vm21 = vcmask 786048
    %22 = vst.msk [vmem:[#allocation0] sm:$0x1] %vm21, %v20
    %s23 = scalar_lea.vmem %s0, 4
    %v24 = vld [vmem:[%s23] sm:$0x1]
    %25 = vrot.lane.b32.xlu0 %v24, 64
    %v26 = vpop.permute.xlu0 %25
    %vm27 = vcmask 654848
    %28 = vst.msk [vmem:[#allocation0] sm:$0x1] %vm27, %v26
    %s29 = scalar_lea.vmem %s0, 3
    %v30 = vld [vmem:[%s29] sm:$0x1]
    %31 = vrot.lane.b32.xlu0 %v30, 48
    %v32 = vpop.permute.xlu0 %31
    %vm33 = vcmask 523648
    %34 = vst.msk [vmem:[#allocation0] sm:$0x1] %vm33, %v32
    %s35 = scalar_lea.vmem %s0, 2
    %v36 = vld [vmem:[%s35] sm:$0x1]
    %37 = vrot.lane.b32.xlu0 %v36, 32
    %v38 = vpop.permute.xlu0 %37
    %vm39 = vcmask 392448
    %40 = vst.msk [vmem:[#allocation0] sm:$0x1] %vm39, %v38
    %s41 = scalar_lea.vmem %s0, 1
    %v42 = vld [vmem:[%s41] sm:$0x1]
    %43 = vrot.lane.b32.xlu0 %v42, 16
    %v44 = vpop.permute.xlu0 %43
    %vm45 = vcmask 261248
    %46 = vst.msk [vmem:[#allocation0] sm:$0x1] %vm45, %v44
    %s48 = sshllo.u32 0, 1
    %v50 = vld [vmem:[#allocation0] sm:%s48]
    %s51 = sshllo.u32 0, 1
    %52 = vst [vmem:[%s1] sm:%s51] %v50

// kernel: tile.30
$region0: #{tile.30}
  #allocation0 [shape = 's32[1]{0}', space=sflag, size = 0x4, scoped, tag = 'scoped memory for tile.30']
  %s0 = inlined_call_operand.vmem [shape: f32[32], index: 0, kind: input, shape index: {}]
  %s1 = inlined_call_operand.vmem [shape: f32[4,32], index: 1, kind: output, shape index: {}]
  // Predicated region
  $region2: #{tile.30} parent=0 // pred_check
    _
  $region3: #{tile.30} parent=0 // pred_check_branch
    %3 = sbr.rel (0) target = $region5
  $region4: #{tile.30} parent=0 // pred_region
    _
  $region5: #{tile.30} parent=0 // pred_fallthru
    _
  %v4 = vld [vmem:[%s0] ss:$0 sm:$0xff]
  %5 = vst [vmem:[%s1] sm:$0xf] %v4

// kernel: tile.26
$region0: #{tile.26}
  %s0 = inlined_call_operand.vmem [shape: f32[16,8], index: 0, kind: input, shape index: {}]
  %s1 = inlined_call_operand.vmem [shape: f32[1,128], index: 1, kind: output, shape index: {}]
  $region1: #{tile.26} parent=0
    #allocation0 [shape = 'u8[4096]{0}', space=vmem, size = 0x1000, scoped, tag = 'scoped mem for output reshape']
    %v2 = vld [vmem:[%s0] sm:$0x1]
    %vm3 = vcmask 64512
    %4 = vst.msk [vmem:[#allocation0] sm:$0x1] %vm3, %v2
    %s5 = scalar_lea.vmem %s0, 15
    %v6 = vld [vmem:[%s5] sm:$0x1]
    %7 = vrot.lane.b32.xlu0 %v6, 120
    %v8 = vpop.permute.xlu0 %7
    %vm9 = vcmask 1048512
    %10 = vst.msk [vmem:[#allocation0] sm:$0x1] %vm9, %v8
    %s11 = scalar_lea.vmem %s0, 14
    %v12 = vld [vmem:[%s11] sm:$0x1]
    %13 = vrot.lane.b32.xlu0 %v12, 112
    %v14 = vpop.permute.xlu0 %13
    %vm15 = vcmask 982912
    %16 = vst.msk [vmem:[#allocation0] sm:$0x1] %vm15, %v14
    %s17 = scalar_lea.vmem %s0, 13
    %v18 = vld [vmem:[%s17] sm:$0x1]
    %19 = vrot.lane.b32.xlu0 %v18, 104
    %v20 = vpop.permute.xlu0 %19
    %vm21 = vcmask 917312
    %22 = vst.msk [vmem:[#allocation0] sm:$0x1] %vm21, %v20
    %s23 = scalar_lea.vmem %s0, 12
    %v24 = vld [vmem:[%s23] sm:$0x1]
    %25 = vrot.lane.b32.xlu0 %v24, 96
    %v26 = vpop.permute.xlu0 %25
    %vm27 = vcmask 851712
    %28 = vst.msk [vmem:[#allocation0] sm:$0x1] %vm27, %v26
    %s29 = scalar_lea.vmem %s0, 11
    %v30 = vld [vmem:[%s29] sm:$0x1]
    %31 = vrot.lane.b32.xlu0 %v30, 88
    %v32 = vpop.permute.xlu0 %31
    %vm33 = vcmask 786112
    %34 = vst.msk [vmem:[#allocation0] sm:$0x1] %vm33, %v32
    %s35 = scalar_lea.vmem %s0, 10
    %v36 = vld [vmem:[%s35] sm:$0x1]
    %37 = vrot.lane.b32.xlu0 %v36, 80
    %v38 = vpop.permute.xlu0 %37
    %vm39 = vcmask 720512
    %40 = vst.msk [vmem:[#allocation0] sm:$0x1] %vm39, %v38
    %s41 = scalar_lea.vmem %s0, 9
    %v42 = vld [vmem:[%s41] sm:$0x1]
    %43 = vrot.lane.b32.xlu0 %v42, 72
    %v44 = vpop.permute.xlu0 %43
    %vm45 = vcmask 654912
    %46 = vst.msk [vmem:[#allocation0] sm:$0x1] %vm45, %v44
    %s47 = scalar_lea.vmem %s0, 8
    %v48 = vld [vmem:[%s47] sm:$0x1]
    %49 = vrot.lane.b32.xlu0 %v48, 64
    %v50 = vpop.permute.xlu0 %49
    %vm51 = vcmask 589312
    %52 = vst.msk [vmem:[#allocation0] sm:$0x1] %vm51, %v50
    %s53 = scalar_lea.vmem %s0, 7
    %v54 = vld [vmem:[%s53] sm:$0x1]
    %55 = vrot.lane.b32.xlu0 %v54, 56
    %v56 = vpop.permute.xlu0 %55
    %vm57 = vcmask 523712
    %58 = vst.msk [vmem:[#allocation0] sm:$0x1] %vm57, %v56
    %s59 = scalar_lea.vmem %s0, 6
    %v60 = vld [vmem:[%s59] sm:$0x1]
    %61 = vrot.lane.b32.xlu0 %v60, 48
    %v62 = vpop.permute.xlu0 %61
    %vm63 = vcmask 458112
    %64 = vst.msk [vmem:[#allocation0] sm:$0x1] %vm63, %v62
    %s65 = scalar_lea.vmem %s0, 5
    %v66 = vld [vmem:[%s65] sm:$0x1]
    %67 = vrot.lane.b32.xlu0 %v66, 40
    %v68 = vpop.permute.xlu0 %67
    %vm69 = vcmask 392512
    %70 = vst.msk [vmem:[#allocation0] sm:$0x1] %vm69, %v68
    %s71 = scalar_lea.vmem %s0, 4
    %v72 = vld [vmem:[%s71] sm:$0x1]
    %73 = vrot.lane.b32.xlu0 %v72, 32
    %v74 = vpop.permute.xlu0 %73
    %vm75 = vcmask 326912
    %76 = vst.msk [vmem:[#allocation0] sm:$0x1] %vm75, %v74
    %s77 = scalar_lea.vmem %s0, 3
    %v78 = vld [vmem:[%s77] sm:$0x1]
    %79 = vrot.lane.b32.xlu0 %v78, 24
    %v80 = vpop.permute.xlu0 %79
    %vm81 = vcmask 261312
    %82 = vst.msk [vmem:[#allocation0] sm:$0x1] %vm81, %v80
    %s83 = scalar_lea.vmem %s0, 2
    %v84 = vld [vmem:[%s83] sm:$0x1]
    %85 = vrot.lane.b32.xlu0 %v84, 16
    %v86 = vpop.permute.xlu0 %85
    %vm87 = vcmask 195712
    %88 = vst.msk [vmem:[#allocation0] sm:$0x1] %vm87, %v86
    %s89 = scalar_lea.vmem %s0, 1
    %v90 = vld [vmem:[%s89] sm:$0x1]
    %91 = vrot.lane.b32.xlu0 %v90, 8
    %v92 = vpop.permute.xlu0 %91
    %vm93 = vcmask 130112
    %94 = vst.msk [vmem:[#allocation0] sm:$0x1] %vm93, %v92
    %s96 = sshllo.u32 0, 1
    %v98 = vld [vmem:[#allocation0] sm:%s96]
    %s99 = sshllo.u32 0, 1
    %100 = vst [vmem:[%s1] sm:%s99] %v98

// kernel: tile.31
$region0: #{tile.31}
  %s0 = inlined_call_operand.vmem [shape: f32[4,32], index: 0, kind: input, shape index: {}]
  %s1 = inlined_call_operand.vmem [shape: f32[1,128], index: 1, kind: output, shape index: {}]
  $region1: #{tile.31} parent=0
    #allocation0 [shape = 'u8[4096]{0}', space=vmem, size = 0x1000, scoped, tag = 'scoped mem for output reshape']
    #allocation1 [shape = 'u8[4096]{0}', space=vmem, size = 0x1000, scoped, tag = 'scoped mem for input reshape']
    %s3 = sshllo.u32 0, 4
    %v4 = vld [vmem:[%s0] sm:%s3]
    %5 = vst [vmem:[#allocation1] sm:%s3] %v4
    %v6 = vld [vmem:[#allocation1] sm:$0x1]
    %vm7 = vcmask 261120
    %8 = vst.msk [vmem:[#allocation0] sm:$0x1] %vm7, %v6
    %s9 = scalar_lea.vmem [#allocation1], 3
    %v10 = vld [vmem:[%s9] sm:$0x1]
    %11 = vrot.lane.b32.xlu0 %v10, 96
    %v12 = vpop.permute.xlu0 %11
    %vm13 = vcmask 1048320
    %14 = vst.msk [vmem:[#allocation0] sm:$0x1] %vm13, %v12
    %s15 = scalar_lea.vmem [#allocation1], 2
    %v16 = vld [vmem:[%s15] sm:$0x1]
    %17 = vrot.lane.b32.xlu0 %v16, 64
    %v18 = vpop.permute.xlu0 %17
    %vm19 = vcmask 785920
    %20 = vst.msk [vmem:[#allocation0] sm:$0x1] %vm19, %v18
    %s21 = scalar_lea.vmem [#allocation1], 1
    %v22 = vld [vmem:[%s21] sm:$0x1]
    %23 = vrot.lane.b32.xlu0 %v22, 32
    %v24 = vpop.permute.xlu0 %23
    %vm25 = vcmask 523520
    %26 = vst.msk [vmem:[#allocation0] sm:$0x1] %vm25, %v24
    %s28 = sshllo.u32 0, 1
    %v30 = vld [vmem:[#allocation0] sm:%s28]
    %s31 = sshllo.u32 0, 1
    %32 = vst [vmem:[%s1] sm:%s31] %v30

// kernel: _lambda_.1
$region0: #{_lambda_.1}
  #allocation0 [shape = 'u32[]', space=smem, size = 0x4, offset = 0x4, fixed_abs, tag = 'smem constant byte address 0x4 - core index']
  #allocation1 [shape = 'u32[144,128]{1,0:T(1,128)}', space=vmem, size = 0x12000, scoped, tag = 'internal scratch']
  %s0 = inlined_call_operand.vmem [shape: f32[2,16,128], index: 0, kind: input, shape index: {}]
  %s1 = inlined_call_operand.vmem [shape: f32[14,16,16], index: 1, kind: input, shape index: {}]
  %s2 = inlined_call_operand.vmem [shape: f32[3,128,128], index: 2, kind: input, shape index: {}]
  %s3 = inlined_call_operand.vmem [shape: f32[1,128], index: 3, kind: input, shape index: {}]
  %s4 = inlined_call_operand.vmem [shape: f32[3,128,128], index: 4, kind: input, shape index: {}]
  %s5 = inlined_call_operand.vmem [shape: f32[3,128,128], index: 5, kind: input, shape index: {}]
  %s6 = inlined_call_operand.vmem [shape: f32[3,128,128], index: 6, kind: input, shape index: {}]
  %s7 = inlined_call_operand.vmem [shape: f32[3,128,128], index: 7, kind: input, shape index: {}]
  %s8 = inlined_call_operand.vmem [shape: f32[1,128], index: 8, kind: input, shape index: {}]
  %s9 = inlined_call_operand.vmem [shape: f32[3,128,128], index: 9, kind: input, shape index: {}]
  %s10 = inlined_call_operand.vmem [shape: f32[3,128,128], index: 10, kind: input, shape index: {}]
  %s11 = inlined_call_operand.vmem [shape: f32[1,128], index: 11, kind: input, shape index: {}]
  %s12 = inlined_call_operand.vmem [shape: f32[3,128,128], index: 12, kind: input, shape index: {}]
  %s13 = inlined_call_operand.vmem [shape: f32[3,128,128], index: 13, kind: input, shape index: {}]
  %s14 = inlined_call_operand.vmem [shape: f32[1,128], index: 14, kind: input, shape index: {}]
  %s15 = inlined_call_operand.vmem [shape: f32[3,128,192], index: 15, kind: input, shape index: {}]
  %s16 = inlined_call_operand.vmem [shape: f32[3,128,192], index: 16, kind: input, shape index: {}]
  %s17 = inlined_call_operand.vmem [shape: f32[1,192], index: 17, kind: input, shape index: {}]
  %s18 = inlined_call_operand.vmem [shape: f32[2,16,192], index: 18, kind: output, shape index: {}]
  %s19 = sld [smem:[#allocation0]]
  $region105: #{_lambda_.1} parent=0
    _
  %s21 = ssub.s32 1, %s19
  %s22 = scalar_select 0, %s21, %s19
  loop: start=0, step=1, limit=4
  $region2: #{_lambda_.1} parent=0 // loop_pre_header
    _
  $region3: #{_lambda_.1} parent=0 // loop_header
    %s24 = sphi 0, %s28
    %p25 = scmp.ge.s32.totalorder %s24, 4
    %s34 = sphi 0, %s36
    %s37 = sphi 0, %s34
    %s38 = sphi 0, %s37
    %s54 = sphi 0, %s38
    %s58 = sphi 0, %s58
    %s60 = sphi 0, %s58
    %s61 = sphi 0, %s60
    %s75 = sphi 0, %s61
    %s79 = sphi 0, %s79
    %s81 = sphi 0, %s79
    %s82 = sphi 0, %s81
    %s96 = sphi 0, %s82
    %s100 = sphi 0, %s100
    %s102 = sphi 0, %s100
    %s103 = sphi 0, %s102
    %s117 = sphi 0, %s103
    %s121 = sphi 0, %s121
    %s123 = sphi 0, %s121
    %s124 = sphi 0, %s123
    %s138 = sphi 0, %s124
    %s142 = sphi 0, %s142
    %s144 = sphi 0, %s142
    %s145 = sphi 0, %s144
    %s159 = sphi 0, %s145
    %s163 = sphi 0, %s163
    %s165 = sphi 0, %s163
    %s166 = sphi 0, %s165
    %s180 = sphi 0, %s166
    %s184 = sphi 0, %s184
    %s186 = sphi 0, %s184
    %s187 = sphi 0, %s186
    %s201 = sphi 0, %s187
    %s205 = sphi 0, %s205
    %s207 = sphi 0, %s205
    %s208 = sphi 0, %s207
    %s222 = sphi 0, %s208
    %s226 = sphi 0, %s226
    %s228 = sphi 0, %s226
    %s229 = sphi 0, %s228
    %s243 = sphi 0, %s229
    %s247 = sphi 0, %s247
    %s249 = sphi 0, %s247
    %s250 = sphi 0, %s249
    %s264 = sphi 0, %s250
    %s268 = sphi 0, %s268
    %s270 = sphi 0, %s268
    %s271 = sphi 0, %s270
    %s285 = sphi 0, %s271
    %s289 = sphi 0, %s289
    %s291 = sphi 0, %s289
    %s292 = sphi 0, %s291
    %s306 = sphi 0, %s292
    %s310 = sphi 0, %s310
    %s312 = sphi 0, %s310
    %s313 = sphi 0, %s312
    %s327 = sphi 0, %s313
    %s331 = sphi 0, %s331
    %s333 = sphi 0, %s331
    %s334 = sphi 0, %s333
    %s348 = sphi 0, %s334
    %s352 = sphi 0, %s352
    %s354 = sphi 0, %s352
    %s355 = sphi 0, %s354
    %s369 = sphi 0, %s355
    %s373 = sphi 0, %s373
    %s375 = sphi 0, %s373
    %s376 = sphi 0, %s375
    %s390 = sphi 0, %s376
    %s394 = sphi 0, %s394
    %s396 = sphi 0, %s394
    %s397 = sphi 0, %s396
    %s411 = sphi 0, %s397
    %s417 = sphi 0, %s419
    %s420 = sphi 0, %s417
    %s421 = sphi 0, %s420
    %s437 = sphi 0, %s421
  $region4: #{_lambda_.1} parent=0 // loop_header_branch
    %27 = sbr.rel (%p25) target = $region8
  $region5: #{_lambda_.1} parent=0 // loop_body
    %s29 = ssub.s32 %s24, 1
    %s30 = ssub.s32 %s24, 2
    %s31 = sadd.s32 %s24, 1
    %s32 = ssub.s32 %s24, %s31
    %p33 = scmp.eq.s32.totalorder %s32, 0
    %s35 = sadd.s32 %s34, 1
    %s36 = scalar_select %p33, %s34, %s35
    %p39 = pneg %p33
    %p40 = scmp.eq.s32.totalorder %s24, 1
    %p41 = por %p39, %p40
    %p42 = scmp.ne.s32.totalorder %s34, %s37
    %p43 = scmp.eq.s32.totalorder %s24, 0
    %p44 = por %p42, %p43
    %p45 = scmp.ne.s32.totalorder %s34, %s37
    %p46 = scmp.eq.s32.totalorder %s29, 1
    %p47 = por %p45, %p46
    %p48 = scmp.ne.s32.totalorder %s37, %s38
    %p49 = scmp.eq.s32.totalorder %s29, 0
    %p50 = por %p48, %p49
    %p51 = scmp.ne.s32.totalorder %s37, %s38
    %p52 = scmp.eq.s32.totalorder %s30, 1
    %p53 = por %p51, %p52
    %p55 = scmp.ne.s32.totalorder %s38, %s54
    %p56 = scmp.eq.s32.totalorder %s30, 0
    %p57 = por %p55, %p56
    %s59 = sadd.s32 %s58, 1
    %p62 = scmp.eq.s32.totalorder %s24, 1
    %p63 = scmp.ne.s32.totalorder %s58, %s60
    %p64 = scmp.eq.s32.totalorder %s24, 0
    %p65 = por %p63, %p64
    %p66 = scmp.ne.s32.totalorder %s58, %s60
    %p67 = scmp.eq.s32.totalorder %s29, 1
    %p68 = por %p66, %p67
    %p69 = scmp.ne.s32.totalorder %s60, %s61
    %p70 = scmp.eq.s32.totalorder %s29, 0
    %p71 = por %p69, %p70
    %p72 = scmp.ne.s32.totalorder %s60, %s61
    %p73 = scmp.eq.s32.totalorder %s30, 1
    %p74 = por %p72, %p73
    %p76 = scmp.ne.s32.totalorder %s61, %s75
    %p77 = scmp.eq.s32.totalorder %s30, 0
    %p78 = por %p76, %p77
    %s80 = sadd.s32 %s79, 1
    %p83 = scmp.eq.s32.totalorder %s24, 1
    %p84 = scmp.ne.s32.totalorder %s79, %s81
    %p85 = scmp.eq.s32.totalorder %s24, 0
    %p86 = por %p84, %p85
    %p87 = scmp.ne.s32.totalorder %s79, %s81
    %p88 = scmp.eq.s32.totalorder %s29, 1
    %p89 = por %p87, %p88
    %p90 = scmp.ne.s32.totalorder %s81, %s82
    %p91 = scmp.eq.s32.totalorder %s29, 0
    %p92 = por %p90, %p91
    %p93 = scmp.ne.s32.totalorder %s81, %s82
    %p94 = scmp.eq.s32.totalorder %s30, 1
    %p95 = por %p93, %p94
    %p97 = scmp.ne.s32.totalorder %s82, %s96
    %p98 = scmp.eq.s32.totalorder %s30, 0
    %p99 = por %p97, %p98
    %s101 = sadd.s32 %s100, 1
    %p104 = scmp.eq.s32.totalorder %s24, 1
    %p105 = scmp.ne.s32.totalorder %s100, %s102
    %p106 = scmp.eq.s32.totalorder %s24, 0
    %p107 = por %p105, %p106
    %p108 = scmp.ne.s32.totalorder %s100, %s102
    %p109 = scmp.eq.s32.totalorder %s29, 1
    %p110 = por %p108, %p109
    %p111 = scmp.ne.s32.totalorder %s102, %s103
    %p112 = scmp.eq.s32.totalorder %s29, 0
    %p113 = por %p111, %p112
    %p114 = scmp.ne.s32.totalorder %s102, %s103
    %p115 = scmp.eq.s32.totalorder %s30, 1
    %p116 = por %p114, %p115
    %p118 = scmp.ne.s32.totalorder %s103, %s117
    %p119 = scmp.eq.s32.totalorder %s30, 0
    %p120 = por %p118, %p119
    %s122 = sadd.s32 %s121, 1
    %p125 = scmp.eq.s32.totalorder %s24, 1
    %p126 = scmp.ne.s32.totalorder %s121, %s123
    %p127 = scmp.eq.s32.totalorder %s24, 0
    %p128 = por %p126, %p127
    %p129 = scmp.ne.s32.totalorder %s121, %s123
    %p130 = scmp.eq.s32.totalorder %s29, 1
    %p131 = por %p129, %p130
    %p132 = scmp.ne.s32.totalorder %s123, %s124
    %p133 = scmp.eq.s32.totalorder %s29, 0
    %p134 = por %p132, %p133
    %p135 = scmp.ne.s32.totalorder %s123, %s124
    %p136 = scmp.eq.s32.totalorder %s30, 1
    %p137 = por %p135, %p136
    %p139 = scmp.ne.s32.totalorder %s124, %s138
    %p140 = scmp.eq.s32.totalorder %s30, 0
    %p141 = por %p139, %p140
    %s143 = sadd.s32 %s142, 1
    %p146 = scmp.eq.s32.totalorder %s24, 1
    %p147 = scmp.ne.s32.totalorder %s142, %s144
    %p148 = scmp.eq.s32.totalorder %s24, 0
    %p149 = por %p147, %p148
    %p150 = scmp.ne.s32.totalorder %s142, %s144
    %p151 = scmp.eq.s32.totalorder %s29, 1
    %p152 = por %p150, %p151
    %p153 = scmp.ne.s32.totalorder %s144, %s145
    %p154 = scmp.eq.s32.totalorder %s29, 0
    %p155 = por %p153, %p154
    %p156 = scmp.ne.s32.totalorder %s144, %s145
    %p157 = scmp.eq.s32.totalorder %s30, 1
    %p158 = por %p156, %p157
    %p160 = scmp.ne.s32.totalorder %s145, %s159
    %p161 = scmp.eq.s32.totalorder %s30, 0
    %p162 = por %p160, %p161
    %s164 = sadd.s32 %s163, 1
    %p167 = scmp.eq.s32.totalorder %s24, 1
    %p168 = scmp.ne.s32.totalorder %s163, %s165
    %p169 = scmp.eq.s32.totalorder %s24, 0
    %p170 = por %p168, %p169
    %p171 = scmp.ne.s32.totalorder %s163, %s165
    %p172 = scmp.eq.s32.totalorder %s29, 1
    %p173 = por %p171, %p172
    %p174 = scmp.ne.s32.totalorder %s165, %s166
    %p175 = scmp.eq.s32.totalorder %s29, 0
    %p176 = por %p174, %p175
    %p177 = scmp.ne.s32.totalorder %s165, %s166
    %p178 = scmp.eq.s32.totalorder %s30, 1
    %p179 = por %p177, %p178
    %p181 = scmp.ne.s32.totalorder %s166, %s180
    %p182 = scmp.eq.s32.totalorder %s30, 0
    %p183 = por %p181, %p182
    %s185 = sadd.s32 %s184, 1
    %p188 = scmp.eq.s32.totalorder %s24, 1
    %p189 = scmp.ne.s32.totalorder %s184, %s186
    %p190 = scmp.eq.s32.totalorder %s24, 0
    %p191 = por %p189, %p190
    %p192 = scmp.ne.s32.totalorder %s184, %s186
    %p193 = scmp.eq.s32.totalorder %s29, 1
    %p194 = por %p192, %p193
    %p195 = scmp.ne.s32.totalorder %s186, %s187
    %p196 = scmp.eq.s32.totalorder %s29, 0
    %p197 = por %p195, %p196
    %p198 = scmp.ne.s32.totalorder %s186, %s187
    %p199 = scmp.eq.s32.totalorder %s30, 1
    %p200 = por %p198, %p199
    %p202 = scmp.ne.s32.totalorder %s187, %s201
    %p203 = scmp.eq.s32.totalorder %s30, 0
    %p204 = por %p202, %p203
    %s206 = sadd.s32 %s205, 1
    %p209 = scmp.eq.s32.totalorder %s24, 1
    %p210 = scmp.ne.s32.totalorder %s205, %s207
    %p211 = scmp.eq.s32.totalorder %s24, 0
    %p212 = por %p210, %p211
    %p213 = scmp.ne.s32.totalorder %s205, %s207
    %p214 = scmp.eq.s32.totalorder %s29, 1
    %p215 = por %p213, %p214
    %p216 = scmp.ne.s32.totalorder %s207, %s208
    %p217 = scmp.eq.s32.totalorder %s29, 0
    %p218 = por %p216, %p217
    %p219 = scmp.ne.s32.totalorder %s207, %s208
    %p220 = scmp.eq.s32.totalorder %s30, 1
    %p221 = por %p219, %p220
    %p223 = scmp.ne.s32.totalorder %s208, %s222
    %p224 = scmp.eq.s32.totalorder %s30, 0
    %p225 = por %p223, %p224
    %s227 = sadd.s32 %s226, 1
    %p230 = scmp.eq.s32.totalorder %s24, 1
    %p231 = scmp.ne.s32.totalorder %s226, %s228
    %p232 = scmp.eq.s32.totalorder %s24, 0
    %p233 = por %p231, %p232
    %p234 = scmp.ne.s32.totalorder %s226, %s228
    %p235 = scmp.eq.s32.totalorder %s29, 1
    %p236 = por %p234, %p235
    %p237 = scmp.ne.s32.totalorder %s228, %s229
    %p238 = scmp.eq.s32.totalorder %s29, 0
    %p239 = por %p237, %p238
    %p240 = scmp.ne.s32.totalorder %s228, %s229
    %p241 = scmp.eq.s32.totalorder %s30, 1
    %p242 = por %p240, %p241
    %p244 = scmp.ne.s32.totalorder %s229, %s243
    %p245 = scmp.eq.s32.totalorder %s30, 0
    %p246 = por %p244, %p245
    %s248 = sadd.s32 %s247, 1
    %p251 = scmp.eq.s32.totalorder %s24, 1
    %p252 = scmp.ne.s32.totalorder %s247, %s249
    %p253 = scmp.eq.s32.totalorder %s24, 0
    %p254 = por %p252, %p253
    %p255 = scmp.ne.s32.totalorder %s247, %s249
    %p256 = scmp.eq.s32.totalorder %s29, 1
    %p257 = por %p255, %p256
    %p258 = scmp.ne.s32.totalorder %s249, %s250
    %p259 = scmp.eq.s32.totalorder %s29, 0
    %p260 = por %p258, %p259
    %p261 = scmp.ne.s32.totalorder %s249, %s250
    %p262 = scmp.eq.s32.totalorder %s30, 1
    %p263 = por %p261, %p262
    %p265 = scmp.ne.s32.totalorder %s250, %s264
    %p266 = scmp.eq.s32.totalorder %s30, 0
    %p267 = por %p265, %p266
    %s269 = sadd.s32 %s268, 1
    %p272 = scmp.eq.s32.totalorder %s24, 1
    %p273 = scmp.ne.s32.totalorder %s268, %s270
    %p274 = scmp.eq.s32.totalorder %s24, 0
    %p275 = por %p273, %p274
    %p276 = scmp.ne.s32.totalorder %s268, %s270
    %p277 = scmp.eq.s32.totalorder %s29, 1
    %p278 = por %p276, %p277
    %p279 = scmp.ne.s32.totalorder %s270, %s271
    %p280 = scmp.eq.s32.totalorder %s29, 0
    %p281 = por %p279, %p280
    %p282 = scmp.ne.s32.totalorder %s270, %s271
    %p283 = scmp.eq.s32.totalorder %s30, 1
    %p284 = por %p282, %p283
    %p286 = scmp.ne.s32.totalorder %s271, %s285
    %p287 = scmp.eq.s32.totalorder %s30, 0
    %p288 = por %p286, %p287
    %s290 = sadd.s32 %s289, 1
    %p293 = scmp.eq.s32.totalorder %s24, 1
    %p294 = scmp.ne.s32.totalorder %s289, %s291
    %p295 = scmp.eq.s32.totalorder %s24, 0
    %p296 = por %p294, %p295
    %p297 = scmp.ne.s32.totalorder %s289, %s291
    %p298 = scmp.eq.s32.totalorder %s29, 1
    %p299 = por %p297, %p298
    %p300 = scmp.ne.s32.totalorder %s291, %s292
    %p301 = scmp.eq.s32.totalorder %s29, 0
    %p302 = por %p300, %p301
    %p303 = scmp.ne.s32.totalorder %s291, %s292
    %p304 = scmp.eq.s32.totalorder %s30, 1
    %p305 = por %p303, %p304
    %p307 = scmp.ne.s32.totalorder %s292, %s306
    %p308 = scmp.eq.s32.totalorder %s30, 0
    %p309 = por %p307, %p308
    %s311 = sadd.s32 %s310, 1
    %p314 = scmp.eq.s32.totalorder %s24, 1
    %p315 = scmp.ne.s32.totalorder %s310, %s312
    %p316 = scmp.eq.s32.totalorder %s24, 0
    %p317 = por %p315, %p316
    %p318 = scmp.ne.s32.totalorder %s310, %s312
    %p319 = scmp.eq.s32.totalorder %s29, 1
    %p320 = por %p318, %p319
    %p321 = scmp.ne.s32.totalorder %s312, %s313
    %p322 = scmp.eq.s32.totalorder %s29, 0
    %p323 = por %p321, %p322
    %p324 = scmp.ne.s32.totalorder %s312, %s313
    %p325 = scmp.eq.s32.totalorder %s30, 1
    %p326 = por %p324, %p325
    %p328 = scmp.ne.s32.totalorder %s313, %s327
    %p329 = scmp.eq.s32.totalorder %s30, 0
    %p330 = por %p328, %p329
    %s332 = sadd.s32 %s331, 1
    %p335 = scmp.eq.s32.totalorder %s24, 1
    %p336 = scmp.ne.s32.totalorder %s331, %s333
    %p337 = scmp.eq.s32.totalorder %s24, 0
    %p338 = por %p336, %p337
    %p339 = scmp.ne.s32.totalorder %s331, %s333
    %p340 = scmp.eq.s32.totalorder %s29, 1
    %p341 = por %p339, %p340
    %p342 = scmp.ne.s32.totalorder %s333, %s334
    %p343 = scmp.eq.s32.totalorder %s29, 0
    %p344 = por %p342, %p343
    %p345 = scmp.ne.s32.totalorder %s333, %s334
    %p346 = scmp.eq.s32.totalorder %s30, 1
    %p347 = por %p345, %p346
    %p349 = scmp.ne.s32.totalorder %s334, %s348
    %p350 = scmp.eq.s32.totalorder %s30, 0
    %p351 = por %p349, %p350
    %s353 = sadd.s32 %s352, 1
    %p356 = scmp.eq.s32.totalorder %s24, 1
    %p357 = scmp.ne.s32.totalorder %s352, %s354
    %p358 = scmp.eq.s32.totalorder %s24, 0
    %p359 = por %p357, %p358
    %p360 = scmp.ne.s32.totalorder %s352, %s354
    %p361 = scmp.eq.s32.totalorder %s29, 1
    %p362 = por %p360, %p361
    %p363 = scmp.ne.s32.totalorder %s354, %s355
    %p364 = scmp.eq.s32.totalorder %s29, 0
    %p365 = por %p363, %p364
    %p366 = scmp.ne.s32.totalorder %s354, %s355
    %p367 = scmp.eq.s32.totalorder %s30, 1
    %p368 = por %p366, %p367
    %p370 = scmp.ne.s32.totalorder %s355, %s369
    %p371 = scmp.eq.s32.totalorder %s30, 0
    %p372 = por %p370, %p371
    %s374 = sadd.s32 %s373, 1
    %p377 = scmp.eq.s32.totalorder %s24, 1
    %p378 = scmp.ne.s32.totalorder %s373, %s375
    %p379 = scmp.eq.s32.totalorder %s24, 0
    %p380 = por %p378, %p379
    %p381 = scmp.ne.s32.totalorder %s373, %s375
    %p382 = scmp.eq.s32.totalorder %s29, 1
    %p383 = por %p381, %p382
    %p384 = scmp.ne.s32.totalorder %s375, %s376
    %p385 = scmp.eq.s32.totalorder %s29, 0
    %p386 = por %p384, %p385
    %p387 = scmp.ne.s32.totalorder %s375, %s376
    %p388 = scmp.eq.s32.totalorder %s30, 1
    %p389 = por %p387, %p388
    %p391 = scmp.ne.s32.totalorder %s376, %s390
    %p392 = scmp.eq.s32.totalorder %s30, 0
    %p393 = por %p391, %p392
    %s395 = sadd.s32 %s394, 1
    %p398 = scmp.eq.s32.totalorder %s24, 1
    %p399 = scmp.ne.s32.totalorder %s394, %s396
    %p400 = scmp.eq.s32.totalorder %s24, 0
    %p401 = por %p399, %p400
    %p402 = scmp.ne.s32.totalorder %s394, %s396
    %p403 = scmp.eq.s32.totalorder %s29, 1
    %p404 = por %p402, %p403
    %p405 = scmp.ne.s32.totalorder %s396, %s397
    %p406 = scmp.eq.s32.totalorder %s29, 0
    %p407 = por %p405, %p406
    %p408 = scmp.ne.s32.totalorder %s396, %s397
    %p409 = scmp.eq.s32.totalorder %s30, 1
    %p410 = por %p408, %p409
    %p412 = scmp.ne.s32.totalorder %s397, %s411
    %p413 = scmp.eq.s32.totalorder %s30, 0
    %p414 = por %p412, %p413
    %s415 = ssub.s32 %s24, %s31
    %p416 = scmp.eq.s32.totalorder %s415, 0
    %s418 = sadd.s32 %s417, 1
    %s419 = scalar_select %p416, %s417, %s418
    %p422 = pneg %p416
    %p423 = scmp.eq.s32.totalorder %s24, 1
    %p424 = por %p422, %p423
    %p425 = scmp.ne.s32.totalorder %s417, %s420
    %p426 = scmp.eq.s32.totalorder %s24, 0
    %p427 = por %p425, %p426
    %p428 = scmp.ne.s32.totalorder %s417, %s420
    %p429 = scmp.eq.s32.totalorder %s29, 1
    %p430 = por %p428, %p429
    %p431 = scmp.ne.s32.totalorder %s420, %s421
    %p432 = scmp.eq.s32.totalorder %s29, 0
    %p433 = por %p431, %p432
    %p434 = scmp.ne.s32.totalorder %s420, %s421
    %p435 = scmp.eq.s32.totalorder %s30, 1
    %p436 = por %p434, %p435
    %p438 = scmp.ne.s32.totalorder %s421, %s437
    %p439 = scmp.eq.s32.totalorder %s30, 0
    %p440 = por %p438, %p439
    %p441 = scmp.le.s32.totalorder 1, %s24
    %p442 = scmp.lt.s32.totalorder %s24, 3
    %p443 = pnand %p441, %p442
    %p444 = pneg %p443
    // Predicated region
    $region9: #{_lambda_.1} parent=5 // pred_check
      _
    $region10: #{_lambda_.1} parent=5 // pred_check_branch
      %446 = sbr.rel (%p443) target = $region12
    $region11: #{_lambda_.1} parent=5 // pred_region
      %s447 = ssub.s32 %s24, 1
      // Predicated region
      $region13: #{_lambda_.1} parent=11 // pred_check
        %p448 = pneg %p71
      $region14: #{_lambda_.1} parent=11 // pred_check_branch
        %450 = sbr.rel (%p448) target = $region16
      $region15: #{_lambda_.1} parent=11 // pred_region
        _
      $region16: #{_lambda_.1} parent=11 // pred_fallthru
        _
      // Predicated region
      $region17: #{_lambda_.1} parent=11 // pred_check
        %p451 = pneg %p92
      $region18: #{_lambda_.1} parent=11 // pred_check_branch
        %453 = sbr.rel (%p451) target = $region20
      $region19: #{_lambda_.1} parent=11 // pred_region
        _
      $region20: #{_lambda_.1} parent=11 // pred_fallthru
        _
      // Predicated region
      $region21: #{_lambda_.1} parent=11 // pred_check
        %p454 = pneg %p113
      $region22: #{_lambda_.1} parent=11 // pred_check_branch
        %456 = sbr.rel (%p454) target = $region24
      $region23: #{_lambda_.1} parent=11 // pred_region
        _
      $region24: #{_lambda_.1} parent=11 // pred_fallthru
        _
      // Predicated region
      $region25: #{_lambda_.1} parent=11 // pred_check
        %p457 = pneg %p134
      $region26: #{_lambda_.1} parent=11 // pred_check_branch
        %459 = sbr.rel (%p457) target = $region28
      $region27: #{_lambda_.1} parent=11 // pred_region
        _
      $region28: #{_lambda_.1} parent=11 // pred_fallthru
        _
      // Predicated region
      $region29: #{_lambda_.1} parent=11 // pred_check
        %p460 = pneg %p155
      $region30: #{_lambda_.1} parent=11 // pred_check_branch
        %462 = sbr.rel (%p460) target = $region32
      $region31: #{_lambda_.1} parent=11 // pred_region
        _
      $region32: #{_lambda_.1} parent=11 // pred_fallthru
        _
      // Predicated region
      $region33: #{_lambda_.1} parent=11 // pred_check
        %p463 = pneg %p176
      $region34: #{_lambda_.1} parent=11 // pred_check_branch
        %465 = sbr.rel (%p463) target = $region36
      $region35: #{_lambda_.1} parent=11 // pred_region
        _
      $region36: #{_lambda_.1} parent=11 // pred_fallthru
        _
      // Predicated region
      $region37: #{_lambda_.1} parent=11 // pred_check
        %p466 = pneg %p197
      $region38: #{_lambda_.1} parent=11 // pred_check_branch
        %468 = sbr.rel (%p466) target = $region40
      $region39: #{_lambda_.1} parent=11 // pred_region
        _
      $region40: #{_lambda_.1} parent=11 // pred_fallthru
        _
      // Predicated region
      $region41: #{_lambda_.1} parent=11 // pred_check
        %p469 = pneg %p218
      $region42: #{_lambda_.1} parent=11 // pred_check_branch
        %471 = sbr.rel (%p469) target = $region44
      $region43: #{_lambda_.1} parent=11 // pred_region
        _
      $region44: #{_lambda_.1} parent=11 // pred_fallthru
        _
      // Predicated region
      $region45: #{_lambda_.1} parent=11 // pred_check
        %p472 = pneg %p239
      $region46: #{_lambda_.1} parent=11 // pred_check_branch
        %474 = sbr.rel (%p472) target = $region48
      $region47: #{_lambda_.1} parent=11 // pred_region
        _
      $region48: #{_lambda_.1} parent=11 // pred_fallthru
        _
      // Predicated region
      $region49: #{_lambda_.1} parent=11 // pred_check
        %p475 = pneg %p260
      $region50: #{_lambda_.1} parent=11 // pred_check_branch
        %477 = sbr.rel (%p475) target = $region52
      $region51: #{_lambda_.1} parent=11 // pred_region
        _
      $region52: #{_lambda_.1} parent=11 // pred_fallthru
        _
      // Predicated region
      $region53: #{_lambda_.1} parent=11 // pred_check
        %p478 = pneg %p281
      $region54: #{_lambda_.1} parent=11 // pred_check_branch
        %480 = sbr.rel (%p478) target = $region56
      $region55: #{_lambda_.1} parent=11 // pred_region
        _
      $region56: #{_lambda_.1} parent=11 // pred_fallthru
        _
      // Predicated region
      $region57: #{_lambda_.1} parent=11 // pred_check
        %p481 = pneg %p302
      $region58: #{_lambda_.1} parent=11 // pred_check_branch
        %483 = sbr.rel (%p481) target = $region60
      $region59: #{_lambda_.1} parent=11 // pred_region
        _
      $region60: #{_lambda_.1} parent=11 // pred_fallthru
        _
      // Predicated region
      $region61: #{_lambda_.1} parent=11 // pred_check
        %p484 = pneg %p323
      $region62: #{_lambda_.1} parent=11 // pred_check_branch
        %486 = sbr.rel (%p484) target = $region64
      $region63: #{_lambda_.1} parent=11 // pred_region
        _
      $region64: #{_lambda_.1} parent=11 // pred_fallthru
        _
      // Predicated region
      $region65: #{_lambda_.1} parent=11 // pred_check
        %p487 = pneg %p344
      $region66: #{_lambda_.1} parent=11 // pred_check_branch
        %489 = sbr.rel (%p487) target = $region68
      $region67: #{_lambda_.1} parent=11 // pred_region
        _
      $region68: #{_lambda_.1} parent=11 // pred_fallthru
        _
      // Predicated region
      $region69: #{_lambda_.1} parent=11 // pred_check
        %p490 = pneg %p365
      $region70: #{_lambda_.1} parent=11 // pred_check_branch
        %492 = sbr.rel (%p490) target = $region72
      $region71: #{_lambda_.1} parent=11 // pred_region
        _
      $region72: #{_lambda_.1} parent=11 // pred_fallthru
        _
      // Predicated region
      $region73: #{_lambda_.1} parent=11 // pred_check
        %p493 = pneg %p386
      $region74: #{_lambda_.1} parent=11 // pred_check_branch
        %495 = sbr.rel (%p493) target = $region76
      $region75: #{_lambda_.1} parent=11 // pred_region
        _
      $region76: #{_lambda_.1} parent=11 // pred_fallthru
        _
      // Predicated region
      $region77: #{_lambda_.1} parent=11 // pred_check
        %p496 = pneg %p407
      $region78: #{_lambda_.1} parent=11 // pred_check_branch
        %498 = sbr.rel (%p496) target = $region80
      $region79: #{_lambda_.1} parent=11 // pred_region
        _
      $region80: #{_lambda_.1} parent=11 // pred_fallthru
        _
    $region12: #{_lambda_.1} parent=5 // pred_fallthru
      _
    %p499 = scmp.lt.s32.totalorder %s24, 2
    // Predicated region
    $region81: #{_lambda_.1} parent=5 // pred_check
      %p500 = pneg %p499
    $region82: #{_lambda_.1} parent=5 // pred_check_branch
      %502 = sbr.rel (%p500) target = $region84
    $region83: #{_lambda_.1} parent=5 // pred_region
      // Predicated region
      $region85: #{_lambda_.1} parent=83 // pred_check
        %p503 = pneg %p44
      $region86: #{_lambda_.1} parent=83 // pred_check_branch
        %505 = sbr.rel (%p503) target = $region88
      $region87: #{_lambda_.1} parent=83 // pred_region
        %p506 = scmp.lt.s32.totalorder %s24, 1
        %s507 = scalar_select %p506, %s24, 1
        %s508 = smul.addr %s507, 2
        %s509 = smul.addr %s508, 8
        %s510 = scalar_lea.vmem %s0, %s509
      $region88: #{_lambda_.1} parent=83 // pred_fallthru
        _
    $region84: #{_lambda_.1} parent=5 // pred_fallthru
      _
    %p511 = scmp.le.s32.totalorder 1, %s24
    %p512 = scmp.lt.s32.totalorder %s24, 3
    %p513 = pnand %p511, %p512
    %p514 = pneg %p513
    // Predicated region
    $region89: #{_lambda_.1} parent=5 // pred_check
      _
    $region90: #{_lambda_.1} parent=5 // pred_check_branch
      %516 = sbr.rel (%p513) target = $region92
    $region91: #{_lambda_.1} parent=5 // pred_region
      %s517 = ssub.s32 %s24, 1
      %p518 = scmp.lt.s32.totalorder %s29, 1
      %s519 = scalar_select %p518, %s29, 1
      %s520 = smul.addr %s519, 2
      %s521 = smul.addr %s520, 8
      %s522 = scalar_lea.vmem %s0, %s521
      %p523 = pneg %p50
      %p524 = pneg %p47
      %p525 = pneg %p71
      %p526 = pneg %p68
      %p527 = pneg %p92
      %p528 = pneg %p89
      %p529 = pneg %p113
      %p530 = pneg %p110
      %p531 = pneg %p134
      %p532 = pneg %p131
      %p533 = pneg %p155
      %p534 = pneg %p152
      %p535 = pneg %p176
      %p536 = pneg %p173
      %p537 = pneg %p197
      %p538 = pneg %p194
      %p539 = pneg %p218
      %p540 = pneg %p215
      %p541 = pneg %p239
      %p542 = pneg %p236
      %p543 = pneg %p260
      %p544 = pneg %p257
      %p545 = pneg %p281
      %p546 = pneg %p278
      %p547 = pneg %p302
      %p548 = pneg %p299
      %p549 = pneg %p323
      %p550 = pneg %p320
      %p551 = pneg %p344
      %p552 = pneg %p341
      %p553 = pneg %p365
      %p554 = pneg %p362
      %p555 = pneg %p386
      %p556 = pneg %p383
      %p557 = pneg %p407
      %p558 = pneg %p404
      %p559 = pneg %p433
      %p560 = pneg %p430
      %p561 = scmp.lt.s32.totalorder %s29, 1
      %s562 = scalar_select %p561, %s29, 1
      %s563 = smul.addr %s562, 4
      %s564 = smul.addr %s563, 8
      %s565 = scalar_lea.vmem %s18, %s564
      %p566 = scmp.lt.s32.totalorder %s29, 1
      %s567 = scalar_select %p566, %s29, 1
      %s568 = smul.addr %s567, 2
      %s569 = smul.addr %s568, 8
      %s570 = scalar_lea.vmem %s0, %s569
      %p571 = scmp.lt.s32.totalorder %s29, 1
      %s572 = scalar_select %p571, %s29, 1
      %s573 = smul.addr %s572, 4
      %s574 = smul.addr %s573, 8
      %s575 = scalar_lea.vmem %s18, %s574
      %v576 = vld [vmem:[%s1] sm:$0xff]
      %v577 = vld [vmem:[%s1 + $0x8] sm:$0xff]
      %s578 = scalar_lea.vmem %s1, 16
      %v579 = vld [vmem:[%s578] sm:$0xff]
      %v580 = vld [vmem:[%s578 + $0x8] sm:$0xff]
      %s581 = scalar_lea.vmem %s1, 32
      %v582 = vld [vmem:[%s581] sm:$0xff]
      %v583 = vld [vmem:[%s581 + $0x8] sm:$0xff]
      %s584 = scalar_lea.vmem %s1, 48
      %v585 = vld [vmem:[%s584] sm:$0xff]
      %v586 = vld [vmem:[%s584 + $0x8] sm:$0xff]
      %s587 = scalar_lea.vmem %s1, 64
      %v588 = vld [vmem:[%s587] sm:$0xff]
      %v589 = vld [vmem:[%s587 + $0x8] sm:$0xff]
      %s590 = scalar_lea.vmem %s1, 80
      %v591 = vld [vmem:[%s590] sm:$0xff]
      %v592 = vld [vmem:[%s590 + $0x8] sm:$0xff]
      %s593 = scalar_lea.vmem %s1, 96
      %v594 = vld [vmem:[%s593] sm:$0xff]
      %v595 = vld [vmem:[%s593 + $0x8] sm:$0xff]
      %s596 = scalar_lea.vmem %s1, 112
      %v597 = vld [vmem:[%s596] sm:$0xff]
      %v598 = vld [vmem:[%s596 + $0x8] sm:$0xff]
      %s599 = scalar_lea.vmem %s1, 128
      %v600 = vld [vmem:[%s599] sm:$0xff]
      %v601 = vld [vmem:[%s599 + $0x8] sm:$0xff]
      %s602 = scalar_lea.vmem %s1, 144
      %v603 = vld [vmem:[%s602] sm:$0xff]
      %v604 = vld [vmem:[%s602 + $0x8] sm:$0xff]
      %s605 = scalar_lea.vmem %s1, 160
      %v606 = vld [vmem:[%s605] sm:$0xff]
      %v607 = vld [vmem:[%s605 + $0x8] sm:$0xff]
      %s608 = scalar_lea.vmem %s1, 176
      %v609 = vld [vmem:[%s608] sm:$0xff]
      %v610 = vld [vmem:[%s608 + $0x8] sm:$0xff]
      %s611 = scalar_lea.vmem %s1, 192
      %v612 = vld [vmem:[%s611] sm:$0xff]
      %v613 = vld [vmem:[%s611 + $0x8] sm:$0xff]
      %s614 = scalar_lea.vmem %s1, 208
      %v615 = vld [vmem:[%s614] sm:$0xff]
      %v616 = vld [vmem:[%s614 + $0x8] sm:$0xff]
      %v617 = vld [vmem:[%s570] sm:$0xff]
      %v618 = vld [vmem:[%s570 + $0x8] sm:$0xff]
      %v619 = vld [vmem:[%s3] sm:$0x1]
      %vm620 = vcmask 130048
      %v622 = vsel %vm620, %v576, 0
      %v625 = vsel %vm620, %v577, 0
      %627 = vmatprep.subr.mxu0 0.0
      %628 = vmatpush1.msra.mxu0 %v617
      %629 = vmatprep.subr.mxu0 0.0
      %630 = vmatpush1.msra.mxu0 %v618
      %631 = vmatprep.subr.mxu0 0.0
      %632 = vmatpush1.msra.mxu0 0.0
      %633 = vmatprep.subr.mxu0 0.0
      %634 = vmatpush1.msra.mxu0 0.0
      %635 = vmatprep.subr.mxu0 0.0
      %636 = vmatpush1.msra.mxu0 0.0
      %637 = vmatprep.subr.mxu0 0.0
      %638 = vmatpush1.msra.mxu0 0.0
      %639 = vmatprep.subr.mxu0 0.0
      %640 = vmatpush1.msra.mxu0 0.0
      %641 = vmatprep.subr.mxu0 0.0
      %642 = vmatpush1.msra.mxu0 0.0
      %643 = vmatprep.subr.mxu0 0.0
      %644 = vmatpush1.msra.mxu0 0.0
      %645 = vmatprep.subr.mxu0 0.0
      %646 = vmatpush1.msra.mxu0 0.0
      %647 = vmatprep.subr.mxu0 0.0
      %648 = vmatpush1.msra.mxu0 0.0
      %649 = vmatprep.subr.mxu0 0.0
      %650 = vmatpush1.msra.mxu0 0.0
      %651 = vmatprep.subr.mxu0 0.0
      %652 = vmatpush1.msra.mxu0 0.0
      %653 = vmatprep.subr.mxu0 0.0
      %654 = vmatpush1.msra.mxu0 0.0
      %655 = vmatprep.subr.mxu0 0.0
      %656 = vmatpush1.msra.mxu0 0.0
      %657 = vmatprep.subr.mxu0 0.0
      %658 = vmatpush1.msra.mxu0 0.0
      %659 = vmatprep.subr.mxu0 0.0
      %660 = vmatpush1.msra.mxu0 0.0
      %661 = vmatprep.subr.mxu0 0.0
      %662 = vmatpush1.msra.mxu0 0.0
      %663 = vmatprep.subr.mxu0 0.0
      %664 = vmatpush1.msra.mxu0 0.0
      %665 = vmatprep.subr.mxu0 0.0
      %666 = vmatpush1.msra.mxu0 0.0
      %667 = vmatprep.subr.mxu0 0.0
      %668 = vmatpush1.msra.mxu0 0.0
      %669 = vmatprep.subr.mxu0 0.0
      %670 = vmatpush1.msra.mxu0 0.0
      %671 = vmatprep.subr.mxu0 0.0
      %672 = vmatpush1.msra.mxu0 0.0
      %673 = vmatprep.subr.mxu0 0.0
      %674 = vmatpush1.msra.mxu0 0.0
      %675 = vmatprep.subr.mxu0 0.0
      %676 = vmatpush1.msra.mxu0 0.0
      %677 = vmatprep.subr.mxu0 0.0
      %678 = vmatpush1.msra.mxu0 0.0
      %679 = vmatprep.subr.mxu0 0.0
      %680 = vmatpush1.msra.mxu0 0.0
      %681 = vmatprep.subr.mxu0 0.0
      %682 = vmatpush1.msra.mxu0 0.0
      %683 = vmatprep.subr.mxu0 0.0
      %684 = vmatpush1.msra.mxu0 0.0
      %685 = vmatprep.subr.mxu0 0.0
      %686 = vmatpush1.msra.mxu0 0.0
      %687 = vmatprep.subr.mxu0 0.0
      %688 = vmatpush1.msra.mxu0 0.0
      %689 = vmatprep.subr.mxu0 0.0
      %690 = vmatpush1.msra.mxu0 0.0
      %691 = vmatprep.mubr.f32.mxu0 0.0
      %692 = vmatmul.mubr.f32.gmra.mrb[0].mxu0 %v622
      %v693 = vpop.f32.mrb[0].mxu0
      %v694 = vadd.f32 0.0, %v693
      %v695 = vpop.f32.mrb[0].mxu0
      %696 = vmatprep.mubr.f32.mxu0 0.0
      %697 = vmatmul.mubr.f32.gmra.mrb[0].mxu0 %v625
      %v698 = vpop.f32.mrb[0].mxu0
      %v699 = vadd.f32 0.0, %v698
      %v700 = vpop.f32.mrb[0].mxu0
      %701 = vdwg.mxu0
      %v702 = vld [vmem:[%s2] sm:$0xff]
      %v703 = vld [vmem:[%s2 + $0x8] sm:$0xff]
      %v704 = vld [vmem:[%s2 + $0x10] sm:$0xff]
      %v705 = vld [vmem:[%s2 + $0x18] sm:$0xff]
      %v706 = vld [vmem:[%s2 + $0x20] sm:$0xff]
      %v707 = vld [vmem:[%s2 + $0x28] sm:$0xff]
      %v708 = vld [vmem:[%s2 + $0x30] sm:$0xff]
      %v709 = vld [vmem:[%s2 + $0x38] sm:$0xff]
      %v710 = vld [vmem:[%s2 + $0x40] sm:$0xff]
      %v711 = vld [vmem:[%s2 + $0x48] sm:$0xff]
      %v712 = vld [vmem:[%s2 + $0x50] sm:$0xff]
      %v713 = vld [vmem:[%s2 + $0x58] sm:$0xff]
      %v714 = vld [vmem:[%s2 + $0x60] sm:$0xff]
      %v715 = vld [vmem:[%s2 + $0x68] sm:$0xff]
      %v716 = vld [vmem:[%s2 + $0x70] sm:$0xff]
      %v717 = vld [vmem:[%s2 + $0x78] sm:$0xff]
      %s718 = scalar_lea.vmem %s2, 128
      %v719 = vld [vmem:[%s718] sm:$0xff]
      %v720 = vld [vmem:[%s718 + $0x8] sm:$0xff]
      %v721 = vld [vmem:[%s718 + $0x10] sm:$0xff]
      %v722 = vld [vmem:[%s718 + $0x18] sm:$0xff]
      %v723 = vld [vmem:[%s718 + $0x20] sm:$0xff]
      %v724 = vld [vmem:[%s718 + $0x28] sm:$0xff]
      %v725 = vld [vmem:[%s718 + $0x30] sm:$0xff]
      %v726 = vld [vmem:[%s718 + $0x38] sm:$0xff]
      %v727 = vld [vmem:[%s718 + $0x40] sm:$0xff]
      %v728 = vld [vmem:[%s718 + $0x48] sm:$0xff]
      %v729 = vld [vmem:[%s718 + $0x50] sm:$0xff]
      %v730 = vld [vmem:[%s718 + $0x58] sm:$0xff]
      %v731 = vld [vmem:[%s718 + $0x60] sm:$0xff]
      %v732 = vld [vmem:[%s718 + $0x68] sm:$0xff]
      %v733 = vld [vmem:[%s718 + $0x70] sm:$0xff]
      %v734 = vld [vmem:[%s718 + $0x78] sm:$0xff]
      %735 = vmatprep.subr.mxu0 0.0
      %736 = vmatpush1.msra.mxu0 %v719
      %737 = vmatprep.subr.mxu0 0.0
      %738 = vmatpush1.msra.mxu0 %v720
      %739 = vmatprep.subr.mxu0 0.0
      %740 = vmatpush1.msra.mxu0 %v721
      %741 = vmatprep.subr.mxu0 0.0
      %742 = vmatpush1.msra.mxu0 %v722
      %743 = vmatprep.subr.mxu0 0.0
      %744 = vmatpush1.msra.mxu0 %v723
      %745 = vmatprep.subr.mxu0 0.0
      %746 = vmatpush1.msra.mxu0 %v724
      %747 = vmatprep.subr.mxu0 0.0
      %748 = vmatpush1.msra.mxu0 %v725
      %749 = vmatprep.subr.mxu0 0.0
      %750 = vmatpush1.msra.mxu0 %v726
      %751 = vmatprep.subr.mxu0 0.0
      %752 = vmatpush1.msra.mxu0 %v727
      %753 = vmatprep.subr.mxu0 0.0
      %754 = vmatpush1.msra.mxu0 %v728
      %755 = vmatprep.subr.mxu0 0.0
      %756 = vmatpush1.msra.mxu0 %v729
      %757 = vmatprep.subr.mxu0 0.0
      %758 = vmatpush1.msra.mxu0 %v730
      %759 = vmatprep.subr.mxu0 0.0
      %760 = vmatpush1.msra.mxu0 %v731
      %761 = vmatprep.subr.mxu0 0.0
      %762 = vmatpush1.msra.mxu0 %v732
      %763 = vmatprep.subr.mxu0 0.0
      %764 = vmatpush1.msra.mxu0 %v733
      %765 = vmatprep.subr.mxu0 0.0
      %766 = vmatpush1.msra.mxu0 %v734
      %767 = vmatprep.subr.mxu0 0.0
      %768 = vmatpush1.msra.mxu0 0.0
      %769 = vmatprep.subr.mxu0 0.0
      %770 = vmatpush1.msra.mxu0 0.0
      %771 = vmatprep.subr.mxu0 0.0
      %772 = vmatpush1.msra.mxu0 0.0
      %773 = vmatprep.subr.mxu0 0.0
      %774 = vmatpush1.msra.mxu0 0.0
      %775 = vmatprep.subr.mxu0 0.0
      %776 = vmatpush1.msra.mxu0 0.0
      %777 = vmatprep.subr.mxu0 0.0
      %778 = vmatpush1.msra.mxu0 0.0
      %779 = vmatprep.subr.mxu0 0.0
      %780 = vmatpush1.msra.mxu0 0.0
      %781 = vmatprep.subr.mxu0 0.0
      %782 = vmatpush1.msra.mxu0 0.0
      %783 = vmatprep.subr.mxu0 0.0
      %784 = vmatpush1.msra.mxu0 0.0
      %785 = vmatprep.subr.mxu0 0.0
      %786 = vmatpush1.msra.mxu0 0.0
      %787 = vmatprep.subr.mxu0 0.0
      %788 = vmatpush1.msra.mxu0 0.0
      %789 = vmatprep.subr.mxu0 0.0
      %790 = vmatpush1.msra.mxu0 0.0
      %791 = vmatprep.subr.mxu0 0.0
      %792 = vmatpush1.msra.mxu0 0.0
      %793 = vmatprep.subr.mxu0 0.0
      %794 = vmatpush1.msra.mxu0 0.0
      %795 = vmatprep.subr.mxu0 0.0
      %796 = vmatpush1.msra.mxu0 0.0
      %797 = vmatprep.subr.mxu0 0.0
      %798 = vmatpush1.msra.mxu0 0.0
      %799 = vmatprep.mubr.f32.mxu0 0.0
      %800 = vmatmul.mubr.f32.gmra.mrb[0].mxu0 %v617
      %v801 = vpop.f32.mrb[0].mxu0
      %v802 = vadd.f32 0.0, %v801
      %v803 = vpop.f32.mrb[0].mxu0
      %804 = vmatprep.mubr.f32.mxu0 0.0
      %805 = vmatmul.mubr.f32.gmra.mrb[0].mxu0 %v618
      %v806 = vpop.f32.mrb[0].mxu0
      %v807 = vadd.f32 0.0, %v806
      %v808 = vpop.f32.mrb[0].mxu0
      %809 = vdwg.mxu0
      %810 = vmatprep.subr.mxu0 0.0
      %811 = vmatpush1.msra.mxu0 %v702
      %812 = vmatprep.subr.mxu0 0.0
      %813 = vmatpush1.msra.mxu0 %v703
      %814 = vmatprep.subr.mxu0 0.0
      %815 = vmatpush1.msra.mxu0 %v704
      %816 = vmatprep.subr.mxu0 0.0
      %817 = vmatpush1.msra.mxu0 %v705
      %818 = vmatprep.subr.mxu0 0.0
      %819 = vmatpush1.msra.mxu0 %v706
      %820 = vmatprep.subr.mxu0 0.0
      %821 = vmatpush1.msra.mxu0 %v707
      %822 = vmatprep.subr.mxu0 0.0
      %823 = vmatpush1.msra.mxu0 %v708
      %824 = vmatprep.subr.mxu0 0.0
      %825 = vmatpush1.msra.mxu0 %v709
      %826 = vmatprep.subr.mxu0 0.0
      %827 = vmatpush1.msra.mxu0 %v710
      %828 = vmatprep.subr.mxu0 0.0
      %829 = vmatpush1.msra.mxu0 %v711
      %830 = vmatprep.subr.mxu0 0.0
      %831 = vmatpush1.msra.mxu0 %v712
      %832 = vmatprep.subr.mxu0 0.0
      %833 = vmatpush1.msra.mxu0 %v713
      %834 = vmatprep.subr.mxu0 0.0
      %835 = vmatpush1.msra.mxu0 %v714
      %836 = vmatprep.subr.mxu0 0.0
      %837 = vmatpush1.msra.mxu0 %v715
      %838 = vmatprep.subr.mxu0 0.0
      %839 = vmatpush1.msra.mxu0 %v716
      %840 = vmatprep.subr.mxu0 0.0
      %841 = vmatpush1.msra.mxu0 %v717
      %842 = vmatprep.subr.mxu0 0.0
      %843 = vmatpush1.msra.mxu0 0.0
      %844 = vmatprep.subr.mxu0 0.0
      %845 = vmatpush1.msra.mxu0 0.0
      %846 = vmatprep.subr.mxu0 0.0
      %847 = vmatpush1.msra.mxu0 0.0
      %848 = vmatprep.subr.mxu0 0.0
      %849 = vmatpush1.msra.mxu0 0.0
      %850 = vmatprep.subr.mxu0 0.0
      %851 = vmatpush1.msra.mxu0 0.0
      %852 = vmatprep.subr.mxu0 0.0
      %853 = vmatpush1.msra.mxu0 0.0
      %854 = vmatprep.subr.mxu0 0.0
      %855 = vmatpush1.msra.mxu0 0.0
      %856 = vmatprep.subr.mxu0 0.0
      %857 = vmatpush1.msra.mxu0 0.0
      %858 = vmatprep.subr.mxu0 0.0
      %859 = vmatpush1.msra.mxu0 0.0
      %860 = vmatprep.subr.mxu0 0.0
      %861 = vmatpush1.msra.mxu0 0.0
      %862 = vmatprep.subr.mxu0 0.0
      %863 = vmatpush1.msra.mxu0 0.0
      %864 = vmatprep.subr.mxu0 0.0
      %865 = vmatpush1.msra.mxu0 0.0
      %866 = vmatprep.subr.mxu0 0.0
      %867 = vmatpush1.msra.mxu0 0.0
      %868 = vmatprep.subr.mxu0 0.0
      %869 = vmatpush1.msra.mxu0 0.0
      %870 = vmatprep.subr.mxu0 0.0
      %871 = vmatpush1.msra.mxu0 0.0
      %872 = vmatprep.subr.mxu0 0.0
      %873 = vmatpush1.msra.mxu0 0.0
      %874 = vmatprep.mubr.f32.mxu0 0.0
      %875 = vmatmul.mubr.f32.gmra.mrb[0].mxu0 %v694
      %v876 = vpop.f32.mrb[0].mxu0
      %v877 = vadd.f32 %v802, %v876
      %v878 = vpop.f32.mrb[0].mxu0
      %879 = vmatprep.mubr.f32.mxu0 0.0
      %880 = vmatmul.mubr.f32.gmra.mrb[0].mxu0 %v699
      %v881 = vpop.f32.mrb[0].mxu0
      %v882 = vadd.f32 %v807, %v881
      %v883 = vpop.f32.mrb[0].mxu0
      %884 = vdwg.mxu0
      %v886 = vsel %vm620, %v579, 0
      %v889 = vsel %vm620, %v580, 0
      %891 = vmatprep.subr.mxu0 0.0
      %892 = vmatpush1.msra.mxu0 %v617
      %893 = vmatprep.subr.mxu0 0.0
      %894 = vmatpush1.msra.mxu0 %v618
      %895 = vmatprep.subr.mxu0 0.0
      %896 = vmatpush1.msra.mxu0 0.0
      %897 = vmatprep.subr.mxu0 0.0
      %898 = vmatpush1.msra.mxu0 0.0
      %899 = vmatprep.subr.mxu0 0.0
      %900 = vmatpush1.msra.mxu0 0.0
      %901 = vmatprep.subr.mxu0 0.0
      %902 = vmatpush1.msra.mxu0 0.0
      %903 = vmatprep.subr.mxu0 0.0
      %904 = vmatpush1.msra.mxu0 0.0
      %905 = vmatprep.subr.mxu0 0.0
      %906 = vmatpush1.msra.mxu0 0.0
      %907 = vmatprep.subr.mxu0 0.0
      %908 = vmatpush1.msra.mxu0 0.0
      %909 = vmatprep.subr.mxu0 0.0
      %910 = vmatpush1.msra.mxu0 0.0
      %911 = vmatprep.subr.mxu0 0.0
      %912 = vmatpush1.msra.mxu0 0.0
      %913 = vmatprep.subr.mxu0 0.0
      %914 = vmatpush1.msra.mxu0 0.0
      %915 = vmatprep.subr.mxu0 0.0
      %916 = vmatpush1.msra.mxu0 0.0
      %917 = vmatprep.subr.mxu0 0.0
      %918 = vmatpush1.msra.mxu0 0.0
      %919 = vmatprep.subr.mxu0 0.0
      %920 = vmatpush1.msra.mxu0 0.0
      %921 = vmatprep.subr.mxu0 0.0
      %922 = vmatpush1.msra.mxu0 0.0
      %923 = vmatprep.subr.mxu0 0.0
      %924 = vmatpush1.msra.mxu0 0.0
      %925 = vmatprep.subr.mxu0 0.0
      %926 = vmatpush1.msra.mxu0 0.0
      %927 = vmatprep.subr.mxu0 0.0
      %928 = vmatpush1.msra.mxu0 0.0
      %929 = vmatprep.subr.mxu0 0.0
      %930 = vmatpush1.msra.mxu0 0.0
      %931 = vmatprep.subr.mxu0 0.0
      %932 = vmatpush1.msra.mxu0 0.0
      %933 = vmatprep.subr.mxu0 0.0
      %934 = vmatpush1.msra.mxu0 0.0
      %935 = vmatprep.subr.mxu0 0.0
      %936 = vmatpush1.msra.mxu0 0.0
      %937 = vmatprep.subr.mxu0 0.0
      %938 = vmatpush1.msra.mxu0 0.0
      %939 = vmatprep.subr.mxu0 0.0
      %940 = vmatpush1.msra.mxu0 0.0
      %941 = vmatprep.subr.mxu0 0.0
      %942 = vmatpush1.msra.mxu0 0.0
      %943 = vmatprep.subr.mxu0 0.0
      %944 = vmatpush1.msra.mxu0 0.0
      %945 = vmatprep.subr.mxu0 0.0
      %946 = vmatpush1.msra.mxu0 0.0
      %947 = vmatprep.subr.mxu0 0.0
      %948 = vmatpush1.msra.mxu0 0.0
      %949 = vmatprep.subr.mxu0 0.0
      %950 = vmatpush1.msra.mxu0 0.0
      %951 = vmatprep.subr.mxu0 0.0
      %952 = vmatpush1.msra.mxu0 0.0
      %953 = vmatprep.subr.mxu0 0.0
      %954 = vmatpush1.msra.mxu0 0.0
      %955 = vmatprep.mubr.f32.mxu0 0.0
      %956 = vmatmul.mubr.f32.gmra.mrb[0].mxu0 %v886
      %v957 = vpop.f32.mrb[0].mxu0
      %v958 = vadd.f32 0.0, %v957
      %v959 = vpop.f32.mrb[0].mxu0
      %960 = vmatprep.mubr.f32.mxu0 0.0
      %961 = vmatmul.mubr.f32.gmra.mrb[0].mxu0 %v889
      %v962 = vpop.f32.mrb[0].mxu0
      %v963 = vadd.f32 0.0, %v962
      %v964 = vpop.f32.mrb[0].mxu0
      %965 = vdwg.mxu0
      %s966 = scalar_lea.vmem %s2, 256
      %v967 = vld [vmem:[%s966] sm:$0xff]
      %v968 = vld [vmem:[%s966 + $0x8] sm:$0xff]
      %v969 = vld [vmem:[%s966 + $0x10] sm:$0xff]
      %v970 = vld [vmem:[%s966 + $0x18] sm:$0xff]
      %v971 = vld [vmem:[%s966 + $0x20] sm:$0xff]
      %v972 = vld [vmem:[%s966 + $0x28] sm:$0xff]
      %v973 = vld [vmem:[%s966 + $0x30] sm:$0xff]
      %v974 = vld [vmem:[%s966 + $0x38] sm:$0xff]
      %v975 = vld [vmem:[%s966 + $0x40] sm:$0xff]
      %v976 = vld [vmem:[%s966 + $0x48] sm:$0xff]
      %v977 = vld [vmem:[%s966 + $0x50] sm:$0xff]
      %v978 = vld [vmem:[%s966 + $0x58] sm:$0xff]
      %v979 = vld [vmem:[%s966 + $0x60] sm:$0xff]
      %v980 = vld [vmem:[%s966 + $0x68] sm:$0xff]
      %v981 = vld [vmem:[%s966 + $0x70] sm:$0xff]
      %v982 = vld [vmem:[%s966 + $0x78] sm:$0xff]
      %983 = vmatprep.subr.mxu0 0.0
      %984 = vmatpush1.msra.mxu0 %v967
      %985 = vmatprep.subr.mxu0 0.0
      %986 = vmatpush1.msra.mxu0 %v968
      %987 = vmatprep.subr.mxu0 0.0
      %988 = vmatpush1.msra.mxu0 %v969
      %989 = vmatprep.subr.mxu0 0.0
      %990 = vmatpush1.msra.mxu0 %v970
      %991 = vmatprep.subr.mxu0 0.0
      %992 = vmatpush1.msra.mxu0 %v971
      %993 = vmatprep.subr.mxu0 0.0
      %994 = vmatpush1.msra.mxu0 %v972
      %995 = vmatprep.subr.mxu0 0.0
      %996 = vmatpush1.msra.mxu0 %v973
      %997 = vmatprep.subr.mxu0 0.0
      %998 = vmatpush1.msra.mxu0 %v974
      %999 = vmatprep.subr.mxu0 0.0
      %1000 = vmatpush1.msra.mxu0 %v975
      %1001 = vmatprep.subr.mxu0 0.0
      %1002 = vmatpush1.msra.mxu0 %v976
      %1003 = vmatprep.subr.mxu0 0.0
      %1004 = vmatpush1.msra.mxu0 %v977
      %1005 = vmatprep.subr.mxu0 0.0
      %1006 = vmatpush1.msra.mxu0 %v978
      %1007 = vmatprep.subr.mxu0 0.0
      %1008 = vmatpush1.msra.mxu0 %v979
      %1009 = vmatprep.subr.mxu0 0.0
      %1010 = vmatpush1.msra.mxu0 %v980
      %1011 = vmatprep.subr.mxu0 0.0
      %1012 = vmatpush1.msra.mxu0 %v981
      %1013 = vmatprep.subr.mxu0 0.0
      %1014 = vmatpush1.msra.mxu0 %v982
      %1015 = vmatprep.subr.mxu0 0.0
      %1016 = vmatpush1.msra.mxu0 0.0
      %1017 = vmatprep.subr.mxu0 0.0
      %1018 = vmatpush1.msra.mxu0 0.0
      %1019 = vmatprep.subr.mxu0 0.0
      %1020 = vmatpush1.msra.mxu0 0.0
      %1021 = vmatprep.subr.mxu0 0.0
      %1022 = vmatpush1.msra.mxu0 0.0
      %1023 = vmatprep.subr.mxu0 0.0
      %1024 = vmatpush1.msra.mxu0 0.0
      %1025 = vmatprep.subr.mxu0 0.0
      %1026 = vmatpush1.msra.mxu0 0.0
      %1027 = vmatprep.subr.mxu0 0.0
      %1028 = vmatpush1.msra.mxu0 0.0
      %1029 = vmatprep.subr.mxu0 0.0
      %1030 = vmatpush1.msra.mxu0 0.0
      %1031 = vmatprep.subr.mxu0 0.0
      %1032 = vmatpush1.msra.mxu0 0.0
      %1033 = vmatprep.subr.mxu0 0.0
      %1034 = vmatpush1.msra.mxu0 0.0
      %1035 = vmatprep.subr.mxu0 0.0
      %1036 = vmatpush1.msra.mxu0 0.0
      %1037 = vmatprep.subr.mxu0 0.0
      %1038 = vmatpush1.msra.mxu0 0.0
      %1039 = vmatprep.subr.mxu0 0.0
      %1040 = vmatpush1.msra.mxu0 0.0
      %1041 = vmatprep.subr.mxu0 0.0
      %1042 = vmatpush1.msra.mxu0 0.0
      %1043 = vmatprep.subr.mxu0 0.0
      %1044 = vmatpush1.msra.mxu0 0.0
      %1045 = vmatprep.subr.mxu0 0.0
      %1046 = vmatpush1.msra.mxu0 0.0
      %1047 = vmatprep.mubr.f32.mxu0 0.0
      %1048 = vmatmul.mubr.f32.gmra.mrb[0].mxu0 %v958
      %v1049 = vpop.f32.mrb[0].mxu0
      %v1050 = vadd.f32 0.0, %v1049
      %v1051 = vpop.f32.mrb[0].mxu0
      %1052 = vmatprep.mubr.f32.mxu0 0.0
      %1053 = vmatmul.mubr.f32.gmra.mrb[0].mxu0 %v963
      %v1054 = vpop.f32.mrb[0].mxu0
      %v1055 = vadd.f32 0.0, %v1054
      %v1056 = vpop.f32.mrb[0].mxu0
      %1057 = vdwg.mxu0
      %v1058 = vadd.f32 %v877, %v1050
      %v1059 = vadd.f32 %v882, %v1055
      %v1061 = vlaneseq
      %v1062 = vshrl.u32 %v1061, 7
      %v1063 = vsub.s32 0, %v1062
      %v1064 = vrot.slane %v619, %v1063
      %v1066 = vadd.f32 %v1058, %v1064
      %v1067 = vadd.f32 %v1059, %v1064
      %v1068 = vmax.f32 %v1066, 0.0
      %v1069 = vmax.f32 %v1067, 0.0
      %v1071 = vsel %vm620, %v591, 0
      %v1074 = vsel %vm620, %v592, 0
      %1076 = vmatprep.subr.mxu0 0.0
      %1077 = vmatpush1.msra.mxu0 %v1068
      %1078 = vmatprep.subr.mxu0 0.0
      %1079 = vmatpush1.msra.mxu0 %v1069
      %1080 = vmatprep.subr.mxu0 0.0
      %1081 = vmatpush1.msra.mxu0 0.0
      %1082 = vmatprep.subr.mxu0 0.0
      %1083 = vmatpush1.msra.mxu0 0.0
      %1084 = vmatprep.subr.mxu0 0.0
      %1085 = vmatpush1.msra.mxu0 0.0
      %1086 = vmatprep.subr.mxu0 0.0
      %1087 = vmatpush1.msra.mxu0 0.0
      %1088 = vmatprep.subr.mxu0 0.0
      %1089 = vmatpush1.msra.mxu0 0.0
      %1090 = vmatprep.subr.mxu0 0.0
      %1091 = vmatpush1.msra.mxu0 0.0
      %1092 = vmatprep.subr.mxu0 0.0
      %1093 = vmatpush1.msra.mxu0 0.0
      %1094 = vmatprep.subr.mxu0 0.0
      %1095 = vmatpush1.msra.mxu0 0.0
      %1096 = vmatprep.subr.mxu0 0.0
      %1097 = vmatpush1.msra.mxu0 0.0
      %1098 = vmatprep.subr.mxu0 0.0
      %1099 = vmatpush1.msra.mxu0 0.0
      %1100 = vmatprep.subr.mxu0 0.0
      %1101 = vmatpush1.msra.mxu0 0.0
      %1102 = vmatprep.subr.mxu0 0.0
      %1103 = vmatpush1.msra.mxu0 0.0
      %1104 = vmatprep.subr.mxu0 0.0
      %1105 = vmatpush1.msra.mxu0 0.0
      %1106 = vmatprep.subr.mxu0 0.0
      %1107 = vmatpush1.msra.mxu0 0.0
      %1108 = vmatprep.subr.mxu0 0.0
      %1109 = vmatpush1.msra.mxu0 0.0
      %1110 = vmatprep.subr.mxu0 0.0
      %1111 = vmatpush1.msra.mxu0 0.0
      %1112 = vmatprep.subr.mxu0 0.0
      %1113 = vmatpush1.msra.mxu0 0.0
      %1114 = vmatprep.subr.mxu0 0.0
      %1115 = vmatpush1.msra.mxu0 0.0
      %1116 = vmatprep.subr.mxu0 0.0
      %1117 = vmatpush1.msra.mxu0 0.0
      %1118 = vmatprep.subr.mxu0 0.0
      %1119 = vmatpush1.msra.mxu0 0.0
      %1120 = vmatprep.subr.mxu0 0.0
      %1121 = vmatpush1.msra.mxu0 0.0
      %1122 = vmatprep.subr.mxu0 0.0
      %1123 = vmatpush1.msra.mxu0 0.0
      %1124 = vmatprep.subr.mxu0 0.0
      %1125 = vmatpush1.msra.mxu0 0.0
      %1126 = vmatprep.subr.mxu0 0.0
      %1127 = vmatpush1.msra.mxu0 0.0
      %1128 = vmatprep.subr.mxu0 0.0
      %1129 = vmatpush1.msra.mxu0 0.0
      %1130 = vmatprep.subr.mxu0 0.0
      %1131 = vmatpush1.msra.mxu0 0.0
      %1132 = vmatprep.subr.mxu0 0.0
      %1133 = vmatpush1.msra.mxu0 0.0
      %1134 = vmatprep.subr.mxu0 0.0
      %1135 = vmatpush1.msra.mxu0 0.0
      %1136 = vmatprep.subr.mxu0 0.0
      %1137 = vmatpush1.msra.mxu0 0.0
      %1138 = vmatprep.subr.mxu0 0.0
      %1139 = vmatpush1.msra.mxu0 0.0
      %1140 = vmatprep.mubr.f32.mxu0 0.0
      %1141 = vmatmul.mubr.f32.gmra.mrb[0].mxu0 %v1071
      %v1142 = vpop.f32.mrb[0].mxu0
      %v1143 = vadd.f32 0.0, %v1142
      %v1144 = vpop.f32.mrb[0].mxu0
      %1145 = vmatprep.mubr.f32.mxu0 0.0
      %1146 = vmatmul.mubr.f32.gmra.mrb[0].mxu0 %v1074
      %v1147 = vpop.f32.mrb[0].mxu0
      %v1148 = vadd.f32 0.0, %v1147
      %v1149 = vpop.f32.mrb[0].mxu0
      %1150 = vdwg.mxu0
      %1151 = vmatprep.subr.mxu0 0.0
      %1152 = vmatpush1.msra.mxu0 %v1143
      %1153 = vmatprep.subr.mxu0 0.0
      %1154 = vmatpush1.msra.mxu0 %v1148
      %1155 = vmatprep.subr.mxu0 0.0
      %1156 = vmatpush1.msra.mxu0 0.0
      %1157 = vmatprep.subr.mxu0 0.0
      %1158 = vmatpush1.msra.mxu0 0.0
      %1159 = vmatprep.subr.mxu0 0.0
      %1160 = vmatpush1.msra.mxu0 0.0
      %1161 = vmatprep.subr.mxu0 0.0
      %1162 = vmatpush1.msra.mxu0 0.0
      %1163 = vmatprep.subr.mxu0 0.0
      %1164 = vmatpush1.msra.mxu0 0.0
      %1165 = vmatprep.subr.mxu0 0.0
      %1166 = vmatpush1.msra.mxu0 0.0
      %1167 = vmatprep.subr.mxu0 0.0
      %1168 = vmatpush1.msra.mxu0 0.0
      %1169 = vmatprep.subr.mxu0 0.0
      %1170 = vmatpush1.msra.mxu0 0.0
      %1171 = vmatprep.subr.mxu0 0.0
      %1172 = vmatpush1.msra.mxu0 0.0
      %1173 = vmatprep.subr.mxu0 0.0
      %1174 = vmatpush1.msra.mxu0 0.0
      %1175 = vmatprep.subr.mxu0 0.0
      %1176 = vmatpush1.msra.mxu0 0.0
      %1177 = vmatprep.subr.mxu0 0.0
      %1178 = vmatpush1.msra.mxu0 0.0
      %1179 = vmatprep.subr.mxu0 0.0
      %1180 = vmatpush1.msra.mxu0 0.0
      %1181 = vmatprep.subr.mxu0 0.0
      %1182 = vmatpush1.msra.mxu0 0.0
      %1183 = vmatprep.subr.mxu0 0.0
      %1184 = vmatpush1.msra.mxu0 0.0
      %1185 = vmatprep.subr.mxu0 0.0
      %1186 = vmatpush1.msra.mxu0 0.0
      %1187 = vmatprep.subr.mxu0 0.0
      %1188 = vmatpush1.msra.mxu0 0.0
      %1189 = vmatprep.subr.mxu0 0.0
      %1190 = vmatpush1.msra.mxu0 0.0
      %1191 = vmatprep.subr.mxu0 0.0
      %1192 = vmatpush1.msra.mxu0 0.0
      %1193 = vmatprep.subr.mxu0 0.0
      %1194 = vmatpush1.msra.mxu0 0.0
      %1195 = vmatprep.subr.mxu0 0.0
      %1196 = vmatpush1.msra.mxu0 0.0
      %1197 = vmatprep.subr.mxu0 0.0
      %1198 = vmatpush1.msra.mxu0 0.0
      %1199 = vmatprep.subr.mxu0 0.0
      %1200 = vmatpush1.msra.mxu0 0.0
      %1201 = vmatprep.subr.mxu0 0.0
      %1202 = vmatpush1.msra.mxu0 0.0
      %1203 = vmatprep.subr.mxu0 0.0
      %1204 = vmatpush1.msra.mxu0 0.0
      %1205 = vmatprep.subr.mxu0 0.0
      %1206 = vmatpush1.msra.mxu0 0.0
      %1207 = vmatprep.subr.mxu0 0.0
      %1208 = vmatpush1.msra.mxu0 0.0
      %1209 = vmatprep.subr.mxu0 0.0
      %1210 = vmatpush1.msra.mxu0 0.0
      %1211 = vmatprep.subr.mxu0 0.0
      %1212 = vmatpush1.msra.mxu0 0.0
      %1213 = vmatprep.subr.mxu0 0.0
      %1214 = vmatpush1.msra.mxu0 0.0
      %1215 = vmatprep.mubr.f32.mxu0 0.0
      %1216 = vmatmul.mubr.f32.gmra.mrb[0].mxu0 %v622
      %v1217 = vpop.f32.mrb[0].mxu0
      %v1218 = vadd.f32 0.0, %v1217
      %v1219 = vpop.f32.mrb[0].mxu0
      %1220 = vmatprep.mubr.f32.mxu0 0.0
      %1221 = vmatmul.mubr.f32.gmra.mrb[0].mxu0 %v625
      %v1222 = vpop.f32.mrb[0].mxu0
      %v1223 = vadd.f32 0.0, %v1222
      %v1224 = vpop.f32.mrb[0].mxu0
      %1225 = vdwg.mxu0
      %v1226 = vld [vmem:[%s4] sm:$0xff]
      %v1227 = vld [vmem:[%s4 + $0x8] sm:$0xff]
      %v1228 = vld [vmem:[%s4 + $0x10] sm:$0xff]
      %v1229 = vld [vmem:[%s4 + $0x18] sm:$0xff]
      %v1230 = vld [vmem:[%s4 + $0x20] sm:$0xff]
      %v1231 = vld [vmem:[%s4 + $0x28] sm:$0xff]
      %v1232 = vld [vmem:[%s4 + $0x30] sm:$0xff]
      %v1233 = vld [vmem:[%s4 + $0x38] sm:$0xff]
      %v1234 = vld [vmem:[%s4 + $0x40] sm:$0xff]
      %v1235 = vld [vmem:[%s4 + $0x48] sm:$0xff]
      %v1236 = vld [vmem:[%s4 + $0x50] sm:$0xff]
      %v1237 = vld [vmem:[%s4 + $0x58] sm:$0xff]
      %v1238 = vld [vmem:[%s4 + $0x60] sm:$0xff]
      %v1239 = vld [vmem:[%s4 + $0x68] sm:$0xff]
      %v1240 = vld [vmem:[%s4 + $0x70] sm:$0xff]
      %v1241 = vld [vmem:[%s4 + $0x78] sm:$0xff]
      %s1242 = scalar_lea.vmem %s4, 128
      %v1243 = vld [vmem:[%s1242] sm:$0xff]
      %v1244 = vld [vmem:[%s1242 + $0x8] sm:$0xff]
      %v1245 = vld [vmem:[%s1242 + $0x10] sm:$0xff]
      %v1246 = vld [vmem:[%s1242 + $0x18] sm:$0xff]
      %v1247 = vld [vmem:[%s1242 + $0x20] sm:$0xff]
      %v1248 = vld [vmem:[%s1242 + $0x28] sm:$0xff]
      %v1249 = vld [vmem:[%s1242 + $0x30] sm:$0xff]
      %v1250 = vld [vmem:[%s1242 + $0x38] sm:$0xff]
      %v1251 = vld [vmem:[%s1242 + $0x40] sm:$0xff]
      %v1252 = vld [vmem:[%s1242 + $0x48] sm:$0xff]
      %v1253 = vld [vmem:[%s1242 + $0x50] sm:$0xff]
      %v1254 = vld [vmem:[%s1242 + $0x58] sm:$0xff]
      %v1255 = vld [vmem:[%s1242 + $0x60] sm:$0xff]
      %v1256 = vld [vmem:[%s1242 + $0x68] sm:$0xff]
      %v1257 = vld [vmem:[%s1242 + $0x70] sm:$0xff]
      %v1258 = vld [vmem:[%s1242 + $0x78] sm:$0xff]
      %1259 = vmatprep.subr.mxu0 0.0
      %1260 = vmatpush1.msra.mxu0 %v1243
      %1261 = vmatprep.subr.mxu0 0.0
      %1262 = vmatpush1.msra.mxu0 %v1244
      %1263 = vmatprep.subr.mxu0 0.0
      %1264 = vmatpush1.msra.mxu0 %v1245
      %1265 = vmatprep.subr.mxu0 0.0
      %1266 = vmatpush1.msra.mxu0 %v1246
      %1267 = vmatprep.subr.mxu0 0.0
      %1268 = vmatpush1.msra.mxu0 %v1247
      %1269 = vmatprep.subr.mxu0 0.0
      %1270 = vmatpush1.msra.mxu0 %v1248
      %1271 = vmatprep.subr.mxu0 0.0
      %1272 = vmatpush1.msra.mxu0 %v1249
      %1273 = vmatprep.subr.mxu0 0.0
      %1274 = vmatpush1.msra.mxu0 %v1250
      %1275 = vmatprep.subr.mxu0 0.0
      %1276 = vmatpush1.msra.mxu0 %v1251
      %1277 = vmatprep.subr.mxu0 0.0
      %1278 = vmatpush1.msra.mxu0 %v1252
      %1279 = vmatprep.subr.mxu0 0.0
      %1280 = vmatpush1.msra.mxu0 %v1253
      %1281 = vmatprep.subr.mxu0 0.0
      %1282 = vmatpush1.msra.mxu0 %v1254
      %1283 = vmatprep.subr.mxu0 0.0
      %1284 = vmatpush1.msra.mxu0 %v1255
      %1285 = vmatprep.subr.mxu0 0.0
      %1286 = vmatpush1.msra.mxu0 %v1256
      %1287 = vmatprep.subr.mxu0 0.0
      %1288 = vmatpush1.msra.mxu0 %v1257
      %1289 = vmatprep.subr.mxu0 0.0
      %1290 = vmatpush1.msra.mxu0 %v1258
      %1291 = vmatprep.subr.mxu0 0.0
      %1292 = vmatpush1.msra.mxu0 0.0
      %1293 = vmatprep.subr.mxu0 0.0
      %1294 = vmatpush1.msra.mxu0 0.0
      %1295 = vmatprep.subr.mxu0 0.0
      %1296 = vmatpush1.msra.mxu0 0.0
      %1297 = vmatprep.subr.mxu0 0.0
      %1298 = vmatpush1.msra.mxu0 0.0
      %1299 = vmatprep.subr.mxu0 0.0
      %1300 = vmatpush1.msra.mxu0 0.0
      %1301 = vmatprep.subr.mxu0 0.0
      %1302 = vmatpush1.msra.mxu0 0.0
      %1303 = vmatprep.subr.mxu0 0.0
      %1304 = vmatpush1.msra.mxu0 0.0
      %1305 = vmatprep.subr.mxu0 0.0
      %1306 = vmatpush1.msra.mxu0 0.0
      %1307 = vmatprep.subr.mxu0 0.0
      %1308 = vmatpush1.msra.mxu0 0.0
      %1309 = vmatprep.subr.mxu0 0.0
      %1310 = vmatpush1.msra.mxu0 0.0
      %1311 = vmatprep.subr.mxu0 0.0
      %1312 = vmatpush1.msra.mxu0 0.0
      %1313 = vmatprep.subr.mxu0 0.0
      %1314 = vmatpush1.msra.mxu0 0.0
      %1315 = vmatprep.subr.mxu0 0.0
      %1316 = vmatpush1.msra.mxu0 0.0
      %1317 = vmatprep.subr.mxu0 0.0
      %1318 = vmatpush1.msra.mxu0 0.0
      %1319 = vmatprep.subr.mxu0 0.0
      %1320 = vmatpush1.msra.mxu0 0.0
      %1321 = vmatprep.subr.mxu0 0.0
      %1322 = vmatpush1.msra.mxu0 0.0
      %1323 = vmatprep.mubr.f32.mxu0 0.0
      %1324 = vmatmul.mubr.f32.gmra.mrb[0].mxu0 %v1143
      %v1325 = vpop.f32.mrb[0].mxu0
      %v1326 = vadd.f32 0.0, %v1325
      %v1327 = vpop.f32.mrb[0].mxu0
      %1328 = vmatprep.mubr.f32.mxu0 0.0
      %1329 = vmatmul.mubr.f32.gmra.mrb[0].mxu0 %v1148
      %v1330 = vpop.f32.mrb[0].mxu0
      %v1331 = vadd.f32 0.0, %v1330
      %v1332 = vpop.f32.mrb[0].mxu0
      %1333 = vdwg.mxu0
      %1334 = vmatprep.subr.mxu0 0.0
      %1335 = vmatpush1.msra.mxu0 %v1226
      %1336 = vmatprep.subr.mxu0 0.0
      %1337 = vmatpush1.msra.mxu0 %v1227
      %1338 = vmatprep.subr.mxu0 0.0
      %1339 = vmatpush1.msra.mxu0 %v1228
      %1340 = vmatprep.subr.mxu0 0.0
      %1341 = vmatpush1.msra.mxu0 %v1229
      %1342 = vmatprep.subr.mxu0 0.0
      %1343 = vmatpush1.msra.mxu0 %v1230
      %1344 = vmatprep.subr.mxu0 0.0
      %1345 = vmatpush1.msra.mxu0 %v1231
      %1346 = vmatprep.subr.mxu0 0.0
      %1347 = vmatpush1.msra.mxu0 %v1232
      %1348 = vmatprep.subr.mxu0 0.0
      %1349 = vmatpush1.msra.mxu0 %v1233
      %1350 = vmatprep.subr.mxu0 0.0
      %1351 = vmatpush1.msra.mxu0 %v1234
      %1352 = vmatprep.subr.mxu0 0.0
      %1353 = vmatpush1.msra.mxu0 %v1235
      %1354 = vmatprep.subr.mxu0 0.0
      %1355 = vmatpush1.msra.mxu0 %v1236
      %1356 = vmatprep.subr.mxu0 0.0
      %1357 = vmatpush1.msra.mxu0 %v1237
      %1358 = vmatprep.subr.mxu0 0.0
      %1359 = vmatpush1.msra.mxu0 %v1238
      %1360 = vmatprep.subr.mxu0 0.0
      %1361 = vmatpush1.msra.mxu0 %v1239
      %1362 = vmatprep.subr.mxu0 0.0
      %1363 = vmatpush1.msra.mxu0 %v1240
      %1364 = vmatprep.subr.mxu0 0.0
      %1365 = vmatpush1.msra.mxu0 %v1241
      %1366 = vmatprep.subr.mxu0 0.0
      %1367 = vmatpush1.msra.mxu0 0.0
      %1368 = vmatprep.subr.mxu0 0.0
      %1369 = vmatpush1.msra.mxu0 0.0
      %1370 = vmatprep.subr.mxu0 0.0
      %1371 = vmatpush1.msra.mxu0 0.0
      %1372 = vmatprep.subr.mxu0 0.0
      %1373 = vmatpush1.msra.mxu0 0.0
      %1374 = vmatprep.subr.mxu0 0.0
      %1375 = vmatpush1.msra.mxu0 0.0
      %1376 = vmatprep.subr.mxu0 0.0
      %1377 = vmatpush1.msra.mxu0 0.0
      %1378 = vmatprep.subr.mxu0 0.0
      %1379 = vmatpush1.msra.mxu0 0.0
      %1380 = vmatprep.subr.mxu0 0.0
      %1381 = vmatpush1.msra.mxu0 0.0
      %1382 = vmatprep.subr.mxu0 0.0
      %1383 = vmatpush1.msra.mxu0 0.0
      %1384 = vmatprep.subr.mxu0 0.0
      %1385 = vmatpush1.msra.mxu0 0.0
      %1386 = vmatprep.subr.mxu0 0.0
      %1387 = vmatpush1.msra.mxu0 0.0
      %1388 = vmatprep.subr.mxu0 0.0
      %1389 = vmatpush1.msra.mxu0 0.0
      %1390 = vmatprep.subr.mxu0 0.0
      %1391 = vmatpush1.msra.mxu0 0.0
      %1392 = vmatprep.subr.mxu0 0.0
      %1393 = vmatpush1.msra.mxu0 0.0
      %1394 = vmatprep.subr.mxu0 0.0
      %1395 = vmatpush1.msra.mxu0 0.0
      %1396 = vmatprep.subr.mxu0 0.0
      %1397 = vmatpush1.msra.mxu0 0.0
      %1398 = vmatprep.mubr.f32.mxu0 0.0
      %1399 = vmatmul.mubr.f32.gmra.mrb[0].mxu0 %v1218
      %v1400 = vpop.f32.mrb[0].mxu0
      %v1401 = vadd.f32 %v1326, %v1400
      %v1402 = vpop.f32.mrb[0].mxu0
      %1403 = vmatprep.mubr.f32.mxu0 0.0
      %1404 = vmatmul.mubr.f32.gmra.mrb[0].mxu0 %v1223
      %v1405 = vpop.f32.mrb[0].mxu0
      %v1406 = vadd.f32 %v1331, %v1405
      %v1407 = vpop.f32.mrb[0].mxu0
      %1408 = vdwg.mxu0
      %v1410 = vsel %vm620, %v582, 0
      %v1413 = vsel %vm620, %v583, 0
      %1415 = vmatprep.subr.mxu0 0.0
      %1416 = vmatpush1.msra.mxu0 %v1143
      %1417 = vmatprep.subr.mxu0 0.0
      %1418 = vmatpush1.msra.mxu0 %v1148
      %1419 = vmatprep.subr.mxu0 0.0
      %1420 = vmatpush1.msra.mxu0 0.0
      %1421 = vmatprep.subr.mxu0 0.0
      %1422 = vmatpush1.msra.mxu0 0.0
      %1423 = vmatprep.subr.mxu0 0.0
      %1424 = vmatpush1.msra.mxu0 0.0
      %1425 = vmatprep.subr.mxu0 0.0
      %1426 = vmatpush1.msra.mxu0 0.0
      %1427 = vmatprep.subr.mxu0 0.0
      %1428 = vmatpush1.msra.mxu0 0.0
      %1429 = vmatprep.subr.mxu0 0.0
      %1430 = vmatpush1.msra.mxu0 0.0
      %1431 = vmatprep.subr.mxu0 0.0
      %1432 = vmatpush1.msra.mxu0 0.0
      %1433 = vmatprep.subr.mxu0 0.0
      %1434 = vmatpush1.msra.mxu0 0.0
      %1435 = vmatprep.subr.mxu0 0.0
      %1436 = vmatpush1.msra.mxu0 0.0
      %1437 = vmatprep.subr.mxu0 0.0
      %1438 = vmatpush1.msra.mxu0 0.0
      %1439 = vmatprep.subr.mxu0 0.0
      %1440 = vmatpush1.msra.mxu0 0.0
      %1441 = vmatprep.subr.mxu0 0.0
      %1442 = vmatpush1.msra.mxu0 0.0
      %1443 = vmatprep.subr.mxu0 0.0
      %1444 = vmatpush1.msra.mxu0 0.0
      %1445 = vmatprep.subr.mxu0 0.0
      %1446 = vmatpush1.msra.mxu0 0.0
      %1447 = vmatprep.subr.mxu0 0.0
      %1448 = vmatpush1.msra.mxu0 0.0
      %1449 = vmatprep.subr.mxu0 0.0
      %1450 = vmatpush1.msra.mxu0 0.0
      %1451 = vmatprep.subr.mxu0 0.0
      %1452 = vmatpush1.msra.mxu0 0.0
      %1453 = vmatprep.subr.mxu0 0.0
      %1454 = vmatpush1.msra.mxu0 0.0
      %1455 = vmatprep.subr.mxu0 0.0
      %1456 = vmatpush1.msra.mxu0 0.0
      %1457 = vmatprep.subr.mxu0 0.0
      %1458 = vmatpush1.msra.mxu0 0.0
      %1459 = vmatprep.subr.mxu0 0.0
      %1460 = vmatpush1.msra.mxu0 0.0
      %1461 = vmatprep.subr.mxu0 0.0
      %1462 = vmatpush1.msra.mxu0 0.0
      %1463 = vmatprep.subr.mxu0 0.0
      %1464 = vmatpush1.msra.mxu0 0.0
      %1465 = vmatprep.subr.mxu0 0.0
      %1466 = vmatpush1.msra.mxu0 0.0
      %1467 = vmatprep.subr.mxu0 0.0
      %1468 = vmatpush1.msra.mxu0 0.0
      %1469 = vmatprep.subr.mxu0 0.0
      %1470 = vmatpush1.msra.mxu0 0.0
      %1471 = vmatprep.subr.mxu0 0.0
      %1472 = vmatpush1.msra.mxu0 0.0
      %1473 = vmatprep.subr.mxu0 0.0
      %1474 = vmatpush1.msra.mxu0 0.0
      %1475 = vmatprep.subr.mxu0 0.0
      %1476 = vmatpush1.msra.mxu0 0.0
      %1477 = vmatprep.subr.mxu0 0.0
      %1478 = vmatpush1.msra.mxu0 0.0
      %1479 = vmatprep.mubr.f32.mxu0 0.0
      %1480 = vmatmul.mubr.f32.gmra.mrb[0].mxu0 %v1410
      %v1481 = vpop.f32.mrb[0].mxu0
      %v1482 = vadd.f32 0.0, %v1481
      %v1483 = vpop.f32.mrb[0].mxu0
      %1484 = vmatprep.mubr.f32.mxu0 0.0
      %1485 = vmatmul.mubr.f32.gmra.mrb[0].mxu0 %v1413
      %v1486 = vpop.f32.mrb[0].mxu0
      %v1487 = vadd.f32 0.0, %v1486
      %v1488 = vpop.f32.mrb[0].mxu0
      %1489 = vdwg.mxu0
      %s1490 = scalar_lea.vmem %s4, 256
      %v1491 = vld [vmem:[%s1490] sm:$0xff]
      %v1492 = vld [vmem:[%s1490 + $0x8] sm:$0xff]
      %v1493 = vld [vmem:[%s1490 + $0x10] sm:$0xff]
      %v1494 = vld [vmem:[%s1490 + $0x18] sm:$0xff]
      %v1495 = vld [vmem:[%s1490 + $0x20] sm:$0xff]
      %v1496 = vld [vmem:[%s1490 + $0x28] sm:$0xff]
      %v1497 = vld [vmem:[%s1490 + $0x30] sm:$0xff]
      %v1498 = vld [vmem:[%s1490 + $0x38] sm:$0xff]
      %v1499 = vld [vmem:[%s1490 + $0x40] sm:$0xff]
      %v1500 = vld [vmem:[%s1490 + $0x48] sm:$0xff]
      %v1501 = vld [vmem:[%s1490 + $0x50] sm:$0xff]
      %v1502 = vld [vmem:[%s1490 + $0x58] sm:$0xff]
      %v1503 = vld [vmem:[%s1490 + $0x60] sm:$0xff]
      %v1504 = vld [vmem:[%s1490 + $0x68] sm:$0xff]
      %v1505 = vld [vmem:[%s1490 + $0x70] sm:$0xff]
      %v1506 = vld [vmem:[%s1490 + $0x78] sm:$0xff]
      %1507 = vmatprep.subr.mxu0 0.0
      %1508 = vmatpush1.msra.mxu0 %v1491
      %1509 = vmatprep.subr.mxu0 0.0
      %1510 = vmatpush1.msra.mxu0 %v1492
      %1511 = vmatprep.subr.mxu0 0.0
      %1512 = vmatpush1.msra.mxu0 %v1493
      %1513 = vmatprep.subr.mxu0 0.0
      %1514 = vmatpush1.msra.mxu0 %v1494
      %1515 = vmatprep.subr.mxu0 0.0
      %1516 = vmatpush1.msra.mxu0 %v1495
      %1517 = vmatprep.subr.mxu0 0.0
      %1518 = vmatpush1.msra.mxu0 %v1496
      %1519 = vmatprep.subr.mxu0 0.0
      %1520 = vmatpush1.msra.mxu0 %v1497
      %1521 = vmatprep.subr.mxu0 0.0
      %1522 = vmatpush1.msra.mxu0 %v1498
      %1523 = vmatprep.subr.mxu0 0.0
      %1524 = vmatpush1.msra.mxu0 %v1499
      %1525 = vmatprep.subr.mxu0 0.0
      %1526 = vmatpush1.msra.mxu0 %v1500
      %1527 = vmatprep.subr.mxu0 0.0
      %1528 = vmatpush1.msra.mxu0 %v1501
      %1529 = vmatprep.subr.mxu0 0.0
      %1530 = vmatpush1.msra.mxu0 %v1502
      %1531 = vmatprep.subr.mxu0 0.0
      %1532 = vmatpush1.msra.mxu0 %v1503
      %1533 = vmatprep.subr.mxu0 0.0
      %1534 = vmatpush1.msra.mxu0 %v1504
      %1535 = vmatprep.subr.mxu0 0.0
      %1536 = vmatpush1.msra.mxu0 %v1505
      %1537 = vmatprep.subr.mxu0 0.0
      %1538 = vmatpush1.msra.mxu0 %v1506
      %1539 = vmatprep.subr.mxu0 0.0
      %1540 = vmatpush1.msra.mxu0 0.0
      %1541 = vmatprep.subr.mxu0 0.0
      %1542 = vmatpush1.msra.mxu0 0.0
      %1543 = vmatprep.subr.mxu0 0.0
      %1544 = vmatpush1.msra.mxu0 0.0
      %1545 = vmatprep.subr.mxu0 0.0
      %1546 = vmatpush1.msra.mxu0 0.0
      %1547 = vmatprep.subr.mxu0 0.0
      %1548 = vmatpush1.msra.mxu0 0.0
      %1549 = vmatprep.subr.mxu0 0.0
      %1550 = vmatpush1.msra.mxu0 0.0
      %1551 = vmatprep.subr.mxu0 0.0
      %1552 = vmatpush1.msra.mxu0 0.0
      %1553 = vmatprep.subr.mxu0 0.0
      %1554 = vmatpush1.msra.mxu0 0.0
      %1555 = vmatprep.subr.mxu0 0.0
      %1556 = vmatpush1.msra.mxu0 0.0
      %1557 = vmatprep.subr.mxu0 0.0
      %1558 = vmatpush1.msra.mxu0 0.0
      %1559 = vmatprep.subr.mxu0 0.0
      %1560 = vmatpush1.msra.mxu0 0.0
      %1561 = vmatprep.subr.mxu0 0.0
      %1562 = vmatpush1.msra.mxu0 0.0
      %1563 = vmatprep.subr.mxu0 0.0
      %1564 = vmatpush1.msra.mxu0 0.0
      %1565 = vmatprep.subr.mxu0 0.0
      %1566 = vmatpush1.msra.mxu0 0.0
      %1567 = vmatprep.subr.mxu0 0.0
      %1568 = vmatpush1.msra.mxu0 0.0
      %1569 = vmatprep.subr.mxu0 0.0
      %1570 = vmatpush1.msra.mxu0 0.0
      %1571 = vmatprep.mubr.f32.mxu0 0.0
      %1572 = vmatmul.mubr.f32.gmra.mrb[0].mxu0 %v1482
      %v1573 = vpop.f32.mrb[0].mxu0
      %v1574 = vadd.f32 0.0, %v1573
      %v1575 = vpop.f32.mrb[0].mxu0
      %1576 = vmatprep.mubr.f32.mxu0 0.0
      %1577 = vmatmul.mubr.f32.gmra.mrb[0].mxu0 %v1487
      %v1578 = vpop.f32.mrb[0].mxu0
      %v1579 = vadd.f32 0.0, %v1578
      %v1580 = vpop.f32.mrb[0].mxu0
      %1581 = vdwg.mxu0
      %v1582 = vadd.f32 %v1401, %v1574
      %v1583 = vadd.f32 %v1406, %v1579
      %v1584 = vmax.f32 %v1582, 0.0
      %v1585 = vmax.f32 %v1583, 0.0
      %v1587 = vsel %vm620, %v594, 0
      %v1590 = vsel %vm620, %v595, 0
      %1592 = vmatprep.subr.mxu0 0.0
      %1593 = vmatpush1.msra.mxu0 %v1584
      %1594 = vmatprep.subr.mxu0 0.0
      %1595 = vmatpush1.msra.mxu0 %v1585
      %1596 = vmatprep.subr.mxu0 0.0
      %1597 = vmatpush1.msra.mxu0 0.0
      %1598 = vmatprep.subr.mxu0 0.0
      %1599 = vmatpush1.msra.mxu0 0.0
      %1600 = vmatprep.subr.mxu0 0.0
      %1601 = vmatpush1.msra.mxu0 0.0
      %1602 = vmatprep.subr.mxu0 0.0
      %1603 = vmatpush1.msra.mxu0 0.0
      %1604 = vmatprep.subr.mxu0 0.0
      %1605 = vmatpush1.msra.mxu0 0.0
      %1606 = vmatprep.subr.mxu0 0.0
      %1607 = vmatpush1.msra.mxu0 0.0
      %1608 = vmatprep.subr.mxu0 0.0
      %1609 = vmatpush1.msra.mxu0 0.0
      %1610 = vmatprep.subr.mxu0 0.0
      %1611 = vmatpush1.msra.mxu0 0.0
      %1612 = vmatprep.subr.mxu0 0.0
      %1613 = vmatpush1.msra.mxu0 0.0
      %1614 = vmatprep.subr.mxu0 0.0
      %1615 = vmatpush1.msra.mxu0 0.0
      %1616 = vmatprep.subr.mxu0 0.0
      %1617 = vmatpush1.msra.mxu0 0.0
      %1618 = vmatprep.subr.mxu0 0.0
      %1619 = vmatpush1.msra.mxu0 0.0
      %1620 = vmatprep.subr.mxu0 0.0
      %1621 = vmatpush1.msra.mxu0 0.0
      %1622 = vmatprep.subr.mxu0 0.0
      %1623 = vmatpush1.msra.mxu0 0.0
      %1624 = vmatprep.subr.mxu0 0.0
      %1625 = vmatpush1.msra.mxu0 0.0
      %1626 = vmatprep.subr.mxu0 0.0
      %1627 = vmatpush1.msra.mxu0 0.0
      %1628 = vmatprep.subr.mxu0 0.0
      %1629 = vmatpush1.msra.mxu0 0.0
      %1630 = vmatprep.subr.mxu0 0.0
      %1631 = vmatpush1.msra.mxu0 0.0
      %1632 = vmatprep.subr.mxu0 0.0
      %1633 = vmatpush1.msra.mxu0 0.0
      %1634 = vmatprep.subr.mxu0 0.0
      %1635 = vmatpush1.msra.mxu0 0.0
      %1636 = vmatprep.subr.mxu0 0.0
      %1637 = vmatpush1.msra.mxu0 0.0
      %1638 = vmatprep.subr.mxu0 0.0
      %1639 = vmatpush1.msra.mxu0 0.0
      %1640 = vmatprep.subr.mxu0 0.0
      %1641 = vmatpush1.msra.mxu0 0.0
      %1642 = vmatprep.subr.mxu0 0.0
      %1643 = vmatpush1.msra.mxu0 0.0
      %1644 = vmatprep.subr.mxu0 0.0
      %1645 = vmatpush1.msra.mxu0 0.0
      %1646 = vmatprep.subr.mxu0 0.0
      %1647 = vmatpush1.msra.mxu0 0.0
      %1648 = vmatprep.subr.mxu0 0.0
      %1649 = vmatpush1.msra.mxu0 0.0
      %1650 = vmatprep.subr.mxu0 0.0
      %1651 = vmatpush1.msra.mxu0 0.0
      %1652 = vmatprep.subr.mxu0 0.0
      %1653 = vmatpush1.msra.mxu0 0.0
      %1654 = vmatprep.subr.mxu0 0.0
      %1655 = vmatpush1.msra.mxu0 0.0
      %1656 = vmatprep.mubr.f32.mxu0 0.0
      %1657 = vmatmul.mubr.f32.gmra.mrb[0].mxu0 %v1587
      %v1658 = vpop.f32.mrb[0].mxu0
      %v1659 = vadd.f32 0.0, %v1658
      %v1660 = vpop.f32.mrb[0].mxu0
      %1661 = vmatprep.mubr.f32.mxu0 0.0
      %1662 = vmatmul.mubr.f32.gmra.mrb[0].mxu0 %v1590
      %v1663 = vpop.f32.mrb[0].mxu0
      %v1664 = vadd.f32 0.0, %v1663
      %v1665 = vpop.f32.mrb[0].mxu0
      %1666 = vdwg.mxu0
      %1667 = vmatprep.subr.mxu0 0.0
      %1668 = vmatpush1.msra.mxu0 %v1659
      %1669 = vmatprep.subr.mxu0 0.0
      %1670 = vmatpush1.msra.mxu0 %v1664
      %1671 = vmatprep.subr.mxu0 0.0
      %1672 = vmatpush1.msra.mxu0 0.0
      %1673 = vmatprep.subr.mxu0 0.0
      %1674 = vmatpush1.msra.mxu0 0.0
      %1675 = vmatprep.subr.mxu0 0.0
      %1676 = vmatpush1.msra.mxu0 0.0
      %1677 = vmatprep.subr.mxu0 0.0
      %1678 = vmatpush1.msra.mxu0 0.0
      %1679 = vmatprep.subr.mxu0 0.0
      %1680 = vmatpush1.msra.mxu0 0.0
      %1681 = vmatprep.subr.mxu0 0.0
      %1682 = vmatpush1.msra.mxu0 0.0
      %1683 = vmatprep.subr.mxu0 0.0
      %1684 = vmatpush1.msra.mxu0 0.0
      %1685 = vmatprep.subr.mxu0 0.0
      %1686 = vmatpush1.msra.mxu0 0.0
      %1687 = vmatprep.subr.mxu0 0.0
      %1688 = vmatpush1.msra.mxu0 0.0
      %1689 = vmatprep.subr.mxu0 0.0
      %1690 = vmatpush1.msra.mxu0 0.0
      %1691 = vmatprep.subr.mxu0 0.0
      %1692 = vmatpush1.msra.mxu0 0.0
      %1693 = vmatprep.subr.mxu0 0.0
      %1694 = vmatpush1.msra.mxu0 0.0
      %1695 = vmatprep.subr.mxu0 0.0
      %1696 = vmatpush1.msra.mxu0 0.0
      %1697 = vmatprep.subr.mxu0 0.0
      %1698 = vmatpush1.msra.mxu0 0.0
      %1699 = vmatprep.subr.mxu0 0.0
      %1700 = vmatpush1.msra.mxu0 0.0
      %1701 = vmatprep.subr.mxu0 0.0
      %1702 = vmatpush1.msra.mxu0 0.0
      %1703 = vmatprep.subr.mxu0 0.0
      %1704 = vmatpush1.msra.mxu0 0.0
      %1705 = vmatprep.subr.mxu0 0.0
      %1706 = vmatpush1.msra.mxu0 0.0
      %1707 = vmatprep.subr.mxu0 0.0
      %1708 = vmatpush1.msra.mxu0 0.0
      %1709 = vmatprep.subr.mxu0 0.0
      %1710 = vmatpush1.msra.mxu0 0.0
      %1711 = vmatprep.subr.mxu0 0.0
      %1712 = vmatpush1.msra.mxu0 0.0
      %1713 = vmatprep.subr.mxu0 0.0
      %1714 = vmatpush1.msra.mxu0 0.0
      %1715 = vmatprep.subr.mxu0 0.0
      %1716 = vmatpush1.msra.mxu0 0.0
      %1717 = vmatprep.subr.mxu0 0.0
      %1718 = vmatpush1.msra.mxu0 0.0
      %1719 = vmatprep.subr.mxu0 0.0
      %1720 = vmatpush1.msra.mxu0 0.0
      %1721 = vmatprep.subr.mxu0 0.0
      %1722 = vmatpush1.msra.mxu0 0.0
      %1723 = vmatprep.subr.mxu0 0.0
      %1724 = vmatpush1.msra.mxu0 0.0
      %1725 = vmatprep.subr.mxu0 0.0
      %1726 = vmatpush1.msra.mxu0 0.0
      %1727 = vmatprep.subr.mxu0 0.0
      %1728 = vmatpush1.msra.mxu0 0.0
      %1729 = vmatprep.subr.mxu0 0.0
      %1730 = vmatpush1.msra.mxu0 0.0
      %1731 = vmatprep.mubr.f32.mxu0 0.0
      %1732 = vmatmul.mubr.f32.gmra.mrb[0].mxu0 %v622
      %v1733 = vpop.f32.mrb[0].mxu0
      %v1734 = vadd.f32 0.0, %v1733
      %v1735 = vpop.f32.mrb[0].mxu0
      %1736 = vmatprep.mubr.f32.mxu0 0.0
      %1737 = vmatmul.mubr.f32.gmra.mrb[0].mxu0 %v625
      %v1738 = vpop.f32.mrb[0].mxu0
      %v1739 = vadd.f32 0.0, %v1738
      %v1740 = vpop.f32.mrb[0].mxu0
      %1741 = vdwg.mxu0
      %v1742 = vld [vmem:[%s5] sm:$0xff]
      %v1743 = vld [vmem:[%s5 + $0x8] sm:$0xff]
      %v1744 = vld [vmem:[%s5 + $0x10] sm:$0xff]
      %v1745 = vld [vmem:[%s5 + $0x18] sm:$0xff]
      %v1746 = vld [vmem:[%s5 + $0x20] sm:$0xff]
      %v1747 = vld [vmem:[%s5 + $0x28] sm:$0xff]
      %v1748 = vld [vmem:[%s5 + $0x30] sm:$0xff]
      %v1749 = vld [vmem:[%s5 + $0x38] sm:$0xff]
      %v1750 = vld [vmem:[%s5 + $0x40] sm:$0xff]
      %v1751 = vld [vmem:[%s5 + $0x48] sm:$0xff]
      %v1752 = vld [vmem:[%s5 + $0x50] sm:$0xff]
      %v1753 = vld [vmem:[%s5 + $0x58] sm:$0xff]
      %v1754 = vld [vmem:[%s5 + $0x60] sm:$0xff]
      %v1755 = vld [vmem:[%s5 + $0x68] sm:$0xff]
      %v1756 = vld [vmem:[%s5 + $0x70] sm:$0xff]
      %v1757 = vld [vmem:[%s5 + $0x78] sm:$0xff]
      %s1758 = scalar_lea.vmem %s5, 128
      %v1759 = vld [vmem:[%s1758] sm:$0xff]
      %v1760 = vld [vmem:[%s1758 + $0x8] sm:$0xff]
      %v1761 = vld [vmem:[%s1758 + $0x10] sm:$0xff]
      %v1762 = vld [vmem:[%s1758 + $0x18] sm:$0xff]
      %v1763 = vld [vmem:[%s1758 + $0x20] sm:$0xff]
      %v1764 = vld [vmem:[%s1758 + $0x28] sm:$0xff]
      %v1765 = vld [vmem:[%s1758 + $0x30] sm:$0xff]
      %v1766 = vld [vmem:[%s1758 + $0x38] sm:$0xff]
      %v1767 = vld [vmem:[%s1758 + $0x40] sm:$0xff]
      %v1768 = vld [vmem:[%s1758 + $0x48] sm:$0xff]
      %v1769 = vld [vmem:[%s1758 + $0x50] sm:$0xff]
      %v1770 = vld [vmem:[%s1758 + $0x58] sm:$0xff]
      %v1771 = vld [vmem:[%s1758 + $0x60] sm:$0xff]
      %v1772 = vld [vmem:[%s1758 + $0x68] sm:$0xff]
      %v1773 = vld [vmem:[%s1758 + $0x70] sm:$0xff]
      %v1774 = vld [vmem:[%s1758 + $0x78] sm:$0xff]
      %1775 = vmatprep.subr.mxu0 0.0
      %1776 = vmatpush1.msra.mxu0 %v1759
      %1777 = vmatprep.subr.mxu0 0.0
      %1778 = vmatpush1.msra.mxu0 %v1760
      %1779 = vmatprep.subr.mxu0 0.0
      %1780 = vmatpush1.msra.mxu0 %v1761
      %1781 = vmatprep.subr.mxu0 0.0
      %1782 = vmatpush1.msra.mxu0 %v1762
      %1783 = vmatprep.subr.mxu0 0.0
      %1784 = vmatpush1.msra.mxu0 %v1763
      %1785 = vmatprep.subr.mxu0 0.0
      %1786 = vmatpush1.msra.mxu0 %v1764
      %1787 = vmatprep.subr.mxu0 0.0
      %1788 = vmatpush1.msra.mxu0 %v1765
      %1789 = vmatprep.subr.mxu0 0.0
      %1790 = vmatpush1.msra.mxu0 %v1766
      %1791 = vmatprep.subr.mxu0 0.0
      %1792 = vmatpush1.msra.mxu0 %v1767
      %1793 = vmatprep.subr.mxu0 0.0
      %1794 = vmatpush1.msra.mxu0 %v1768
      %1795 = vmatprep.subr.mxu0 0.0
      %1796 = vmatpush1.msra.mxu0 %v1769
      %1797 = vmatprep.subr.mxu0 0.0
      %1798 = vmatpush1.msra.mxu0 %v1770
      %1799 = vmatprep.subr.mxu0 0.0
      %1800 = vmatpush1.msra.mxu0 %v1771
      %1801 = vmatprep.subr.mxu0 0.0
      %1802 = vmatpush1.msra.mxu0 %v1772
      %1803 = vmatprep.subr.mxu0 0.0
      %1804 = vmatpush1.msra.mxu0 %v1773
      %1805 = vmatprep.subr.mxu0 0.0
      %1806 = vmatpush1.msra.mxu0 %v1774
      %1807 = vmatprep.subr.mxu0 0.0
      %1808 = vmatpush1.msra.mxu0 0.0
      %1809 = vmatprep.subr.mxu0 0.0
      %1810 = vmatpush1.msra.mxu0 0.0
      %1811 = vmatprep.subr.mxu0 0.0
      %1812 = vmatpush1.msra.mxu0 0.0
      %1813 = vmatprep.subr.mxu0 0.0
      %1814 = vmatpush1.msra.mxu0 0.0
      %1815 = vmatprep.subr.mxu0 0.0
      %1816 = vmatpush1.msra.mxu0 0.0
      %1817 = vmatprep.subr.mxu0 0.0
      %1818 = vmatpush1.msra.mxu0 0.0
      %1819 = vmatprep.subr.mxu0 0.0
      %1820 = vmatpush1.msra.mxu0 0.0
      %1821 = vmatprep.subr.mxu0 0.0
      %1822 = vmatpush1.msra.mxu0 0.0
      %1823 = vmatprep.subr.mxu0 0.0
      %1824 = vmatpush1.msra.mxu0 0.0
      %1825 = vmatprep.subr.mxu0 0.0
      %1826 = vmatpush1.msra.mxu0 0.0
      %1827 = vmatprep.subr.mxu0 0.0
      %1828 = vmatpush1.msra.mxu0 0.0
      %1829 = vmatprep.subr.mxu0 0.0
      %1830 = vmatpush1.msra.mxu0 0.0
      %1831 = vmatprep.subr.mxu0 0.0
      %1832 = vmatpush1.msra.mxu0 0.0
      %1833 = vmatprep.subr.mxu0 0.0
      %1834 = vmatpush1.msra.mxu0 0.0
      %1835 = vmatprep.subr.mxu0 0.0
      %1836 = vmatpush1.msra.mxu0 0.0
      %1837 = vmatprep.subr.mxu0 0.0
      %1838 = vmatpush1.msra.mxu0 0.0
      %1839 = vmatprep.mubr.f32.mxu0 0.0
      %1840 = vmatmul.mubr.f32.gmra.mrb[0].mxu0 %v1659
      %v1841 = vpop.f32.mrb[0].mxu0
      %v1842 = vadd.f32 0.0, %v1841
      %v1843 = vpop.f32.mrb[0].mxu0
      %1844 = vmatprep.mubr.f32.mxu0 0.0
      %1845 = vmatmul.mubr.f32.gmra.mrb[0].mxu0 %v1664
      %v1846 = vpop.f32.mrb[0].mxu0
      %v1847 = vadd.f32 0.0, %v1846
      %v1848 = vpop.f32.mrb[0].mxu0
      %1849 = vdwg.mxu0
      %1850 = vmatprep.subr.mxu0 0.0
      %1851 = vmatpush1.msra.mxu0 %v1742
      %1852 = vmatprep.subr.mxu0 0.0
      %1853 = vmatpush1.msra.mxu0 %v1743
      %1854 = vmatprep.subr.mxu0 0.0
      %1855 = vmatpush1.msra.mxu0 %v1744
      %1856 = vmatprep.subr.mxu0 0.0
      %1857 = vmatpush1.msra.mxu0 %v1745
      %1858 = vmatprep.subr.mxu0 0.0
      %1859 = vmatpush1.msra.mxu0 %v1746
      %1860 = vmatprep.subr.mxu0 0.0
      %1861 = vmatpush1.msra.mxu0 %v1747
      %1862 = vmatprep.subr.mxu0 0.0
      %1863 = vmatpush1.msra.mxu0 %v1748
      %1864 = vmatprep.subr.mxu0 0.0
      %1865 = vmatpush1.msra.mxu0 %v1749
      %1866 = vmatprep.subr.mxu0 0.0
      %1867 = vmatpush1.msra.mxu0 %v1750
      %1868 = vmatprep.subr.mxu0 0.0
      %1869 = vmatpush1.msra.mxu0 %v1751
      %1870 = vmatprep.subr.mxu0 0.0
      %1871 = vmatpush1.msra.mxu0 %v1752
      %1872 = vmatprep.subr.mxu0 0.0
      %1873 = vmatpush1.msra.mxu0 %v1753
      %1874 = vmatprep.subr.mxu0 0.0
      %1875 = vmatpush1.msra.mxu0 %v1754
      %1876 = vmatprep.subr.mxu0 0.0
      %1877 = vmatpush1.msra.mxu0 %v1755
      %1878 = vmatprep.subr.mxu0 0.0
      %1879 = vmatpush1.msra.mxu0 %v1756
      %1880 = vmatprep.subr.mxu0 0.0
      %1881 = vmatpush1.msra.mxu0 %v1757
      %1882 = vmatprep.subr.mxu0 0.0
      %1883 = vmatpush1.msra.mxu0 0.0
      %1884 = vmatprep.subr.mxu0 0.0
      %1885 = vmatpush1.msra.mxu0 0.0
      %1886 = vmatprep.subr.mxu0 0.0
      %1887 = vmatpush1.msra.mxu0 0.0
      %1888 = vmatprep.subr.mxu0 0.0
      %1889 = vmatpush1.msra.mxu0 0.0
      %1890 = vmatprep.subr.mxu0 0.0
      %1891 = vmatpush1.msra.mxu0 0.0
      %1892 = vmatprep.subr.mxu0 0.0
      %1893 = vmatpush1.msra.mxu0 0.0
      %1894 = vmatprep.subr.mxu0 0.0
      %1895 = vmatpush1.msra.mxu0 0.0
      %1896 = vmatprep.subr.mxu0 0.0
      %1897 = vmatpush1.msra.mxu0 0.0
      %1898 = vmatprep.subr.mxu0 0.0
      %1899 = vmatpush1.msra.mxu0 0.0
      %1900 = vmatprep.subr.mxu0 0.0
      %1901 = vmatpush1.msra.mxu0 0.0
      %1902 = vmatprep.subr.mxu0 0.0
      %1903 = vmatpush1.msra.mxu0 0.0
      %1904 = vmatprep.subr.mxu0 0.0
      %1905 = vmatpush1.msra.mxu0 0.0
      %1906 = vmatprep.subr.mxu0 0.0
      %1907 = vmatpush1.msra.mxu0 0.0
      %1908 = vmatprep.subr.mxu0 0.0
      %1909 = vmatpush1.msra.mxu0 0.0
      %1910 = vmatprep.subr.mxu0 0.0
      %1911 = vmatpush1.msra.mxu0 0.0
      %1912 = vmatprep.subr.mxu0 0.0
      %1913 = vmatpush1.msra.mxu0 0.0
      %1914 = vmatprep.mubr.f32.mxu0 0.0
      %1915 = vmatmul.mubr.f32.gmra.mrb[0].mxu0 %v1734
      %v1916 = vpop.f32.mrb[0].mxu0
      %v1917 = vadd.f32 %v1842, %v1916
      %v1918 = vpop.f32.mrb[0].mxu0
      %1919 = vmatprep.mubr.f32.mxu0 0.0
      %1920 = vmatmul.mubr.f32.gmra.mrb[0].mxu0 %v1739
      %v1921 = vpop.f32.mrb[0].mxu0
      %v1922 = vadd.f32 %v1847, %v1921
      %v1923 = vpop.f32.mrb[0].mxu0
      %1924 = vdwg.mxu0
      %v1926 = vsel %vm620, %v585, 0
      %v1929 = vsel %vm620, %v586, 0
      %1931 = vmatprep.subr.mxu0 0.0
      %1932 = vmatpush1.msra.mxu0 %v1659
      %1933 = vmatprep.subr.mxu0 0.0
      %1934 = vmatpush1.msra.mxu0 %v1664
      %1935 = vmatprep.subr.mxu0 0.0
      %1936 = vmatpush1.msra.mxu0 0.0
      %1937 = vmatprep.subr.mxu0 0.0
      %1938 = vmatpush1.msra.mxu0 0.0
      %1939 = vmatprep.subr.mxu0 0.0
      %1940 = vmatpush1.msra.mxu0 0.0
      %1941 = vmatprep.subr.mxu0 0.0
      %1942 = vmatpush1.msra.mxu0 0.0
      %1943 = vmatprep.subr.mxu0 0.0
      %1944 = vmatpush1.msra.mxu0 0.0
      %1945 = vmatprep.subr.mxu0 0.0
      %1946 = vmatpush1.msra.mxu0 0.0
      %1947 = vmatprep.subr.mxu0 0.0
      %1948 = vmatpush1.msra.mxu0 0.0
      %1949 = vmatprep.subr.mxu0 0.0
      %1950 = vmatpush1.msra.mxu0 0.0
      %1951 = vmatprep.subr.mxu0 0.0
      %1952 = vmatpush1.msra.mxu0 0.0
      %1953 = vmatprep.subr.mxu0 0.0
      %1954 = vmatpush1.msra.mxu0 0.0
      %1955 = vmatprep.subr.mxu0 0.0
      %1956 = vmatpush1.msra.mxu0 0.0
      %1957 = vmatprep.subr.mxu0 0.0
      %1958 = vmatpush1.msra.mxu0 0.0
      %1959 = vmatprep.subr.mxu0 0.0
      %1960 = vmatpush1.msra.mxu0 0.0
      %1961 = vmatprep.subr.mxu0 0.0
      %1962 = vmatpush1.msra.mxu0 0.0
      %1963 = vmatprep.subr.mxu0 0.0
      %1964 = vmatpush1.msra.mxu0 0.0
      %1965 = vmatprep.subr.mxu0 0.0
      %1966 = vmatpush1.msra.mxu0 0.0
      %1967 = vmatprep.subr.mxu0 0.0
      %1968 = vmatpush1.msra.mxu0 0.0
      %1969 = vmatprep.subr.mxu0 0.0
      %1970 = vmatpush1.msra.mxu0 0.0
      %1971 = vmatprep.subr.mxu0 0.0
      %1972 = vmatpush1.msra.mxu0 0.0
      %1973 = vmatprep.subr.mxu0 0.0
      %1974 = vmatpush1.msra.mxu0 0.0
      %1975 = vmatprep.subr.mxu0 0.0
      %1976 = vmatpush1.msra.mxu0 0.0
      %1977 = vmatprep.subr.mxu0 0.0
      %1978 = vmatpush1.msra.mxu0 0.0
      %1979 = vmatprep.subr.mxu0 0.0
      %1980 = vmatpush1.msra.mxu0 0.0
      %1981 = vmatprep.subr.mxu0 0.0
      %1982 = vmatpush1.msra.mxu0 0.0
      %1983 = vmatprep.subr.mxu0 0.0
      %1984 = vmatpush1.msra.mxu0 0.0
      %1985 = vmatprep.subr.mxu0 0.0
      %1986 = vmatpush1.msra.mxu0 0.0
      %1987 = vmatprep.subr.mxu0 0.0
      %1988 = vmatpush1.msra.mxu0 0.0
      %1989 = vmatprep.subr.mxu0 0.0
      %1990 = vmatpush1.msra.mxu0 0.0
      %1991 = vmatprep.subr.mxu0 0.0
      %1992 = vmatpush1.msra.mxu0 0.0
      %1993 = vmatprep.subr.mxu0 0.0
      %1994 = vmatpush1.msra.mxu0 0.0
      %1995 = vmatprep.mubr.f32.mxu0 0.0
      %1996 = vmatmul.mubr.f32.gmra.mrb[0].mxu0 %v1926
      %v1997 = vpop.f32.mrb[0].mxu0
      %v1998 = vadd.f32 0.0, %v1997
      %v1999 = vpop.f32.mrb[0].mxu0
      %2000 = vmatprep.mubr.f32.mxu0 0.0
      %2001 = vmatmul.mubr.f32.gmra.mrb[0].mxu0 %v1929
      %v2002 = vpop.f32.mrb[0].mxu0
      %v2003 = vadd.f32 0.0, %v2002
      %v2004 = vpop.f32.mrb[0].mxu0
      %2005 = vdwg.mxu0
      %s2006 = scalar_lea.vmem %s5, 256
      %v2007 = vld [vmem:[%s2006] sm:$0xff]
      %v2008 = vld [vmem:[%s2006 + $0x8] sm:$0xff]
      %v2009 = vld [vmem:[%s2006 + $0x10] sm:$0xff]
      %v2010 = vld [vmem:[%s2006 + $0x18] sm:$0xff]
      %v2011 = vld [vmem:[%s2006 + $0x20] sm:$0xff]
      %v2012 = vld [vmem:[%s2006 + $0x28] sm:$0xff]
      %v2013 = vld [vmem:[%s2006 + $0x30] sm:$0xff]
      %v2014 = vld [vmem:[%s2006 + $0x38] sm:$0xff]
      %v2015 = vld [vmem:[%s2006 + $0x40] sm:$0xff]
      %v2016 = vld [vmem:[%s2006 + $0x48] sm:$0xff]
      %v2017 = vld [vmem:[%s2006 + $0x50] sm:$0xff]
      %v2018 = vld [vmem:[%s2006 + $0x58] sm:$0xff]
      %v2019 = vld [vmem:[%s2006 + $0x60] sm:$0xff]
      %v2020 = vld [vmem:[%s2006 + $0x68] sm:$0xff]
      %v2021 = vld [vmem:[%s2006 + $0x70] sm:$0xff]
      %v2022 = vld [vmem:[%s2006 + $0x78] sm:$0xff]
      %2023 = vmatprep.subr.mxu0 0.0
      %2024 = vmatpush1.msra.mxu0 %v2007
      %2025 = vmatprep.subr.mxu0 0.0
      %2026 = vmatpush1.msra.mxu0 %v2008
      %2027 = vmatprep.subr.mxu0 0.0
      %2028 = vmatpush1.msra.mxu0 %v2009
      %2029 = vmatprep.subr.mxu0 0.0
      %2030 = vmatpush1.msra.mxu0 %v2010
      %2031 = vmatprep.subr.mxu0 0.0
      %2032 = vmatpush1.msra.mxu0 %v2011
      %2033 = vmatprep.subr.mxu0 0.0
      %2034 = vmatpush1.msra.mxu0 %v2012
      %2035 = vmatprep.subr.mxu0 0.0
      %2036 = vmatpush1.msra.mxu0 %v2013
      %2037 = vmatprep.subr.mxu0 0.0
      %2038 = vmatpush1.msra.mxu0 %v2014
      %2039 = vmatprep.subr.mxu0 0.0
      %2040 = vmatpush1.msra.mxu0 %v2015
      %2041 = vmatprep.subr.mxu0 0.0
      %2042 = vmatpush1.msra.mxu0 %v2016
      %2043 = vmatprep.subr.mxu0 0.0
      %2044 = vmatpush1.msra.mxu0 %v2017
      %2045 = vmatprep.subr.mxu0 0.0
      %2046 = vmatpush1.msra.mxu0 %v2018
      %2047 = vmatprep.subr.mxu0 0.0
      %2048 = vmatpush1.msra.mxu0 %v2019
      %2049 = vmatprep.subr.mxu0 0.0
      %2050 = vmatpush1.msra.mxu0 %v2020
      %2051 = vmatprep.subr.mxu0 0.0
      %2052 = vmatpush1.msra.mxu0 %v2021
      %2053 = vmatprep.subr.mxu0 0.0
      %2054 = vmatpush1.msra.mxu0 %v2022
      %2055 = vmatprep.subr.mxu0 0.0
      %2056 = vmatpush1.msra.mxu0 0.0
      %2057 = vmatprep.subr.mxu0 0.0
      %2058 = vmatpush1.msra.mxu0 0.0
      %2059 = vmatprep.subr.mxu0 0.0
      %2060 = vmatpush1.msra.mxu0 0.0
      %2061 = vmatprep.subr.mxu0 0.0
      %2062 = vmatpush1.msra.mxu0 0.0
      %2063 = vmatprep.subr.mxu0 0.0
      %2064 = vmatpush1.msra.mxu0 0.0
      %2065 = vmatprep.subr.mxu0 0.0
      %2066 = vmatpush1.msra.mxu0 0.0
      %2067 = vmatprep.subr.mxu0 0.0
      %2068 = vmatpush1.msra.mxu0 0.0
      %2069 = vmatprep.subr.mxu0 0.0
      %2070 = vmatpush1.msra.mxu0 0.0
      %2071 = vmatprep.subr.mxu0 0.0
      %2072 = vmatpush1.msra.mxu0 0.0
      %2073 = vmatprep.subr.mxu0 0.0
      %2074 = vmatpush1.msra.mxu0 0.0
      %2075 = vmatprep.subr.mxu0 0.0
      %2076 = vmatpush1.msra.mxu0 0.0
      %2077 = vmatprep.subr.mxu0 0.0
      %2078 = vmatpush1.msra.mxu0 0.0
      %2079 = vmatprep.subr.mxu0 0.0
      %2080 = vmatpush1.msra.mxu0 0.0
      %2081 = vmatprep.subr.mxu0 0.0
      %2082 = vmatpush1.msra.mxu0 0.0
      %2083 = vmatprep.subr.mxu0 0.0
      %2084 = vmatpush1.msra.mxu0 0.0
      %2085 = vmatprep.subr.mxu0 0.0
      %2086 = vmatpush1.msra.mxu0 0.0
      %2087 = vmatprep.mubr.f32.mxu0 0.0
      %2088 = vmatmul.mubr.f32.gmra.mrb[0].mxu0 %v1998
      %v2089 = vpop.f32.mrb[0].mxu0
      %v2090 = vadd.f32 0.0, %v2089
      %v2091 = vpop.f32.mrb[0].mxu0
      %2092 = vmatprep.mubr.f32.mxu0 0.0
      %2093 = vmatmul.mubr.f32.gmra.mrb[0].mxu0 %v2003
      %v2094 = vpop.f32.mrb[0].mxu0
      %v2095 = vadd.f32 0.0, %v2094
      %v2096 = vpop.f32.mrb[0].mxu0
      %2097 = vdwg.mxu0
      %v2098 = vadd.f32 %v1917, %v2090
      %v2099 = vadd.f32 %v1922, %v2095
      %v2100 = vmax.f32 %v2098, 0.0
      %v2101 = vmax.f32 %v2099, 0.0
      %v2103 = vsel %vm620, %v597, 0
      %v2106 = vsel %vm620, %v598, 0
      %2108 = vmatprep.subr.mxu0 0.0
      %2109 = vmatpush1.msra.mxu0 %v2100
      %2110 = vmatprep.subr.mxu0 0.0
      %2111 = vmatpush1.msra.mxu0 %v2101
      %2112 = vmatprep.subr.mxu0 0.0
      %2113 = vmatpush1.msra.mxu0 0.0
      %2114 = vmatprep.subr.mxu0 0.0
      %2115 = vmatpush1.msra.mxu0 0.0
      %2116 = vmatprep.subr.mxu0 0.0
      %2117 = vmatpush1.msra.mxu0 0.0
      %2118 = vmatprep.subr.mxu0 0.0
      %2119 = vmatpush1.msra.mxu0 0.0
      %2120 = vmatprep.subr.mxu0 0.0
      %2121 = vmatpush1.msra.mxu0 0.0
      %2122 = vmatprep.subr.mxu0 0.0
      %2123 = vmatpush1.msra.mxu0 0.0
      %2124 = vmatprep.subr.mxu0 0.0
      %2125 = vmatpush1.msra.mxu0 0.0
      %2126 = vmatprep.subr.mxu0 0.0
      %2127 = vmatpush1.msra.mxu0 0.0
      %2128 = vmatprep.subr.mxu0 0.0
      %2129 = vmatpush1.msra.mxu0 0.0
      %2130 = vmatprep.subr.mxu0 0.0
      %2131 = vmatpush1.msra.mxu0 0.0
      %2132 = vmatprep.subr.mxu0 0.0
      %2133 = vmatpush1.msra.mxu0 0.0
      %2134 = vmatprep.subr.mxu0 0.0
      %2135 = vmatpush1.msra.mxu0 0.0
      %2136 = vmatprep.subr.mxu0 0.0
      %2137 = vmatpush1.msra.mxu0 0.0
      %2138 = vmatprep.subr.mxu0 0.0
      %2139 = vmatpush1.msra.mxu0 0.0
      %2140 = vmatprep.subr.mxu0 0.0
      %2141 = vmatpush1.msra.mxu0 0.0
      %2142 = vmatprep.subr.mxu0 0.0
      %2143 = vmatpush1.msra.mxu0 0.0
      %2144 = vmatprep.subr.mxu0 0.0
      %2145 = vmatpush1.msra.mxu0 0.0
      %2146 = vmatprep.subr.mxu0 0.0
      %2147 = vmatpush1.msra.mxu0 0.0
      %2148 = vmatprep.subr.mxu0 0.0
      %2149 = vmatpush1.msra.mxu0 0.0
      %2150 = vmatprep.subr.mxu0 0.0
      %2151 = vmatpush1.msra.mxu0 0.0
      %2152 = vmatprep.subr.mxu0 0.0
      %2153 = vmatpush1.msra.mxu0 0.0
      %2154 = vmatprep.subr.mxu0 0.0
      %2155 = vmatpush1.msra.mxu0 0.0
      %2156 = vmatprep.subr.mxu0 0.0
      %2157 = vmatpush1.msra.mxu0 0.0
      %2158 = vmatprep.subr.mxu0 0.0
      %2159 = vmatpush1.msra.mxu0 0.0
      %2160 = vmatprep.subr.mxu0 0.0
      %2161 = vmatpush1.msra.mxu0 0.0
      %2162 = vmatprep.subr.mxu0 0.0
      %2163 = vmatpush1.msra.mxu0 0.0
      %2164 = vmatprep.subr.mxu0 0.0
      %2165 = vmatpush1.msra.mxu0 0.0
      %2166 = vmatprep.subr.mxu0 0.0
      %2167 = vmatpush1.msra.mxu0 0.0
      %2168 = vmatprep.subr.mxu0 0.0
      %2169 = vmatpush1.msra.mxu0 0.0
      %2170 = vmatprep.subr.mxu0 0.0
      %2171 = vmatpush1.msra.mxu0 0.0
      %2172 = vmatprep.mubr.f32.mxu0 0.0
      %2173 = vmatmul.mubr.f32.gmra.mrb[0].mxu0 %v2103
      %v2174 = vpop.f32.mrb[0].mxu0
      %v2175 = vadd.f32 0.0, %v2174
      %v2176 = vpop.f32.mrb[0].mxu0
      %2177 = vmatprep.mubr.f32.mxu0 0.0
      %2178 = vmatmul.mubr.f32.gmra.mrb[0].mxu0 %v2106
      %v2179 = vpop.f32.mrb[0].mxu0
      %v2180 = vadd.f32 0.0, %v2179
      %v2181 = vpop.f32.mrb[0].mxu0
      %2182 = vdwg.mxu0
      %2183 = vmatprep.subr.mxu0 0.0
      %2184 = vmatpush1.msra.mxu0 %v2175
      %2185 = vmatprep.subr.mxu0 0.0
      %2186 = vmatpush1.msra.mxu0 %v2180
      %2187 = vmatprep.subr.mxu0 0.0
      %2188 = vmatpush1.msra.mxu0 0.0
      %2189 = vmatprep.subr.mxu0 0.0
      %2190 = vmatpush1.msra.mxu0 0.0
      %2191 = vmatprep.subr.mxu0 0.0
      %2192 = vmatpush1.msra.mxu0 0.0
      %2193 = vmatprep.subr.mxu0 0.0
      %2194 = vmatpush1.msra.mxu0 0.0
      %2195 = vmatprep.subr.mxu0 0.0
      %2196 = vmatpush1.msra.mxu0 0.0
      %2197 = vmatprep.subr.mxu0 0.0
      %2198 = vmatpush1.msra.mxu0 0.0
      %2199 = vmatprep.subr.mxu0 0.0
      %2200 = vmatpush1.msra.mxu0 0.0
      %2201 = vmatprep.subr.mxu0 0.0
      %2202 = vmatpush1.msra.mxu0 0.0
      %2203 = vmatprep.subr.mxu0 0.0
      %2204 = vmatpush1.msra.mxu0 0.0
      %2205 = vmatprep.subr.mxu0 0.0
      %2206 = vmatpush1.msra.mxu0 0.0
      %2207 = vmatprep.subr.mxu0 0.0
      %2208 = vmatpush1.msra.mxu0 0.0
      %2209 = vmatprep.subr.mxu0 0.0
      %2210 = vmatpush1.msra.mxu0 0.0
      %2211 = vmatprep.subr.mxu0 0.0
      %2212 = vmatpush1.msra.mxu0 0.0
      %2213 = vmatprep.subr.mxu0 0.0
      %2214 = vmatpush1.msra.mxu0 0.0
      %2215 = vmatprep.subr.mxu0 0.0
      %2216 = vmatpush1.msra.mxu0 0.0
      %2217 = vmatprep.subr.mxu0 0.0
      %2218 = vmatpush1.msra.mxu0 0.0
      %2219 = vmatprep.subr.mxu0 0.0
      %2220 = vmatpush1.msra.mxu0 0.0
      %2221 = vmatprep.subr.mxu0 0.0
      %2222 = vmatpush1.msra.mxu0 0.0
      %2223 = vmatprep.subr.mxu0 0.0
      %2224 = vmatpush1.msra.mxu0 0.0
      %2225 = vmatprep.subr.mxu0 0.0
      %2226 = vmatpush1.msra.mxu0 0.0
      %2227 = vmatprep.subr.mxu0 0.0
      %2228 = vmatpush1.msra.mxu0 0.0
      %2229 = vmatprep.subr.mxu0 0.0
      %2230 = vmatpush1.msra.mxu0 0.0
      %2231 = vmatprep.subr.mxu0 0.0
      %2232 = vmatpush1.msra.mxu0 0.0
      %2233 = vmatprep.subr.mxu0 0.0
      %2234 = vmatpush1.msra.mxu0 0.0
      %2235 = vmatprep.subr.mxu0 0.0
      %2236 = vmatpush1.msra.mxu0 0.0
      %2237 = vmatprep.subr.mxu0 0.0
      %2238 = vmatpush1.msra.mxu0 0.0
      %2239 = vmatprep.subr.mxu0 0.0
      %2240 = vmatpush1.msra.mxu0 0.0
      %2241 = vmatprep.subr.mxu0 0.0
      %2242 = vmatpush1.msra.mxu0 0.0
      %2243 = vmatprep.subr.mxu0 0.0
      %2244 = vmatpush1.msra.mxu0 0.0
      %2245 = vmatprep.subr.mxu0 0.0
      %2246 = vmatpush1.msra.mxu0 0.0
      %2247 = vmatprep.mubr.f32.mxu0 0.0
      %2248 = vmatmul.mubr.f32.gmra.mrb[0].mxu0 %v622
      %v2249 = vpop.f32.mrb[0].mxu0
      %v2250 = vadd.f32 0.0, %v2249
      %v2251 = vpop.f32.mrb[0].mxu0
      %2252 = vmatprep.mubr.f32.mxu0 0.0
      %2253 = vmatmul.mubr.f32.gmra.mrb[0].mxu0 %v625
      %v2254 = vpop.f32.mrb[0].mxu0
      %v2255 = vadd.f32 0.0, %v2254
      %v2256 = vpop.f32.mrb[0].mxu0
      %2257 = vdwg.mxu0
      %v2258 = vld [vmem:[%s6] sm:$0xff]
      %v2259 = vld [vmem:[%s6 + $0x8] sm:$0xff]
      %v2260 = vld [vmem:[%s6 + $0x10] sm:$0xff]
      %v2261 = vld [vmem:[%s6 + $0x18] sm:$0xff]
      %v2262 = vld [vmem:[%s6 + $0x20] sm:$0xff]
      %v2263 = vld [vmem:[%s6 + $0x28] sm:$0xff]
      %v2264 = vld [vmem:[%s6 + $0x30] sm:$0xff]
      %v2265 = vld [vmem:[%s6 + $0x38] sm:$0xff]
      %v2266 = vld [vmem:[%s6 + $0x40] sm:$0xff]
      %v2267 = vld [vmem:[%s6 + $0x48] sm:$0xff]
      %v2268 = vld [vmem:[%s6 + $0x50] sm:$0xff]
      %v2269 = vld [vmem:[%s6 + $0x58] sm:$0xff]
      %v2270 = vld [vmem:[%s6 + $0x60] sm:$0xff]
      %v2271 = vld [vmem:[%s6 + $0x68] sm:$0xff]
      %v2272 = vld [vmem:[%s6 + $0x70] sm:$0xff]
      %v2273 = vld [vmem:[%s6 + $0x78] sm:$0xff]
      %s2274 = scalar_lea.vmem %s6, 128
      %v2275 = vld [vmem:[%s2274] sm:$0xff]
      %v2276 = vld [vmem:[%s2274 + $0x8] sm:$0xff]
      %v2277 = vld [vmem:[%s2274 + $0x10] sm:$0xff]
      %v2278 = vld [vmem:[%s2274 + $0x18] sm:$0xff]
      %v2279 = vld [vmem:[%s2274 + $0x20] sm:$0xff]
      %v2280 = vld [vmem:[%s2274 + $0x28] sm:$0xff]
      %v2281 = vld [vmem:[%s2274 + $0x30] sm:$0xff]
      %v2282 = vld [vmem:[%s2274 + $0x38] sm:$0xff]
      %v2283 = vld [vmem:[%s2274 + $0x40] sm:$0xff]
      %v2284 = vld [vmem:[%s2274 + $0x48] sm:$0xff]
      %v2285 = vld [vmem:[%s2274 + $0x50] sm:$0xff]
      %v2286 = vld [vmem:[%s2274 + $0x58] sm:$0xff]
      %v2287 = vld [vmem:[%s2274 + $0x60] sm:$0xff]
      %v2288 = vld [vmem:[%s2274 + $0x68] sm:$0xff]
      %v2289 = vld [vmem:[%s2274 + $0x70] sm:$0xff]
      %v2290 = vld [vmem:[%s2274 + $0x78] sm:$0xff]
      %2291 = vmatprep.subr.mxu0 0.0
      %2292 = vmatpush1.msra.mxu0 %v2275
      %2293 = vmatprep.subr.mxu0 0.0
      %2294 = vmatpush1.msra.mxu0 %v2276
      %2295 = vmatprep.subr.mxu0 0.0
      %2296 = vmatpush1.msra.mxu0 %v2277
      %2297 = vmatprep.subr.mxu0 0.0
      %2298 = vmatpush1.msra.mxu0 %v2278
      %2299 = vmatprep.subr.mxu0 0.0
      %2300 = vmatpush1.msra.mxu0 %v2279
      %2301 = vmatprep.subr.mxu0 0.0
      %2302 = vmatpush1.msra.mxu0 %v2280
      %2303 = vmatprep.subr.mxu0 0.0
      %2304 = vmatpush1.msra.mxu0 %v2281
      %2305 = vmatprep.subr.mxu0 0.0
      %2306 = vmatpush1.msra.mxu0 %v2282
      %2307 = vmatprep.subr.mxu0 0.0
      %2308 = vmatpush1.msra.mxu0 %v2283
      %2309 = vmatprep.subr.mxu0 0.0
      %2310 = vmatpush1.msra.mxu0 %v2284
      %2311 = vmatprep.subr.mxu0 0.0
      %2312 = vmatpush1.msra.mxu0 %v2285
      %2313 = vmatprep.subr.mxu0 0.0
      %2314 = vmatpush1.msra.mxu0 %v2286
      %2315 = vmatprep.subr.mxu0 0.0
      %2316 = vmatpush1.msra.mxu0 %v2287
      %2317 = vmatprep.subr.mxu0 0.0
      %2318 = vmatpush1.msra.mxu0 %v2288
      %2319 = vmatprep.subr.mxu0 0.0
      %2320 = vmatpush1.msra.mxu0 %v2289
      %2321 = vmatprep.subr.mxu0 0.0
      %2322 = vmatpush1.msra.mxu0 %v2290
      %2323 = vmatprep.subr.mxu0 0.0
      %2324 = vmatpush1.msra.mxu0 0.0
      %2325 = vmatprep.subr.mxu0 0.0
      %2326 = vmatpush1.msra.mxu0 0.0
      %2327 = vmatprep.subr.mxu0 0.0
      %2328 = vmatpush1.msra.mxu0 0.0
      %2329 = vmatprep.subr.mxu0 0.0
      %2330 = vmatpush1.msra.mxu0 0.0
      %2331 = vmatprep.subr.mxu0 0.0
      %2332 = vmatpush1.msra.mxu0 0.0
      %2333 = vmatprep.subr.mxu0 0.0
      %2334 = vmatpush1.msra.mxu0 0.0
      %2335 = vmatprep.subr.mxu0 0.0
      %2336 = vmatpush1.msra.mxu0 0.0
      %2337 = vmatprep.subr.mxu0 0.0
      %2338 = vmatpush1.msra.mxu0 0.0
      %2339 = vmatprep.subr.mxu0 0.0
      %2340 = vmatpush1.msra.mxu0 0.0
      %2341 = vmatprep.subr.mxu0 0.0
      %2342 = vmatpush1.msra.mxu0 0.0
      %2343 = vmatprep.subr.mxu0 0.0
      %2344 = vmatpush1.msra.mxu0 0.0
      %2345 = vmatprep.subr.mxu0 0.0
      %2346 = vmatpush1.msra.mxu0 0.0
      %2347 = vmatprep.subr.mxu0 0.0
      %2348 = vmatpush1.msra.mxu0 0.0
      %2349 = vmatprep.subr.mxu0 0.0
      %2350 = vmatpush1.msra.mxu0 0.0
      %2351 = vmatprep.subr.mxu0 0.0
      %2352 = vmatpush1.msra.mxu0 0.0
      %2353 = vmatprep.subr.mxu0 0.0
      %2354 = vmatpush1.msra.mxu0 0.0
      %2355 = vmatprep.mubr.f32.mxu0 0.0
      %2356 = vmatmul.mubr.f32.gmra.mrb[0].mxu0 %v2175
      %v2357 = vpop.f32.mrb[0].mxu0
      %v2358 = vadd.f32 0.0, %v2357
      %v2359 = vpop.f32.mrb[0].mxu0
      %2360 = vmatprep.mubr.f32.mxu0 0.0
      %2361 = vmatmul.mubr.f32.gmra.mrb[0].mxu0 %v2180
      %v2362 = vpop.f32.mrb[0].mxu0
      %v2363 = vadd.f32 0.0, %v2362
      %v2364 = vpop.f32.mrb[0].mxu0
      %2365 = vdwg.mxu0
      %2366 = vmatprep.subr.mxu0 0.0
      %2367 = vmatpush1.msra.mxu0 %v2258
      %2368 = vmatprep.subr.mxu0 0.0
      %2369 = vmatpush1.msra.mxu0 %v2259
      %2370 = vmatprep.subr.mxu0 0.0
      %2371 = vmatpush1.msra.mxu0 %v2260
      %2372 = vmatprep.subr.mxu0 0.0
      %2373 = vmatpush1.msra.mxu0 %v2261
      %2374 = vmatprep.subr.mxu0 0.0
      %2375 = vmatpush1.msra.mxu0 %v2262
      %2376 = vmatprep.subr.mxu0 0.0
      %2377 = vmatpush1.msra.mxu0 %v2263
      %2378 = vmatprep.subr.mxu0 0.0
      %2379 = vmatpush1.msra.mxu0 %v2264
      %2380 = vmatprep.subr.mxu0 0.0
      %2381 = vmatpush1.msra.mxu0 %v2265
      %2382 = vmatprep.subr.mxu0 0.0
      %2383 = vmatpush1.msra.mxu0 %v2266
      %2384 = vmatprep.subr.mxu0 0.0
      %2385 = vmatpush1.msra.mxu0 %v2267
      %2386 = vmatprep.subr.mxu0 0.0
      %2387 = vmatpush1.msra.mxu0 %v2268
      %2388 = vmatprep.subr.mxu0 0.0
      %2389 = vmatpush1.msra.mxu0 %v2269
      %2390 = vmatprep.subr.mxu0 0.0
      %2391 = vmatpush1.msra.mxu0 %v2270
      %2392 = vmatprep.subr.mxu0 0.0
      %2393 = vmatpush1.msra.mxu0 %v2271
      %2394 = vmatprep.subr.mxu0 0.0
      %2395 = vmatpush1.msra.mxu0 %v2272
      %2396 = vmatprep.subr.mxu0 0.0
      %2397 = vmatpush1.msra.mxu0 %v2273
      %2398 = vmatprep.subr.mxu0 0.0
      %2399 = vmatpush1.msra.mxu0 0.0
      %2400 = vmatprep.subr.mxu0 0.0
      %2401 = vmatpush1.msra.mxu0 0.0
      %2402 = vmatprep.subr.mxu0 0.0
      %2403 = vmatpush1.msra.mxu0 0.0
      %2404 = vmatprep.subr.mxu0 0.0
      %2405 = vmatpush1.msra.mxu0 0.0
      %2406 = vmatprep.subr.mxu0 0.0
      %2407 = vmatpush1.msra.mxu0 0.0
      %2408 = vmatprep.subr.mxu0 0.0
      %2409 = vmatpush1.msra.mxu0 0.0
      %2410 = vmatprep.subr.mxu0 0.0
      %2411 = vmatpush1.msra.mxu0 0.0
      %2412 = vmatprep.subr.mxu0 0.0
      %2413 = vmatpush1.msra.mxu0 0.0
      %2414 = vmatprep.subr.mxu0 0.0
      %2415 = vmatpush1.msra.mxu0 0.0
      %2416 = vmatprep.subr.mxu0 0.0
      %2417 = vmatpush1.msra.mxu0 0.0
      %2418 = vmatprep.subr.mxu0 0.0
      %2419 = vmatpush1.msra.mxu0 0.0
      %2420 = vmatprep.subr.mxu0 0.0
      %2421 = vmatpush1.msra.mxu0 0.0
      %2422 = vmatprep.subr.mxu0 0.0
      %2423 = vmatpush1.msra.mxu0 0.0
      %2424 = vmatprep.subr.mxu0 0.0
      %2425 = vmatpush1.msra.mxu0 0.0
      %2426 = vmatprep.subr.mxu0 0.0
      %2427 = vmatpush1.msra.mxu0 0.0
      %2428 = vmatprep.subr.mxu0 0.0
      %2429 = vmatpush1.msra.mxu0 0.0
      %2430 = vmatprep.mubr.f32.mxu0 0.0
      %2431 = vmatmul.mubr.f32.gmra.mrb[0].mxu0 %v2250
      %v2432 = vpop.f32.mrb[0].mxu0
      %v2433 = vadd.f32 %v2358, %v2432
      %v2434 = vpop.f32.mrb[0].mxu0
      %2435 = vmatprep.mubr.f32.mxu0 0.0
      %2436 = vmatmul.mubr.f32.gmra.mrb[0].mxu0 %v2255
      %v2437 = vpop.f32.mrb[0].mxu0
      %v2438 = vadd.f32 %v2363, %v2437
      %v2439 = vpop.f32.mrb[0].mxu0
      %2440 = vdwg.mxu0
      %v2442 = vsel %vm620, %v588, 0
      %v2445 = vsel %vm620, %v589, 0
      %2447 = vmatprep.subr.mxu0 0.0
      %2448 = vmatpush1.msra.mxu0 %v2175
      %2449 = vmatprep.subr.mxu0 0.0
      %2450 = vmatpush1.msra.mxu0 %v2180
      %2451 = vmatprep.subr.mxu0 0.0
      %2452 = vmatpush1.msra.mxu0 0.0
      %2453 = vmatprep.subr.mxu0 0.0
      %2454 = vmatpush1.msra.mxu0 0.0
      %2455 = vmatprep.subr.mxu0 0.0
      %2456 = vmatpush1.msra.mxu0 0.0
      %2457 = vmatprep.subr.mxu0 0.0
      %2458 = vmatpush1.msra.mxu0 0.0
      %2459 = vmatprep.subr.mxu0 0.0
      %2460 = vmatpush1.msra.mxu0 0.0
      %2461 = vmatprep.subr.mxu0 0.0
      %2462 = vmatpush1.msra.mxu0 0.0
      %2463 = vmatprep.subr.mxu0 0.0
      %2464 = vmatpush1.msra.mxu0 0.0
      %2465 = vmatprep.subr.mxu0 0.0
      %2466 = vmatpush1.msra.mxu0 0.0
      %2467 = vmatprep.subr.mxu0 0.0
      %2468 = vmatpush1.msra.mxu0 0.0
      %2469 = vmatprep.subr.mxu0 0.0
      %2470 = vmatpush1.msra.mxu0 0.0
      %2471 = vmatprep.subr.mxu0 0.0
      %2472 = vmatpush1.msra.mxu0 0.0
      %2473 = vmatprep.subr.mxu0 0.0
      %2474 = vmatpush1.msra.mxu0 0.0
      %2475 = vmatprep.subr.mxu0 0.0
      %2476 = vmatpush1.msra.mxu0 0.0
      %2477 = vmatprep.subr.mxu0 0.0
      %2478 = vmatpush1.msra.mxu0 0.0
      %2479 = vmatprep.subr.mxu0 0.0
      %2480 = vmatpush1.msra.mxu0 0.0
      %2481 = vmatprep.subr.mxu0 0.0
      %2482 = vmatpush1.msra.mxu0 0.0
      %2483 = vmatprep.subr.mxu0 0.0
      %2484 = vmatpush1.msra.mxu0 0.0
      %2485 = vmatprep.subr.mxu0 0.0
      %2486 = vmatpush1.msra.mxu0 0.0
      %2487 = vmatprep.subr.mxu0 0.0
      %2488 = vmatpush1.msra.mxu0 0.0
      %2489 = vmatprep.subr.mxu0 0.0
      %2490 = vmatpush1.msra.mxu0 0.0
      %2491 = vmatprep.subr.mxu0 0.0
      %2492 = vmatpush1.msra.mxu0 0.0
      %2493 = vmatprep.subr.mxu0 0.0
      %2494 = vmatpush1.msra.mxu0 0.0
      %2495 = vmatprep.subr.mxu0 0.0
      %2496 = vmatpush1.msra.mxu0 0.0
      %2497 = vmatprep.subr.mxu0 0.0
      %2498 = vmatpush1.msra.mxu0 0.0
      %2499 = vmatprep.subr.mxu0 0.0
      %2500 = vmatpush1.msra.mxu0 0.0
      %2501 = vmatprep.subr.mxu0 0.0
      %2502 = vmatpush1.msra.mxu0 0.0
      %2503 = vmatprep.subr.mxu0 0.0
      %2504 = vmatpush1.msra.mxu0 0.0
      %2505 = vmatprep.subr.mxu0 0.0
      %2506 = vmatpush1.msra.mxu0 0.0
      %2507 = vmatprep.subr.mxu0 0.0
      %2508 = vmatpush1.msra.mxu0 0.0
      %2509 = vmatprep.subr.mxu0 0.0
      %2510 = vmatpush1.msra.mxu0 0.0
      %2511 = vmatprep.mubr.f32.mxu0 0.0
      %2512 = vmatmul.mubr.f32.gmra.mrb[0].mxu0 %v2442
      %v2513 = vpop.f32.mrb[0].mxu0
      %v2514 = vadd.f32 0.0, %v2513
      %v2515 = vpop.f32.mrb[0].mxu0
      %2516 = vmatprep.mubr.f32.mxu0 0.0
      %2517 = vmatmul.mubr.f32.gmra.mrb[0].mxu0 %v2445
      %v2518 = vpop.f32.mrb[0].mxu0
      %v2519 = vadd.f32 0.0, %v2518
      %v2520 = vpop.f32.mrb[0].mxu0
      %2521 = vdwg.mxu0
      %s2522 = scalar_lea.vmem %s6, 256
      %v2523 = vld [vmem:[%s2522] sm:$0xff]
      %v2524 = vld [vmem:[%s2522 + $0x8] sm:$0xff]
      %v2525 = vld [vmem:[%s2522 + $0x10] sm:$0xff]
      %v2526 = vld [vmem:[%s2522 + $0x18] sm:$0xff]
      %v2527 = vld [vmem:[%s2522 + $0x20] sm:$0xff]
      %v2528 = vld [vmem:[%s2522 + $0x28] sm:$0xff]
      %v2529 = vld [vmem:[%s2522 + $0x30] sm:$0xff]
      %v2530 = vld [vmem:[%s2522 + $0x38] sm:$0xff]
      %v2531 = vld [vmem:[%s2522 + $0x40] sm:$0xff]
      %v2532 = vld [vmem:[%s2522 + $0x48] sm:$0xff]
      %v2533 = vld [vmem:[%s2522 + $0x50] sm:$0xff]
      %v2534 = vld [vmem:[%s2522 + $0x58] sm:$0xff]
      %v2535 = vld [vmem:[%s2522 + $0x60] sm:$0xff]
      %v2536 = vld [vmem:[%s2522 + $0x68] sm:$0xff]
      %v2537 = vld [vmem:[%s2522 + $0x70] sm:$0xff]
      %v2538 = vld [vmem:[%s2522 + $0x78] sm:$0xff]
      %2539 = vmatprep.subr.mxu0 0.0
      %2540 = vmatpush1.msra.mxu0 %v2523
      %2541 = vmatprep.subr.mxu0 0.0
      %2542 = vmatpush1.msra.mxu0 %v2524
      %2543 = vmatprep.subr.mxu0 0.0
      %2544 = vmatpush1.msra.mxu0 %v2525
      %2545 = vmatprep.subr.mxu0 0.0
      %2546 = vmatpush1.msra.mxu0 %v2526
      %2547 = vmatprep.subr.mxu0 0.0
      %2548 = vmatpush1.msra.mxu0 %v2527
      %2549 = vmatprep.subr.mxu0 0.0
      %2550 = vmatpush1.msra.mxu0 %v2528
      %2551 = vmatprep.subr.mxu0 0.0
      %2552 = vmatpush1.msra.mxu0 %v2529
      %2553 = vmatprep.subr.mxu0 0.0
      %2554 = vmatpush1.msra.mxu0 %v2530
      %2555 = vmatprep.subr.mxu0 0.0
      %2556 = vmatpush1.msra.mxu0 %v2531
      %2557 = vmatprep.subr.mxu0 0.0
      %2558 = vmatpush1.msra.mxu0 %v2532
      %2559 = vmatprep.subr.mxu0 0.0
      %2560 = vmatpush1.msra.mxu0 %v2533
      %2561 = vmatprep.subr.mxu0 0.0
      %2562 = vmatpush1.msra.mxu0 %v2534
      %2563 = vmatprep.subr.mxu0 0.0
      %2564 = vmatpush1.msra.mxu0 %v2535
      %2565 = vmatprep.subr.mxu0 0.0
      %2566 = vmatpush1.msra.mxu0 %v2536
      %2567 = vmatprep.subr.mxu0 0.0
      %2568 = vmatpush1.msra.mxu0 %v2537
      %2569 = vmatprep.subr.mxu0 0.0
      %2570 = vmatpush1.msra.mxu0 %v2538
      %2571 = vmatprep.subr.mxu0 0.0
      %2572 = vmatpush1.msra.mxu0 0.0
      %2573 = vmatprep.subr.mxu0 0.0
      %2574 = vmatpush1.msra.mxu0 0.0
      %2575 = vmatprep.subr.mxu0 0.0
      %2576 = vmatpush1.msra.mxu0 0.0
      %2577 = vmatprep.subr.mxu0 0.0
      %2578 = vmatpush1.msra.mxu0 0.0
      %2579 = vmatprep.subr.mxu0 0.0
      %2580 = vmatpush1.msra.mxu0 0.0
      %2581 = vmatprep.subr.mxu0 0.0
      %2582 = vmatpush1.msra.mxu0 0.0
      %2583 = vmatprep.subr.mxu0 0.0
      %2584 = vmatpush1.msra.mxu0 0.0
      %2585 = vmatprep.subr.mxu0 0.0
      %2586 = vmatpush1.msra.mxu0 0.0
      %2587 = vmatprep.subr.mxu0 0.0
      %2588 = vmatpush1.msra.mxu0 0.0
      %2589 = vmatprep.subr.mxu0 0.0
      %2590 = vmatpush1.msra.mxu0 0.0
      %2591 = vmatprep.subr.mxu0 0.0
      %2592 = vmatpush1.msra.mxu0 0.0
      %2593 = vmatprep.subr.mxu0 0.0
      %2594 = vmatpush1.msra.mxu0 0.0
      %2595 = vmatprep.subr.mxu0 0.0
      %2596 = vmatpush1.msra.mxu0 0.0
      %2597 = vmatprep.subr.mxu0 0.0
      %2598 = vmatpush1.msra.mxu0 0.0
      %2599 = vmatprep.subr.mxu0 0.0
      %2600 = vmatpush1.msra.mxu0 0.0
      %2601 = vmatprep.subr.mxu0 0.0
      %2602 = vmatpush1.msra.mxu0 0.0
      %2603 = vmatprep.mubr.f32.mxu0 0.0
      %2604 = vmatmul.mubr.f32.gmra.mrb[0].mxu0 %v2514
      %v2605 = vpop.f32.mrb[0].mxu0
      %v2606 = vadd.f32 0.0, %v2605
      %v2607 = vpop.f32.mrb[0].mxu0
      %2608 = vmatprep.mubr.f32.mxu0 0.0
      %2609 = vmatmul.mubr.f32.gmra.mrb[0].mxu0 %v2519
      %v2610 = vpop.f32.mrb[0].mxu0
      %v2611 = vadd.f32 0.0, %v2610
      %v2612 = vpop.f32.mrb[0].mxu0
      %2613 = vdwg.mxu0
      %v2614 = vadd.f32 %v2433, %v2606
      %v2615 = vadd.f32 %v2438, %v2611
      %v2616 = vmax.f32 %v2614, 0.0
      %v2617 = vmax.f32 %v2615, 0.0
      %v2618 = vld [vmem:[%s8] sm:$0x1]
      %v2619 = vld [vmem:[%s7] sm:$0xff]
      %v2620 = vld [vmem:[%s7 + $0x8] sm:$0xff]
      %v2621 = vld [vmem:[%s7 + $0x10] sm:$0xff]
      %v2622 = vld [vmem:[%s7 + $0x18] sm:$0xff]
      %v2623 = vld [vmem:[%s7 + $0x20] sm:$0xff]
      %v2624 = vld [vmem:[%s7 + $0x28] sm:$0xff]
      %v2625 = vld [vmem:[%s7 + $0x30] sm:$0xff]
      %v2626 = vld [vmem:[%s7 + $0x38] sm:$0xff]
      %v2627 = vld [vmem:[%s7 + $0x40] sm:$0xff]
      %v2628 = vld [vmem:[%s7 + $0x48] sm:$0xff]
      %v2629 = vld [vmem:[%s7 + $0x50] sm:$0xff]
      %v2630 = vld [vmem:[%s7 + $0x58] sm:$0xff]
      %v2631 = vld [vmem:[%s7 + $0x60] sm:$0xff]
      %v2632 = vld [vmem:[%s7 + $0x68] sm:$0xff]
      %v2633 = vld [vmem:[%s7 + $0x70] sm:$0xff]
      %v2634 = vld [vmem:[%s7 + $0x78] sm:$0xff]
      %v2636 = vlaneseq
      %v2637 = vshrl.u32 %v2636, 7
      %v2638 = vsub.s32 0, %v2637
      %v2639 = vrot.slane %v2618, %v2638
      %2641 = vmatprep.subr.mxu0 0.0
      %2642 = vmatpush1.msra.mxu0 %v2619
      %2643 = vmatprep.subr.mxu0 0.0
      %2644 = vmatpush1.msra.mxu0 %v2620
      %2645 = vmatprep.subr.mxu0 0.0
      %2646 = vmatpush1.msra.mxu0 %v2621
      %2647 = vmatprep.subr.mxu0 0.0
      %2648 = vmatpush1.msra.mxu0 %v2622
      %2649 = vmatprep.subr.mxu0 0.0
      %2650 = vmatpush1.msra.mxu0 %v2623
      %2651 = vmatprep.subr.mxu0 0.0
      %2652 = vmatpush1.msra.mxu0 %v2624
      %2653 = vmatprep.subr.mxu0 0.0
      %2654 = vmatpush1.msra.mxu0 %v2625
      %2655 = vmatprep.subr.mxu0 0.0
      %2656 = vmatpush1.msra.mxu0 %v2626
      %2657 = vmatprep.subr.mxu0 0.0
      %2658 = vmatpush1.msra.mxu0 %v2627
      %2659 = vmatprep.subr.mxu0 0.0
      %2660 = vmatpush1.msra.mxu0 %v2628
      %2661 = vmatprep.subr.mxu0 0.0
      %2662 = vmatpush1.msra.mxu0 %v2629
      %2663 = vmatprep.subr.mxu0 0.0
      %2664 = vmatpush1.msra.mxu0 %v2630
      %2665 = vmatprep.subr.mxu0 0.0
      %2666 = vmatpush1.msra.mxu0 %v2631
      %2667 = vmatprep.subr.mxu0 0.0
      %2668 = vmatpush1.msra.mxu0 %v2632
      %2669 = vmatprep.subr.mxu0 0.0
      %2670 = vmatpush1.msra.mxu0 %v2633
      %2671 = vmatprep.subr.mxu0 0.0
      %2672 = vmatpush1.msra.mxu0 %v2634
      %2673 = vmatprep.subr.mxu0 0.0
      %2674 = vmatpush1.msra.mxu0 0.0
      %2675 = vmatprep.subr.mxu0 0.0
      %2676 = vmatpush1.msra.mxu0 0.0
      %2677 = vmatprep.subr.mxu0 0.0
      %2678 = vmatpush1.msra.mxu0 0.0
      %2679 = vmatprep.subr.mxu0 0.0
      %2680 = vmatpush1.msra.mxu0 0.0
      %2681 = vmatprep.subr.mxu0 0.0
      %2682 = vmatpush1.msra.mxu0 0.0
      %2683 = vmatprep.subr.mxu0 0.0
      %2684 = vmatpush1.msra.mxu0 0.0
      %2685 = vmatprep.subr.mxu0 0.0
      %2686 = vmatpush1.msra.mxu0 0.0
      %2687 = vmatprep.subr.mxu0 0.0
      %2688 = vmatpush1.msra.mxu0 0.0
      %2689 = vmatprep.subr.mxu0 0.0
      %2690 = vmatpush1.msra.mxu0 0.0
      %2691 = vmatprep.subr.mxu0 0.0
      %2692 = vmatpush1.msra.mxu0 0.0
      %2693 = vmatprep.subr.mxu0 0.0
      %2694 = vmatpush1.msra.mxu0 0.0
      %2695 = vmatprep.subr.mxu0 0.0
      %2696 = vmatpush1.msra.mxu0 0.0
      %2697 = vmatprep.subr.mxu0 0.0
      %2698 = vmatpush1.msra.mxu0 0.0
      %2699 = vmatprep.subr.mxu0 0.0
      %2700 = vmatpush1.msra.mxu0 0.0
      %2701 = vmatprep.subr.mxu0 0.0
      %2702 = vmatpush1.msra.mxu0 0.0
      %2703 = vmatprep.subr.mxu0 0.0
      %2704 = vmatpush1.msra.mxu0 0.0
      %2705 = vmatprep.mubr.f32.mxu0 0.0
      %2706 = vmatmul.mubr.f32.gmra.mrb[0].mxu0 %v2616
      %v2707 = vpop.f32.mrb[0].mxu0
      %v2708 = vadd.f32 %v2639, %v2707
      %v2709 = vpop.f32.mrb[0].mxu0
      %2710 = vmatprep.mubr.f32.mxu0 0.0
      %2711 = vmatmul.mubr.f32.gmra.mrb[0].mxu0 %v2617
      %v2712 = vpop.f32.mrb[0].mxu0
      %v2713 = vadd.f32 %v2639, %v2712
      %v2714 = vpop.f32.mrb[0].mxu0
      %2715 = vdwg.mxu0
      %s2716 = scalar_lea.vmem %s7, 128
      %v2717 = vld [vmem:[%s2716] sm:$0xff]
      %v2718 = vld [vmem:[%s2716 + $0x8] sm:$0xff]
      %v2719 = vld [vmem:[%s2716 + $0x10] sm:$0xff]
      %v2720 = vld [vmem:[%s2716 + $0x18] sm:$0xff]
      %v2721 = vld [vmem:[%s2716 + $0x20] sm:$0xff]
      %v2722 = vld [vmem:[%s2716 + $0x28] sm:$0xff]
      %v2723 = vld [vmem:[%s2716 + $0x30] sm:$0xff]
      %v2724 = vld [vmem:[%s2716 + $0x38] sm:$0xff]
      %v2725 = vld [vmem:[%s2716 + $0x40] sm:$0xff]
      %v2726 = vld [vmem:[%s2716 + $0x48] sm:$0xff]
      %v2727 = vld [vmem:[%s2716 + $0x50] sm:$0xff]
      %v2728 = vld [vmem:[%s2716 + $0x58] sm:$0xff]
      %v2729 = vld [vmem:[%s2716 + $0x60] sm:$0xff]
      %v2730 = vld [vmem:[%s2716 + $0x68] sm:$0xff]
      %v2731 = vld [vmem:[%s2716 + $0x70] sm:$0xff]
      %v2732 = vld [vmem:[%s2716 + $0x78] sm:$0xff]
      %2733 = vmatprep.subr.mxu0 0.0
      %2734 = vmatpush1.msra.mxu0 %v2616
      %2735 = vmatprep.subr.mxu0 0.0
      %2736 = vmatpush1.msra.mxu0 %v2617
      %2737 = vmatprep.subr.mxu0 0.0
      %2738 = vmatpush1.msra.mxu0 0.0
      %2739 = vmatprep.subr.mxu0 0.0
      %2740 = vmatpush1.msra.mxu0 0.0
      %2741 = vmatprep.subr.mxu0 0.0
      %2742 = vmatpush1.msra.mxu0 0.0
      %2743 = vmatprep.subr.mxu0 0.0
      %2744 = vmatpush1.msra.mxu0 0.0
      %2745 = vmatprep.subr.mxu0 0.0
      %2746 = vmatpush1.msra.mxu0 0.0
      %2747 = vmatprep.subr.mxu0 0.0
      %2748 = vmatpush1.msra.mxu0 0.0
      %2749 = vmatprep.subr.mxu0 0.0
      %2750 = vmatpush1.msra.mxu0 0.0
      %2751 = vmatprep.subr.mxu0 0.0
      %2752 = vmatpush1.msra.mxu0 0.0
      %2753 = vmatprep.subr.mxu0 0.0
      %2754 = vmatpush1.msra.mxu0 0.0
      %2755 = vmatprep.subr.mxu0 0.0
      %2756 = vmatpush1.msra.mxu0 0.0
      %2757 = vmatprep.subr.mxu0 0.0
      %2758 = vmatpush1.msra.mxu0 0.0
      %2759 = vmatprep.subr.mxu0 0.0
      %2760 = vmatpush1.msra.mxu0 0.0
      %2761 = vmatprep.subr.mxu0 0.0
      %2762 = vmatpush1.msra.mxu0 0.0
      %2763 = vmatprep.subr.mxu0 0.0
      %2764 = vmatpush1.msra.mxu0 0.0
      %2765 = vmatprep.subr.mxu0 0.0
      %2766 = vmatpush1.msra.mxu0 0.0
      %2767 = vmatprep.subr.mxu0 0.0
      %2768 = vmatpush1.msra.mxu0 0.0
      %2769 = vmatprep.subr.mxu0 0.0
      %2770 = vmatpush1.msra.mxu0 0.0
      %2771 = vmatprep.subr.mxu0 0.0
      %2772 = vmatpush1.msra.mxu0 0.0
      %2773 = vmatprep.subr.mxu0 0.0
      %2774 = vmatpush1.msra.mxu0 0.0
      %2775 = vmatprep.subr.mxu0 0.0
      %2776 = vmatpush1.msra.mxu0 0.0
      %2777 = vmatprep.subr.mxu0 0.0
      %2778 = vmatpush1.msra.mxu0 0.0
      %2779 = vmatprep.subr.mxu0 0.0
      %2780 = vmatpush1.msra.mxu0 0.0
      %2781 = vmatprep.subr.mxu0 0.0
      %2782 = vmatpush1.msra.mxu0 0.0
      %2783 = vmatprep.subr.mxu0 0.0
      %2784 = vmatpush1.msra.mxu0 0.0
      %2785 = vmatprep.subr.mxu0 0.0
      %2786 = vmatpush1.msra.mxu0 0.0
      %2787 = vmatprep.subr.mxu0 0.0
      %2788 = vmatpush1.msra.mxu0 0.0
      %2789 = vmatprep.subr.mxu0 0.0
      %2790 = vmatpush1.msra.mxu0 0.0
      %2791 = vmatprep.subr.mxu0 0.0
      %2792 = vmatpush1.msra.mxu0 0.0
      %2793 = vmatprep.subr.mxu0 0.0
      %2794 = vmatpush1.msra.mxu0 0.0
      %2795 = vmatprep.subr.mxu0 0.0
      %2796 = vmatpush1.msra.mxu0 0.0
      %2797 = vmatprep.mubr.f32.mxu0 0.0
      %2798 = vmatmul.mubr.f32.gmra.mrb[0].mxu0 %v2442
      %v2799 = vpop.f32.mrb[0].mxu0
      %v2800 = vadd.f32 0.0, %v2799
      %v2801 = vpop.f32.mrb[0].mxu0
      %2802 = vmatprep.mubr.f32.mxu0 0.0
      %2803 = vmatmul.mubr.f32.gmra.mrb[0].mxu0 %v2445
      %v2804 = vpop.f32.mrb[0].mxu0
      %v2805 = vadd.f32 0.0, %v2804
      %v2806 = vpop.f32.mrb[0].mxu0
      %2807 = vdwg.mxu0
      %s2808 = scalar_lea.vmem %s7, 256
      %v2809 = vld [vmem:[%s2808] sm:$0xff]
      %v2810 = vld [vmem:[%s2808 + $0x8] sm:$0xff]
      %v2811 = vld [vmem:[%s2808 + $0x10] sm:$0xff]
      %v2812 = vld [vmem:[%s2808 + $0x18] sm:$0xff]
      %v2813 = vld [vmem:[%s2808 + $0x20] sm:$0xff]
      %v2814 = vld [vmem:[%s2808 + $0x28] sm:$0xff]
      %v2815 = vld [vmem:[%s2808 + $0x30] sm:$0xff]
      %v2816 = vld [vmem:[%s2808 + $0x38] sm:$0xff]
      %v2817 = vld [vmem:[%s2808 + $0x40] sm:$0xff]
      %v2818 = vld [vmem:[%s2808 + $0x48] sm:$0xff]
      %v2819 = vld [vmem:[%s2808 + $0x50] sm:$0xff]
      %v2820 = vld [vmem:[%s2808 + $0x58] sm:$0xff]
      %v2821 = vld [vmem:[%s2808 + $0x60] sm:$0xff]
      %v2822 = vld [vmem:[%s2808 + $0x68] sm:$0xff]
      %v2823 = vld [vmem:[%s2808 + $0x70] sm:$0xff]
      %v2824 = vld [vmem:[%s2808 + $0x78] sm:$0xff]
      %2825 = vmatprep.subr.mxu0 0.0
      %2826 = vmatpush1.msra.mxu0 %v2809
      %2827 = vmatprep.subr.mxu0 0.0
      %2828 = vmatpush1.msra.mxu0 %v2810
      %2829 = vmatprep.subr.mxu0 0.0
      %2830 = vmatpush1.msra.mxu0 %v2811
      %2831 = vmatprep.subr.mxu0 0.0
      %2832 = vmatpush1.msra.mxu0 %v2812
      %2833 = vmatprep.subr.mxu0 0.0
      %2834 = vmatpush1.msra.mxu0 %v2813
      %2835 = vmatprep.subr.mxu0 0.0
      %2836 = vmatpush1.msra.mxu0 %v2814
      %2837 = vmatprep.subr.mxu0 0.0
      %2838 = vmatpush1.msra.mxu0 %v2815
      %2839 = vmatprep.subr.mxu0 0.0
      %2840 = vmatpush1.msra.mxu0 %v2816
      %2841 = vmatprep.subr.mxu0 0.0
      %2842 = vmatpush1.msra.mxu0 %v2817
      %2843 = vmatprep.subr.mxu0 0.0
      %2844 = vmatpush1.msra.mxu0 %v2818
      %2845 = vmatprep.subr.mxu0 0.0
      %2846 = vmatpush1.msra.mxu0 %v2819
      %2847 = vmatprep.subr.mxu0 0.0
      %2848 = vmatpush1.msra.mxu0 %v2820
      %2849 = vmatprep.subr.mxu0 0.0
      %2850 = vmatpush1.msra.mxu0 %v2821
      %2851 = vmatprep.subr.mxu0 0.0
      %2852 = vmatpush1.msra.mxu0 %v2822
      %2853 = vmatprep.subr.mxu0 0.0
      %2854 = vmatpush1.msra.mxu0 %v2823
      %2855 = vmatprep.subr.mxu0 0.0
      %2856 = vmatpush1.msra.mxu0 %v2824
      %2857 = vmatprep.subr.mxu0 0.0
      %2858 = vmatpush1.msra.mxu0 0.0
      %2859 = vmatprep.subr.mxu0 0.0
      %2860 = vmatpush1.msra.mxu0 0.0
      %2861 = vmatprep.subr.mxu0 0.0
      %2862 = vmatpush1.msra.mxu0 0.0
      %2863 = vmatprep.subr.mxu0 0.0
      %2864 = vmatpush1.msra.mxu0 0.0
      %2865 = vmatprep.subr.mxu0 0.0
      %2866 = vmatpush1.msra.mxu0 0.0
      %2867 = vmatprep.subr.mxu0 0.0
      %2868 = vmatpush1.msra.mxu0 0.0
      %2869 = vmatprep.subr.mxu0 0.0
      %2870 = vmatpush1.msra.mxu0 0.0
      %2871 = vmatprep.subr.mxu0 0.0
      %2872 = vmatpush1.msra.mxu0 0.0
      %2873 = vmatprep.subr.mxu0 0.0
      %2874 = vmatpush1.msra.mxu0 0.0
      %2875 = vmatprep.subr.mxu0 0.0
      %2876 = vmatpush1.msra.mxu0 0.0
      %2877 = vmatprep.subr.mxu0 0.0
      %2878 = vmatpush1.msra.mxu0 0.0
      %2879 = vmatprep.subr.mxu0 0.0
      %2880 = vmatpush1.msra.mxu0 0.0
      %2881 = vmatprep.subr.mxu0 0.0
      %2882 = vmatpush1.msra.mxu0 0.0
      %2883 = vmatprep.subr.mxu0 0.0
      %2884 = vmatpush1.msra.mxu0 0.0
      %2885 = vmatprep.subr.mxu0 0.0
      %2886 = vmatpush1.msra.mxu0 0.0
      %2887 = vmatprep.subr.mxu0 0.0
      %2888 = vmatpush1.msra.mxu0 0.0
      %2889 = vmatprep.mubr.f32.mxu0 0.0
      %2890 = vmatmul.mubr.f32.gmra.mrb[0].mxu0 %v2800
      %v2891 = vpop.f32.mrb[0].mxu0
      %v2892 = vadd.f32 0.0, %v2891
      %v2893 = vpop.f32.mrb[0].mxu0
      %2894 = vmatprep.mubr.f32.mxu0 0.0
      %2895 = vmatmul.mubr.f32.gmra.mrb[0].mxu0 %v2805
      %v2896 = vpop.f32.mrb[0].mxu0
      %v2897 = vadd.f32 0.0, %v2896
      %v2898 = vpop.f32.mrb[0].mxu0
      %2899 = vdwg.mxu0
      %2900 = vmatprep.subr.mxu0 0.0
      %2901 = vmatpush1.msra.mxu0 %v2717
      %2902 = vmatprep.subr.mxu0 0.0
      %2903 = vmatpush1.msra.mxu0 %v2718
      %2904 = vmatprep.subr.mxu0 0.0
      %2905 = vmatpush1.msra.mxu0 %v2719
      %2906 = vmatprep.subr.mxu0 0.0
      %2907 = vmatpush1.msra.mxu0 %v2720
      %2908 = vmatprep.subr.mxu0 0.0
      %2909 = vmatpush1.msra.mxu0 %v2721
      %2910 = vmatprep.subr.mxu0 0.0
      %2911 = vmatpush1.msra.mxu0 %v2722
      %2912 = vmatprep.subr.mxu0 0.0
      %2913 = vmatpush1.msra.mxu0 %v2723
      %2914 = vmatprep.subr.mxu0 0.0
      %2915 = vmatpush1.msra.mxu0 %v2724
      %2916 = vmatprep.subr.mxu0 0.0
      %2917 = vmatpush1.msra.mxu0 %v2725
      %2918 = vmatprep.subr.mxu0 0.0
      %2919 = vmatpush1.msra.mxu0 %v2726
      %2920 = vmatprep.subr.mxu0 0.0
      %2921 = vmatpush1.msra.mxu0 %v2727
      %2922 = vmatprep.subr.mxu0 0.0
      %2923 = vmatpush1.msra.mxu0 %v2728
      %2924 = vmatprep.subr.mxu0 0.0
      %2925 = vmatpush1.msra.mxu0 %v2729
      %2926 = vmatprep.subr.mxu0 0.0
      %2927 = vmatpush1.msra.mxu0 %v2730
      %2928 = vmatprep.subr.mxu0 0.0
      %2929 = vmatpush1.msra.mxu0 %v2731
      %2930 = vmatprep.subr.mxu0 0.0
      %2931 = vmatpush1.msra.mxu0 %v2732
      %2932 = vmatprep.subr.mxu0 0.0
      %2933 = vmatpush1.msra.mxu0 0.0
      %2934 = vmatprep.subr.mxu0 0.0
      %2935 = vmatpush1.msra.mxu0 0.0
      %2936 = vmatprep.subr.mxu0 0.0
      %2937 = vmatpush1.msra.mxu0 0.0
      %2938 = vmatprep.subr.mxu0 0.0
      %2939 = vmatpush1.msra.mxu0 0.0
      %2940 = vmatprep.subr.mxu0 0.0
      %2941 = vmatpush1.msra.mxu0 0.0
      %2942 = vmatprep.subr.mxu0 0.0
      %2943 = vmatpush1.msra.mxu0 0.0
      %2944 = vmatprep.subr.mxu0 0.0
      %2945 = vmatpush1.msra.mxu0 0.0
      %2946 = vmatprep.subr.mxu0 0.0
      %2947 = vmatpush1.msra.mxu0 0.0
      %2948 = vmatprep.subr.mxu0 0.0
      %2949 = vmatpush1.msra.mxu0 0.0
      %2950 = vmatprep.subr.mxu0 0.0
      %2951 = vmatpush1.msra.mxu0 0.0
      %2952 = vmatprep.subr.mxu0 0.0
      %2953 = vmatpush1.msra.mxu0 0.0
      %2954 = vmatprep.subr.mxu0 0.0
      %2955 = vmatpush1.msra.mxu0 0.0
      %2956 = vmatprep.subr.mxu0 0.0
      %2957 = vmatpush1.msra.mxu0 0.0
      %2958 = vmatprep.subr.mxu0 0.0
      %2959 = vmatpush1.msra.mxu0 0.0
      %2960 = vmatprep.subr.mxu0 0.0
      %2961 = vmatpush1.msra.mxu0 0.0
      %2962 = vmatprep.subr.mxu0 0.0
      %2963 = vmatpush1.msra.mxu0 0.0
      %2964 = vmatprep.mubr.f32.mxu0 0.0
      %2965 = vmatmul.mubr.f32.gmra.mrb[0].mxu0 %v2616
      %v2966 = vpop.f32.mrb[0].mxu0
      %v2967 = vadd.f32 %v2892, %v2966
      %v2968 = vpop.f32.mrb[0].mxu0
      %2969 = vmatprep.mubr.f32.mxu0 0.0
      %2970 = vmatmul.mubr.f32.gmra.mrb[0].mxu0 %v2617
      %v2971 = vpop.f32.mrb[0].mxu0
      %v2972 = vadd.f32 %v2897, %v2971
      %v2973 = vpop.f32.mrb[0].mxu0
      %2974 = vdwg.mxu0
      %v2975 = vadd.f32 %v2967, %v2639
      %v2976 = vadd.f32 %v2972, %v2639
      %v2977 = vmax.f32 %v2708, 0.0
      %v2978 = vmax.f32 %v2713, 0.0
      %v2979 = vmax.f32 %v2975, 0.0
      %v2980 = vmax.f32 %v2976, 0.0
      %v2982 = vsel %vm620, %v609, 0
      %v2985 = vsel %vm620, %v610, 0
      %2987 = vmatprep.subr.mxu0 0.0
      %2988 = vmatpush1.msra.mxu0 %v2979
      %2989 = vmatprep.subr.mxu0 0.0
      %2990 = vmatpush1.msra.mxu0 %v2980
      %2991 = vmatprep.subr.mxu0 0.0
      %2992 = vmatpush1.msra.mxu0 0.0
      %2993 = vmatprep.subr.mxu0 0.0
      %2994 = vmatpush1.msra.mxu0 0.0
      %2995 = vmatprep.subr.mxu0 0.0
      %2996 = vmatpush1.msra.mxu0 0.0
      %2997 = vmatprep.subr.mxu0 0.0
      %2998 = vmatpush1.msra.mxu0 0.0
      %2999 = vmatprep.subr.mxu0 0.0
      %3000 = vmatpush1.msra.mxu0 0.0
      %3001 = vmatprep.subr.mxu0 0.0
      %3002 = vmatpush1.msra.mxu0 0.0
      %3003 = vmatprep.subr.mxu0 0.0
      %3004 = vmatpush1.msra.mxu0 0.0
      %3005 = vmatprep.subr.mxu0 0.0
      %3006 = vmatpush1.msra.mxu0 0.0
      %3007 = vmatprep.subr.mxu0 0.0
      %3008 = vmatpush1.msra.mxu0 0.0
      %3009 = vmatprep.subr.mxu0 0.0
      %3010 = vmatpush1.msra.mxu0 0.0
      %3011 = vmatprep.subr.mxu0 0.0
      %3012 = vmatpush1.msra.mxu0 0.0
      %3013 = vmatprep.subr.mxu0 0.0
      %3014 = vmatpush1.msra.mxu0 0.0
      %3015 = vmatprep.subr.mxu0 0.0
      %3016 = vmatpush1.msra.mxu0 0.0
      %3017 = vmatprep.subr.mxu0 0.0
      %3018 = vmatpush1.msra.mxu0 0.0
      %3019 = vmatprep.subr.mxu0 0.0
      %3020 = vmatpush1.msra.mxu0 0.0
      %3021 = vmatprep.subr.mxu0 0.0
      %3022 = vmatpush1.msra.mxu0 0.0
      %3023 = vmatprep.subr.mxu0 0.0
      %3024 = vmatpush1.msra.mxu0 0.0
      %3025 = vmatprep.subr.mxu0 0.0
      %3026 = vmatpush1.msra.mxu0 0.0
      %3027 = vmatprep.subr.mxu0 0.0
      %3028 = vmatpush1.msra.mxu0 0.0
      %3029 = vmatprep.subr.mxu0 0.0
      %3030 = vmatpush1.msra.mxu0 0.0
      %3031 = vmatprep.subr.mxu0 0.0
      %3032 = vmatpush1.msra.mxu0 0.0
      %3033 = vmatprep.subr.mxu0 0.0
      %3034 = vmatpush1.msra.mxu0 0.0
      %3035 = vmatprep.subr.mxu0 0.0
      %3036 = vmatpush1.msra.mxu0 0.0
      %3037 = vmatprep.subr.mxu0 0.0
      %3038 = vmatpush1.msra.mxu0 0.0
      %3039 = vmatprep.subr.mxu0 0.0
      %3040 = vmatpush1.msra.mxu0 0.0
      %3041 = vmatprep.subr.mxu0 0.0
      %3042 = vmatpush1.msra.mxu0 0.0
      %3043 = vmatprep.subr.mxu0 0.0
      %3044 = vmatpush1.msra.mxu0 0.0
      %3045 = vmatprep.subr.mxu0 0.0
      %3046 = vmatpush1.msra.mxu0 0.0
      %3047 = vmatprep.subr.mxu0 0.0
      %3048 = vmatpush1.msra.mxu0 0.0
      %3049 = vmatprep.subr.mxu0 0.0
      %3050 = vmatpush1.msra.mxu0 0.0
      %3051 = vmatprep.mubr.f32.mxu0 0.0
      %3052 = vmatmul.mubr.f32.gmra.mrb[0].mxu0 %v2982
      %v3053 = vpop.f32.mrb[0].mxu0
      %v3054 = vadd.f32 0.0, %v3053
      %v3055 = vpop.f32.mrb[0].mxu0
      %3056 = vmatprep.mubr.f32.mxu0 0.0
      %3057 = vmatmul.mubr.f32.gmra.mrb[0].mxu0 %v2985
      %v3058 = vpop.f32.mrb[0].mxu0
      %v3059 = vadd.f32 0.0, %v3058
      %v3060 = vpop.f32.mrb[0].mxu0
      %3061 = vdwg.mxu0
      %v3063 = vsel %vm620, %v600, 0
      %v3066 = vsel %vm620, %v601, 0
      %3068 = vmatprep.subr.mxu0 0.0
      %3069 = vmatpush1.msra.mxu0 %v2977
      %3070 = vmatprep.subr.mxu0 0.0
      %3071 = vmatpush1.msra.mxu0 %v2978
      %3072 = vmatprep.subr.mxu0 0.0
      %3073 = vmatpush1.msra.mxu0 0.0
      %3074 = vmatprep.subr.mxu0 0.0
      %3075 = vmatpush1.msra.mxu0 0.0
      %3076 = vmatprep.subr.mxu0 0.0
      %3077 = vmatpush1.msra.mxu0 0.0
      %3078 = vmatprep.subr.mxu0 0.0
      %3079 = vmatpush1.msra.mxu0 0.0
      %3080 = vmatprep.subr.mxu0 0.0
      %3081 = vmatpush1.msra.mxu0 0.0
      %3082 = vmatprep.subr.mxu0 0.0
      %3083 = vmatpush1.msra.mxu0 0.0
      %3084 = vmatprep.subr.mxu0 0.0
      %3085 = vmatpush1.msra.mxu0 0.0
      %3086 = vmatprep.subr.mxu0 0.0
      %3087 = vmatpush1.msra.mxu0 0.0
      %3088 = vmatprep.subr.mxu0 0.0
      %3089 = vmatpush1.msra.mxu0 0.0
      %3090 = vmatprep.subr.mxu0 0.0
      %3091 = vmatpush1.msra.mxu0 0.0
      %3092 = vmatprep.subr.mxu0 0.0
      %3093 = vmatpush1.msra.mxu0 0.0
      %3094 = vmatprep.subr.mxu0 0.0
      %3095 = vmatpush1.msra.mxu0 0.0
      %3096 = vmatprep.subr.mxu0 0.0
      %3097 = vmatpush1.msra.mxu0 0.0
      %3098 = vmatprep.subr.mxu0 0.0
      %3099 = vmatpush1.msra.mxu0 0.0
      %3100 = vmatprep.subr.mxu0 0.0
      %3101 = vmatpush1.msra.mxu0 0.0
      %3102 = vmatprep.subr.mxu0 0.0
      %3103 = vmatpush1.msra.mxu0 0.0
      %3104 = vmatprep.subr.mxu0 0.0
      %3105 = vmatpush1.msra.mxu0 0.0
      %3106 = vmatprep.subr.mxu0 0.0
      %3107 = vmatpush1.msra.mxu0 0.0
      %3108 = vmatprep.subr.mxu0 0.0
      %3109 = vmatpush1.msra.mxu0 0.0
      %3110 = vmatprep.subr.mxu0 0.0
      %3111 = vmatpush1.msra.mxu0 0.0
      %3112 = vmatprep.subr.mxu0 0.0
      %3113 = vmatpush1.msra.mxu0 0.0
      %3114 = vmatprep.subr.mxu0 0.0
      %3115 = vmatpush1.msra.mxu0 0.0
      %3116 = vmatprep.subr.mxu0 0.0
      %3117 = vmatpush1.msra.mxu0 0.0
      %3118 = vmatprep.subr.mxu0 0.0
      %3119 = vmatpush1.msra.mxu0 0.0
      %3120 = vmatprep.subr.mxu0 0.0
      %3121 = vmatpush1.msra.mxu0 0.0
      %3122 = vmatprep.subr.mxu0 0.0
      %3123 = vmatpush1.msra.mxu0 0.0
      %3124 = vmatprep.subr.mxu0 0.0
      %3125 = vmatpush1.msra.mxu0 0.0
      %3126 = vmatprep.subr.mxu0 0.0
      %3127 = vmatpush1.msra.mxu0 0.0
      %3128 = vmatprep.subr.mxu0 0.0
      %3129 = vmatpush1.msra.mxu0 0.0
      %3130 = vmatprep.subr.mxu0 0.0
      %3131 = vmatpush1.msra.mxu0 0.0
      %3132 = vmatprep.mubr.f32.mxu0 0.0
      %3133 = vmatmul.mubr.f32.gmra.mrb[0].mxu0 %v3063
      %v3134 = vpop.f32.mrb[0].mxu0
      %v3135 = vadd.f32 %v3054, %v3134
      %v3136 = vpop.f32.mrb[0].mxu0
      %3137 = vmatprep.mubr.f32.mxu0 0.0
      %3138 = vmatmul.mubr.f32.gmra.mrb[0].mxu0 %v3066
      %v3139 = vpop.f32.mrb[0].mxu0
      %v3140 = vadd.f32 %v3059, %v3139
      %v3141 = vpop.f32.mrb[0].mxu0
      %3142 = vdwg.mxu0
      %v3143 = vld [vmem:[%s11] sm:$0x1]
      %v3144 = vld [vmem:[%s9] sm:$0xff]
      %v3145 = vld [vmem:[%s9 + $0x8] sm:$0xff]
      %v3146 = vld [vmem:[%s9 + $0x10] sm:$0xff]
      %v3147 = vld [vmem:[%s9 + $0x18] sm:$0xff]
      %v3148 = vld [vmem:[%s9 + $0x20] sm:$0xff]
      %v3149 = vld [vmem:[%s9 + $0x28] sm:$0xff]
      %v3150 = vld [vmem:[%s9 + $0x30] sm:$0xff]
      %v3151 = vld [vmem:[%s9 + $0x38] sm:$0xff]
      %v3152 = vld [vmem:[%s9 + $0x40] sm:$0xff]
      %v3153 = vld [vmem:[%s9 + $0x48] sm:$0xff]
      %v3154 = vld [vmem:[%s9 + $0x50] sm:$0xff]
      %v3155 = vld [vmem:[%s9 + $0x58] sm:$0xff]
      %v3156 = vld [vmem:[%s9 + $0x60] sm:$0xff]
      %v3157 = vld [vmem:[%s9 + $0x68] sm:$0xff]
      %v3158 = vld [vmem:[%s9 + $0x70] sm:$0xff]
      %v3159 = vld [vmem:[%s9 + $0x78] sm:$0xff]
      %v3161 = vlaneseq
      %v3162 = vshrl.u32 %v3161, 7
      %v3163 = vsub.s32 0, %v3162
      %v3164 = vrot.slane %v3143, %v3163
      %3166 = vmatprep.subr.mxu0 0.0
      %3167 = vmatpush1.msra.mxu0 %v3144
      %3168 = vmatprep.subr.mxu0 0.0
      %3169 = vmatpush1.msra.mxu0 %v3145
      %3170 = vmatprep.subr.mxu0 0.0
      %3171 = vmatpush1.msra.mxu0 %v3146
      %3172 = vmatprep.subr.mxu0 0.0
      %3173 = vmatpush1.msra.mxu0 %v3147
      %3174 = vmatprep.subr.mxu0 0.0
      %3175 = vmatpush1.msra.mxu0 %v3148
      %3176 = vmatprep.subr.mxu0 0.0
      %3177 = vmatpush1.msra.mxu0 %v3149
      %3178 = vmatprep.subr.mxu0 0.0
      %3179 = vmatpush1.msra.mxu0 %v3150
      %3180 = vmatprep.subr.mxu0 0.0
      %3181 = vmatpush1.msra.mxu0 %v3151
      %3182 = vmatprep.subr.mxu0 0.0
      %3183 = vmatpush1.msra.mxu0 %v3152
      %3184 = vmatprep.subr.mxu0 0.0
      %3185 = vmatpush1.msra.mxu0 %v3153
      %3186 = vmatprep.subr.mxu0 0.0
      %3187 = vmatpush1.msra.mxu0 %v3154
      %3188 = vmatprep.subr.mxu0 0.0
      %3189 = vmatpush1.msra.mxu0 %v3155
      %3190 = vmatprep.subr.mxu0 0.0
      %3191 = vmatpush1.msra.mxu0 %v3156
      %3192 = vmatprep.subr.mxu0 0.0
      %3193 = vmatpush1.msra.mxu0 %v3157
      %3194 = vmatprep.subr.mxu0 0.0
      %3195 = vmatpush1.msra.mxu0 %v3158
      %3196 = vmatprep.subr.mxu0 0.0
      %3197 = vmatpush1.msra.mxu0 %v3159
      %3198 = vmatprep.subr.mxu0 0.0
      %3199 = vmatpush1.msra.mxu0 0.0
      %3200 = vmatprep.subr.mxu0 0.0
      %3201 = vmatpush1.msra.mxu0 0.0
      %3202 = vmatprep.subr.mxu0 0.0
      %3203 = vmatpush1.msra.mxu0 0.0
      %3204 = vmatprep.subr.mxu0 0.0
      %3205 = vmatpush1.msra.mxu0 0.0
      %3206 = vmatprep.subr.mxu0 0.0
      %3207 = vmatpush1.msra.mxu0 0.0
      %3208 = vmatprep.subr.mxu0 0.0
      %3209 = vmatpush1.msra.mxu0 0.0
      %3210 = vmatprep.subr.mxu0 0.0
      %3211 = vmatpush1.msra.mxu0 0.0
      %3212 = vmatprep.subr.mxu0 0.0
      %3213 = vmatpush1.msra.mxu0 0.0
      %3214 = vmatprep.subr.mxu0 0.0
      %3215 = vmatpush1.msra.mxu0 0.0
      %3216 = vmatprep.subr.mxu0 0.0
      %3217 = vmatpush1.msra.mxu0 0.0
      %3218 = vmatprep.subr.mxu0 0.0
      %3219 = vmatpush1.msra.mxu0 0.0
      %3220 = vmatprep.subr.mxu0 0.0
      %3221 = vmatpush1.msra.mxu0 0.0
      %3222 = vmatprep.subr.mxu0 0.0
      %3223 = vmatpush1.msra.mxu0 0.0
      %3224 = vmatprep.subr.mxu0 0.0
      %3225 = vmatpush1.msra.mxu0 0.0
      %3226 = vmatprep.subr.mxu0 0.0
      %3227 = vmatpush1.msra.mxu0 0.0
      %3228 = vmatprep.subr.mxu0 0.0
      %3229 = vmatpush1.msra.mxu0 0.0
      %3230 = vmatprep.mubr.f32.mxu0 0.0
      %3231 = vmatmul.mubr.f32.gmra.mrb[0].mxu0 %v3135
      %v3232 = vpop.f32.mrb[0].mxu0
      %v3233 = vadd.f32 %v3164, %v3232
      %v3234 = vpop.f32.mrb[0].mxu0
      %3235 = vmatprep.mubr.f32.mxu0 0.0
      %3236 = vmatmul.mubr.f32.gmra.mrb[0].mxu0 %v3140
      %v3237 = vpop.f32.mrb[0].mxu0
      %v3238 = vadd.f32 %v3164, %v3237
      %v3239 = vpop.f32.mrb[0].mxu0
      %3240 = vdwg.mxu0
      %s3241 = scalar_lea.vmem %s9, 128
      %v3242 = vld [vmem:[%s3241] sm:$0xff]
      %v3243 = vld [vmem:[%s3241 + $0x8] sm:$0xff]
      %v3244 = vld [vmem:[%s3241 + $0x10] sm:$0xff]
      %v3245 = vld [vmem:[%s3241 + $0x18] sm:$0xff]
      %v3246 = vld [vmem:[%s3241 + $0x20] sm:$0xff]
      %v3247 = vld [vmem:[%s3241 + $0x28] sm:$0xff]
      %v3248 = vld [vmem:[%s3241 + $0x30] sm:$0xff]
      %v3249 = vld [vmem:[%s3241 + $0x38] sm:$0xff]
      %v3250 = vld [vmem:[%s3241 + $0x40] sm:$0xff]
      %v3251 = vld [vmem:[%s3241 + $0x48] sm:$0xff]
      %v3252 = vld [vmem:[%s3241 + $0x50] sm:$0xff]
      %v3253 = vld [vmem:[%s3241 + $0x58] sm:$0xff]
      %v3254 = vld [vmem:[%s3241 + $0x60] sm:$0xff]
      %v3255 = vld [vmem:[%s3241 + $0x68] sm:$0xff]
      %v3256 = vld [vmem:[%s3241 + $0x70] sm:$0xff]
      %v3257 = vld [vmem:[%s3241 + $0x78] sm:$0xff]
      %3258 = vmatprep.subr.mxu0 0.0
      %3259 = vmatpush1.msra.mxu0 %v3135
      %3260 = vmatprep.subr.mxu0 0.0
      %3261 = vmatpush1.msra.mxu0 %v3140
      %3262 = vmatprep.subr.mxu0 0.0
      %3263 = vmatpush1.msra.mxu0 0.0
      %3264 = vmatprep.subr.mxu0 0.0
      %3265 = vmatpush1.msra.mxu0 0.0
      %3266 = vmatprep.subr.mxu0 0.0
      %3267 = vmatpush1.msra.mxu0 0.0
      %3268 = vmatprep.subr.mxu0 0.0
      %3269 = vmatpush1.msra.mxu0 0.0
      %3270 = vmatprep.subr.mxu0 0.0
      %3271 = vmatpush1.msra.mxu0 0.0
      %3272 = vmatprep.subr.mxu0 0.0
      %3273 = vmatpush1.msra.mxu0 0.0
      %3274 = vmatprep.subr.mxu0 0.0
      %3275 = vmatpush1.msra.mxu0 0.0
      %3276 = vmatprep.subr.mxu0 0.0
      %3277 = vmatpush1.msra.mxu0 0.0
      %3278 = vmatprep.subr.mxu0 0.0
      %3279 = vmatpush1.msra.mxu0 0.0
      %3280 = vmatprep.subr.mxu0 0.0
      %3281 = vmatpush1.msra.mxu0 0.0
      %3282 = vmatprep.subr.mxu0 0.0
      %3283 = vmatpush1.msra.mxu0 0.0
      %3284 = vmatprep.subr.mxu0 0.0
      %3285 = vmatpush1.msra.mxu0 0.0
      %3286 = vmatprep.subr.mxu0 0.0
      %3287 = vmatpush1.msra.mxu0 0.0
      %3288 = vmatprep.subr.mxu0 0.0
      %3289 = vmatpush1.msra.mxu0 0.0
      %3290 = vmatprep.subr.mxu0 0.0
      %3291 = vmatpush1.msra.mxu0 0.0
      %3292 = vmatprep.subr.mxu0 0.0
      %3293 = vmatpush1.msra.mxu0 0.0
      %3294 = vmatprep.subr.mxu0 0.0
      %3295 = vmatpush1.msra.mxu0 0.0
      %3296 = vmatprep.subr.mxu0 0.0
      %3297 = vmatpush1.msra.mxu0 0.0
      %3298 = vmatprep.subr.mxu0 0.0
      %3299 = vmatpush1.msra.mxu0 0.0
      %3300 = vmatprep.subr.mxu0 0.0
      %3301 = vmatpush1.msra.mxu0 0.0
      %3302 = vmatprep.subr.mxu0 0.0
      %3303 = vmatpush1.msra.mxu0 0.0
      %3304 = vmatprep.subr.mxu0 0.0
      %3305 = vmatpush1.msra.mxu0 0.0
      %3306 = vmatprep.subr.mxu0 0.0
      %3307 = vmatpush1.msra.mxu0 0.0
      %3308 = vmatprep.subr.mxu0 0.0
      %3309 = vmatpush1.msra.mxu0 0.0
      %3310 = vmatprep.subr.mxu0 0.0
      %3311 = vmatpush1.msra.mxu0 0.0
      %3312 = vmatprep.subr.mxu0 0.0
      %3313 = vmatpush1.msra.mxu0 0.0
      %3314 = vmatprep.subr.mxu0 0.0
      %3315 = vmatpush1.msra.mxu0 0.0
      %3316 = vmatprep.subr.mxu0 0.0
      %3317 = vmatpush1.msra.mxu0 0.0
      %3318 = vmatprep.subr.mxu0 0.0
      %3319 = vmatpush1.msra.mxu0 0.0
      %3320 = vmatprep.subr.mxu0 0.0
      %3321 = vmatpush1.msra.mxu0 0.0
      %3322 = vmatprep.mubr.f32.mxu0 0.0
      %3323 = vmatmul.mubr.f32.gmra.mrb[0].mxu0 %v1926
      %v3324 = vpop.f32.mrb[0].mxu0
      %v3325 = vadd.f32 0.0, %v3324
      %v3326 = vpop.f32.mrb[0].mxu0
      %3327 = vmatprep.mubr.f32.mxu0 0.0
      %3328 = vmatmul.mubr.f32.gmra.mrb[0].mxu0 %v1929
      %v3329 = vpop.f32.mrb[0].mxu0
      %v3330 = vadd.f32 0.0, %v3329
      %v3331 = vpop.f32.mrb[0].mxu0
      %3332 = vdwg.mxu0
      %s3333 = scalar_lea.vmem %s9, 256
      %v3334 = vld [vmem:[%s3333] sm:$0xff]
      %v3335 = vld [vmem:[%s3333 + $0x8] sm:$0xff]
      %v3336 = vld [vmem:[%s3333 + $0x10] sm:$0xff]
      %v3337 = vld [vmem:[%s3333 + $0x18] sm:$0xff]
      %v3338 = vld [vmem:[%s3333 + $0x20] sm:$0xff]
      %v3339 = vld [vmem:[%s3333 + $0x28] sm:$0xff]
      %v3340 = vld [vmem:[%s3333 + $0x30] sm:$0xff]
      %v3341 = vld [vmem:[%s3333 + $0x38] sm:$0xff]
      %v3342 = vld [vmem:[%s3333 + $0x40] sm:$0xff]
      %v3343 = vld [vmem:[%s3333 + $0x48] sm:$0xff]
      %v3344 = vld [vmem:[%s3333 + $0x50] sm:$0xff]
      %v3345 = vld [vmem:[%s3333 + $0x58] sm:$0xff]
      %v3346 = vld [vmem:[%s3333 + $0x60] sm:$0xff]
      %v3347 = vld [vmem:[%s3333 + $0x68] sm:$0xff]
      %v3348 = vld [vmem:[%s3333 + $0x70] sm:$0xff]
      %v3349 = vld [vmem:[%s3333 + $0x78] sm:$0xff]
      %3350 = vmatprep.subr.mxu0 0.0
      %3351 = vmatpush1.msra.mxu0 %v3334
      %3352 = vmatprep.subr.mxu0 0.0
      %3353 = vmatpush1.msra.mxu0 %v3335
      %3354 = vmatprep.subr.mxu0 0.0
      %3355 = vmatpush1.msra.mxu0 %v3336
      %3356 = vmatprep.subr.mxu0 0.0
      %3357 = vmatpush1.msra.mxu0 %v3337
      %3358 = vmatprep.subr.mxu0 0.0
      %3359 = vmatpush1.msra.mxu0 %v3338
      %3360 = vmatprep.subr.mxu0 0.0
      %3361 = vmatpush1.msra.mxu0 %v3339
      %3362 = vmatprep.subr.mxu0 0.0
      %3363 = vmatpush1.msra.mxu0 %v3340
      %3364 = vmatprep.subr.mxu0 0.0
      %3365 = vmatpush1.msra.mxu0 %v3341
      %3366 = vmatprep.subr.mxu0 0.0
      %3367 = vmatpush1.msra.mxu0 %v3342
      %3368 = vmatprep.subr.mxu0 0.0
      %3369 = vmatpush1.msra.mxu0 %v3343
      %3370 = vmatprep.subr.mxu0 0.0
      %3371 = vmatpush1.msra.mxu0 %v3344
      %3372 = vmatprep.subr.mxu0 0.0
      %3373 = vmatpush1.msra.mxu0 %v3345
      %3374 = vmatprep.subr.mxu0 0.0
      %3375 = vmatpush1.msra.mxu0 %v3346
      %3376 = vmatprep.subr.mxu0 0.0
      %3377 = vmatpush1.msra.mxu0 %v3347
      %3378 = vmatprep.subr.mxu0 0.0
      %3379 = vmatpush1.msra.mxu0 %v3348
      %3380 = vmatprep.subr.mxu0 0.0
      %3381 = vmatpush1.msra.mxu0 %v3349
      %3382 = vmatprep.subr.mxu0 0.0
      %3383 = vmatpush1.msra.mxu0 0.0
      %3384 = vmatprep.subr.mxu0 0.0
      %3385 = vmatpush1.msra.mxu0 0.0
      %3386 = vmatprep.subr.mxu0 0.0
      %3387 = vmatpush1.msra.mxu0 0.0
      %3388 = vmatprep.subr.mxu0 0.0
      %3389 = vmatpush1.msra.mxu0 0.0
      %3390 = vmatprep.subr.mxu0 0.0
      %3391 = vmatpush1.msra.mxu0 0.0
      %3392 = vmatprep.subr.mxu0 0.0
      %3393 = vmatpush1.msra.mxu0 0.0
      %3394 = vmatprep.subr.mxu0 0.0
      %3395 = vmatpush1.msra.mxu0 0.0
      %3396 = vmatprep.subr.mxu0 0.0
      %3397 = vmatpush1.msra.mxu0 0.0
      %3398 = vmatprep.subr.mxu0 0.0
      %3399 = vmatpush1.msra.mxu0 0.0
      %3400 = vmatprep.subr.mxu0 0.0
      %3401 = vmatpush1.msra.mxu0 0.0
      %3402 = vmatprep.subr.mxu0 0.0
      %3403 = vmatpush1.msra.mxu0 0.0
      %3404 = vmatprep.subr.mxu0 0.0
      %3405 = vmatpush1.msra.mxu0 0.0
      %3406 = vmatprep.subr.mxu0 0.0
      %3407 = vmatpush1.msra.mxu0 0.0
      %3408 = vmatprep.subr.mxu0 0.0
      %3409 = vmatpush1.msra.mxu0 0.0
      %3410 = vmatprep.subr.mxu0 0.0
      %3411 = vmatpush1.msra.mxu0 0.0
      %3412 = vmatprep.subr.mxu0 0.0
      %3413 = vmatpush1.msra.mxu0 0.0
      %3414 = vmatprep.mubr.f32.mxu0 0.0
      %3415 = vmatmul.mubr.f32.gmra.mrb[0].mxu0 %v3325
      %v3416 = vpop.f32.mrb[0].mxu0
      %v3417 = vadd.f32 0.0, %v3416
      %v3418 = vpop.f32.mrb[0].mxu0
      %3419 = vmatprep.mubr.f32.mxu0 0.0
      %3420 = vmatmul.mubr.f32.gmra.mrb[0].mxu0 %v3330
      %v3421 = vpop.f32.mrb[0].mxu0
      %v3422 = vadd.f32 0.0, %v3421
      %v3423 = vpop.f32.mrb[0].mxu0
      %3424 = vdwg.mxu0
      %3425 = vmatprep.subr.mxu0 0.0
      %3426 = vmatpush1.msra.mxu0 %v3242
      %3427 = vmatprep.subr.mxu0 0.0
      %3428 = vmatpush1.msra.mxu0 %v3243
      %3429 = vmatprep.subr.mxu0 0.0
      %3430 = vmatpush1.msra.mxu0 %v3244
      %3431 = vmatprep.subr.mxu0 0.0
      %3432 = vmatpush1.msra.mxu0 %v3245
      %3433 = vmatprep.subr.mxu0 0.0
      %3434 = vmatpush1.msra.mxu0 %v3246
      %3435 = vmatprep.subr.mxu0 0.0
      %3436 = vmatpush1.msra.mxu0 %v3247
      %3437 = vmatprep.subr.mxu0 0.0
      %3438 = vmatpush1.msra.mxu0 %v3248
      %3439 = vmatprep.subr.mxu0 0.0
      %3440 = vmatpush1.msra.mxu0 %v3249
      %3441 = vmatprep.subr.mxu0 0.0
      %3442 = vmatpush1.msra.mxu0 %v3250
      %3443 = vmatprep.subr.mxu0 0.0
      %3444 = vmatpush1.msra.mxu0 %v3251
      %3445 = vmatprep.subr.mxu0 0.0
      %3446 = vmatpush1.msra.mxu0 %v3252
      %3447 = vmatprep.subr.mxu0 0.0
      %3448 = vmatpush1.msra.mxu0 %v3253
      %3449 = vmatprep.subr.mxu0 0.0
      %3450 = vmatpush1.msra.mxu0 %v3254
      %3451 = vmatprep.subr.mxu0 0.0
      %3452 = vmatpush1.msra.mxu0 %v3255
      %3453 = vmatprep.subr.mxu0 0.0
      %3454 = vmatpush1.msra.mxu0 %v3256
      %3455 = vmatprep.subr.mxu0 0.0
      %3456 = vmatpush1.msra.mxu0 %v3257
      %3457 = vmatprep.subr.mxu0 0.0
      %3458 = vmatpush1.msra.mxu0 0.0
      %3459 = vmatprep.subr.mxu0 0.0
      %3460 = vmatpush1.msra.mxu0 0.0
      %3461 = vmatprep.subr.mxu0 0.0
      %3462 = vmatpush1.msra.mxu0 0.0
      %3463 = vmatprep.subr.mxu0 0.0
      %3464 = vmatpush1.msra.mxu0 0.0
      %3465 = vmatprep.subr.mxu0 0.0
      %3466 = vmatpush1.msra.mxu0 0.0
      %3467 = vmatprep.subr.mxu0 0.0
      %3468 = vmatpush1.msra.mxu0 0.0
      %3469 = vmatprep.subr.mxu0 0.0
      %3470 = vmatpush1.msra.mxu0 0.0
      %3471 = vmatprep.subr.mxu0 0.0
      %3472 = vmatpush1.msra.mxu0 0.0
      %3473 = vmatprep.subr.mxu0 0.0
      %3474 = vmatpush1.msra.mxu0 0.0
      %3475 = vmatprep.subr.mxu0 0.0
      %3476 = vmatpush1.msra.mxu0 0.0
      %3477 = vmatprep.subr.mxu0 0.0
      %3478 = vmatpush1.msra.mxu0 0.0
      %3479 = vmatprep.subr.mxu0 0.0
      %3480 = vmatpush1.msra.mxu0 0.0
      %3481 = vmatprep.subr.mxu0 0.0
      %3482 = vmatpush1.msra.mxu0 0.0
      %3483 = vmatprep.subr.mxu0 0.0
      %3484 = vmatpush1.msra.mxu0 0.0
      %3485 = vmatprep.subr.mxu0 0.0
      %3486 = vmatpush1.msra.mxu0 0.0
      %3487 = vmatprep.subr.mxu0 0.0
      %3488 = vmatpush1.msra.mxu0 0.0
      %3489 = vmatprep.mubr.f32.mxu0 0.0
      %3490 = vmatmul.mubr.f32.gmra.mrb[0].mxu0 %v3135
      %v3491 = vpop.f32.mrb[0].mxu0
      %v3492 = vadd.f32 %v3417, %v3491
      %v3493 = vpop.f32.mrb[0].mxu0
      %3494 = vmatprep.mubr.f32.mxu0 0.0
      %3495 = vmatmul.mubr.f32.gmra.mrb[0].mxu0 %v3140
      %v3496 = vpop.f32.mrb[0].mxu0
      %v3497 = vadd.f32 %v3422, %v3496
      %v3498 = vpop.f32.mrb[0].mxu0
      %3499 = vdwg.mxu0
      %v3500 = vadd.f32 %v3492, %v3164
      %v3501 = vadd.f32 %v3497, %v3164
      %v3502 = vld [vmem:[%s10] sm:$0xff]
      %v3503 = vld [vmem:[%s10 + $0x8] sm:$0xff]
      %v3504 = vld [vmem:[%s10 + $0x10] sm:$0xff]
      %v3505 = vld [vmem:[%s10 + $0x18] sm:$0xff]
      %v3506 = vld [vmem:[%s10 + $0x20] sm:$0xff]
      %v3507 = vld [vmem:[%s10 + $0x28] sm:$0xff]
      %v3508 = vld [vmem:[%s10 + $0x30] sm:$0xff]
      %v3509 = vld [vmem:[%s10 + $0x38] sm:$0xff]
      %v3510 = vld [vmem:[%s10 + $0x40] sm:$0xff]
      %v3511 = vld [vmem:[%s10 + $0x48] sm:$0xff]
      %v3512 = vld [vmem:[%s10 + $0x50] sm:$0xff]
      %v3513 = vld [vmem:[%s10 + $0x58] sm:$0xff]
      %v3514 = vld [vmem:[%s10 + $0x60] sm:$0xff]
      %v3515 = vld [vmem:[%s10 + $0x68] sm:$0xff]
      %v3516 = vld [vmem:[%s10 + $0x70] sm:$0xff]
      %v3517 = vld [vmem:[%s10 + $0x78] sm:$0xff]
      %3518 = vmatprep.subr.mxu0 0.0
      %3519 = vmatpush1.msra.mxu0 %v3502
      %3520 = vmatprep.subr.mxu0 0.0
      %3521 = vmatpush1.msra.mxu0 %v3503
      %3522 = vmatprep.subr.mxu0 0.0
      %3523 = vmatpush1.msra.mxu0 %v3504
      %3524 = vmatprep.subr.mxu0 0.0
      %3525 = vmatpush1.msra.mxu0 %v3505
      %3526 = vmatprep.subr.mxu0 0.0
      %3527 = vmatpush1.msra.mxu0 %v3506
      %3528 = vmatprep.subr.mxu0 0.0
      %3529 = vmatpush1.msra.mxu0 %v3507
      %3530 = vmatprep.subr.mxu0 0.0
      %3531 = vmatpush1.msra.mxu0 %v3508
      %3532 = vmatprep.subr.mxu0 0.0
      %3533 = vmatpush1.msra.mxu0 %v3509
      %3534 = vmatprep.subr.mxu0 0.0
      %3535 = vmatpush1.msra.mxu0 %v3510
      %3536 = vmatprep.subr.mxu0 0.0
      %3537 = vmatpush1.msra.mxu0 %v3511
      %3538 = vmatprep.subr.mxu0 0.0
      %3539 = vmatpush1.msra.mxu0 %v3512
      %3540 = vmatprep.subr.mxu0 0.0
      %3541 = vmatpush1.msra.mxu0 %v3513
      %3542 = vmatprep.subr.mxu0 0.0
      %3543 = vmatpush1.msra.mxu0 %v3514
      %3544 = vmatprep.subr.mxu0 0.0
      %3545 = vmatpush1.msra.mxu0 %v3515
      %3546 = vmatprep.subr.mxu0 0.0
      %3547 = vmatpush1.msra.mxu0 %v3516
      %3548 = vmatprep.subr.mxu0 0.0
      %3549 = vmatpush1.msra.mxu0 %v3517
      %3550 = vmatprep.subr.mxu0 0.0
      %3551 = vmatpush1.msra.mxu0 0.0
      %3552 = vmatprep.subr.mxu0 0.0
      %3553 = vmatpush1.msra.mxu0 0.0
      %3554 = vmatprep.subr.mxu0 0.0
      %3555 = vmatpush1.msra.mxu0 0.0
      %3556 = vmatprep.subr.mxu0 0.0
      %3557 = vmatpush1.msra.mxu0 0.0
      %3558 = vmatprep.subr.mxu0 0.0
      %3559 = vmatpush1.msra.mxu0 0.0
      %3560 = vmatprep.subr.mxu0 0.0
      %3561 = vmatpush1.msra.mxu0 0.0
      %3562 = vmatprep.subr.mxu0 0.0
      %3563 = vmatpush1.msra.mxu0 0.0
      %3564 = vmatprep.subr.mxu0 0.0
      %3565 = vmatpush1.msra.mxu0 0.0
      %3566 = vmatprep.subr.mxu0 0.0
      %3567 = vmatpush1.msra.mxu0 0.0
      %3568 = vmatprep.subr.mxu0 0.0
      %3569 = vmatpush1.msra.mxu0 0.0
      %3570 = vmatprep.subr.mxu0 0.0
      %3571 = vmatpush1.msra.mxu0 0.0
      %3572 = vmatprep.subr.mxu0 0.0
      %3573 = vmatpush1.msra.mxu0 0.0
      %3574 = vmatprep.subr.mxu0 0.0
      %3575 = vmatpush1.msra.mxu0 0.0
      %3576 = vmatprep.subr.mxu0 0.0
      %3577 = vmatpush1.msra.mxu0 0.0
      %3578 = vmatprep.subr.mxu0 0.0
      %3579 = vmatpush1.msra.mxu0 0.0
      %3580 = vmatprep.subr.mxu0 0.0
      %3581 = vmatpush1.msra.mxu0 0.0
      %3582 = vmatprep.mubr.f32.mxu0 0.0
      %3583 = vmatmul.mubr.f32.gmra.mrb[0].mxu0 %v2100
      %v3584 = vpop.f32.mrb[0].mxu0
      %v3585 = vadd.f32 0.0, %v3584
      %v3586 = vpop.f32.mrb[0].mxu0
      %3587 = vmatprep.mubr.f32.mxu0 0.0
      %3588 = vmatmul.mubr.f32.gmra.mrb[0].mxu0 %v2101
      %v3589 = vpop.f32.mrb[0].mxu0
      %v3590 = vadd.f32 0.0, %v3589
      %v3591 = vpop.f32.mrb[0].mxu0
      %3592 = vdwg.mxu0
      %v3593 = vadd.f32 %v3233, %v3585
      %v3594 = vadd.f32 %v3238, %v3590
      %s3595 = scalar_lea.vmem %s10, 128
      %v3596 = vld [vmem:[%s3595] sm:$0xff]
      %v3597 = vld [vmem:[%s3595 + $0x8] sm:$0xff]
      %v3598 = vld [vmem:[%s3595 + $0x10] sm:$0xff]
      %v3599 = vld [vmem:[%s3595 + $0x18] sm:$0xff]
      %v3600 = vld [vmem:[%s3595 + $0x20] sm:$0xff]
      %v3601 = vld [vmem:[%s3595 + $0x28] sm:$0xff]
      %v3602 = vld [vmem:[%s3595 + $0x30] sm:$0xff]
      %v3603 = vld [vmem:[%s3595 + $0x38] sm:$0xff]
      %v3604 = vld [vmem:[%s3595 + $0x40] sm:$0xff]
      %v3605 = vld [vmem:[%s3595 + $0x48] sm:$0xff]
      %v3606 = vld [vmem:[%s3595 + $0x50] sm:$0xff]
      %v3607 = vld [vmem:[%s3595 + $0x58] sm:$0xff]
      %v3608 = vld [vmem:[%s3595 + $0x60] sm:$0xff]
      %v3609 = vld [vmem:[%s3595 + $0x68] sm:$0xff]
      %v3610 = vld [vmem:[%s3595 + $0x70] sm:$0xff]
      %v3611 = vld [vmem:[%s3595 + $0x78] sm:$0xff]
      %3612 = vmatprep.subr.mxu0 0.0
      %3613 = vmatpush1.msra.mxu0 %v3596
      %3614 = vmatprep.subr.mxu0 0.0
      %3615 = vmatpush1.msra.mxu0 %v3597
      %3616 = vmatprep.subr.mxu0 0.0
      %3617 = vmatpush1.msra.mxu0 %v3598
      %3618 = vmatprep.subr.mxu0 0.0
      %3619 = vmatpush1.msra.mxu0 %v3599
      %3620 = vmatprep.subr.mxu0 0.0
      %3621 = vmatpush1.msra.mxu0 %v3600
      %3622 = vmatprep.subr.mxu0 0.0
      %3623 = vmatpush1.msra.mxu0 %v3601
      %3624 = vmatprep.subr.mxu0 0.0
      %3625 = vmatpush1.msra.mxu0 %v3602
      %3626 = vmatprep.subr.mxu0 0.0
      %3627 = vmatpush1.msra.mxu0 %v3603
      %3628 = vmatprep.subr.mxu0 0.0
      %3629 = vmatpush1.msra.mxu0 %v3604
      %3630 = vmatprep.subr.mxu0 0.0
      %3631 = vmatpush1.msra.mxu0 %v3605
      %3632 = vmatprep.subr.mxu0 0.0
      %3633 = vmatpush1.msra.mxu0 %v3606
      %3634 = vmatprep.subr.mxu0 0.0
      %3635 = vmatpush1.msra.mxu0 %v3607
      %3636 = vmatprep.subr.mxu0 0.0
      %3637 = vmatpush1.msra.mxu0 %v3608
      %3638 = vmatprep.subr.mxu0 0.0
      %3639 = vmatpush1.msra.mxu0 %v3609
      %3640 = vmatprep.subr.mxu0 0.0
      %3641 = vmatpush1.msra.mxu0 %v3610
      %3642 = vmatprep.subr.mxu0 0.0
      %3643 = vmatpush1.msra.mxu0 %v3611
      %3644 = vmatprep.subr.mxu0 0.0
      %3645 = vmatpush1.msra.mxu0 0.0
      %3646 = vmatprep.subr.mxu0 0.0
      %3647 = vmatpush1.msra.mxu0 0.0
      %3648 = vmatprep.subr.mxu0 0.0
      %3649 = vmatpush1.msra.mxu0 0.0
      %3650 = vmatprep.subr.mxu0 0.0
      %3651 = vmatpush1.msra.mxu0 0.0
      %3652 = vmatprep.subr.mxu0 0.0
      %3653 = vmatpush1.msra.mxu0 0.0
      %3654 = vmatprep.subr.mxu0 0.0
      %3655 = vmatpush1.msra.mxu0 0.0
      %3656 = vmatprep.subr.mxu0 0.0
      %3657 = vmatpush1.msra.mxu0 0.0
      %3658 = vmatprep.subr.mxu0 0.0
      %3659 = vmatpush1.msra.mxu0 0.0
      %3660 = vmatprep.subr.mxu0 0.0
      %3661 = vmatpush1.msra.mxu0 0.0
      %3662 = vmatprep.subr.mxu0 0.0
      %3663 = vmatpush1.msra.mxu0 0.0
      %3664 = vmatprep.subr.mxu0 0.0
      %3665 = vmatpush1.msra.mxu0 0.0
      %3666 = vmatprep.subr.mxu0 0.0
      %3667 = vmatpush1.msra.mxu0 0.0
      %3668 = vmatprep.subr.mxu0 0.0
      %3669 = vmatpush1.msra.mxu0 0.0
      %3670 = vmatprep.subr.mxu0 0.0
      %3671 = vmatpush1.msra.mxu0 0.0
      %3672 = vmatprep.subr.mxu0 0.0
      %3673 = vmatpush1.msra.mxu0 0.0
      %3674 = vmatprep.subr.mxu0 0.0
      %3675 = vmatpush1.msra.mxu0 0.0
      %3676 = vmatprep.mubr.f32.mxu0 0.0
      %3677 = vmatmul.mubr.f32.gmra.mrb[0].mxu0 %v2100
      %v3678 = vpop.f32.mrb[0].mxu0
      %v3679 = vadd.f32 0.0, %v3678
      %v3680 = vpop.f32.mrb[0].mxu0
      %3681 = vmatprep.mubr.f32.mxu0 0.0
      %3682 = vmatmul.mubr.f32.gmra.mrb[0].mxu0 %v2101
      %v3683 = vpop.f32.mrb[0].mxu0
      %v3684 = vadd.f32 0.0, %v3683
      %v3685 = vpop.f32.mrb[0].mxu0
      %3686 = vdwg.mxu0
      %v3687 = vadd.f32 %v3500, %v3679
      %v3688 = vadd.f32 %v3501, %v3684
      %3689 = vmatprep.subr.mxu0 0.0
      %3690 = vmatpush1.msra.mxu0 %v2100
      %3691 = vmatprep.subr.mxu0 0.0
      %3692 = vmatpush1.msra.mxu0 %v2101
      %3693 = vmatprep.subr.mxu0 0.0
      %3694 = vmatpush1.msra.mxu0 0.0
      %3695 = vmatprep.subr.mxu0 0.0
      %3696 = vmatpush1.msra.mxu0 0.0
      %3697 = vmatprep.subr.mxu0 0.0
      %3698 = vmatpush1.msra.mxu0 0.0
      %3699 = vmatprep.subr.mxu0 0.0
      %3700 = vmatpush1.msra.mxu0 0.0
      %3701 = vmatprep.subr.mxu0 0.0
      %3702 = vmatpush1.msra.mxu0 0.0
      %3703 = vmatprep.subr.mxu0 0.0
      %3704 = vmatpush1.msra.mxu0 0.0
      %3705 = vmatprep.subr.mxu0 0.0
      %3706 = vmatpush1.msra.mxu0 0.0
      %3707 = vmatprep.subr.mxu0 0.0
      %3708 = vmatpush1.msra.mxu0 0.0
      %3709 = vmatprep.subr.mxu0 0.0
      %3710 = vmatpush1.msra.mxu0 0.0
      %3711 = vmatprep.subr.mxu0 0.0
      %3712 = vmatpush1.msra.mxu0 0.0
      %3713 = vmatprep.subr.mxu0 0.0
      %3714 = vmatpush1.msra.mxu0 0.0
      %3715 = vmatprep.subr.mxu0 0.0
      %3716 = vmatpush1.msra.mxu0 0.0
      %3717 = vmatprep.subr.mxu0 0.0
      %3718 = vmatpush1.msra.mxu0 0.0
      %3719 = vmatprep.subr.mxu0 0.0
      %3720 = vmatpush1.msra.mxu0 0.0
      %3721 = vmatprep.subr.mxu0 0.0
      %3722 = vmatpush1.msra.mxu0 0.0
      %3723 = vmatprep.subr.mxu0 0.0
      %3724 = vmatpush1.msra.mxu0 0.0
      %3725 = vmatprep.subr.mxu0 0.0
      %3726 = vmatpush1.msra.mxu0 0.0
      %3727 = vmatprep.subr.mxu0 0.0
      %3728 = vmatpush1.msra.mxu0 0.0
      %3729 = vmatprep.subr.mxu0 0.0
      %3730 = vmatpush1.msra.mxu0 0.0
      %3731 = vmatprep.subr.mxu0 0.0
      %3732 = vmatpush1.msra.mxu0 0.0
      %3733 = vmatprep.subr.mxu0 0.0
      %3734 = vmatpush1.msra.mxu0 0.0
      %3735 = vmatprep.subr.mxu0 0.0
      %3736 = vmatpush1.msra.mxu0 0.0
      %3737 = vmatprep.subr.mxu0 0.0
      %3738 = vmatpush1.msra.mxu0 0.0
      %3739 = vmatprep.subr.mxu0 0.0
      %3740 = vmatpush1.msra.mxu0 0.0
      %3741 = vmatprep.subr.mxu0 0.0
      %3742 = vmatpush1.msra.mxu0 0.0
      %3743 = vmatprep.subr.mxu0 0.0
      %3744 = vmatpush1.msra.mxu0 0.0
      %3745 = vmatprep.subr.mxu0 0.0
      %3746 = vmatpush1.msra.mxu0 0.0
      %3747 = vmatprep.subr.mxu0 0.0
      %3748 = vmatpush1.msra.mxu0 0.0
      %3749 = vmatprep.subr.mxu0 0.0
      %3750 = vmatpush1.msra.mxu0 0.0
      %3751 = vmatprep.subr.mxu0 0.0
      %3752 = vmatpush1.msra.mxu0 0.0
      %3753 = vmatprep.mubr.f32.mxu0 0.0
      %3754 = vmatmul.mubr.f32.gmra.mrb[0].mxu0 %v1926
      %v3755 = vpop.f32.mrb[0].mxu0
      %v3756 = vadd.f32 0.0, %v3755
      %v3757 = vpop.f32.mrb[0].mxu0
      %3758 = vmatprep.mubr.f32.mxu0 0.0
      %3759 = vmatmul.mubr.f32.gmra.mrb[0].mxu0 %v1929
      %v3760 = vpop.f32.mrb[0].mxu0
      %v3761 = vadd.f32 0.0, %v3760
      %v3762 = vpop.f32.mrb[0].mxu0
      %3763 = vdwg.mxu0
      %s3764 = scalar_lea.vmem %s10, 256
      %v3765 = vld [vmem:[%s3764] sm:$0xff]
      %v3766 = vld [vmem:[%s3764 + $0x8] sm:$0xff]
      %v3767 = vld [vmem:[%s3764 + $0x10] sm:$0xff]
      %v3768 = vld [vmem:[%s3764 + $0x18] sm:$0xff]
      %v3769 = vld [vmem:[%s3764 + $0x20] sm:$0xff]
      %v3770 = vld [vmem:[%s3764 + $0x28] sm:$0xff]
      %v3771 = vld [vmem:[%s3764 + $0x30] sm:$0xff]
      %v3772 = vld [vmem:[%s3764 + $0x38] sm:$0xff]
      %v3773 = vld [vmem:[%s3764 + $0x40] sm:$0xff]
      %v3774 = vld [vmem:[%s3764 + $0x48] sm:$0xff]
      %v3775 = vld [vmem:[%s3764 + $0x50] sm:$0xff]
      %v3776 = vld [vmem:[%s3764 + $0x58] sm:$0xff]
      %v3777 = vld [vmem:[%s3764 + $0x60] sm:$0xff]
      %v3778 = vld [vmem:[%s3764 + $0x68] sm:$0xff]
      %v3779 = vld [vmem:[%s3764 + $0x70] sm:$0xff]
      %v3780 = vld [vmem:[%s3764 + $0x78] sm:$0xff]
      %3781 = vmatprep.subr.mxu0 0.0
      %3782 = vmatpush1.msra.mxu0 %v3765
      %3783 = vmatprep.subr.mxu0 0.0
      %3784 = vmatpush1.msra.mxu0 %v3766
      %3785 = vmatprep.subr.mxu0 0.0
      %3786 = vmatpush1.msra.mxu0 %v3767
      %3787 = vmatprep.subr.mxu0 0.0
      %3788 = vmatpush1.msra.mxu0 %v3768
      %3789 = vmatprep.subr.mxu0 0.0
      %3790 = vmatpush1.msra.mxu0 %v3769
      %3791 = vmatprep.subr.mxu0 0.0
      %3792 = vmatpush1.msra.mxu0 %v3770
      %3793 = vmatprep.subr.mxu0 0.0
      %3794 = vmatpush1.msra.mxu0 %v3771
      %3795 = vmatprep.subr.mxu0 0.0
      %3796 = vmatpush1.msra.mxu0 %v3772
      %3797 = vmatprep.subr.mxu0 0.0
      %3798 = vmatpush1.msra.mxu0 %v3773
      %3799 = vmatprep.subr.mxu0 0.0
      %3800 = vmatpush1.msra.mxu0 %v3774
      %3801 = vmatprep.subr.mxu0 0.0
      %3802 = vmatpush1.msra.mxu0 %v3775
      %3803 = vmatprep.subr.mxu0 0.0
      %3804 = vmatpush1.msra.mxu0 %v3776
      %3805 = vmatprep.subr.mxu0 0.0
      %3806 = vmatpush1.msra.mxu0 %v3777
      %3807 = vmatprep.subr.mxu0 0.0
      %3808 = vmatpush1.msra.mxu0 %v3778
      %3809 = vmatprep.subr.mxu0 0.0
      %3810 = vmatpush1.msra.mxu0 %v3779
      %3811 = vmatprep.subr.mxu0 0.0
      %3812 = vmatpush1.msra.mxu0 %v3780
      %3813 = vmatprep.subr.mxu0 0.0
      %3814 = vmatpush1.msra.mxu0 0.0
      %3815 = vmatprep.subr.mxu0 0.0
      %3816 = vmatpush1.msra.mxu0 0.0
      %3817 = vmatprep.subr.mxu0 0.0
      %3818 = vmatpush1.msra.mxu0 0.0
      %3819 = vmatprep.subr.mxu0 0.0
      %3820 = vmatpush1.msra.mxu0 0.0
      %3821 = vmatprep.subr.mxu0 0.0
      %3822 = vmatpush1.msra.mxu0 0.0
      %3823 = vmatprep.subr.mxu0 0.0
      %3824 = vmatpush1.msra.mxu0 0.0
      %3825 = vmatprep.subr.mxu0 0.0
      %3826 = vmatpush1.msra.mxu0 0.0
      %3827 = vmatprep.subr.mxu0 0.0
      %3828 = vmatpush1.msra.mxu0 0.0
      %3829 = vmatprep.subr.mxu0 0.0
      %3830 = vmatpush1.msra.mxu0 0.0
      %3831 = vmatprep.subr.mxu0 0.0
      %3832 = vmatpush1.msra.mxu0 0.0
      %3833 = vmatprep.subr.mxu0 0.0
      %3834 = vmatpush1.msra.mxu0 0.0
      %3835 = vmatprep.subr.mxu0 0.0
      %3836 = vmatpush1.msra.mxu0 0.0
      %3837 = vmatprep.subr.mxu0 0.0
      %3838 = vmatpush1.msra.mxu0 0.0
      %3839 = vmatprep.subr.mxu0 0.0
      %3840 = vmatpush1.msra.mxu0 0.0
      %3841 = vmatprep.subr.mxu0 0.0
      %3842 = vmatpush1.msra.mxu0 0.0
      %3843 = vmatprep.subr.mxu0 0.0
      %3844 = vmatpush1.msra.mxu0 0.0
      %3845 = vmatprep.mubr.f32.mxu0 0.0
      %3846 = vmatmul.mubr.f32.gmra.mrb[0].mxu0 %v3756
      %v3847 = vpop.f32.mrb[0].mxu0
      %v3848 = vadd.f32 0.0, %v3847
      %v3849 = vpop.f32.mrb[0].mxu0
      %3850 = vmatprep.mubr.f32.mxu0 0.0
      %3851 = vmatmul.mubr.f32.gmra.mrb[0].mxu0 %v3761
      %v3852 = vpop.f32.mrb[0].mxu0
      %v3853 = vadd.f32 0.0, %v3852
      %v3854 = vpop.f32.mrb[0].mxu0
      %3855 = vdwg.mxu0
      %v3856 = vadd.f32 %v3687, %v3848
      %v3857 = vadd.f32 %v3688, %v3853
      %v3858 = vmax.f32 %v3593, 0.0
      %v3859 = vmax.f32 %v3594, 0.0
      %v3860 = vmax.f32 %v3856, 0.0
      %v3861 = vmax.f32 %v3857, 0.0
      %v3863 = vsel %vm620, %v612, 0
      %v3866 = vsel %vm620, %v613, 0
      %3868 = vmatprep.subr.mxu0 0.0
      %3869 = vmatpush1.msra.mxu0 %v3860
      %3870 = vmatprep.subr.mxu0 0.0
      %3871 = vmatpush1.msra.mxu0 %v3861
      %3872 = vmatprep.subr.mxu0 0.0
      %3873 = vmatpush1.msra.mxu0 0.0
      %3874 = vmatprep.subr.mxu0 0.0
      %3875 = vmatpush1.msra.mxu0 0.0
      %3876 = vmatprep.subr.mxu0 0.0
      %3877 = vmatpush1.msra.mxu0 0.0
      %3878 = vmatprep.subr.mxu0 0.0
      %3879 = vmatpush1.msra.mxu0 0.0
      %3880 = vmatprep.subr.mxu0 0.0
      %3881 = vmatpush1.msra.mxu0 0.0
      %3882 = vmatprep.subr.mxu0 0.0
      %3883 = vmatpush1.msra.mxu0 0.0
      %3884 = vmatprep.subr.mxu0 0.0
      %3885 = vmatpush1.msra.mxu0 0.0
      %3886 = vmatprep.subr.mxu0 0.0
      %3887 = vmatpush1.msra.mxu0 0.0
      %3888 = vmatprep.subr.mxu0 0.0
      %3889 = vmatpush1.msra.mxu0 0.0
      %3890 = vmatprep.subr.mxu0 0.0
      %3891 = vmatpush1.msra.mxu0 0.0
      %3892 = vmatprep.subr.mxu0 0.0
      %3893 = vmatpush1.msra.mxu0 0.0
      %3894 = vmatprep.subr.mxu0 0.0
      %3895 = vmatpush1.msra.mxu0 0.0
      %3896 = vmatprep.subr.mxu0 0.0
      %3897 = vmatpush1.msra.mxu0 0.0
      %3898 = vmatprep.subr.mxu0 0.0
      %3899 = vmatpush1.msra.mxu0 0.0
      %3900 = vmatprep.subr.mxu0 0.0
      %3901 = vmatpush1.msra.mxu0 0.0
      %3902 = vmatprep.subr.mxu0 0.0
      %3903 = vmatpush1.msra.mxu0 0.0
      %3904 = vmatprep.subr.mxu0 0.0
      %3905 = vmatpush1.msra.mxu0 0.0
      %3906 = vmatprep.subr.mxu0 0.0
      %3907 = vmatpush1.msra.mxu0 0.0
      %3908 = vmatprep.subr.mxu0 0.0
      %3909 = vmatpush1.msra.mxu0 0.0
      %3910 = vmatprep.subr.mxu0 0.0
      %3911 = vmatpush1.msra.mxu0 0.0
      %3912 = vmatprep.subr.mxu0 0.0
      %3913 = vmatpush1.msra.mxu0 0.0
      %3914 = vmatprep.subr.mxu0 0.0
      %3915 = vmatpush1.msra.mxu0 0.0
      %3916 = vmatprep.subr.mxu0 0.0
      %3917 = vmatpush1.msra.mxu0 0.0
      %3918 = vmatprep.subr.mxu0 0.0
      %3919 = vmatpush1.msra.mxu0 0.0
      %3920 = vmatprep.subr.mxu0 0.0
      %3921 = vmatpush1.msra.mxu0 0.0
      %3922 = vmatprep.subr.mxu0 0.0
      %3923 = vmatpush1.msra.mxu0 0.0
      %3924 = vmatprep.subr.mxu0 0.0
      %3925 = vmatpush1.msra.mxu0 0.0
      %3926 = vmatprep.subr.mxu0 0.0
      %3927 = vmatpush1.msra.mxu0 0.0
      %3928 = vmatprep.subr.mxu0 0.0
      %3929 = vmatpush1.msra.mxu0 0.0
      %3930 = vmatprep.subr.mxu0 0.0
      %3931 = vmatpush1.msra.mxu0 0.0
      %3932 = vmatprep.mubr.f32.mxu0 0.0
      %3933 = vmatmul.mubr.f32.gmra.mrb[0].mxu0 %v3863
      %v3934 = vpop.f32.mrb[0].mxu0
      %v3935 = vadd.f32 0.0, %v3934
      %v3936 = vpop.f32.mrb[0].mxu0
      %3937 = vmatprep.mubr.f32.mxu0 0.0
      %3938 = vmatmul.mubr.f32.gmra.mrb[0].mxu0 %v3866
      %v3939 = vpop.f32.mrb[0].mxu0
      %v3940 = vadd.f32 0.0, %v3939
      %v3941 = vpop.f32.mrb[0].mxu0
      %3942 = vdwg.mxu0
      %v3944 = vsel %vm620, %v603, 0
      %v3947 = vsel %vm620, %v604, 0
      %3949 = vmatprep.subr.mxu0 0.0
      %3950 = vmatpush1.msra.mxu0 %v3858
      %3951 = vmatprep.subr.mxu0 0.0
      %3952 = vmatpush1.msra.mxu0 %v3859
      %3953 = vmatprep.subr.mxu0 0.0
      %3954 = vmatpush1.msra.mxu0 0.0
      %3955 = vmatprep.subr.mxu0 0.0
      %3956 = vmatpush1.msra.mxu0 0.0
      %3957 = vmatprep.subr.mxu0 0.0
      %3958 = vmatpush1.msra.mxu0 0.0
      %3959 = vmatprep.subr.mxu0 0.0
      %3960 = vmatpush1.msra.mxu0 0.0
      %3961 = vmatprep.subr.mxu0 0.0
      %3962 = vmatpush1.msra.mxu0 0.0
      %3963 = vmatprep.subr.mxu0 0.0
      %3964 = vmatpush1.msra.mxu0 0.0
      %3965 = vmatprep.subr.mxu0 0.0
      %3966 = vmatpush1.msra.mxu0 0.0
      %3967 = vmatprep.subr.mxu0 0.0
      %3968 = vmatpush1.msra.mxu0 0.0
      %3969 = vmatprep.subr.mxu0 0.0
      %3970 = vmatpush1.msra.mxu0 0.0
      %3971 = vmatprep.subr.mxu0 0.0
      %3972 = vmatpush1.msra.mxu0 0.0
      %3973 = vmatprep.subr.mxu0 0.0
      %3974 = vmatpush1.msra.mxu0 0.0
      %3975 = vmatprep.subr.mxu0 0.0
      %3976 = vmatpush1.msra.mxu0 0.0
      %3977 = vmatprep.subr.mxu0 0.0
      %3978 = vmatpush1.msra.mxu0 0.0
      %3979 = vmatprep.subr.mxu0 0.0
      %3980 = vmatpush1.msra.mxu0 0.0
      %3981 = vmatprep.subr.mxu0 0.0
      %3982 = vmatpush1.msra.mxu0 0.0
      %3983 = vmatprep.subr.mxu0 0.0
      %3984 = vmatpush1.msra.mxu0 0.0
      %3985 = vmatprep.subr.mxu0 0.0
      %3986 = vmatpush1.msra.mxu0 0.0
      %3987 = vmatprep.subr.mxu0 0.0
      %3988 = vmatpush1.msra.mxu0 0.0
      %3989 = vmatprep.subr.mxu0 0.0
      %3990 = vmatpush1.msra.mxu0 0.0
      %3991 = vmatprep.subr.mxu0 0.0
      %3992 = vmatpush1.msra.mxu0 0.0
      %3993 = vmatprep.subr.mxu0 0.0
      %3994 = vmatpush1.msra.mxu0 0.0
      %3995 = vmatprep.subr.mxu0 0.0
      %3996 = vmatpush1.msra.mxu0 0.0
      %3997 = vmatprep.subr.mxu0 0.0
      %3998 = vmatpush1.msra.mxu0 0.0
      %3999 = vmatprep.subr.mxu0 0.0
      %4000 = vmatpush1.msra.mxu0 0.0
      %4001 = vmatprep.subr.mxu0 0.0
      %4002 = vmatpush1.msra.mxu0 0.0
      %4003 = vmatprep.subr.mxu0 0.0
      %4004 = vmatpush1.msra.mxu0 0.0
      %4005 = vmatprep.subr.mxu0 0.0
      %4006 = vmatpush1.msra.mxu0 0.0
      %4007 = vmatprep.subr.mxu0 0.0
      %4008 = vmatpush1.msra.mxu0 0.0
      %4009 = vmatprep.subr.mxu0 0.0
      %4010 = vmatpush1.msra.mxu0 0.0
      %4011 = vmatprep.subr.mxu0 0.0
      %4012 = vmatpush1.msra.mxu0 0.0
      %4013 = vmatprep.mubr.f32.mxu0 0.0
      %4014 = vmatmul.mubr.f32.gmra.mrb[0].mxu0 %v3944
      %v4015 = vpop.f32.mrb[0].mxu0
      %v4016 = vadd.f32 %v3935, %v4015
      %v4017 = vpop.f32.mrb[0].mxu0
      %4018 = vmatprep.mubr.f32.mxu0 0.0
      %4019 = vmatmul.mubr.f32.gmra.mrb[0].mxu0 %v3947
      %v4020 = vpop.f32.mrb[0].mxu0
      %v4021 = vadd.f32 %v3940, %v4020
      %v4022 = vpop.f32.mrb[0].mxu0
      %4023 = vdwg.mxu0
      %v4024 = vld [vmem:[%s14] sm:$0x1]
      %v4025 = vld [vmem:[%s12] sm:$0xff]
      %v4026 = vld [vmem:[%s12 + $0x8] sm:$0xff]
      %v4027 = vld [vmem:[%s12 + $0x10] sm:$0xff]
      %v4028 = vld [vmem:[%s12 + $0x18] sm:$0xff]
      %v4029 = vld [vmem:[%s12 + $0x20] sm:$0xff]
      %v4030 = vld [vmem:[%s12 + $0x28] sm:$0xff]
      %v4031 = vld [vmem:[%s12 + $0x30] sm:$0xff]
      %v4032 = vld [vmem:[%s12 + $0x38] sm:$0xff]
      %v4033 = vld [vmem:[%s12 + $0x40] sm:$0xff]
      %v4034 = vld [vmem:[%s12 + $0x48] sm:$0xff]
      %v4035 = vld [vmem:[%s12 + $0x50] sm:$0xff]
      %v4036 = vld [vmem:[%s12 + $0x58] sm:$0xff]
      %v4037 = vld [vmem:[%s12 + $0x60] sm:$0xff]
      %v4038 = vld [vmem:[%s12 + $0x68] sm:$0xff]
      %v4039 = vld [vmem:[%s12 + $0x70] sm:$0xff]
      %v4040 = vld [vmem:[%s12 + $0x78] sm:$0xff]
      %v4042 = vlaneseq
      %v4043 = vshrl.u32 %v4042, 7
      %v4044 = vsub.s32 0, %v4043
      %v4045 = vrot.slane %v4024, %v4044
      %4047 = vmatprep.subr.mxu0 0.0
      %4048 = vmatpush1.msra.mxu0 %v4025
      %4049 = vmatprep.subr.mxu0 0.0
      %4050 = vmatpush1.msra.mxu0 %v4026
      %4051 = vmatprep.subr.mxu0 0.0
      %4052 = vmatpush1.msra.mxu0 %v4027
      %4053 = vmatprep.subr.mxu0 0.0
      %4054 = vmatpush1.msra.mxu0 %v4028
      %4055 = vmatprep.subr.mxu0 0.0
      %4056 = vmatpush1.msra.mxu0 %v4029
      %4057 = vmatprep.subr.mxu0 0.0
      %4058 = vmatpush1.msra.mxu0 %v4030
      %4059 = vmatprep.subr.mxu0 0.0
      %4060 = vmatpush1.msra.mxu0 %v4031
      %4061 = vmatprep.subr.mxu0 0.0
      %4062 = vmatpush1.msra.mxu0 %v4032
      %4063 = vmatprep.subr.mxu0 0.0
      %4064 = vmatpush1.msra.mxu0 %v4033
      %4065 = vmatprep.subr.mxu0 0.0
      %4066 = vmatpush1.msra.mxu0 %v4034
      %4067 = vmatprep.subr.mxu0 0.0
      %4068 = vmatpush1.msra.mxu0 %v4035
      %4069 = vmatprep.subr.mxu0 0.0
      %4070 = vmatpush1.msra.mxu0 %v4036
      %4071 = vmatprep.subr.mxu0 0.0
      %4072 = vmatpush1.msra.mxu0 %v4037
      %4073 = vmatprep.subr.mxu0 0.0
      %4074 = vmatpush1.msra.mxu0 %v4038
      %4075 = vmatprep.subr.mxu0 0.0
      %4076 = vmatpush1.msra.mxu0 %v4039
      %4077 = vmatprep.subr.mxu0 0.0
      %4078 = vmatpush1.msra.mxu0 %v4040
      %4079 = vmatprep.subr.mxu0 0.0
      %4080 = vmatpush1.msra.mxu0 0.0
      %4081 = vmatprep.subr.mxu0 0.0
      %4082 = vmatpush1.msra.mxu0 0.0
      %4083 = vmatprep.subr.mxu0 0.0
      %4084 = vmatpush1.msra.mxu0 0.0
      %4085 = vmatprep.subr.mxu0 0.0
      %4086 = vmatpush1.msra.mxu0 0.0
      %4087 = vmatprep.subr.mxu0 0.0
      %4088 = vmatpush1.msra.mxu0 0.0
      %4089 = vmatprep.subr.mxu0 0.0
      %4090 = vmatpush1.msra.mxu0 0.0
      %4091 = vmatprep.subr.mxu0 0.0
      %4092 = vmatpush1.msra.mxu0 0.0
      %4093 = vmatprep.subr.mxu0 0.0
      %4094 = vmatpush1.msra.mxu0 0.0
      %4095 = vmatprep.subr.mxu0 0.0
      %4096 = vmatpush1.msra.mxu0 0.0
      %4097 = vmatprep.subr.mxu0 0.0
      %4098 = vmatpush1.msra.mxu0 0.0
      %4099 = vmatprep.subr.mxu0 0.0
      %4100 = vmatpush1.msra.mxu0 0.0
      %4101 = vmatprep.subr.mxu0 0.0
      %4102 = vmatpush1.msra.mxu0 0.0
      %4103 = vmatprep.subr.mxu0 0.0
      %4104 = vmatpush1.msra.mxu0 0.0
      %4105 = vmatprep.subr.mxu0 0.0
      %4106 = vmatpush1.msra.mxu0 0.0
      %4107 = vmatprep.subr.mxu0 0.0
      %4108 = vmatpush1.msra.mxu0 0.0
      %4109 = vmatprep.subr.mxu0 0.0
      %4110 = vmatpush1.msra.mxu0 0.0
      %4111 = vmatprep.mubr.f32.mxu0 0.0
      %4112 = vmatmul.mubr.f32.gmra.mrb[0].mxu0 %v4016
      %v4113 = vpop.f32.mrb[0].mxu0
      %v4114 = vadd.f32 %v4045, %v4113
      %v4115 = vpop.f32.mrb[0].mxu0
      %4116 = vmatprep.mubr.f32.mxu0 0.0
      %4117 = vmatmul.mubr.f32.gmra.mrb[0].mxu0 %v4021
      %v4118 = vpop.f32.mrb[0].mxu0
      %v4119 = vadd.f32 %v4045, %v4118
      %v4120 = vpop.f32.mrb[0].mxu0
      %4121 = vdwg.mxu0
      %s4122 = scalar_lea.vmem %s12, 128
      %v4123 = vld [vmem:[%s4122] sm:$0xff]
      %v4124 = vld [vmem:[%s4122 + $0x8] sm:$0xff]
      %v4125 = vld [vmem:[%s4122 + $0x10] sm:$0xff]
      %v4126 = vld [vmem:[%s4122 + $0x18] sm:$0xff]
      %v4127 = vld [vmem:[%s4122 + $0x20] sm:$0xff]
      %v4128 = vld [vmem:[%s4122 + $0x28] sm:$0xff]
      %v4129 = vld [vmem:[%s4122 + $0x30] sm:$0xff]
      %v4130 = vld [vmem:[%s4122 + $0x38] sm:$0xff]
      %v4131 = vld [vmem:[%s4122 + $0x40] sm:$0xff]
      %v4132 = vld [vmem:[%s4122 + $0x48] sm:$0xff]
      %v4133 = vld [vmem:[%s4122 + $0x50] sm:$0xff]
      %v4134 = vld [vmem:[%s4122 + $0x58] sm:$0xff]
      %v4135 = vld [vmem:[%s4122 + $0x60] sm:$0xff]
      %v4136 = vld [vmem:[%s4122 + $0x68] sm:$0xff]
      %v4137 = vld [vmem:[%s4122 + $0x70] sm:$0xff]
      %v4138 = vld [vmem:[%s4122 + $0x78] sm:$0xff]
      %4139 = vmatprep.subr.mxu0 0.0
      %4140 = vmatpush1.msra.mxu0 %v4016
      %4141 = vmatprep.subr.mxu0 0.0
      %4142 = vmatpush1.msra.mxu0 %v4021
      %4143 = vmatprep.subr.mxu0 0.0
      %4144 = vmatpush1.msra.mxu0 0.0
      %4145 = vmatprep.subr.mxu0 0.0
      %4146 = vmatpush1.msra.mxu0 0.0
      %4147 = vmatprep.subr.mxu0 0.0
      %4148 = vmatpush1.msra.mxu0 0.0
      %4149 = vmatprep.subr.mxu0 0.0
      %4150 = vmatpush1.msra.mxu0 0.0
      %4151 = vmatprep.subr.mxu0 0.0
      %4152 = vmatpush1.msra.mxu0 0.0
      %4153 = vmatprep.subr.mxu0 0.0
      %4154 = vmatpush1.msra.mxu0 0.0
      %4155 = vmatprep.subr.mxu0 0.0
      %4156 = vmatpush1.msra.mxu0 0.0
      %4157 = vmatprep.subr.mxu0 0.0
      %4158 = vmatpush1.msra.mxu0 0.0
      %4159 = vmatprep.subr.mxu0 0.0
      %4160 = vmatpush1.msra.mxu0 0.0
      %4161 = vmatprep.subr.mxu0 0.0
      %4162 = vmatpush1.msra.mxu0 0.0
      %4163 = vmatprep.subr.mxu0 0.0
      %4164 = vmatpush1.msra.mxu0 0.0
      %4165 = vmatprep.subr.mxu0 0.0
      %4166 = vmatpush1.msra.mxu0 0.0
      %4167 = vmatprep.subr.mxu0 0.0
      %4168 = vmatpush1.msra.mxu0 0.0
      %4169 = vmatprep.subr.mxu0 0.0
      %4170 = vmatpush1.msra.mxu0 0.0
      %4171 = vmatprep.subr.mxu0 0.0
      %4172 = vmatpush1.msra.mxu0 0.0
      %4173 = vmatprep.subr.mxu0 0.0
      %4174 = vmatpush1.msra.mxu0 0.0
      %4175 = vmatprep.subr.mxu0 0.0
      %4176 = vmatpush1.msra.mxu0 0.0
      %4177 = vmatprep.subr.mxu0 0.0
      %4178 = vmatpush1.msra.mxu0 0.0
      %4179 = vmatprep.subr.mxu0 0.0
      %4180 = vmatpush1.msra.mxu0 0.0
      %4181 = vmatprep.subr.mxu0 0.0
      %4182 = vmatpush1.msra.mxu0 0.0
      %4183 = vmatprep.subr.mxu0 0.0
      %4184 = vmatpush1.msra.mxu0 0.0
      %4185 = vmatprep.subr.mxu0 0.0
      %4186 = vmatpush1.msra.mxu0 0.0
      %4187 = vmatprep.subr.mxu0 0.0
      %4188 = vmatpush1.msra.mxu0 0.0
      %4189 = vmatprep.subr.mxu0 0.0
      %4190 = vmatpush1.msra.mxu0 0.0
      %4191 = vmatprep.subr.mxu0 0.0
      %4192 = vmatpush1.msra.mxu0 0.0
      %4193 = vmatprep.subr.mxu0 0.0
      %4194 = vmatpush1.msra.mxu0 0.0
      %4195 = vmatprep.subr.mxu0 0.0
      %4196 = vmatpush1.msra.mxu0 0.0
      %4197 = vmatprep.subr.mxu0 0.0
      %4198 = vmatpush1.msra.mxu0 0.0
      %4199 = vmatprep.subr.mxu0 0.0
      %4200 = vmatpush1.msra.mxu0 0.0
      %4201 = vmatprep.subr.mxu0 0.0
      %4202 = vmatpush1.msra.mxu0 0.0
      %4203 = vmatprep.mubr.f32.mxu0 0.0
      %4204 = vmatmul.mubr.f32.gmra.mrb[0].mxu0 %v1410
      %v4205 = vpop.f32.mrb[0].mxu0
      %v4206 = vadd.f32 0.0, %v4205
      %v4207 = vpop.f32.mrb[0].mxu0
      %4208 = vmatprep.mubr.f32.mxu0 0.0
      %4209 = vmatmul.mubr.f32.gmra.mrb[0].mxu0 %v1413
      %v4210 = vpop.f32.mrb[0].mxu0
      %v4211 = vadd.f32 0.0, %v4210
      %v4212 = vpop.f32.mrb[0].mxu0
      %4213 = vdwg.mxu0
      %s4214 = scalar_lea.vmem %s12, 256
      %v4215 = vld [vmem:[%s4214] sm:$0xff]
      %v4216 = vld [vmem:[%s4214 + $0x8] sm:$0xff]
      %v4217 = vld [vmem:[%s4214 + $0x10] sm:$0xff]
      %v4218 = vld [vmem:[%s4214 + $0x18] sm:$0xff]
      %v4219 = vld [vmem:[%s4214 + $0x20] sm:$0xff]
      %v4220 = vld [vmem:[%s4214 + $0x28] sm:$0xff]
      %v4221 = vld [vmem:[%s4214 + $0x30] sm:$0xff]
      %v4222 = vld [vmem:[%s4214 + $0x38] sm:$0xff]
      %v4223 = vld [vmem:[%s4214 + $0x40] sm:$0xff]
      %v4224 = vld [vmem:[%s4214 + $0x48] sm:$0xff]
      %v4225 = vld [vmem:[%s4214 + $0x50] sm:$0xff]
      %v4226 = vld [vmem:[%s4214 + $0x58] sm:$0xff]
      %v4227 = vld [vmem:[%s4214 + $0x60] sm:$0xff]
      %v4228 = vld [vmem:[%s4214 + $0x68] sm:$0xff]
      %v4229 = vld [vmem:[%s4214 + $0x70] sm:$0xff]
      %v4230 = vld [vmem:[%s4214 + $0x78] sm:$0xff]
      %4231 = vmatprep.subr.mxu0 0.0
      %4232 = vmatpush1.msra.mxu0 %v4215
      %4233 = vmatprep.subr.mxu0 0.0
      %4234 = vmatpush1.msra.mxu0 %v4216
      %4235 = vmatprep.subr.mxu0 0.0
      %4236 = vmatpush1.msra.mxu0 %v4217
      %4237 = vmatprep.subr.mxu0 0.0
      %4238 = vmatpush1.msra.mxu0 %v4218
      %4239 = vmatprep.subr.mxu0 0.0
      %4240 = vmatpush1.msra.mxu0 %v4219
      %4241 = vmatprep.subr.mxu0 0.0
      %4242 = vmatpush1.msra.mxu0 %v4220
      %4243 = vmatprep.subr.mxu0 0.0
      %4244 = vmatpush1.msra.mxu0 %v4221
      %4245 = vmatprep.subr.mxu0 0.0
      %4246 = vmatpush1.msra.mxu0 %v4222
      %4247 = vmatprep.subr.mxu0 0.0
      %4248 = vmatpush1.msra.mxu0 %v4223
      %4249 = vmatprep.subr.mxu0 0.0
      %4250 = vmatpush1.msra.mxu0 %v4224
      %4251 = vmatprep.subr.mxu0 0.0
      %4252 = vmatpush1.msra.mxu0 %v4225
      %4253 = vmatprep.subr.mxu0 0.0
      %4254 = vmatpush1.msra.mxu0 %v4226
      %4255 = vmatprep.subr.mxu0 0.0
      %4256 = vmatpush1.msra.mxu0 %v4227
      %4257 = vmatprep.subr.mxu0 0.0
      %4258 = vmatpush1.msra.mxu0 %v4228
      %4259 = vmatprep.subr.mxu0 0.0
      %4260 = vmatpush1.msra.mxu0 %v4229
      %4261 = vmatprep.subr.mxu0 0.0
      %4262 = vmatpush1.msra.mxu0 %v4230
      %4263 = vmatprep.subr.mxu0 0.0
      %4264 = vmatpush1.msra.mxu0 0.0
      %4265 = vmatprep.subr.mxu0 0.0
      %4266 = vmatpush1.msra.mxu0 0.0
      %4267 = vmatprep.subr.mxu0 0.0
      %4268 = vmatpush1.msra.mxu0 0.0
      %4269 = vmatprep.subr.mxu0 0.0
      %4270 = vmatpush1.msra.mxu0 0.0
      %4271 = vmatprep.subr.mxu0 0.0
      %4272 = vmatpush1.msra.mxu0 0.0
      %4273 = vmatprep.subr.mxu0 0.0
      %4274 = vmatpush1.msra.mxu0 0.0
      %4275 = vmatprep.subr.mxu0 0.0
      %4276 = vmatpush1.msra.mxu0 0.0
      %4277 = vmatprep.subr.mxu0 0.0
      %4278 = vmatpush1.msra.mxu0 0.0
      %4279 = vmatprep.subr.mxu0 0.0
      %4280 = vmatpush1.msra.mxu0 0.0
      %4281 = vmatprep.subr.mxu0 0.0
      %4282 = vmatpush1.msra.mxu0 0.0
      %4283 = vmatprep.subr.mxu0 0.0
      %4284 = vmatpush1.msra.mxu0 0.0
      %4285 = vmatprep.subr.mxu0 0.0
      %4286 = vmatpush1.msra.mxu0 0.0
      %4287 = vmatprep.subr.mxu0 0.0
      %4288 = vmatpush1.msra.mxu0 0.0
      %4289 = vmatprep.subr.mxu0 0.0
      %4290 = vmatpush1.msra.mxu0 0.0
      %4291 = vmatprep.subr.mxu0 0.0
      %4292 = vmatpush1.msra.mxu0 0.0
      %4293 = vmatprep.subr.mxu0 0.0
      %4294 = vmatpush1.msra.mxu0 0.0
      %4295 = vmatprep.mubr.f32.mxu0 0.0
      %4296 = vmatmul.mubr.f32.gmra.mrb[0].mxu0 %v4206
      %v4297 = vpop.f32.mrb[0].mxu0
      %v4298 = vadd.f32 0.0, %v4297
      %v4299 = vpop.f32.mrb[0].mxu0
      %4300 = vmatprep.mubr.f32.mxu0 0.0
      %4301 = vmatmul.mubr.f32.gmra.mrb[0].mxu0 %v4211
      %v4302 = vpop.f32.mrb[0].mxu0
      %v4303 = vadd.f32 0.0, %v4302
      %v4304 = vpop.f32.mrb[0].mxu0
      %4305 = vdwg.mxu0
      %4306 = vmatprep.subr.mxu0 0.0
      %4307 = vmatpush1.msra.mxu0 %v4123
      %4308 = vmatprep.subr.mxu0 0.0
      %4309 = vmatpush1.msra.mxu0 %v4124
      %4310 = vmatprep.subr.mxu0 0.0
      %4311 = vmatpush1.msra.mxu0 %v4125
      %4312 = vmatprep.subr.mxu0 0.0
      %4313 = vmatpush1.msra.mxu0 %v4126
      %4314 = vmatprep.subr.mxu0 0.0
      %4315 = vmatpush1.msra.mxu0 %v4127
      %4316 = vmatprep.subr.mxu0 0.0
      %4317 = vmatpush1.msra.mxu0 %v4128
      %4318 = vmatprep.subr.mxu0 0.0
      %4319 = vmatpush1.msra.mxu0 %v4129
      %4320 = vmatprep.subr.mxu0 0.0
      %4321 = vmatpush1.msra.mxu0 %v4130
      %4322 = vmatprep.subr.mxu0 0.0
      %4323 = vmatpush1.msra.mxu0 %v4131
      %4324 = vmatprep.subr.mxu0 0.0
      %4325 = vmatpush1.msra.mxu0 %v4132
      %4326 = vmatprep.subr.mxu0 0.0
      %4327 = vmatpush1.msra.mxu0 %v4133
      %4328 = vmatprep.subr.mxu0 0.0
      %4329 = vmatpush1.msra.mxu0 %v4134
      %4330 = vmatprep.subr.mxu0 0.0
      %4331 = vmatpush1.msra.mxu0 %v4135
      %4332 = vmatprep.subr.mxu0 0.0
      %4333 = vmatpush1.msra.mxu0 %v4136
      %4334 = vmatprep.subr.mxu0 0.0
      %4335 = vmatpush1.msra.mxu0 %v4137
      %4336 = vmatprep.subr.mxu0 0.0
      %4337 = vmatpush1.msra.mxu0 %v4138
      %4338 = vmatprep.subr.mxu0 0.0
      %4339 = vmatpush1.msra.mxu0 0.0
      %4340 = vmatprep.subr.mxu0 0.0
      %4341 = vmatpush1.msra.mxu0 0.0
      %4342 = vmatprep.subr.mxu0 0.0
      %4343 = vmatpush1.msra.mxu0 0.0
      %4344 = vmatprep.subr.mxu0 0.0
      %4345 = vmatpush1.msra.mxu0 0.0
      %4346 = vmatprep.subr.mxu0 0.0
      %4347 = vmatpush1.msra.mxu0 0.0
      %4348 = vmatprep.subr.mxu0 0.0
      %4349 = vmatpush1.msra.mxu0 0.0
      %4350 = vmatprep.subr.mxu0 0.0
      %4351 = vmatpush1.msra.mxu0 0.0
      %4352 = vmatprep.subr.mxu0 0.0
      %4353 = vmatpush1.msra.mxu0 0.0
      %4354 = vmatprep.subr.mxu0 0.0
      %4355 = vmatpush1.msra.mxu0 0.0
      %4356 = vmatprep.subr.mxu0 0.0
      %4357 = vmatpush1.msra.mxu0 0.0
      %4358 = vmatprep.subr.mxu0 0.0
      %4359 = vmatpush1.msra.mxu0 0.0
      %4360 = vmatprep.subr.mxu0 0.0
      %4361 = vmatpush1.msra.mxu0 0.0
      %4362 = vmatprep.subr.mxu0 0.0
      %4363 = vmatpush1.msra.mxu0 0.0
      %4364 = vmatprep.subr.mxu0 0.0
      %4365 = vmatpush1.msra.mxu0 0.0
      %4366 = vmatprep.subr.mxu0 0.0
      %4367 = vmatpush1.msra.mxu0 0.0
      %4368 = vmatprep.subr.mxu0 0.0
      %4369 = vmatpush1.msra.mxu0 0.0
      %4370 = vmatprep.mubr.f32.mxu0 0.0
      %4371 = vmatmul.mubr.f32.gmra.mrb[0].mxu0 %v4016
      %v4372 = vpop.f32.mrb[0].mxu0
      %v4373 = vadd.f32 %v4298, %v4372
      %v4374 = vpop.f32.mrb[0].mxu0
      %4375 = vmatprep.mubr.f32.mxu0 0.0
      %4376 = vmatmul.mubr.f32.gmra.mrb[0].mxu0 %v4021
      %v4377 = vpop.f32.mrb[0].mxu0
      %v4378 = vadd.f32 %v4303, %v4377
      %v4379 = vpop.f32.mrb[0].mxu0
      %4380 = vdwg.mxu0
      %v4381 = vadd.f32 %v4373, %v4045
      %v4382 = vadd.f32 %v4378, %v4045
      %v4383 = vld [vmem:[%s13] sm:$0xff]
      %v4384 = vld [vmem:[%s13 + $0x8] sm:$0xff]
      %v4385 = vld [vmem:[%s13 + $0x10] sm:$0xff]
      %v4386 = vld [vmem:[%s13 + $0x18] sm:$0xff]
      %v4387 = vld [vmem:[%s13 + $0x20] sm:$0xff]
      %v4388 = vld [vmem:[%s13 + $0x28] sm:$0xff]
      %v4389 = vld [vmem:[%s13 + $0x30] sm:$0xff]
      %v4390 = vld [vmem:[%s13 + $0x38] sm:$0xff]
      %v4391 = vld [vmem:[%s13 + $0x40] sm:$0xff]
      %v4392 = vld [vmem:[%s13 + $0x48] sm:$0xff]
      %v4393 = vld [vmem:[%s13 + $0x50] sm:$0xff]
      %v4394 = vld [vmem:[%s13 + $0x58] sm:$0xff]
      %v4395 = vld [vmem:[%s13 + $0x60] sm:$0xff]
      %v4396 = vld [vmem:[%s13 + $0x68] sm:$0xff]
      %v4397 = vld [vmem:[%s13 + $0x70] sm:$0xff]
      %v4398 = vld [vmem:[%s13 + $0x78] sm:$0xff]
      %4399 = vmatprep.subr.mxu0 0.0
      %4400 = vmatpush1.msra.mxu0 %v4383
      %4401 = vmatprep.subr.mxu0 0.0
      %4402 = vmatpush1.msra.mxu0 %v4384
      %4403 = vmatprep.subr.mxu0 0.0
      %4404 = vmatpush1.msra.mxu0 %v4385
      %4405 = vmatprep.subr.mxu0 0.0
      %4406 = vmatpush1.msra.mxu0 %v4386
      %4407 = vmatprep.subr.mxu0 0.0
      %4408 = vmatpush1.msra.mxu0 %v4387
      %4409 = vmatprep.subr.mxu0 0.0
      %4410 = vmatpush1.msra.mxu0 %v4388
      %4411 = vmatprep.subr.mxu0 0.0
      %4412 = vmatpush1.msra.mxu0 %v4389
      %4413 = vmatprep.subr.mxu0 0.0
      %4414 = vmatpush1.msra.mxu0 %v4390
      %4415 = vmatprep.subr.mxu0 0.0
      %4416 = vmatpush1.msra.mxu0 %v4391
      %4417 = vmatprep.subr.mxu0 0.0
      %4418 = vmatpush1.msra.mxu0 %v4392
      %4419 = vmatprep.subr.mxu0 0.0
      %4420 = vmatpush1.msra.mxu0 %v4393
      %4421 = vmatprep.subr.mxu0 0.0
      %4422 = vmatpush1.msra.mxu0 %v4394
      %4423 = vmatprep.subr.mxu0 0.0
      %4424 = vmatpush1.msra.mxu0 %v4395
      %4425 = vmatprep.subr.mxu0 0.0
      %4426 = vmatpush1.msra.mxu0 %v4396
      %4427 = vmatprep.subr.mxu0 0.0
      %4428 = vmatpush1.msra.mxu0 %v4397
      %4429 = vmatprep.subr.mxu0 0.0
      %4430 = vmatpush1.msra.mxu0 %v4398
      %4431 = vmatprep.subr.mxu0 0.0
      %4432 = vmatpush1.msra.mxu0 0.0
      %4433 = vmatprep.subr.mxu0 0.0
      %4434 = vmatpush1.msra.mxu0 0.0
      %4435 = vmatprep.subr.mxu0 0.0
      %4436 = vmatpush1.msra.mxu0 0.0
      %4437 = vmatprep.subr.mxu0 0.0
      %4438 = vmatpush1.msra.mxu0 0.0
      %4439 = vmatprep.subr.mxu0 0.0
      %4440 = vmatpush1.msra.mxu0 0.0
      %4441 = vmatprep.subr.mxu0 0.0
      %4442 = vmatpush1.msra.mxu0 0.0
      %4443 = vmatprep.subr.mxu0 0.0
      %4444 = vmatpush1.msra.mxu0 0.0
      %4445 = vmatprep.subr.mxu0 0.0
      %4446 = vmatpush1.msra.mxu0 0.0
      %4447 = vmatprep.subr.mxu0 0.0
      %4448 = vmatpush1.msra.mxu0 0.0
      %4449 = vmatprep.subr.mxu0 0.0
      %4450 = vmatpush1.msra.mxu0 0.0
      %4451 = vmatprep.subr.mxu0 0.0
      %4452 = vmatpush1.msra.mxu0 0.0
      %4453 = vmatprep.subr.mxu0 0.0
      %4454 = vmatpush1.msra.mxu0 0.0
      %4455 = vmatprep.subr.mxu0 0.0
      %4456 = vmatpush1.msra.mxu0 0.0
      %4457 = vmatprep.subr.mxu0 0.0
      %4458 = vmatpush1.msra.mxu0 0.0
      %4459 = vmatprep.subr.mxu0 0.0
      %4460 = vmatpush1.msra.mxu0 0.0
      %4461 = vmatprep.subr.mxu0 0.0
      %4462 = vmatpush1.msra.mxu0 0.0
      %4463 = vmatprep.mubr.f32.mxu0 0.0
      %4464 = vmatmul.mubr.f32.gmra.mrb[0].mxu0 %v1584
      %v4465 = vpop.f32.mrb[0].mxu0
      %v4466 = vadd.f32 0.0, %v4465
      %v4467 = vpop.f32.mrb[0].mxu0
      %4468 = vmatprep.mubr.f32.mxu0 0.0
      %4469 = vmatmul.mubr.f32.gmra.mrb[0].mxu0 %v1585
      %v4470 = vpop.f32.mrb[0].mxu0
      %v4471 = vadd.f32 0.0, %v4470
      %v4472 = vpop.f32.mrb[0].mxu0
      %4473 = vdwg.mxu0
      %v4474 = vadd.f32 %v4114, %v4466
      %v4475 = vadd.f32 %v4119, %v4471
      %s4476 = scalar_lea.vmem %s13, 128
      %v4477 = vld [vmem:[%s4476] sm:$0xff]
      %v4478 = vld [vmem:[%s4476 + $0x8] sm:$0xff]
      %v4479 = vld [vmem:[%s4476 + $0x10] sm:$0xff]
      %v4480 = vld [vmem:[%s4476 + $0x18] sm:$0xff]
      %v4481 = vld [vmem:[%s4476 + $0x20] sm:$0xff]
      %v4482 = vld [vmem:[%s4476 + $0x28] sm:$0xff]
      %v4483 = vld [vmem:[%s4476 + $0x30] sm:$0xff]
      %v4484 = vld [vmem:[%s4476 + $0x38] sm:$0xff]
      %v4485 = vld [vmem:[%s4476 + $0x40] sm:$0xff]
      %v4486 = vld [vmem:[%s4476 + $0x48] sm:$0xff]
      %v4487 = vld [vmem:[%s4476 + $0x50] sm:$0xff]
      %v4488 = vld [vmem:[%s4476 + $0x58] sm:$0xff]
      %v4489 = vld [vmem:[%s4476 + $0x60] sm:$0xff]
      %v4490 = vld [vmem:[%s4476 + $0x68] sm:$0xff]
      %v4491 = vld [vmem:[%s4476 + $0x70] sm:$0xff]
      %v4492 = vld [vmem:[%s4476 + $0x78] sm:$0xff]
      %4493 = vmatprep.subr.mxu0 0.0
      %4494 = vmatpush1.msra.mxu0 %v4477
      %4495 = vmatprep.subr.mxu0 0.0
      %4496 = vmatpush1.msra.mxu0 %v4478
      %4497 = vmatprep.subr.mxu0 0.0
      %4498 = vmatpush1.msra.mxu0 %v4479
      %4499 = vmatprep.subr.mxu0 0.0
      %4500 = vmatpush1.msra.mxu0 %v4480
      %4501 = vmatprep.subr.mxu0 0.0
      %4502 = vmatpush1.msra.mxu0 %v4481
      %4503 = vmatprep.subr.mxu0 0.0
      %4504 = vmatpush1.msra.mxu0 %v4482
      %4505 = vmatprep.subr.mxu0 0.0
      %4506 = vmatpush1.msra.mxu0 %v4483
      %4507 = vmatprep.subr.mxu0 0.0
      %4508 = vmatpush1.msra.mxu0 %v4484
      %4509 = vmatprep.subr.mxu0 0.0
      %4510 = vmatpush1.msra.mxu0 %v4485
      %4511 = vmatprep.subr.mxu0 0.0
      %4512 = vmatpush1.msra.mxu0 %v4486
      %4513 = vmatprep.subr.mxu0 0.0
      %4514 = vmatpush1.msra.mxu0 %v4487
      %4515 = vmatprep.subr.mxu0 0.0
      %4516 = vmatpush1.msra.mxu0 %v4488
      %4517 = vmatprep.subr.mxu0 0.0
      %4518 = vmatpush1.msra.mxu0 %v4489
      %4519 = vmatprep.subr.mxu0 0.0
      %4520 = vmatpush1.msra.mxu0 %v4490
      %4521 = vmatprep.subr.mxu0 0.0
      %4522 = vmatpush1.msra.mxu0 %v4491
      %4523 = vmatprep.subr.mxu0 0.0
      %4524 = vmatpush1.msra.mxu0 %v4492
      %4525 = vmatprep.subr.mxu0 0.0
      %4526 = vmatpush1.msra.mxu0 0.0
      %4527 = vmatprep.subr.mxu0 0.0
      %4528 = vmatpush1.msra.mxu0 0.0
      %4529 = vmatprep.subr.mxu0 0.0
      %4530 = vmatpush1.msra.mxu0 0.0
      %4531 = vmatprep.subr.mxu0 0.0
      %4532 = vmatpush1.msra.mxu0 0.0
      %4533 = vmatprep.subr.mxu0 0.0
      %4534 = vmatpush1.msra.mxu0 0.0
      %4535 = vmatprep.subr.mxu0 0.0
      %4536 = vmatpush1.msra.mxu0 0.0
      %4537 = vmatprep.subr.mxu0 0.0
      %4538 = vmatpush1.msra.mxu0 0.0
      %4539 = vmatprep.subr.mxu0 0.0
      %4540 = vmatpush1.msra.mxu0 0.0
      %4541 = vmatprep.subr.mxu0 0.0
      %4542 = vmatpush1.msra.mxu0 0.0
      %4543 = vmatprep.subr.mxu0 0.0
      %4544 = vmatpush1.msra.mxu0 0.0
      %4545 = vmatprep.subr.mxu0 0.0
      %4546 = vmatpush1.msra.mxu0 0.0
      %4547 = vmatprep.subr.mxu0 0.0
      %4548 = vmatpush1.msra.mxu0 0.0
      %4549 = vmatprep.subr.mxu0 0.0
      %4550 = vmatpush1.msra.mxu0 0.0
      %4551 = vmatprep.subr.mxu0 0.0
      %4552 = vmatpush1.msra.mxu0 0.0
      %4553 = vmatprep.subr.mxu0 0.0
      %4554 = vmatpush1.msra.mxu0 0.0
      %4555 = vmatprep.subr.mxu0 0.0
      %4556 = vmatpush1.msra.mxu0 0.0
      %4557 = vmatprep.mubr.f32.mxu0 0.0
      %4558 = vmatmul.mubr.f32.gmra.mrb[0].mxu0 %v1584
      %v4559 = vpop.f32.mrb[0].mxu0
      %v4560 = vadd.f32 0.0, %v4559
      %v4561 = vpop.f32.mrb[0].mxu0
      %4562 = vmatprep.mubr.f32.mxu0 0.0
      %4563 = vmatmul.mubr.f32.gmra.mrb[0].mxu0 %v1585
      %v4564 = vpop.f32.mrb[0].mxu0
      %v4565 = vadd.f32 0.0, %v4564
      %v4566 = vpop.f32.mrb[0].mxu0
      %4567 = vdwg.mxu0
      %v4568 = vadd.f32 %v4381, %v4560
      %v4569 = vadd.f32 %v4382, %v4565
      %4570 = vmatprep.subr.mxu0 0.0
      %4571 = vmatpush1.msra.mxu0 %v1584
      %4572 = vmatprep.subr.mxu0 0.0
      %4573 = vmatpush1.msra.mxu0 %v1585
      %4574 = vmatprep.subr.mxu0 0.0
      %4575 = vmatpush1.msra.mxu0 0.0
      %4576 = vmatprep.subr.mxu0 0.0
      %4577 = vmatpush1.msra.mxu0 0.0
      %4578 = vmatprep.subr.mxu0 0.0
      %4579 = vmatpush1.msra.mxu0 0.0
      %4580 = vmatprep.subr.mxu0 0.0
      %4581 = vmatpush1.msra.mxu0 0.0
      %4582 = vmatprep.subr.mxu0 0.0
      %4583 = vmatpush1.msra.mxu0 0.0
      %4584 = vmatprep.subr.mxu0 0.0
      %4585 = vmatpush1.msra.mxu0 0.0
      %4586 = vmatprep.subr.mxu0 0.0
      %4587 = vmatpush1.msra.mxu0 0.0
      %4588 = vmatprep.subr.mxu0 0.0
      %4589 = vmatpush1.msra.mxu0 0.0
      %4590 = vmatprep.subr.mxu0 0.0
      %4591 = vmatpush1.msra.mxu0 0.0
      %4592 = vmatprep.subr.mxu0 0.0
      %4593 = vmatpush1.msra.mxu0 0.0
      %4594 = vmatprep.subr.mxu0 0.0
      %4595 = vmatpush1.msra.mxu0 0.0
      %4596 = vmatprep.subr.mxu0 0.0
      %4597 = vmatpush1.msra.mxu0 0.0
      %4598 = vmatprep.subr.mxu0 0.0
      %4599 = vmatpush1.msra.mxu0 0.0
      %4600 = vmatprep.subr.mxu0 0.0
      %4601 = vmatpush1.msra.mxu0 0.0
      %4602 = vmatprep.subr.mxu0 0.0
      %4603 = vmatpush1.msra.mxu0 0.0
      %4604 = vmatprep.subr.mxu0 0.0
      %4605 = vmatpush1.msra.mxu0 0.0
      %4606 = vmatprep.subr.mxu0 0.0
      %4607 = vmatpush1.msra.mxu0 0.0
      %4608 = vmatprep.subr.mxu0 0.0
      %4609 = vmatpush1.msra.mxu0 0.0
      %4610 = vmatprep.subr.mxu0 0.0
      %4611 = vmatpush1.msra.mxu0 0.0
      %4612 = vmatprep.subr.mxu0 0.0
      %4613 = vmatpush1.msra.mxu0 0.0
      %4614 = vmatprep.subr.mxu0 0.0
      %4615 = vmatpush1.msra.mxu0 0.0
      %4616 = vmatprep.subr.mxu0 0.0
      %4617 = vmatpush1.msra.mxu0 0.0
      %4618 = vmatprep.subr.mxu0 0.0
      %4619 = vmatpush1.msra.mxu0 0.0
      %4620 = vmatprep.subr.mxu0 0.0
      %4621 = vmatpush1.msra.mxu0 0.0
      %4622 = vmatprep.subr.mxu0 0.0
      %4623 = vmatpush1.msra.mxu0 0.0
      %4624 = vmatprep.subr.mxu0 0.0
      %4625 = vmatpush1.msra.mxu0 0.0
      %4626 = vmatprep.subr.mxu0 0.0
      %4627 = vmatpush1.msra.mxu0 0.0
      %4628 = vmatprep.subr.mxu0 0.0
      %4629 = vmatpush1.msra.mxu0 0.0
      %4630 = vmatprep.subr.mxu0 0.0
      %4631 = vmatpush1.msra.mxu0 0.0
      %4632 = vmatprep.subr.mxu0 0.0
      %4633 = vmatpush1.msra.mxu0 0.0
      %4634 = vmatprep.mubr.f32.mxu0 0.0
      %4635 = vmatmul.mubr.f32.gmra.mrb[0].mxu0 %v1410
      %v4636 = vpop.f32.mrb[0].mxu0
      %v4637 = vadd.f32 0.0, %v4636
      %v4638 = vpop.f32.mrb[0].mxu0
      %4639 = vmatprep.mubr.f32.mxu0 0.0
      %4640 = vmatmul.mubr.f32.gmra.mrb[0].mxu0 %v1413
      %v4641 = vpop.f32.mrb[0].mxu0
      %v4642 = vadd.f32 0.0, %v4641
      %v4643 = vpop.f32.mrb[0].mxu0
      %4644 = vdwg.mxu0
      %s4645 = scalar_lea.vmem %s13, 256
      %v4646 = vld [vmem:[%s4645] sm:$0xff]
      %v4647 = vld [vmem:[%s4645 + $0x8] sm:$0xff]
      %v4648 = vld [vmem:[%s4645 + $0x10] sm:$0xff]
      %v4649 = vld [vmem:[%s4645 + $0x18] sm:$0xff]
      %v4650 = vld [vmem:[%s4645 + $0x20] sm:$0xff]
      %v4651 = vld [vmem:[%s4645 + $0x28] sm:$0xff]
      %v4652 = vld [vmem:[%s4645 + $0x30] sm:$0xff]
      %v4653 = vld [vmem:[%s4645 + $0x38] sm:$0xff]
      %v4654 = vld [vmem:[%s4645 + $0x40] sm:$0xff]
      %v4655 = vld [vmem:[%s4645 + $0x48] sm:$0xff]
      %v4656 = vld [vmem:[%s4645 + $0x50] sm:$0xff]
      %v4657 = vld [vmem:[%s4645 + $0x58] sm:$0xff]
      %v4658 = vld [vmem:[%s4645 + $0x60] sm:$0xff]
      %v4659 = vld [vmem:[%s4645 + $0x68] sm:$0xff]
      %v4660 = vld [vmem:[%s4645 + $0x70] sm:$0xff]
      %v4661 = vld [vmem:[%s4645 + $0x78] sm:$0xff]
      %4662 = vmatprep.subr.mxu0 0.0
      %4663 = vmatpush1.msra.mxu0 %v4646
      %4664 = vmatprep.subr.mxu0 0.0
      %4665 = vmatpush1.msra.mxu0 %v4647
      %4666 = vmatprep.subr.mxu0 0.0
      %4667 = vmatpush1.msra.mxu0 %v4648
      %4668 = vmatprep.subr.mxu0 0.0
      %4669 = vmatpush1.msra.mxu0 %v4649
      %4670 = vmatprep.subr.mxu0 0.0
      %4671 = vmatpush1.msra.mxu0 %v4650
      %4672 = vmatprep.subr.mxu0 0.0
      %4673 = vmatpush1.msra.mxu0 %v4651
      %4674 = vmatprep.subr.mxu0 0.0
      %4675 = vmatpush1.msra.mxu0 %v4652
      %4676 = vmatprep.subr.mxu0 0.0
      %4677 = vmatpush1.msra.mxu0 %v4653
      %4678 = vmatprep.subr.mxu0 0.0
      %4679 = vmatpush1.msra.mxu0 %v4654
      %4680 = vmatprep.subr.mxu0 0.0
      %4681 = vmatpush1.msra.mxu0 %v4655
      %4682 = vmatprep.subr.mxu0 0.0
      %4683 = vmatpush1.msra.mxu0 %v4656
      %4684 = vmatprep.subr.mxu0 0.0
      %4685 = vmatpush1.msra.mxu0 %v4657
      %4686 = vmatprep.subr.mxu0 0.0
      %4687 = vmatpush1.msra.mxu0 %v4658
      %4688 = vmatprep.subr.mxu0 0.0
      %4689 = vmatpush1.msra.mxu0 %v4659
      %4690 = vmatprep.subr.mxu0 0.0
      %4691 = vmatpush1.msra.mxu0 %v4660
      %4692 = vmatprep.subr.mxu0 0.0
      %4693 = vmatpush1.msra.mxu0 %v4661
      %4694 = vmatprep.subr.mxu0 0.0
      %4695 = vmatpush1.msra.mxu0 0.0
      %4696 = vmatprep.subr.mxu0 0.0
      %4697 = vmatpush1.msra.mxu0 0.0
      %4698 = vmatprep.subr.mxu0 0.0
      %4699 = vmatpush1.msra.mxu0 0.0
      %4700 = vmatprep.subr.mxu0 0.0
      %4701 = vmatpush1.msra.mxu0 0.0
      %4702 = vmatprep.subr.mxu0 0.0
      %4703 = vmatpush1.msra.mxu0 0.0
      %4704 = vmatprep.subr.mxu0 0.0
      %4705 = vmatpush1.msra.mxu0 0.0
      %4706 = vmatprep.subr.mxu0 0.0
      %4707 = vmatpush1.msra.mxu0 0.0
      %4708 = vmatprep.subr.mxu0 0.0
      %4709 = vmatpush1.msra.mxu0 0.0
      %4710 = vmatprep.subr.mxu0 0.0
      %4711 = vmatpush1.msra.mxu0 0.0
      %4712 = vmatprep.subr.mxu0 0.0
      %4713 = vmatpush1.msra.mxu0 0.0
      %4714 = vmatprep.subr.mxu0 0.0
      %4715 = vmatpush1.msra.mxu0 0.0
      %4716 = vmatprep.subr.mxu0 0.0
      %4717 = vmatpush1.msra.mxu0 0.0
      %4718 = vmatprep.subr.mxu0 0.0
      %4719 = vmatpush1.msra.mxu0 0.0
      %4720 = vmatprep.subr.mxu0 0.0
      %4721 = vmatpush1.msra.mxu0 0.0
      %4722 = vmatprep.subr.mxu0 0.0
      %4723 = vmatpush1.msra.mxu0 0.0
      %4724 = vmatprep.subr.mxu0 0.0
      %4725 = vmatpush1.msra.mxu0 0.0
      %4726 = vmatprep.mubr.f32.mxu0 0.0
      %4727 = vmatmul.mubr.f32.gmra.mrb[0].mxu0 %v4637
      %v4728 = vpop.f32.mrb[0].mxu0
      %v4729 = vadd.f32 0.0, %v4728
      %v4730 = vpop.f32.mrb[0].mxu0
      %4731 = vmatprep.mubr.f32.mxu0 0.0
      %4732 = vmatmul.mubr.f32.gmra.mrb[0].mxu0 %v4642
      %v4733 = vpop.f32.mrb[0].mxu0
      %v4734 = vadd.f32 0.0, %v4733
      %v4735 = vpop.f32.mrb[0].mxu0
      %4736 = vdwg.mxu0
      %v4737 = vadd.f32 %v4568, %v4729
      %v4738 = vadd.f32 %v4569, %v4734
      %v4739 = vtanh.pop %v4474
      %v4740 = vtanh.pop %v4475
      %v4741 = vtanh.pop %v4737
      %v4742 = vtanh.pop %v4738
      %v4744 = vsel %vm620, %v615, 0
      %v4747 = vsel %vm620, %v616, 0
      %4749 = vmatprep.subr.mxu0 0.0
      %4750 = vmatpush1.msra.mxu0 %v4741
      %4751 = vmatprep.subr.mxu0 0.0
      %4752 = vmatpush1.msra.mxu0 %v4742
      %4753 = vmatprep.subr.mxu0 0.0
      %4754 = vmatpush1.msra.mxu0 0.0
      %4755 = vmatprep.subr.mxu0 0.0
      %4756 = vmatpush1.msra.mxu0 0.0
      %4757 = vmatprep.subr.mxu0 0.0
      %4758 = vmatpush1.msra.mxu0 0.0
      %4759 = vmatprep.subr.mxu0 0.0
      %4760 = vmatpush1.msra.mxu0 0.0
      %4761 = vmatprep.subr.mxu0 0.0
      %4762 = vmatpush1.msra.mxu0 0.0
      %4763 = vmatprep.subr.mxu0 0.0
      %4764 = vmatpush1.msra.mxu0 0.0
      %4765 = vmatprep.subr.mxu0 0.0
      %4766 = vmatpush1.msra.mxu0 0.0
      %4767 = vmatprep.subr.mxu0 0.0
      %4768 = vmatpush1.msra.mxu0 0.0
      %4769 = vmatprep.subr.mxu0 0.0
      %4770 = vmatpush1.msra.mxu0 0.0
      %4771 = vmatprep.subr.mxu0 0.0
      %4772 = vmatpush1.msra.mxu0 0.0
      %4773 = vmatprep.subr.mxu0 0.0
      %4774 = vmatpush1.msra.mxu0 0.0
      %4775 = vmatprep.subr.mxu0 0.0
      %4776 = vmatpush1.msra.mxu0 0.0
      %4777 = vmatprep.subr.mxu0 0.0
      %4778 = vmatpush1.msra.mxu0 0.0
      %4779 = vmatprep.subr.mxu0 0.0
      %4780 = vmatpush1.msra.mxu0 0.0
      %4781 = vmatprep.subr.mxu0 0.0
      %4782 = vmatpush1.msra.mxu0 0.0
      %4783 = vmatprep.subr.mxu0 0.0
      %4784 = vmatpush1.msra.mxu0 0.0
      %4785 = vmatprep.subr.mxu0 0.0
      %4786 = vmatpush1.msra.mxu0 0.0
      %4787 = vmatprep.subr.mxu0 0.0
      %4788 = vmatpush1.msra.mxu0 0.0
      %4789 = vmatprep.subr.mxu0 0.0
      %4790 = vmatpush1.msra.mxu0 0.0
      %4791 = vmatprep.subr.mxu0 0.0
      %4792 = vmatpush1.msra.mxu0 0.0
      %4793 = vmatprep.subr.mxu0 0.0
      %4794 = vmatpush1.msra.mxu0 0.0
      %4795 = vmatprep.subr.mxu0 0.0
      %4796 = vmatpush1.msra.mxu0 0.0
      %4797 = vmatprep.subr.mxu0 0.0
      %4798 = vmatpush1.msra.mxu0 0.0
      %4799 = vmatprep.subr.mxu0 0.0
      %4800 = vmatpush1.msra.mxu0 0.0
      %4801 = vmatprep.subr.mxu0 0.0
      %4802 = vmatpush1.msra.mxu0 0.0
      %4803 = vmatprep.subr.mxu0 0.0
      %4804 = vmatpush1.msra.mxu0 0.0
      %4805 = vmatprep.subr.mxu0 0.0
      %4806 = vmatpush1.msra.mxu0 0.0
      %4807 = vmatprep.subr.mxu0 0.0
      %4808 = vmatpush1.msra.mxu0 0.0
      %4809 = vmatprep.subr.mxu0 0.0
      %4810 = vmatpush1.msra.mxu0 0.0
      %4811 = vmatprep.subr.mxu0 0.0
      %4812 = vmatpush1.msra.mxu0 0.0
      %4813 = vmatprep.mubr.f32.mxu0 0.0
      %4814 = vmatmul.mubr.f32.gmra.mrb[0].mxu0 %v4744
      %v4815 = vpop.f32.mrb[0].mxu0
      %v4816 = vadd.f32 0.0, %v4815
      %v4817 = vpop.f32.mrb[0].mxu0
      %4818 = vmatprep.mubr.f32.mxu0 0.0
      %4819 = vmatmul.mubr.f32.gmra.mrb[0].mxu0 %v4747
      %v4820 = vpop.f32.mrb[0].mxu0
      %v4821 = vadd.f32 0.0, %v4820
      %v4822 = vpop.f32.mrb[0].mxu0
      %4823 = vdwg.mxu0
      %v4825 = vsel %vm620, %v606, 0
      %v4828 = vsel %vm620, %v607, 0
      %4830 = vmatprep.subr.mxu0 0.0
      %4831 = vmatpush1.msra.mxu0 %v4739
      %4832 = vmatprep.subr.mxu0 0.0
      %4833 = vmatpush1.msra.mxu0 %v4740
      %4834 = vmatprep.subr.mxu0 0.0
      %4835 = vmatpush1.msra.mxu0 0.0
      %4836 = vmatprep.subr.mxu0 0.0
      %4837 = vmatpush1.msra.mxu0 0.0
      %4838 = vmatprep.subr.mxu0 0.0
      %4839 = vmatpush1.msra.mxu0 0.0
      %4840 = vmatprep.subr.mxu0 0.0
      %4841 = vmatpush1.msra.mxu0 0.0
      %4842 = vmatprep.subr.mxu0 0.0
      %4843 = vmatpush1.msra.mxu0 0.0
      %4844 = vmatprep.subr.mxu0 0.0
      %4845 = vmatpush1.msra.mxu0 0.0
      %4846 = vmatprep.subr.mxu0 0.0
      %4847 = vmatpush1.msra.mxu0 0.0
      %4848 = vmatprep.subr.mxu0 0.0
      %4849 = vmatpush1.msra.mxu0 0.0
      %4850 = vmatprep.subr.mxu0 0.0
      %4851 = vmatpush1.msra.mxu0 0.0
      %4852 = vmatprep.subr.mxu0 0.0
      %4853 = vmatpush1.msra.mxu0 0.0
      %4854 = vmatprep.subr.mxu0 0.0
      %4855 = vmatpush1.msra.mxu0 0.0
      %4856 = vmatprep.subr.mxu0 0.0
      %4857 = vmatpush1.msra.mxu0 0.0
      %4858 = vmatprep.subr.mxu0 0.0
      %4859 = vmatpush1.msra.mxu0 0.0
      %4860 = vmatprep.subr.mxu0 0.0
      %4861 = vmatpush1.msra.mxu0 0.0
      %4862 = vmatprep.subr.mxu0 0.0
      %4863 = vmatpush1.msra.mxu0 0.0
      %4864 = vmatprep.subr.mxu0 0.0
      %4865 = vmatpush1.msra.mxu0 0.0
      %4866 = vmatprep.subr.mxu0 0.0
      %4867 = vmatpush1.msra.mxu0 0.0
      %4868 = vmatprep.subr.mxu0 0.0
      %4869 = vmatpush1.msra.mxu0 0.0
      %4870 = vmatprep.subr.mxu0 0.0
      %4871 = vmatpush1.msra.mxu0 0.0
      %4872 = vmatprep.subr.mxu0 0.0
      %4873 = vmatpush1.msra.mxu0 0.0
      %4874 = vmatprep.subr.mxu0 0.0
      %4875 = vmatpush1.msra.mxu0 0.0
      %4876 = vmatprep.subr.mxu0 0.0
      %4877 = vmatpush1.msra.mxu0 0.0
      %4878 = vmatprep.subr.mxu0 0.0
      %4879 = vmatpush1.msra.mxu0 0.0
      %4880 = vmatprep.subr.mxu0 0.0
      %4881 = vmatpush1.msra.mxu0 0.0
      %4882 = vmatprep.subr.mxu0 0.0
      %4883 = vmatpush1.msra.mxu0 0.0
      %4884 = vmatprep.subr.mxu0 0.0
      %4885 = vmatpush1.msra.mxu0 0.0
      %4886 = vmatprep.subr.mxu0 0.0
      %4887 = vmatpush1.msra.mxu0 0.0
      %4888 = vmatprep.subr.mxu0 0.0
      %4889 = vmatpush1.msra.mxu0 0.0
      %4890 = vmatprep.subr.mxu0 0.0
      %4891 = vmatpush1.msra.mxu0 0.0
      %4892 = vmatprep.subr.mxu0 0.0
      %4893 = vmatpush1.msra.mxu0 0.0
      %4894 = vmatprep.mubr.f32.mxu0 0.0
      %4895 = vmatmul.mubr.f32.gmra.mrb[0].mxu0 %v4825
      %v4896 = vpop.f32.mrb[0].mxu0
      %v4897 = vadd.f32 %v4816, %v4896
      %v4898 = vpop.f32.mrb[0].mxu0
      %4899 = vmatprep.mubr.f32.mxu0 0.0
      %4900 = vmatmul.mubr.f32.gmra.mrb[0].mxu0 %v4828
      %v4901 = vpop.f32.mrb[0].mxu0
      %v4902 = vadd.f32 %v4821, %v4901
      %v4903 = vpop.f32.mrb[0].mxu0
      %4904 = vdwg.mxu0
      %v4905 = vld [vmem:[%s17] sm:$0x3]
      %4906 = vmatprep.subr.mxu0 0.0
      %4907 = vmatpush1.msra.mxu0 %v4897
      %4908 = vmatprep.subr.mxu0 0.0
      %4909 = vmatpush1.msra.mxu0 %v4902
      %4910 = vmatprep.subr.mxu0 0.0
      %4911 = vmatpush1.msra.mxu0 0.0
      %4912 = vmatprep.subr.mxu0 0.0
      %4913 = vmatpush1.msra.mxu0 0.0
      %4914 = vmatprep.subr.mxu0 0.0
      %4915 = vmatpush1.msra.mxu0 0.0
      %4916 = vmatprep.subr.mxu0 0.0
      %4917 = vmatpush1.msra.mxu0 0.0
      %4918 = vmatprep.subr.mxu0 0.0
      %4919 = vmatpush1.msra.mxu0 0.0
      %4920 = vmatprep.subr.mxu0 0.0
      %4921 = vmatpush1.msra.mxu0 0.0
      %4922 = vmatprep.subr.mxu0 0.0
      %4923 = vmatpush1.msra.mxu0 0.0
      %4924 = vmatprep.subr.mxu0 0.0
      %4925 = vmatpush1.msra.mxu0 0.0
      %4926 = vmatprep.subr.mxu0 0.0
      %4927 = vmatpush1.msra.mxu0 0.0
      %4928 = vmatprep.subr.mxu0 0.0
      %4929 = vmatpush1.msra.mxu0 0.0
      %4930 = vmatprep.subr.mxu0 0.0
      %4931 = vmatpush1.msra.mxu0 0.0
      %4932 = vmatprep.subr.mxu0 0.0
      %4933 = vmatpush1.msra.mxu0 0.0
      %4934 = vmatprep.subr.mxu0 0.0
      %4935 = vmatpush1.msra.mxu0 0.0
      %4936 = vmatprep.subr.mxu0 0.0
      %4937 = vmatpush1.msra.mxu0 0.0
      %4938 = vmatprep.subr.mxu0 0.0
      %4939 = vmatpush1.msra.mxu0 0.0
      %4940 = vmatprep.subr.mxu0 0.0
      %4941 = vmatpush1.msra.mxu0 0.0
      %4942 = vmatprep.subr.mxu0 0.0
      %4943 = vmatpush1.msra.mxu0 0.0
      %4944 = vmatprep.subr.mxu0 0.0
      %4945 = vmatpush1.msra.mxu0 0.0
      %4946 = vmatprep.subr.mxu0 0.0
      %4947 = vmatpush1.msra.mxu0 0.0
      %4948 = vmatprep.subr.mxu0 0.0
      %4949 = vmatpush1.msra.mxu0 0.0
      %4950 = vmatprep.subr.mxu0 0.0
      %4951 = vmatpush1.msra.mxu0 0.0
      %4952 = vmatprep.subr.mxu0 0.0
      %4953 = vmatpush1.msra.mxu0 0.0
      %4954 = vmatprep.subr.mxu0 0.0
      %4955 = vmatpush1.msra.mxu0 0.0
      %4956 = vmatprep.subr.mxu0 0.0
      %4957 = vmatpush1.msra.mxu0 0.0
      %4958 = vmatprep.subr.mxu0 0.0
      %4959 = vmatpush1.msra.mxu0 0.0
      %4960 = vmatprep.subr.mxu0 0.0
      %4961 = vmatpush1.msra.mxu0 0.0
      %4962 = vmatprep.subr.mxu0 0.0
      %4963 = vmatpush1.msra.mxu0 0.0
      %4964 = vmatprep.subr.mxu0 0.0
      %4965 = vmatpush1.msra.mxu0 0.0
      %4966 = vmatprep.subr.mxu0 0.0
      %4967 = vmatpush1.msra.mxu0 0.0
      %4968 = vmatprep.subr.mxu0 0.0
      %4969 = vmatpush1.msra.mxu0 0.0
      %4970 = vmatprep.mubr.f32.mxu0 0.0
      %4971 = vmatmul.mubr.f32.gmra.mrb[0].mxu0 %v622
      %v4972 = vpop.f32.mrb[0].mxu0
      %v4973 = vadd.f32 0.0, %v4972
      %v4974 = vpop.f32.mrb[0].mxu0
      %4975 = vmatprep.mubr.f32.mxu0 0.0
      %4976 = vmatmul.mubr.f32.gmra.mrb[0].mxu0 %v625
      %v4977 = vpop.f32.mrb[0].mxu0
      %v4978 = vadd.f32 0.0, %v4977
      %v4979 = vpop.f32.mrb[0].mxu0
      %4980 = vdwg.mxu0
      %v4981 = vld [vmem:[%s15] sm:$0xff]
      %v4982 = vld [vmem:[%s15 + $0x8] sm:$0xff]
      %v4983 = vld [vmem:[%s15 + $0x10] sm:$0xff]
      %v4984 = vld [vmem:[%s15 + $0x18] sm:$0xff]
      %v4985 = vld [vmem:[%s15 + $0x20] sm:$0xff]
      %v4986 = vld [vmem:[%s15 + $0x28] sm:$0xff]
      %v4987 = vld [vmem:[%s15 + $0x30] sm:$0xff]
      %v4988 = vld [vmem:[%s15 + $0x38] sm:$0xff]
      %v4989 = vld [vmem:[%s15 + $0x40] sm:$0xff]
      %v4990 = vld [vmem:[%s15 + $0x48] sm:$0xff]
      %v4991 = vld [vmem:[%s15 + $0x50] sm:$0xff]
      %v4992 = vld [vmem:[%s15 + $0x58] sm:$0xff]
      %v4993 = vld [vmem:[%s15 + $0x60] sm:$0xff]
      %v4994 = vld [vmem:[%s15 + $0x68] sm:$0xff]
      %v4995 = vld [vmem:[%s15 + $0x70] sm:$0xff]
      %v4996 = vld [vmem:[%s15 + $0x78] sm:$0xff]
      %v4997 = vld [vmem:[%s15 + $0x80] sm:$0xff]
      %v4998 = vld [vmem:[%s15 + $0x88] sm:$0xff]
      %v4999 = vld [vmem:[%s15 + $0x90] sm:$0xff]
      %v5000 = vld [vmem:[%s15 + $0x98] sm:$0xff]
      %v5001 = vld [vmem:[%s15 + $0xa0] sm:$0xff]
      %v5002 = vld [vmem:[%s15 + $0xa8] sm:$0xff]
      %v5003 = vld [vmem:[%s15 + $0xb0] sm:$0xff]
      %v5004 = vld [vmem:[%s15 + $0xb8] sm:$0xff]
      %v5005 = vld [vmem:[%s15 + $0xc0] sm:$0xff]
      %v5006 = vld [vmem:[%s15 + $0xc8] sm:$0xff]
      %v5007 = vld [vmem:[%s15 + $0xd0] sm:$0xff]
      %v5008 = vld [vmem:[%s15 + $0xd8] sm:$0xff]
      %v5009 = vld [vmem:[%s15 + $0xe0] sm:$0xff]
      %v5010 = vld [vmem:[%s15 + $0xe8] sm:$0xff]
      %v5011 = vld [vmem:[%s15 + $0xf0] sm:$0xff]
      %v5012 = vld [vmem:[%s15 + $0xf8] sm:$0xff]
      %s5013 = scalar_lea.vmem %s15, 256
      %v5014 = vld [vmem:[%s5013] sm:$0xff]
      %v5015 = vld [vmem:[%s5013 + $0x8] sm:$0xff]
      %v5016 = vld [vmem:[%s5013 + $0x10] sm:$0xff]
      %v5017 = vld [vmem:[%s5013 + $0x18] sm:$0xff]
      %v5018 = vld [vmem:[%s5013 + $0x20] sm:$0xff]
      %v5019 = vld [vmem:[%s5013 + $0x28] sm:$0xff]
      %v5020 = vld [vmem:[%s5013 + $0x30] sm:$0xff]
      %v5021 = vld [vmem:[%s5013 + $0x38] sm:$0xff]
      %v5022 = vld [vmem:[%s5013 + $0x40] sm:$0xff]
      %v5023 = vld [vmem:[%s5013 + $0x48] sm:$0xff]
      %v5024 = vld [vmem:[%s5013 + $0x50] sm:$0xff]
      %v5025 = vld [vmem:[%s5013 + $0x58] sm:$0xff]
      %v5026 = vld [vmem:[%s5013 + $0x60] sm:$0xff]
      %v5027 = vld [vmem:[%s5013 + $0x68] sm:$0xff]
      %v5028 = vld [vmem:[%s5013 + $0x70] sm:$0xff]
      %v5029 = vld [vmem:[%s5013 + $0x78] sm:$0xff]
      %v5030 = vld [vmem:[%s5013 + $0x80] sm:$0xff]
      %v5031 = vld [vmem:[%s5013 + $0x88] sm:$0xff]
      %v5032 = vld [vmem:[%s5013 + $0x90] sm:$0xff]
      %v5033 = vld [vmem:[%s5013 + $0x98] sm:$0xff]
      %v5034 = vld [vmem:[%s5013 + $0xa0] sm:$0xff]
      %v5035 = vld [vmem:[%s5013 + $0xa8] sm:$0xff]
      %v5036 = vld [vmem:[%s5013 + $0xb0] sm:$0xff]
      %v5037 = vld [vmem:[%s5013 + $0xb8] sm:$0xff]
      %v5038 = vld [vmem:[%s5013 + $0xc0] sm:$0xff]
      %v5039 = vld [vmem:[%s5013 + $0xc8] sm:$0xff]
      %v5040 = vld [vmem:[%s5013 + $0xd0] sm:$0xff]
      %v5041 = vld [vmem:[%s5013 + $0xd8] sm:$0xff]
      %v5042 = vld [vmem:[%s5013 + $0xe0] sm:$0xff]
      %v5043 = vld [vmem:[%s5013 + $0xe8] sm:$0xff]
      %v5044 = vld [vmem:[%s5013 + $0xf0] sm:$0xff]
      %v5045 = vld [vmem:[%s5013 + $0xf8] sm:$0xff]
      %5046 = vmatprep.subr.mxu0 %v5015
      %5047 = vmatpush1.msra.mxu0 %v5014
      %5048 = vmatprep.subr.mxu0 %v5017
      %5049 = vmatpush1.msra.mxu0 %v5016
      %5050 = vmatprep.subr.mxu0 %v5019
      %5051 = vmatpush1.msra.mxu0 %v5018
      %5052 = vmatprep.subr.mxu0 %v5021
      %5053 = vmatpush1.msra.mxu0 %v5020
      %5054 = vmatprep.subr.mxu0 %v5023
      %5055 = vmatpush1.msra.mxu0 %v5022
      %5056 = vmatprep.subr.mxu0 %v5025
      %5057 = vmatpush1.msra.mxu0 %v5024
      %5058 = vmatprep.subr.mxu0 %v5027
      %5059 = vmatpush1.msra.mxu0 %v5026
      %5060 = vmatprep.subr.mxu0 %v5029
      %5061 = vmatpush1.msra.mxu0 %v5028
      %5062 = vmatprep.subr.mxu0 %v5031
      %5063 = vmatpush1.msra.mxu0 %v5030
      %5064 = vmatprep.subr.mxu0 %v5033
      %5065 = vmatpush1.msra.mxu0 %v5032
      %5066 = vmatprep.subr.mxu0 %v5035
      %5067 = vmatpush1.msra.mxu0 %v5034
      %5068 = vmatprep.subr.mxu0 %v5037
      %5069 = vmatpush1.msra.mxu0 %v5036
      %5070 = vmatprep.subr.mxu0 %v5039
      %5071 = vmatpush1.msra.mxu0 %v5038
      %5072 = vmatprep.subr.mxu0 %v5041
      %5073 = vmatpush1.msra.mxu0 %v5040
      %5074 = vmatprep.subr.mxu0 %v5043
      %5075 = vmatpush1.msra.mxu0 %v5042
      %5076 = vmatprep.subr.mxu0 %v5045
      %5077 = vmatpush1.msra.mxu0 %v5044
      %5078 = vmatprep.subr.mxu0 0.0
      %5079 = vmatpush1.msra.mxu0 0.0
      %5080 = vmatprep.subr.mxu0 0.0
      %5081 = vmatpush1.msra.mxu0 0.0
      %5082 = vmatprep.subr.mxu0 0.0
      %5083 = vmatpush1.msra.mxu0 0.0
      %5084 = vmatprep.subr.mxu0 0.0
      %5085 = vmatpush1.msra.mxu0 0.0
      %5086 = vmatprep.subr.mxu0 0.0
      %5087 = vmatpush1.msra.mxu0 0.0
      %5088 = vmatprep.subr.mxu0 0.0
      %5089 = vmatpush1.msra.mxu0 0.0
      %5090 = vmatprep.subr.mxu0 0.0
      %5091 = vmatpush1.msra.mxu0 0.0
      %5092 = vmatprep.subr.mxu0 0.0
      %5093 = vmatpush1.msra.mxu0 0.0
      %5094 = vmatprep.subr.mxu0 0.0
      %5095 = vmatpush1.msra.mxu0 0.0
      %5096 = vmatprep.subr.mxu0 0.0
      %5097 = vmatpush1.msra.mxu0 0.0
      %5098 = vmatprep.subr.mxu0 0.0
      %5099 = vmatpush1.msra.mxu0 0.0
      %5100 = vmatprep.subr.mxu0 0.0
      %5101 = vmatpush1.msra.mxu0 0.0
      %5102 = vmatprep.subr.mxu0 0.0
      %5103 = vmatpush1.msra.mxu0 0.0
      %5104 = vmatprep.subr.mxu0 0.0
      %5105 = vmatpush1.msra.mxu0 0.0
      %5106 = vmatprep.subr.mxu0 0.0
      %5107 = vmatpush1.msra.mxu0 0.0
      %5108 = vmatprep.subr.mxu0 0.0
      %5109 = vmatpush1.msra.mxu0 0.0
      %5110 = vmatprep.mubr.f32.mxu0 0.0
      %5111 = vmatmul.mubr.f32.gmra.mrb[0].mxu0 %v4897
      %v5112 = vpop.f32.mrb[0].mxu0
      %v5113 = vadd.f32 0.0, %v5112
      %v5114 = vpop.f32.mrb[0].mxu0
      %v5115 = vadd.f32 0.0, %v5114
      %5116 = vmatprep.mubr.f32.mxu0 0.0
      %5117 = vmatmul.mubr.f32.gmra.mrb[0].mxu0 %v4902
      %v5118 = vpop.f32.mrb[0].mxu0
      %v5119 = vadd.f32 0.0, %v5118
      %v5120 = vpop.f32.mrb[0].mxu0
      %v5121 = vadd.f32 0.0, %v5120
      %5122 = vdwg.mxu0
      %5123 = vmatprep.subr.mxu0 %v4982
      %5124 = vmatpush1.msra.mxu0 %v4981
      %5125 = vmatprep.subr.mxu0 %v4984
      %5126 = vmatpush1.msra.mxu0 %v4983
      %5127 = vmatprep.subr.mxu0 %v4986
      %5128 = vmatpush1.msra.mxu0 %v4985
      %5129 = vmatprep.subr.mxu0 %v4988
      %5130 = vmatpush1.msra.mxu0 %v4987
      %5131 = vmatprep.subr.mxu0 %v4990
      %5132 = vmatpush1.msra.mxu0 %v4989
      %5133 = vmatprep.subr.mxu0 %v4992
      %5134 = vmatpush1.msra.mxu0 %v4991
      %5135 = vmatprep.subr.mxu0 %v4994
      %5136 = vmatpush1.msra.mxu0 %v4993
      %5137 = vmatprep.subr.mxu0 %v4996
      %5138 = vmatpush1.msra.mxu0 %v4995
      %5139 = vmatprep.subr.mxu0 %v4998
      %5140 = vmatpush1.msra.mxu0 %v4997
      %5141 = vmatprep.subr.mxu0 %v5000
      %5142 = vmatpush1.msra.mxu0 %v4999
      %5143 = vmatprep.subr.mxu0 %v5002
      %5144 = vmatpush1.msra.mxu0 %v5001
      %5145 = vmatprep.subr.mxu0 %v5004
      %5146 = vmatpush1.msra.mxu0 %v5003
      %5147 = vmatprep.subr.mxu0 %v5006
      %5148 = vmatpush1.msra.mxu0 %v5005
      %5149 = vmatprep.subr.mxu0 %v5008
      %5150 = vmatpush1.msra.mxu0 %v5007
      %5151 = vmatprep.subr.mxu0 %v5010
      %5152 = vmatpush1.msra.mxu0 %v5009
      %5153 = vmatprep.subr.mxu0 %v5012
      %5154 = vmatpush1.msra.mxu0 %v5011
      %5155 = vmatprep.subr.mxu0 0.0
      %5156 = vmatpush1.msra.mxu0 0.0
      %5157 = vmatprep.subr.mxu0 0.0
      %5158 = vmatpush1.msra.mxu0 0.0
      %5159 = vmatprep.subr.mxu0 0.0
      %5160 = vmatpush1.msra.mxu0 0.0
      %5161 = vmatprep.subr.mxu0 0.0
      %5162 = vmatpush1.msra.mxu0 0.0
      %5163 = vmatprep.subr.mxu0 0.0
      %5164 = vmatpush1.msra.mxu0 0.0
      %5165 = vmatprep.subr.mxu0 0.0
      %5166 = vmatpush1.msra.mxu0 0.0
      %5167 = vmatprep.subr.mxu0 0.0
      %5168 = vmatpush1.msra.mxu0 0.0
      %5169 = vmatprep.subr.mxu0 0.0
      %5170 = vmatpush1.msra.mxu0 0.0
      %5171 = vmatprep.subr.mxu0 0.0
      %5172 = vmatpush1.msra.mxu0 0.0
      %5173 = vmatprep.subr.mxu0 0.0
      %5174 = vmatpush1.msra.mxu0 0.0
      %5175 = vmatprep.subr.mxu0 0.0
      %5176 = vmatpush1.msra.mxu0 0.0
      %5177 = vmatprep.subr.mxu0 0.0
      %5178 = vmatpush1.msra.mxu0 0.0
      %5179 = vmatprep.subr.mxu0 0.0
      %5180 = vmatpush1.msra.mxu0 0.0
      %5181 = vmatprep.subr.mxu0 0.0
      %5182 = vmatpush1.msra.mxu0 0.0
      %5183 = vmatprep.subr.mxu0 0.0
      %5184 = vmatpush1.msra.mxu0 0.0
      %5185 = vmatprep.subr.mxu0 0.0
      %5186 = vmatpush1.msra.mxu0 0.0
      %5187 = vmatprep.mubr.f32.mxu0 0.0
      %5188 = vmatmul.mubr.f32.gmra.mrb[0].mxu0 %v4973
      %v5189 = vpop.f32.mrb[0].mxu0
      %v5190 = vadd.f32 %v5113, %v5189
      %v5191 = vpop.f32.mrb[0].mxu0
      %v5192 = vadd.f32 %v5115, %v5191
      %5193 = vmatprep.mubr.f32.mxu0 0.0
      %5194 = vmatmul.mubr.f32.gmra.mrb[0].mxu0 %v4978
      %v5195 = vpop.f32.mrb[0].mxu0
      %v5196 = vadd.f32 %v5119, %v5195
      %v5197 = vpop.f32.mrb[0].mxu0
      %v5198 = vadd.f32 %v5121, %v5197
      %5199 = vdwg.mxu0
      %5200 = vmatprep.subr.mxu0 0.0
      %5201 = vmatpush1.msra.mxu0 %v4897
      %5202 = vmatprep.subr.mxu0 0.0
      %5203 = vmatpush1.msra.mxu0 %v4902
      %5204 = vmatprep.subr.mxu0 0.0
      %5205 = vmatpush1.msra.mxu0 0.0
      %5206 = vmatprep.subr.mxu0 0.0
      %5207 = vmatpush1.msra.mxu0 0.0
      %5208 = vmatprep.subr.mxu0 0.0
      %5209 = vmatpush1.msra.mxu0 0.0
      %5210 = vmatprep.subr.mxu0 0.0
      %5211 = vmatpush1.msra.mxu0 0.0
      %5212 = vmatprep.subr.mxu0 0.0
      %5213 = vmatpush1.msra.mxu0 0.0
      %5214 = vmatprep.subr.mxu0 0.0
      %5215 = vmatpush1.msra.mxu0 0.0
      %5216 = vmatprep.subr.mxu0 0.0
      %5217 = vmatpush1.msra.mxu0 0.0
      %5218 = vmatprep.subr.mxu0 0.0
      %5219 = vmatpush1.msra.mxu0 0.0
      %5220 = vmatprep.subr.mxu0 0.0
      %5221 = vmatpush1.msra.mxu0 0.0
      %5222 = vmatprep.subr.mxu0 0.0
      %5223 = vmatpush1.msra.mxu0 0.0
      %5224 = vmatprep.subr.mxu0 0.0
      %5225 = vmatpush1.msra.mxu0 0.0
      %5226 = vmatprep.subr.mxu0 0.0
      %5227 = vmatpush1.msra.mxu0 0.0
      %5228 = vmatprep.subr.mxu0 0.0
      %5229 = vmatpush1.msra.mxu0 0.0
      %5230 = vmatprep.subr.mxu0 0.0
      %5231 = vmatpush1.msra.mxu0 0.0
      %5232 = vmatprep.subr.mxu0 0.0
      %5233 = vmatpush1.msra.mxu0 0.0
      %5234 = vmatprep.subr.mxu0 0.0
      %5235 = vmatpush1.msra.mxu0 0.0
      %5236 = vmatprep.subr.mxu0 0.0
      %5237 = vmatpush1.msra.mxu0 0.0
      %5238 = vmatprep.subr.mxu0 0.0
      %5239 = vmatpush1.msra.mxu0 0.0
      %5240 = vmatprep.subr.mxu0 0.0
      %5241 = vmatpush1.msra.mxu0 0.0
      %5242 = vmatprep.subr.mxu0 0.0
      %5243 = vmatpush1.msra.mxu0 0.0
      %5244 = vmatprep.subr.mxu0 0.0
      %5245 = vmatpush1.msra.mxu0 0.0
      %5246 = vmatprep.subr.mxu0 0.0
      %5247 = vmatpush1.msra.mxu0 0.0
      %5248 = vmatprep.subr.mxu0 0.0
      %5249 = vmatpush1.msra.mxu0 0.0
      %5250 = vmatprep.subr.mxu0 0.0
      %5251 = vmatpush1.msra.mxu0 0.0
      %5252 = vmatprep.subr.mxu0 0.0
      %5253 = vmatpush1.msra.mxu0 0.0
      %5254 = vmatprep.subr.mxu0 0.0
      %5255 = vmatpush1.msra.mxu0 0.0
      %5256 = vmatprep.subr.mxu0 0.0
      %5257 = vmatpush1.msra.mxu0 0.0
      %5258 = vmatprep.subr.mxu0 0.0
      %5259 = vmatpush1.msra.mxu0 0.0
      %5260 = vmatprep.subr.mxu0 0.0
      %5261 = vmatpush1.msra.mxu0 0.0
      %5262 = vmatprep.subr.mxu0 0.0
      %5263 = vmatpush1.msra.mxu0 0.0
      %5264 = vmatprep.mubr.f32.mxu0 0.0
      %5265 = vmatmul.mubr.f32.gmra.mrb[0].mxu0 %v886
      %v5266 = vpop.f32.mrb[0].mxu0
      %v5267 = vadd.f32 0.0, %v5266
      %v5268 = vpop.f32.mrb[0].mxu0
      %5269 = vmatprep.mubr.f32.mxu0 0.0
      %5270 = vmatmul.mubr.f32.gmra.mrb[0].mxu0 %v889
      %v5271 = vpop.f32.mrb[0].mxu0
      %v5272 = vadd.f32 0.0, %v5271
      %v5273 = vpop.f32.mrb[0].mxu0
      %5274 = vdwg.mxu0
      %s5275 = scalar_lea.vmem %s15, 512
      %v5276 = vld [vmem:[%s5275] sm:$0xff]
      %v5277 = vld [vmem:[%s5275 + $0x8] sm:$0xff]
      %v5278 = vld [vmem:[%s5275 + $0x10] sm:$0xff]
      %v5279 = vld [vmem:[%s5275 + $0x18] sm:$0xff]
      %v5280 = vld [vmem:[%s5275 + $0x20] sm:$0xff]
      %v5281 = vld [vmem:[%s5275 + $0x28] sm:$0xff]
      %v5282 = vld [vmem:[%s5275 + $0x30] sm:$0xff]
      %v5283 = vld [vmem:[%s5275 + $0x38] sm:$0xff]
      %v5284 = vld [vmem:[%s5275 + $0x40] sm:$0xff]
      %v5285 = vld [vmem:[%s5275 + $0x48] sm:$0xff]
      %v5286 = vld [vmem:[%s5275 + $0x50] sm:$0xff]
      %v5287 = vld [vmem:[%s5275 + $0x58] sm:$0xff]
      %v5288 = vld [vmem:[%s5275 + $0x60] sm:$0xff]
      %v5289 = vld [vmem:[%s5275 + $0x68] sm:$0xff]
      %v5290 = vld [vmem:[%s5275 + $0x70] sm:$0xff]
      %v5291 = vld [vmem:[%s5275 + $0x78] sm:$0xff]
      %v5292 = vld [vmem:[%s5275 + $0x80] sm:$0xff]
      %v5293 = vld [vmem:[%s5275 + $0x88] sm:$0xff]
      %v5294 = vld [vmem:[%s5275 + $0x90] sm:$0xff]
      %v5295 = vld [vmem:[%s5275 + $0x98] sm:$0xff]
      %v5296 = vld [vmem:[%s5275 + $0xa0] sm:$0xff]
      %v5297 = vld [vmem:[%s5275 + $0xa8] sm:$0xff]
      %v5298 = vld [vmem:[%s5275 + $0xb0] sm:$0xff]
      %v5299 = vld [vmem:[%s5275 + $0xb8] sm:$0xff]
      %v5300 = vld [vmem:[%s5275 + $0xc0] sm:$0xff]
      %v5301 = vld [vmem:[%s5275 + $0xc8] sm:$0xff]
      %v5302 = vld [vmem:[%s5275 + $0xd0] sm:$0xff]
      %v5303 = vld [vmem:[%s5275 + $0xd8] sm:$0xff]
      %v5304 = vld [vmem:[%s5275 + $0xe0] sm:$0xff]
      %v5305 = vld [vmem:[%s5275 + $0xe8] sm:$0xff]
      %v5306 = vld [vmem:[%s5275 + $0xf0] sm:$0xff]
      %v5307 = vld [vmem:[%s5275 + $0xf8] sm:$0xff]
      %5308 = vmatprep.subr.mxu0 %v5277
      %5309 = vmatpush1.msra.mxu0 %v5276
      %5310 = vmatprep.subr.mxu0 %v5279
      %5311 = vmatpush1.msra.mxu0 %v5278
      %5312 = vmatprep.subr.mxu0 %v5281
      %5313 = vmatpush1.msra.mxu0 %v5280
      %5314 = vmatprep.subr.mxu0 %v5283
      %5315 = vmatpush1.msra.mxu0 %v5282
      %5316 = vmatprep.subr.mxu0 %v5285
      %5317 = vmatpush1.msra.mxu0 %v5284
      %5318 = vmatprep.subr.mxu0 %v5287
      %5319 = vmatpush1.msra.mxu0 %v5286
      %5320 = vmatprep.subr.mxu0 %v5289
      %5321 = vmatpush1.msra.mxu0 %v5288
      %5322 = vmatprep.subr.mxu0 %v5291
      %5323 = vmatpush1.msra.mxu0 %v5290
      %5324 = vmatprep.subr.mxu0 %v5293
      %5325 = vmatpush1.msra.mxu0 %v5292
      %5326 = vmatprep.subr.mxu0 %v5295
      %5327 = vmatpush1.msra.mxu0 %v5294
      %5328 = vmatprep.subr.mxu0 %v5297
      %5329 = vmatpush1.msra.mxu0 %v5296
      %5330 = vmatprep.subr.mxu0 %v5299
      %5331 = vmatpush1.msra.mxu0 %v5298
      %5332 = vmatprep.subr.mxu0 %v5301
      %5333 = vmatpush1.msra.mxu0 %v5300
      %5334 = vmatprep.subr.mxu0 %v5303
      %5335 = vmatpush1.msra.mxu0 %v5302
      %5336 = vmatprep.subr.mxu0 %v5305
      %5337 = vmatpush1.msra.mxu0 %v5304
      %5338 = vmatprep.subr.mxu0 %v5307
      %5339 = vmatpush1.msra.mxu0 %v5306
      %5340 = vmatprep.subr.mxu0 0.0
      %5341 = vmatpush1.msra.mxu0 0.0
      %5342 = vmatprep.subr.mxu0 0.0
      %5343 = vmatpush1.msra.mxu0 0.0
      %5344 = vmatprep.subr.mxu0 0.0
      %5345 = vmatpush1.msra.mxu0 0.0
      %5346 = vmatprep.subr.mxu0 0.0
      %5347 = vmatpush1.msra.mxu0 0.0
      %5348 = vmatprep.subr.mxu0 0.0
      %5349 = vmatpush1.msra.mxu0 0.0
      %5350 = vmatprep.subr.mxu0 0.0
      %5351 = vmatpush1.msra.mxu0 0.0
      %5352 = vmatprep.subr.mxu0 0.0
      %5353 = vmatpush1.msra.mxu0 0.0
      %5354 = vmatprep.subr.mxu0 0.0
      %5355 = vmatpush1.msra.mxu0 0.0
      %5356 = vmatprep.subr.mxu0 0.0
      %5357 = vmatpush1.msra.mxu0 0.0
      %5358 = vmatprep.subr.mxu0 0.0
      %5359 = vmatpush1.msra.mxu0 0.0
      %5360 = vmatprep.subr.mxu0 0.0
      %5361 = vmatpush1.msra.mxu0 0.0
      %5362 = vmatprep.subr.mxu0 0.0
      %5363 = vmatpush1.msra.mxu0 0.0
      %5364 = vmatprep.subr.mxu0 0.0
      %5365 = vmatpush1.msra.mxu0 0.0
      %5366 = vmatprep.subr.mxu0 0.0
      %5367 = vmatpush1.msra.mxu0 0.0
      %5368 = vmatprep.subr.mxu0 0.0
      %5369 = vmatpush1.msra.mxu0 0.0
      %5370 = vmatprep.subr.mxu0 0.0
      %5371 = vmatpush1.msra.mxu0 0.0
      %5372 = vmatprep.mubr.f32.mxu0 0.0
      %5373 = vmatmul.mubr.f32.gmra.mrb[0].mxu0 %v5267
      %v5374 = vpop.f32.mrb[0].mxu0
      %v5375 = vadd.f32 0.0, %v5374
      %v5376 = vpop.f32.mrb[0].mxu0
      %v5377 = vadd.f32 0.0, %v5376
      %5378 = vmatprep.mubr.f32.mxu0 0.0
      %5379 = vmatmul.mubr.f32.gmra.mrb[0].mxu0 %v5272
      %v5380 = vpop.f32.mrb[0].mxu0
      %v5381 = vadd.f32 0.0, %v5380
      %v5382 = vpop.f32.mrb[0].mxu0
      %v5383 = vadd.f32 0.0, %v5382
      %5384 = vdwg.mxu0
      %v5385 = vadd.f32 %v5190, %v5375
      %v5386 = vadd.f32 %v5192, %v5377
      %v5387 = vadd.f32 %v5196, %v5381
      %v5388 = vadd.f32 %v5198, %v5383
      %v5390 = vlaneseq
      %v5391 = vshrl.u32 %v5390, 7
      %v5392 = vsub.s32 0, %v5391
      %v5393 = vrot.slane %v4905, %v5392
      %v5394 = vlaneseq
      %v5395 = vshrl.u32 %v5394, 7
      %v5396 = vsub.s32 1, %v5395
      %v5397 = vrot.slane %v4905, %v5396
      %v5400 = vadd.f32 %v5385, %v5393
      %v5401 = vadd.f32 %v5386, %v5397
      %v5402 = vadd.f32 %v5387, %v5393
      %v5403 = vadd.f32 %v5388, %v5397
      %5404 = vmatprep.subr.mxu0 0.0
      %5405 = vmatpush1.msra.mxu0 %v1068
      %5406 = vmatprep.subr.mxu0 0.0
      %5407 = vmatpush1.msra.mxu0 %v1069
      %5408 = vmatprep.subr.mxu0 0.0
      %5409 = vmatpush1.msra.mxu0 0.0
      %5410 = vmatprep.subr.mxu0 0.0
      %5411 = vmatpush1.msra.mxu0 0.0
      %5412 = vmatprep.subr.mxu0 0.0
      %5413 = vmatpush1.msra.mxu0 0.0
      %5414 = vmatprep.subr.mxu0 0.0
      %5415 = vmatpush1.msra.mxu0 0.0
      %5416 = vmatprep.subr.mxu0 0.0
      %5417 = vmatpush1.msra.mxu0 0.0
      %5418 = vmatprep.subr.mxu0 0.0
      %5419 = vmatpush1.msra.mxu0 0.0
      %5420 = vmatprep.subr.mxu0 0.0
      %5421 = vmatpush1.msra.mxu0 0.0
      %5422 = vmatprep.subr.mxu0 0.0
      %5423 = vmatpush1.msra.mxu0 0.0
      %5424 = vmatprep.subr.mxu0 0.0
      %5425 = vmatpush1.msra.mxu0 0.0
      %5426 = vmatprep.subr.mxu0 0.0
      %5427 = vmatpush1.msra.mxu0 0.0
      %5428 = vmatprep.subr.mxu0 0.0
      %5429 = vmatpush1.msra.mxu0 0.0
      %5430 = vmatprep.subr.mxu0 0.0
      %5431 = vmatpush1.msra.mxu0 0.0
      %5432 = vmatprep.subr.mxu0 0.0
      %5433 = vmatpush1.msra.mxu0 0.0
      %5434 = vmatprep.subr.mxu0 0.0
      %5435 = vmatpush1.msra.mxu0 0.0
      %5436 = vmatprep.subr.mxu0 0.0
      %5437 = vmatpush1.msra.mxu0 0.0
      %5438 = vmatprep.subr.mxu0 0.0
      %5439 = vmatpush1.msra.mxu0 0.0
      %5440 = vmatprep.subr.mxu0 0.0
      %5441 = vmatpush1.msra.mxu0 0.0
      %5442 = vmatprep.subr.mxu0 0.0
      %5443 = vmatpush1.msra.mxu0 0.0
      %5444 = vmatprep.subr.mxu0 0.0
      %5445 = vmatpush1.msra.mxu0 0.0
      %5446 = vmatprep.subr.mxu0 0.0
      %5447 = vmatpush1.msra.mxu0 0.0
      %5448 = vmatprep.subr.mxu0 0.0
      %5449 = vmatpush1.msra.mxu0 0.0
      %5450 = vmatprep.subr.mxu0 0.0
      %5451 = vmatpush1.msra.mxu0 0.0
      %5452 = vmatprep.subr.mxu0 0.0
      %5453 = vmatpush1.msra.mxu0 0.0
      %5454 = vmatprep.subr.mxu0 0.0
      %5455 = vmatpush1.msra.mxu0 0.0
      %5456 = vmatprep.subr.mxu0 0.0
      %5457 = vmatpush1.msra.mxu0 0.0
      %5458 = vmatprep.subr.mxu0 0.0
      %5459 = vmatpush1.msra.mxu0 0.0
      %5460 = vmatprep.subr.mxu0 0.0
      %5461 = vmatpush1.msra.mxu0 0.0
      %5462 = vmatprep.subr.mxu0 0.0
      %5463 = vmatpush1.msra.mxu0 0.0
      %5464 = vmatprep.subr.mxu0 0.0
      %5465 = vmatpush1.msra.mxu0 0.0
      %5466 = vmatprep.subr.mxu0 0.0
      %5467 = vmatpush1.msra.mxu0 0.0
      %5468 = vmatprep.mubr.f32.mxu0 0.0
      %5469 = vmatmul.mubr.f32.gmra.mrb[0].mxu0 %v622
      %v5470 = vpop.f32.mrb[0].mxu0
      %v5471 = vadd.f32 0.0, %v5470
      %v5472 = vpop.f32.mrb[0].mxu0
      %5473 = vmatprep.mubr.f32.mxu0 0.0
      %5474 = vmatmul.mubr.f32.gmra.mrb[0].mxu0 %v625
      %v5475 = vpop.f32.mrb[0].mxu0
      %v5476 = vadd.f32 0.0, %v5475
      %v5477 = vpop.f32.mrb[0].mxu0
      %5478 = vdwg.mxu0
      %v5479 = vld [vmem:[%s16] sm:$0xff]
      %v5480 = vld [vmem:[%s16 + $0x8] sm:$0xff]
      %v5481 = vld [vmem:[%s16 + $0x10] sm:$0xff]
      %v5482 = vld [vmem:[%s16 + $0x18] sm:$0xff]
      %v5483 = vld [vmem:[%s16 + $0x20] sm:$0xff]
      %v5484 = vld [vmem:[%s16 + $0x28] sm:$0xff]
      %v5485 = vld [vmem:[%s16 + $0x30] sm:$0xff]
      %v5486 = vld [vmem:[%s16 + $0x38] sm:$0xff]
      %v5487 = vld [vmem:[%s16 + $0x40] sm:$0xff]
      %v5488 = vld [vmem:[%s16 + $0x48] sm:$0xff]
      %v5489 = vld [vmem:[%s16 + $0x50] sm:$0xff]
      %v5490 = vld [vmem:[%s16 + $0x58] sm:$0xff]
      %v5491 = vld [vmem:[%s16 + $0x60] sm:$0xff]
      %v5492 = vld [vmem:[%s16 + $0x68] sm:$0xff]
      %v5493 = vld [vmem:[%s16 + $0x70] sm:$0xff]
      %v5494 = vld [vmem:[%s16 + $0x78] sm:$0xff]
      %v5495 = vld [vmem:[%s16 + $0x80] sm:$0xff]
      %v5496 = vld [vmem:[%s16 + $0x88] sm:$0xff]
      %v5497 = vld [vmem:[%s16 + $0x90] sm:$0xff]
      %v5498 = vld [vmem:[%s16 + $0x98] sm:$0xff]
      %v5499 = vld [vmem:[%s16 + $0xa0] sm:$0xff]
      %v5500 = vld [vmem:[%s16 + $0xa8] sm:$0xff]
      %v5501 = vld [vmem:[%s16 + $0xb0] sm:$0xff]
      %v5502 = vld [vmem:[%s16 + $0xb8] sm:$0xff]
      %v5503 = vld [vmem:[%s16 + $0xc0] sm:$0xff]
      %v5504 = vld [vmem:[%s16 + $0xc8] sm:$0xff]
      %v5505 = vld [vmem:[%s16 + $0xd0] sm:$0xff]
      %v5506 = vld [vmem:[%s16 + $0xd8] sm:$0xff]
      %v5507 = vld [vmem:[%s16 + $0xe0] sm:$0xff]
      %v5508 = vld [vmem:[%s16 + $0xe8] sm:$0xff]
      %v5509 = vld [vmem:[%s16 + $0xf0] sm:$0xff]
      %v5510 = vld [vmem:[%s16 + $0xf8] sm:$0xff]
      %s5511 = scalar_lea.vmem %s16, 256
      %v5512 = vld [vmem:[%s5511] sm:$0xff]
      %v5513 = vld [vmem:[%s5511 + $0x8] sm:$0xff]
      %v5514 = vld [vmem:[%s5511 + $0x10] sm:$0xff]
      %v5515 = vld [vmem:[%s5511 + $0x18] sm:$0xff]
      %v5516 = vld [vmem:[%s5511 + $0x20] sm:$0xff]
      %v5517 = vld [vmem:[%s5511 + $0x28] sm:$0xff]
      %v5518 = vld [vmem:[%s5511 + $0x30] sm:$0xff]
      %v5519 = vld [vmem:[%s5511 + $0x38] sm:$0xff]
      %v5520 = vld [vmem:[%s5511 + $0x40] sm:$0xff]
      %v5521 = vld [vmem:[%s5511 + $0x48] sm:$0xff]
      %v5522 = vld [vmem:[%s5511 + $0x50] sm:$0xff]
      %v5523 = vld [vmem:[%s5511 + $0x58] sm:$0xff]
      %v5524 = vld [vmem:[%s5511 + $0x60] sm:$0xff]
      %v5525 = vld [vmem:[%s5511 + $0x68] sm:$0xff]
      %v5526 = vld [vmem:[%s5511 + $0x70] sm:$0xff]
      %v5527 = vld [vmem:[%s5511 + $0x78] sm:$0xff]
      %v5528 = vld [vmem:[%s5511 + $0x80] sm:$0xff]
      %v5529 = vld [vmem:[%s5511 + $0x88] sm:$0xff]
      %v5530 = vld [vmem:[%s5511 + $0x90] sm:$0xff]
      %v5531 = vld [vmem:[%s5511 + $0x98] sm:$0xff]
      %v5532 = vld [vmem:[%s5511 + $0xa0] sm:$0xff]
      %v5533 = vld [vmem:[%s5511 + $0xa8] sm:$0xff]
      %v5534 = vld [vmem:[%s5511 + $0xb0] sm:$0xff]
      %v5535 = vld [vmem:[%s5511 + $0xb8] sm:$0xff]
      %v5536 = vld [vmem:[%s5511 + $0xc0] sm:$0xff]
      %v5537 = vld [vmem:[%s5511 + $0xc8] sm:$0xff]
      %v5538 = vld [vmem:[%s5511 + $0xd0] sm:$0xff]
      %v5539 = vld [vmem:[%s5511 + $0xd8] sm:$0xff]
      %v5540 = vld [vmem:[%s5511 + $0xe0] sm:$0xff]
      %v5541 = vld [vmem:[%s5511 + $0xe8] sm:$0xff]
      %v5542 = vld [vmem:[%s5511 + $0xf0] sm:$0xff]
      %v5543 = vld [vmem:[%s5511 + $0xf8] sm:$0xff]
      %5544 = vmatprep.subr.mxu0 %v5513
      %5545 = vmatpush1.msra.mxu0 %v5512
      %5546 = vmatprep.subr.mxu0 %v5515
      %5547 = vmatpush1.msra.mxu0 %v5514
      %5548 = vmatprep.subr.mxu0 %v5517
      %5549 = vmatpush1.msra.mxu0 %v5516
      %5550 = vmatprep.subr.mxu0 %v5519
      %5551 = vmatpush1.msra.mxu0 %v5518
      %5552 = vmatprep.subr.mxu0 %v5521
      %5553 = vmatpush1.msra.mxu0 %v5520
      %5554 = vmatprep.subr.mxu0 %v5523
      %5555 = vmatpush1.msra.mxu0 %v5522
      %5556 = vmatprep.subr.mxu0 %v5525
      %5557 = vmatpush1.msra.mxu0 %v5524
      %5558 = vmatprep.subr.mxu0 %v5527
      %5559 = vmatpush1.msra.mxu0 %v5526
      %5560 = vmatprep.subr.mxu0 %v5529
      %5561 = vmatpush1.msra.mxu0 %v5528
      %5562 = vmatprep.subr.mxu0 %v5531
      %5563 = vmatpush1.msra.mxu0 %v5530
      %5564 = vmatprep.subr.mxu0 %v5533
      %5565 = vmatpush1.msra.mxu0 %v5532
      %5566 = vmatprep.subr.mxu0 %v5535
      %5567 = vmatpush1.msra.mxu0 %v5534
      %5568 = vmatprep.subr.mxu0 %v5537
      %5569 = vmatpush1.msra.mxu0 %v5536
      %5570 = vmatprep.subr.mxu0 %v5539
      %5571 = vmatpush1.msra.mxu0 %v5538
      %5572 = vmatprep.subr.mxu0 %v5541
      %5573 = vmatpush1.msra.mxu0 %v5540
      %5574 = vmatprep.subr.mxu0 %v5543
      %5575 = vmatpush1.msra.mxu0 %v5542
      %5576 = vmatprep.subr.mxu0 0.0
      %5577 = vmatpush1.msra.mxu0 0.0
      %5578 = vmatprep.subr.mxu0 0.0
      %5579 = vmatpush1.msra.mxu0 0.0
      %5580 = vmatprep.subr.mxu0 0.0
      %5581 = vmatpush1.msra.mxu0 0.0
      %5582 = vmatprep.subr.mxu0 0.0
      %5583 = vmatpush1.msra.mxu0 0.0
      %5584 = vmatprep.subr.mxu0 0.0
      %5585 = vmatpush1.msra.mxu0 0.0
      %5586 = vmatprep.subr.mxu0 0.0
      %5587 = vmatpush1.msra.mxu0 0.0
      %5588 = vmatprep.subr.mxu0 0.0
      %5589 = vmatpush1.msra.mxu0 0.0
      %5590 = vmatprep.subr.mxu0 0.0
      %5591 = vmatpush1.msra.mxu0 0.0
      %5592 = vmatprep.subr.mxu0 0.0
      %5593 = vmatpush1.msra.mxu0 0.0
      %5594 = vmatprep.subr.mxu0 0.0
      %5595 = vmatpush1.msra.mxu0 0.0
      %5596 = vmatprep.subr.mxu0 0.0
      %5597 = vmatpush1.msra.mxu0 0.0
      %5598 = vmatprep.subr.mxu0 0.0
      %5599 = vmatpush1.msra.mxu0 0.0
      %5600 = vmatprep.subr.mxu0 0.0
      %5601 = vmatpush1.msra.mxu0 0.0
      %5602 = vmatprep.subr.mxu0 0.0
      %5603 = vmatpush1.msra.mxu0 0.0
      %5604 = vmatprep.subr.mxu0 0.0
      %5605 = vmatpush1.msra.mxu0 0.0
      %5606 = vmatprep.subr.mxu0 0.0
      %5607 = vmatpush1.msra.mxu0 0.0
      %5608 = vmatprep.mubr.f32.mxu0 0.0
      %5609 = vmatmul.mubr.f32.gmra.mrb[0].mxu0 %v1068
      %v5610 = vpop.f32.mrb[0].mxu0
      %v5611 = vadd.f32 0.0, %v5610
      %v5612 = vpop.f32.mrb[0].mxu0
      %v5613 = vadd.f32 0.0, %v5612
      %5614 = vmatprep.mubr.f32.mxu0 0.0
      %5615 = vmatmul.mubr.f32.gmra.mrb[0].mxu0 %v1069
      %v5616 = vpop.f32.mrb[0].mxu0
      %v5617 = vadd.f32 0.0, %v5616
      %v5618 = vpop.f32.mrb[0].mxu0
      %v5619 = vadd.f32 0.0, %v5618
      %5620 = vdwg.mxu0
      %5621 = vmatprep.subr.mxu0 %v5480
      %5622 = vmatpush1.msra.mxu0 %v5479
      %5623 = vmatprep.subr.mxu0 %v5482
      %5624 = vmatpush1.msra.mxu0 %v5481
      %5625 = vmatprep.subr.mxu0 %v5484
      %5626 = vmatpush1.msra.mxu0 %v5483
      %5627 = vmatprep.subr.mxu0 %v5486
      %5628 = vmatpush1.msra.mxu0 %v5485
      %5629 = vmatprep.subr.mxu0 %v5488
      %5630 = vmatpush1.msra.mxu0 %v5487
      %5631 = vmatprep.subr.mxu0 %v5490
      %5632 = vmatpush1.msra.mxu0 %v5489
      %5633 = vmatprep.subr.mxu0 %v5492
      %5634 = vmatpush1.msra.mxu0 %v5491
      %5635 = vmatprep.subr.mxu0 %v5494
      %5636 = vmatpush1.msra.mxu0 %v5493
      %5637 = vmatprep.subr.mxu0 %v5496
      %5638 = vmatpush1.msra.mxu0 %v5495
      %5639 = vmatprep.subr.mxu0 %v5498
      %5640 = vmatpush1.msra.mxu0 %v5497
      %5641 = vmatprep.subr.mxu0 %v5500
      %5642 = vmatpush1.msra.mxu0 %v5499
      %5643 = vmatprep.subr.mxu0 %v5502
      %5644 = vmatpush1.msra.mxu0 %v5501
      %5645 = vmatprep.subr.mxu0 %v5504
      %5646 = vmatpush1.msra.mxu0 %v5503
      %5647 = vmatprep.subr.mxu0 %v5506
      %5648 = vmatpush1.msra.mxu0 %v5505
      %5649 = vmatprep.subr.mxu0 %v5508
      %5650 = vmatpush1.msra.mxu0 %v5507
      %5651 = vmatprep.subr.mxu0 %v5510
      %5652 = vmatpush1.msra.mxu0 %v5509
      %5653 = vmatprep.subr.mxu0 0.0
      %5654 = vmatpush1.msra.mxu0 0.0
      %5655 = vmatprep.subr.mxu0 0.0
      %5656 = vmatpush1.msra.mxu0 0.0
      %5657 = vmatprep.subr.mxu0 0.0
      %5658 = vmatpush1.msra.mxu0 0.0
      %5659 = vmatprep.subr.mxu0 0.0
      %5660 = vmatpush1.msra.mxu0 0.0
      %5661 = vmatprep.subr.mxu0 0.0
      %5662 = vmatpush1.msra.mxu0 0.0
      %5663 = vmatprep.subr.mxu0 0.0
      %5664 = vmatpush1.msra.mxu0 0.0
      %5665 = vmatprep.subr.mxu0 0.0
      %5666 = vmatpush1.msra.mxu0 0.0
      %5667 = vmatprep.subr.mxu0 0.0
      %5668 = vmatpush1.msra.mxu0 0.0
      %5669 = vmatprep.subr.mxu0 0.0
      %5670 = vmatpush1.msra.mxu0 0.0
      %5671 = vmatprep.subr.mxu0 0.0
      %5672 = vmatpush1.msra.mxu0 0.0
      %5673 = vmatprep.subr.mxu0 0.0
      %5674 = vmatpush1.msra.mxu0 0.0
      %5675 = vmatprep.subr.mxu0 0.0
      %5676 = vmatpush1.msra.mxu0 0.0
      %5677 = vmatprep.subr.mxu0 0.0
      %5678 = vmatpush1.msra.mxu0 0.0
      %5679 = vmatprep.subr.mxu0 0.0
      %5680 = vmatpush1.msra.mxu0 0.0
      %5681 = vmatprep.subr.mxu0 0.0
      %5682 = vmatpush1.msra.mxu0 0.0
      %5683 = vmatprep.subr.mxu0 0.0
      %5684 = vmatpush1.msra.mxu0 0.0
      %5685 = vmatprep.mubr.f32.mxu0 0.0
      %5686 = vmatmul.mubr.f32.gmra.mrb[0].mxu0 %v5471
      %v5687 = vpop.f32.mrb[0].mxu0
      %v5688 = vadd.f32 %v5611, %v5687
      %v5689 = vpop.f32.mrb[0].mxu0
      %v5690 = vadd.f32 %v5613, %v5689
      %5691 = vmatprep.mubr.f32.mxu0 0.0
      %5692 = vmatmul.mubr.f32.gmra.mrb[0].mxu0 %v5476
      %v5693 = vpop.f32.mrb[0].mxu0
      %v5694 = vadd.f32 %v5617, %v5693
      %v5695 = vpop.f32.mrb[0].mxu0
      %v5696 = vadd.f32 %v5619, %v5695
      %5697 = vdwg.mxu0
      %5698 = vmatprep.subr.mxu0 0.0
      %5699 = vmatpush1.msra.mxu0 %v1068
      %5700 = vmatprep.subr.mxu0 0.0
      %5701 = vmatpush1.msra.mxu0 %v1069
      %5702 = vmatprep.subr.mxu0 0.0
      %5703 = vmatpush1.msra.mxu0 0.0
      %5704 = vmatprep.subr.mxu0 0.0
      %5705 = vmatpush1.msra.mxu0 0.0
      %5706 = vmatprep.subr.mxu0 0.0
      %5707 = vmatpush1.msra.mxu0 0.0
      %5708 = vmatprep.subr.mxu0 0.0
      %5709 = vmatpush1.msra.mxu0 0.0
      %5710 = vmatprep.subr.mxu0 0.0
      %5711 = vmatpush1.msra.mxu0 0.0
      %5712 = vmatprep.subr.mxu0 0.0
      %5713 = vmatpush1.msra.mxu0 0.0
      %5714 = vmatprep.subr.mxu0 0.0
      %5715 = vmatpush1.msra.mxu0 0.0
      %5716 = vmatprep.subr.mxu0 0.0
      %5717 = vmatpush1.msra.mxu0 0.0
      %5718 = vmatprep.subr.mxu0 0.0
      %5719 = vmatpush1.msra.mxu0 0.0
      %5720 = vmatprep.subr.mxu0 0.0
      %5721 = vmatpush1.msra.mxu0 0.0
      %5722 = vmatprep.subr.mxu0 0.0
      %5723 = vmatpush1.msra.mxu0 0.0
      %5724 = vmatprep.subr.mxu0 0.0
      %5725 = vmatpush1.msra.mxu0 0.0
      %5726 = vmatprep.subr.mxu0 0.0
      %5727 = vmatpush1.msra.mxu0 0.0
      %5728 = vmatprep.subr.mxu0 0.0
      %5729 = vmatpush1.msra.mxu0 0.0
      %5730 = vmatprep.subr.mxu0 0.0
      %5731 = vmatpush1.msra.mxu0 0.0
      %5732 = vmatprep.subr.mxu0 0.0
      %5733 = vmatpush1.msra.mxu0 0.0
      %5734 = vmatprep.subr.mxu0 0.0
      %5735 = vmatpush1.msra.mxu0 0.0
      %5736 = vmatprep.subr.mxu0 0.0
      %5737 = vmatpush1.msra.mxu0 0.0
      %5738 = vmatprep.subr.mxu0 0.0
      %5739 = vmatpush1.msra.mxu0 0.0
      %5740 = vmatprep.subr.mxu0 0.0
      %5741 = vmatpush1.msra.mxu0 0.0
      %5742 = vmatprep.subr.mxu0 0.0
      %5743 = vmatpush1.msra.mxu0 0.0
      %5744 = vmatprep.subr.mxu0 0.0
      %5745 = vmatpush1.msra.mxu0 0.0
      %5746 = vmatprep.subr.mxu0 0.0
      %5747 = vmatpush1.msra.mxu0 0.0
      %5748 = vmatprep.subr.mxu0 0.0
      %5749 = vmatpush1.msra.mxu0 0.0
      %5750 = vmatprep.subr.mxu0 0.0
      %5751 = vmatpush1.msra.mxu0 0.0
      %5752 = vmatprep.subr.mxu0 0.0
      %5753 = vmatpush1.msra.mxu0 0.0
      %5754 = vmatprep.subr.mxu0 0.0
      %5755 = vmatpush1.msra.mxu0 0.0
      %5756 = vmatprep.subr.mxu0 0.0
      %5757 = vmatpush1.msra.mxu0 0.0
      %5758 = vmatprep.subr.mxu0 0.0
      %5759 = vmatpush1.msra.mxu0 0.0
      %5760 = vmatprep.subr.mxu0 0.0
      %5761 = vmatpush1.msra.mxu0 0.0
      %5762 = vmatprep.mubr.f32.mxu0 0.0
      %5763 = vmatmul.mubr.f32.gmra.mrb[0].mxu0 %v886
      %v5764 = vpop.f32.mrb[0].mxu0
      %v5765 = vadd.f32 0.0, %v5764
      %v5766 = vpop.f32.mrb[0].mxu0
      %5767 = vmatprep.mubr.f32.mxu0 0.0
      %5768 = vmatmul.mubr.f32.gmra.mrb[0].mxu0 %v889
      %v5769 = vpop.f32.mrb[0].mxu0
      %v5770 = vadd.f32 0.0, %v5769
      %v5771 = vpop.f32.mrb[0].mxu0
      %5772 = vdwg.mxu0
      %s5773 = scalar_lea.vmem %s16, 512
      %v5774 = vld [vmem:[%s5773] sm:$0xff]
      %v5775 = vld [vmem:[%s5773 + $0x8] sm:$0xff]
      %v5776 = vld [vmem:[%s5773 + $0x10] sm:$0xff]
      %v5777 = vld [vmem:[%s5773 + $0x18] sm:$0xff]
      %v5778 = vld [vmem:[%s5773 + $0x20] sm:$0xff]
      %v5779 = vld [vmem:[%s5773 + $0x28] sm:$0xff]
      %v5780 = vld [vmem:[%s5773 + $0x30] sm:$0xff]
      %v5781 = vld [vmem:[%s5773 + $0x38] sm:$0xff]
      %v5782 = vld [vmem:[%s5773 + $0x40] sm:$0xff]
      %v5783 = vld [vmem:[%s5773 + $0x48] sm:$0xff]
      %v5784 = vld [vmem:[%s5773 + $0x50] sm:$0xff]
      %v5785 = vld [vmem:[%s5773 + $0x58] sm:$0xff]
      %v5786 = vld [vmem:[%s5773 + $0x60] sm:$0xff]
      %v5787 = vld [vmem:[%s5773 + $0x68] sm:$0xff]
      %v5788 = vld [vmem:[%s5773 + $0x70] sm:$0xff]
      %v5789 = vld [vmem:[%s5773 + $0x78] sm:$0xff]
      %v5790 = vld [vmem:[%s5773 + $0x80] sm:$0xff]
      %v5791 = vld [vmem:[%s5773 + $0x88] sm:$0xff]
      %v5792 = vld [vmem:[%s5773 + $0x90] sm:$0xff]
      %v5793 = vld [vmem:[%s5773 + $0x98] sm:$0xff]
      %v5794 = vld [vmem:[%s5773 + $0xa0] sm:$0xff]
      %v5795 = vld [vmem:[%s5773 + $0xa8] sm:$0xff]
      %v5796 = vld [vmem:[%s5773 + $0xb0] sm:$0xff]
      %v5797 = vld [vmem:[%s5773 + $0xb8] sm:$0xff]
      %v5798 = vld [vmem:[%s5773 + $0xc0] sm:$0xff]
      %v5799 = vld [vmem:[%s5773 + $0xc8] sm:$0xff]
      %v5800 = vld [vmem:[%s5773 + $0xd0] sm:$0xff]
      %v5801 = vld [vmem:[%s5773 + $0xd8] sm:$0xff]
      %v5802 = vld [vmem:[%s5773 + $0xe0] sm:$0xff]
      %v5803 = vld [vmem:[%s5773 + $0xe8] sm:$0xff]
      %v5804 = vld [vmem:[%s5773 + $0xf0] sm:$0xff]
      %v5805 = vld [vmem:[%s5773 + $0xf8] sm:$0xff]
      %5806 = vmatprep.subr.mxu0 %v5775
      %5807 = vmatpush1.msra.mxu0 %v5774
      %5808 = vmatprep.subr.mxu0 %v5777
      %5809 = vmatpush1.msra.mxu0 %v5776
      %5810 = vmatprep.subr.mxu0 %v5779
      %5811 = vmatpush1.msra.mxu0 %v5778
      %5812 = vmatprep.subr.mxu0 %v5781
      %5813 = vmatpush1.msra.mxu0 %v5780
      %5814 = vmatprep.subr.mxu0 %v5783
      %5815 = vmatpush1.msra.mxu0 %v5782
      %5816 = vmatprep.subr.mxu0 %v5785
      %5817 = vmatpush1.msra.mxu0 %v5784
      %5818 = vmatprep.subr.mxu0 %v5787
      %5819 = vmatpush1.msra.mxu0 %v5786
      %5820 = vmatprep.subr.mxu0 %v5789
      %5821 = vmatpush1.msra.mxu0 %v5788
      %5822 = vmatprep.subr.mxu0 %v5791
      %5823 = vmatpush1.msra.mxu0 %v5790
      %5824 = vmatprep.subr.mxu0 %v5793
      %5825 = vmatpush1.msra.mxu0 %v5792
      %5826 = vmatprep.subr.mxu0 %v5795
      %5827 = vmatpush1.msra.mxu0 %v5794
      %5828 = vmatprep.subr.mxu0 %v5797
      %5829 = vmatpush1.msra.mxu0 %v5796
      %5830 = vmatprep.subr.mxu0 %v5799
      %5831 = vmatpush1.msra.mxu0 %v5798
      %5832 = vmatprep.subr.mxu0 %v5801
      %5833 = vmatpush1.msra.mxu0 %v5800
      %5834 = vmatprep.subr.mxu0 %v5803
      %5835 = vmatpush1.msra.mxu0 %v5802
      %5836 = vmatprep.subr.mxu0 %v5805
      %5837 = vmatpush1.msra.mxu0 %v5804
      %5838 = vmatprep.subr.mxu0 0.0
      %5839 = vmatpush1.msra.mxu0 0.0
      %5840 = vmatprep.subr.mxu0 0.0
      %5841 = vmatpush1.msra.mxu0 0.0
      %5842 = vmatprep.subr.mxu0 0.0
      %5843 = vmatpush1.msra.mxu0 0.0
      %5844 = vmatprep.subr.mxu0 0.0
      %5845 = vmatpush1.msra.mxu0 0.0
      %5846 = vmatprep.subr.mxu0 0.0
      %5847 = vmatpush1.msra.mxu0 0.0
      %5848 = vmatprep.subr.mxu0 0.0
      %5849 = vmatpush1.msra.mxu0 0.0
      %5850 = vmatprep.subr.mxu0 0.0
      %5851 = vmatpush1.msra.mxu0 0.0
      %5852 = vmatprep.subr.mxu0 0.0
      %5853 = vmatpush1.msra.mxu0 0.0
      %5854 = vmatprep.subr.mxu0 0.0
      %5855 = vmatpush1.msra.mxu0 0.0
      %5856 = vmatprep.subr.mxu0 0.0
      %5857 = vmatpush1.msra.mxu0 0.0
      %5858 = vmatprep.subr.mxu0 0.0
      %5859 = vmatpush1.msra.mxu0 0.0
      %5860 = vmatprep.subr.mxu0 0.0
      %5861 = vmatpush1.msra.mxu0 0.0
      %5862 = vmatprep.subr.mxu0 0.0
      %5863 = vmatpush1.msra.mxu0 0.0
      %5864 = vmatprep.subr.mxu0 0.0
      %5865 = vmatpush1.msra.mxu0 0.0
      %5866 = vmatprep.subr.mxu0 0.0
      %5867 = vmatpush1.msra.mxu0 0.0
      %5868 = vmatprep.subr.mxu0 0.0
      %5869 = vmatpush1.msra.mxu0 0.0
      %5870 = vmatprep.mubr.f32.mxu0 0.0
      %5871 = vmatmul.mubr.f32.gmra.mrb[0].mxu0 %v5765
      %v5872 = vpop.f32.mrb[0].mxu0
      %v5873 = vadd.f32 0.0, %v5872
      %v5874 = vpop.f32.mrb[0].mxu0
      %v5875 = vadd.f32 0.0, %v5874
      %5876 = vmatprep.mubr.f32.mxu0 0.0
      %5877 = vmatmul.mubr.f32.gmra.mrb[0].mxu0 %v5770
      %v5878 = vpop.f32.mrb[0].mxu0
      %v5879 = vadd.f32 0.0, %v5878
      %v5880 = vpop.f32.mrb[0].mxu0
      %v5881 = vadd.f32 0.0, %v5880
      %5882 = vdwg.mxu0
      %v5883 = vadd.f32 %v5688, %v5873
      %v5884 = vadd.f32 %v5690, %v5875
      %v5885 = vadd.f32 %v5694, %v5879
      %v5886 = vadd.f32 %v5696, %v5881
      %v5887 = vadd.f32 %v5400, %v5883
      %v5888 = vadd.f32 %v5401, %v5884
      %v5889 = vadd.f32 %v5402, %v5885
      %v5890 = vadd.f32 %v5403, %v5886
      %5891 = vst [vmem:[%s575] sm:$0xff] %v5887
      %vm5892 = vcmask 523264
      %5893 = vst.msk [vmem:[%s575 + $0x8] sm:$0xff] %vm5892, %v5888
      %5894 = vst [vmem:[%s575 + $0x10] sm:$0xff] %v5889
      %5895 = vst.msk [vmem:[%s575 + $0x18] sm:$0xff] %vm5892, %v5890
      %p5896 = scmp.lt.s32.totalorder %s29, 1
      %s5897 = scalar_select %p5896, %s29, 1
      %s5898 = smul.addr %s5897, 4
      %s5899 = smul.addr %s5898, 8
      %s5900 = scalar_lea.vmem %s18, %s5899
      // Predicated region
      $region93: #{_lambda_.1} parent=91 // pred_check
        %p5901 = pneg %p430
      $region94: #{_lambda_.1} parent=91 // pred_check_branch
        %5903 = sbr.rel (%p5901) target = $region96
      $region95: #{_lambda_.1} parent=91 // pred_region
        _
      $region96: #{_lambda_.1} parent=91 // pred_fallthru
        _
    $region92: #{_lambda_.1} parent=5 // pred_fallthru
      _
    %p5904 = scmp.le.s32.totalorder 2, %s24
    // Predicated region
    $region97: #{_lambda_.1} parent=5 // pred_check
      %p5905 = pneg %p5904
    $region98: #{_lambda_.1} parent=5 // pred_check_branch
      %5907 = sbr.rel (%p5905) target = $region100
    $region99: #{_lambda_.1} parent=5 // pred_region
      %s5908 = ssub.s32 %s24, 2
      // Predicated region
      $region101: #{_lambda_.1} parent=99 // pred_check
        %p5909 = pneg %p436
      $region102: #{_lambda_.1} parent=99 // pred_check_branch
        %5911 = sbr.rel (%p5909) target = $region104
      $region103: #{_lambda_.1} parent=99 // pred_region
        %p5912 = scmp.lt.s32.totalorder %s30, 1
        %s5913 = scalar_select %p5912, %s30, 1
        %s5914 = smul.addr %s5913, 4
        %s5915 = smul.addr %s5914, 8
        %s5916 = scalar_lea.vmem %s18, %s5915
      $region104: #{_lambda_.1} parent=99 // pred_fallthru
        _
    $region100: #{_lambda_.1} parent=5 // pred_fallthru
      _
  $region6: #{_lambda_.1} parent=0 // loop_footer
    %s28 = sadd.s32 1, %s24
  $region7: #{_lambda_.1} parent=0 // loop_footer_branch
    %23 = sbr.rel target = $region3
  $region8: #{_lambda_.1} parent=0 // loop_exit
    _

</llo_original>
